<compile_context>
chip_gen: v6e
topology: v6e:2x2x1
jax: 0.10.0
libtpu: 0.0.40
codegen_flags: <defaults>
</compile_context>

<pallas_src>
import numpy as np
import jax
import jax.numpy as jnp
from jax import lax
from jax.experimental import pallas as pl
from jax.experimental.pallas import tpu as pltpu

EDGES = [(0, 1), (1, 20), (20, 2), (2, 3), (20, 4), (4, 5), (5, 6), (6, 7),
         (7, 21), (7, 22), (20, 8), (8, 9), (9, 10), (10, 11), (11, 23),
         (11, 24), (0, 16), (0, 12), (12, 13), (13, 14), (14, 15), (16, 17),
         (17, 18), (18, 19)]
SRC = [e[0] for e in EDGES]
DST = [e[1] for e in EDGES]
E = len(EDGES)                       # 24 edges

N_FFT = 256                          # STFT window size / number of (full) bins
HOP = 16                             # STFT hop
TC = 128                             # stage-1 timestep chunk (one lane tile)
PI = float(np.pi)
SQRT_PI = float(np.sqrt(np.pi))
HI = lax.Precision.HIGHEST


def _build_dft_weights(n_fft=N_FFT):
    """Windowed DFT kernels [wcos | wsin], pre-transposed to (n_fft, 2*n_fft)
    and pre-rolled by n_fft//2 along frequency (the final fftshift/torch.roll
    is folded into the matmul columns).  Matches nnAudio STFT('Complex'):
    periodic Hann window, full (two-sided) spectrum, no normalization."""
    n = np.arange(n_fft)
    win = 0.5 - 0.5 * np.cos(2.0 * np.pi * n / n_fft)
    ang = 2.0 * np.pi * np.outer(n, np.arange(n_fft)) / n_fft      # (time n, bin k)
    wcos = np.roll(win[:, None] * np.cos(ang), n_fft // 2, axis=1)
    wsin = np.roll(win[:, None] * np.sin(ang), n_fft // 2, axis=1)
    return jnp.asarray(np.concatenate([wcos, wsin], axis=1), dtype=jnp.float32)


def _build_reversal(pad):
    """Anti-diagonal permutation: (v @ rev) reverses the last `pad` lanes."""
    return jnp.asarray(np.eye(pad, dtype=np.float32)[:, ::-1])


def _make_fused_kernel(T, nf, nf_pad, n_fft, hop, tc):
    n_chunks = T // tc
    pad = n_fft // 2

    def kernel(radar_ref, wl_ref, g_ref, w_ref, rev_ref, out_ref, sig_ref, fr_ref):
        # ---------------- hoisted scalars (one SMEM read per grid step) -----------
        r0 = radar_ref[0]
        r1 = radar_ref[1]
        r2 = radar_ref[2]
        inv_wl = (4.0 * PI) / wl_ref[0]              # single wavelength divide

        # ---------------- stage 1: radar-return synthesis, TC-wide chunks ---------
        def chunk(ci, carry):
            t0 = pl.multiple_of(ci * tc, tc)
            ts = pl.ds(t0, tc)
            # gathered block: (1, 3, G, 2E, T); src joints [0:E], dst joints [E:2E]
            sx = g_ref[0, 0, :, 0:E, ts]
            dx = g_ref[0, 0, :, E:2 * E, ts]
            sy = g_ref[0, 1, :, 0:E, ts]
            dy = g_ref[0, 1, :, E:2 * E, ts]
            sz = g_ref[0, 2, :, 0:E, ts]
            dz = g_ref[0, 2, :, E:2 * E, ts]

            b0 = dx - sx
            b1 = dy - sy
            b2 = dz - sz
            a0 = r0 - (sx + dx) * 0.5
            a1 = r1 - (sy + dy) * 0.5
            a2 = r2 - (sz + dz) * 0.5
            d0 = sx - r0
            d1 = sy - r1
            d2 = sz - r2
            dist = jnp.sqrt(d0 * d0 + d1 * d1 + d2 * d2)

            dot_ab = a0 * b0 + a1 * b1 + a2 * b2
            na2 = a0 * a0 + a1 * a1 + a2 * a2
            nb2 = b0 * b0 + b1 * b1 + b2 * b2
            norm_b = jnp.sqrt(nb2)                   # kept: mean edge length needs it

            # u = cos(theta) appears only squared -> skip norm_a sqrt and the divide.
            u2 = (dot_ab * dot_ab) / (na2 * nb2 + 1e-12)
            c_mean = jnp.mean(norm_b, axis=1, keepdims=True)     # (G, 1, tc)
            c = c_mean * c_mean
            # sin^2(t)cos^2(p) + sin^2(t)sin^2(p) + c*cos^2(t) == (1 - u^2) + c*u^2
            den = (1.0 - u2) + c * u2                # >= 0
            # sqrt(pi * c / den^2) == sqrt(pi) * c_mean / den   (c_mean, den >= 0)
            amp = c_mean * pl.reciprocal(den, approx=True)

            phase = dist * inv_wl
            re = SQRT_PI * jnp.sum(amp * jnp.cos(phase), axis=(0, 1), keepdims=True)[0]
            im = SQRT_PI * jnp.sum(amp * jnp.sin(phase), axis=(0, 1), keepdims=True)[0]
            sig_ref[:, ts] = jnp.concatenate([re, im], axis=0)   # (2, tc) aligned write
            return carry

        lax.fori_loop(0, n_chunks, chunk, 0, unroll=True)

        # ---------------- stage 2: reflect-pad + frame + DFT + log-magnitude ------
        s = sig_ref[...]                                         # (2, T) complex signal

        # reflect pad: one merged anti-diagonal matmul reverses both boundary slices
        # exactly (precision=HIGHEST -> pure data movement, no bf16 rounding).
        ends = jnp.concatenate([s[:, 1:pad + 1], s[:, T - pad - 1:T - 1]], axis=0)
        refl = jnp.dot(ends, rev_ref[...], precision=HI,
                       preferred_element_type=jnp.float32)       # rows 0:2 left, 2:4 right
        padded = jnp.concatenate([refl[0:2], s, refl[2:4]], axis=1)  # (2, T + n_fft)

        # framing: share one lane shift per frame between real/imag rows; pack 8
        # frames per (8, n_fft) unmasked store.  Rows >= nf duplicate the last
        # frame and are discarded after the matmul (no zero-init needed).
        for g0 in range(0, nf_pad, 8):
            rows_re, rows_im = [], []
            for r in range(8):
                off = min(g0 + r, nf - 1) * hop
                chk = padded[:, off:off + n_fft]                 # (2, n_fft)
                rows_re.append(chk[0:1])
                rows_im.append(chk[1:2])
            fr_ref[g0:g0 + 8, :] = jnp.concatenate(rows_re, axis=0)
            fr_ref[nf_pad + g0:nf_pad + g0 + 8, :] = jnp.concatenate(rows_im, axis=0)

        # single merged windowed-DFT matmul: (2*nf_pad, n_fft) @ (n_fft, 2*n_fft)
        conv = jnp.dot(fr_ref[...], w_ref[...], precision=HI,
                       preferred_element_type=jnp.float32)
        rc = conv[0:nf_pad, 0:n_fft]                   # conv(real, wcos)
        rs = conv[0:nf_pad, n_fft:2 * n_fft]           # conv(real, wsin)
        ic = conv[nf_pad:2 * nf_pad, 0:n_fft]          # conv(imag, wcos)
        is_ = conv[nf_pad:2 * nf_pad, n_fft:2 * n_fft]
        re_s = rc + is_                                # stft(sig).real
        im_s = ic - rs                                 # stft(sig).imag
        out_ref[0] = jnp.log(jnp.sqrt(re_s * re_s + im_s * im_s) + 1e-6)

    return kernel


def virtual_radar_forward(x, radar_location, wavelength, n_fft=N_FFT, hop=HOP):
    """x: (B, 3, T, V, G) float32 -> (B, n_fft, T//hop + 1) float32."""
    B, C, T, V, G = x.shape
    assert C == 3, "x must carry (x, y, z) coordinates in dim 1"
    assert T % TC == 0 and T % hop == 0 and T >= n_fft

    rl = jnp.reshape(radar_location, (3,)).astype(jnp.float32)
    wl = jnp.reshape(wavelength, (1,)).astype(jnp.float32)

    # One combined edge gather (src + dst) and layout to (B, 3, G, 2E, T):
    # timesteps on lanes, edges on sublanes.
    # TODO(synk): this gather + relayout stays as XLA glue; at larger T it can
    # rival the kernel's wall time — keep the skeleton in (B,3,G,V,T) upstream
    # or fold the edge gather into the kernel (scalar-prefetched indices + DMA).
    idx = jnp.asarray(SRC + DST, dtype=jnp.int32)
    g = jnp.transpose(x[:, :, :, idx, :], (0, 1, 4, 3, 2))

    w = _build_dft_weights(n_fft)                          # (n_fft, 2*n_fft)
    rev = _build_reversal(n_fft // 2)                      # (128, 128) anti-diagonal
    nf = T // hop + 1                                      # frames (center padding)
    nf_pad = ((nf + 7) // 8) * 8                           # sublane-aligned rows

    kernel = _make_fused_kernel(T, nf, nf_pad, n_fft, hop, TC)
    smem = pl.BlockSpec(memory_space=pltpu.MemorySpace.SMEM)
    # NOTE: w/rev have constant index_maps so they are fetched once; single-
    # buffering them (pl.Buffered(1)) is VMEM hygiene only if shapes scale up.
    # NOTE(v7x): batch is the only "parallel" axis — with B == 1 one TensorCore
    # idles; split the chunk loop across cores with a cross-core combine then.
    out = pl.pallas_call(
        kernel,
        out_shape=jax.ShapeDtypeStruct((B, nf_pad, n_fft), jnp.float32),
        grid=(B,),
        in_specs=[
            smem,                                                      # radar_location (3,)
            smem,                                                      # wavelength (1,)
            pl.BlockSpec((1, 3, G, 2 * E, T), lambda b: (b, 0, 0, 0, 0)),
            pl.BlockSpec((n_fft, 2 * n_fft), lambda b: (0, 0)),        # DFT weights
            pl.BlockSpec((n_fft // 2, n_fft // 2), lambda b: (0, 0)),  # lane-reversal
        ],
        out_specs=pl.BlockSpec((1, nf_pad, n_fft), lambda b: (b, 0, 0)),
        scratch_shapes=[
            pltpu.VMEM((2, T), jnp.float32),                # complex time signal
            pltpu.VMEM((2 * nf_pad, n_fft), jnp.float32),   # stacked STFT frames
        ],
        compiler_params=pltpu.CompilerParams(
            dimension_semantics=("parallel",)),
    )(rl, wl, g, w, rev)

    # fftshift is pre-folded into the weight columns; slice off the padded rows.
    return jnp.transpose(out, (0, 2, 1))[:, :, :nf]         # (B, freq, frames)


if __name__ == "__main__":
    key = jax.random.PRNGKey(0)
    B, C, T, V, G = 2, 3, 256, 25, 1          # V=25 vertices (edges index up to 24)
    x = jax.random.normal(key, (B, C, T, V, G), dtype=jnp.float32)

    # Deterministic "parameters" matching the module defaults.
    radar_location = jnp.array([0.0, 0.0, 0.0], dtype=jnp.float32)
    wavelength = jnp.array([0.001], dtype=jnp.float32)

    fwd = jax.jit(virtual_radar_forward)
    out = fwd(x, radar_location, wavelength)
    jax.block_until_ready(out)
    assert out.shape == (B, N_FFT, T // HOP + 1), out.shape
    print("KERNEL_OK")
</pallas_src>

<mosaic_0001>
module attributes {stable_mosaic.version = 11 : i64} {
  func.func @kernel(%arg0: i32, %arg1: memref<3xf32, #tpu.memory_space<smem>>, %arg2: memref<1xf32, #tpu.memory_space<smem>>, %arg3: memref<1x3x1x48x256xf32, #tpu.memory_space<vmem>>, %arg4: memref<256x512xf32, #tpu.memory_space<vmem>>, %arg5: memref<128x128xf32, #tpu.memory_space<vmem>>, %arg6: memref<1x24x256xf32, #tpu.memory_space<vmem>>, %arg7: memref<2x256xf32, #tpu.memory_space<vmem>>, %arg8: memref<48x256xf32, #tpu.memory_space<vmem>>) attributes {dimension_semantics = [#tpu.dimension_semantics<parallel>], iteration_bounds = array<i64: 2>, scalar_prefetch = 0 : i64, scratch_operands = 2 : i64, tpu.core_type = #tpu.core_type<tc>, window_params = [{transform_indices = @transform_0, window_bounds = array<i64: 3>}, {transform_indices = @transform_1, window_bounds = array<i64: 1>}, {transform_indices = @transform_2, window_bounds = array<i64: 1, 3, 1, 48, 256>}, {pipeline_mode = #tpu.pipeline_mode<synchronous>, transform_indices = @transform_3, window_bounds = array<i64: 256, 512>}, {pipeline_mode = #tpu.pipeline_mode<synchronous>, transform_indices = @transform_4, window_bounds = array<i64: 128, 128>}, {transform_indices = @transform_5, window_bounds = array<i64: 1, 24, 256>}]} {
    %c0 = arith.constant 0 : index
    %0 = memref.load %arg1[%c0] : memref<3xf32, #tpu.memory_space<smem>>
    %c1 = arith.constant 1 : index
    %1 = memref.load %arg1[%c1] : memref<3xf32, #tpu.memory_space<smem>>
    %c2 = arith.constant 2 : index
    %2 = memref.load %arg1[%c2] : memref<3xf32, #tpu.memory_space<smem>>
    %c0_0 = arith.constant 0 : index
    %3 = memref.load %arg2[%c0_0] : memref<1xf32, #tpu.memory_space<smem>>
    %cst = arith.constant 12.566371 : f32
    %4 = arith.divf %cst, %3 : f32
    %c0_i32 = arith.constant 0 : i32
    %c128_i32 = arith.constant 128 : i32
    %5 = arith.muli %c0_i32, %c128_i32 : i32
    %6 = tpu.assume_multiple %5, 128 : i32
    %c0_1 = arith.constant 0 : index
    %c0_2 = arith.constant 0 : index
    %c0_3 = arith.constant 0 : index
    %c0_4 = arith.constant 0 : index
    %7 = arith.index_cast %6 : i32 to index
    %8 = vector.load %arg3[%c0_1, %c0_2, %c0_3, %c0_4, %7] : memref<1x3x1x48x256xf32, #tpu.memory_space<vmem>>, vector<1x1x1x24x128xf32>
    %9 = vector.shape_cast %8 : vector<1x1x1x24x128xf32> to vector<1x24x128xf32>
    %c0_5 = arith.constant 0 : index
    %c0_6 = arith.constant 0 : index
    %c0_7 = arith.constant 0 : index
    %c24 = arith.constant 24 : index
    %10 = arith.index_cast %6 : i32 to index
    %11 = vector.load %arg3[%c0_5, %c0_6, %c0_7, %c24, %10] : memref<1x3x1x48x256xf32, #tpu.memory_space<vmem>>, vector<1x1x1x24x128xf32>
    %12 = vector.shape_cast %11 : vector<1x1x1x24x128xf32> to vector<1x24x128xf32>
    %c0_8 = arith.constant 0 : index
    %c1_9 = arith.constant 1 : index
    %c0_10 = arith.constant 0 : index
    %c0_11 = arith.constant 0 : index
    %13 = arith.index_cast %6 : i32 to index
    %14 = vector.load %arg3[%c0_8, %c1_9, %c0_10, %c0_11, %13] : memref<1x3x1x48x256xf32, #tpu.memory_space<vmem>>, vector<1x1x1x24x128xf32>
    %15 = vector.shape_cast %14 : vector<1x1x1x24x128xf32> to vector<1x24x128xf32>
    %c0_12 = arith.constant 0 : index
    %c1_13 = arith.constant 1 : index
    %c0_14 = arith.constant 0 : index
    %c24_15 = arith.constant 24 : index
    %16 = arith.index_cast %6 : i32 to index
    %17 = vector.load %arg3[%c0_12, %c1_13, %c0_14, %c24_15, %16] : memref<1x3x1x48x256xf32, #tpu.memory_space<vmem>>, vector<1x1x1x24x128xf32>
    %18 = vector.shape_cast %17 : vector<1x1x1x24x128xf32> to vector<1x24x128xf32>
    %c0_16 = arith.constant 0 : index
    %c2_17 = arith.constant 2 : index
    %c0_18 = arith.constant 0 : index
    %c0_19 = arith.constant 0 : index
    %19 = arith.index_cast %6 : i32 to index
    %20 = vector.load %arg3[%c0_16, %c2_17, %c0_18, %c0_19, %19] : memref<1x3x1x48x256xf32, #tpu.memory_space<vmem>>, vector<1x1x1x24x128xf32>
    %21 = vector.shape_cast %20 : vector<1x1x1x24x128xf32> to vector<1x24x128xf32>
    %c0_20 = arith.constant 0 : index
    %c2_21 = arith.constant 2 : index
    %c0_22 = arith.constant 0 : index
    %c24_23 = arith.constant 24 : index
    %22 = arith.index_cast %6 : i32 to index
    %23 = vector.load %arg3[%c0_20, %c2_21, %c0_22, %c24_23, %22] : memref<1x3x1x48x256xf32, #tpu.memory_space<vmem>>, vector<1x1x1x24x128xf32>
    %24 = vector.shape_cast %23 : vector<1x1x1x24x128xf32> to vector<1x24x128xf32>
    %25 = arith.subf %12, %9 : vector<1x24x128xf32>
    %26 = arith.subf %18, %15 : vector<1x24x128xf32>
    %27 = arith.subf %24, %21 : vector<1x24x128xf32>
    %28 = arith.addf %9, %12 : vector<1x24x128xf32>
    %cst_24 = arith.constant 5.000000e-01 : f32
    %29 = vector.broadcast %cst_24 : f32 to vector<1x24x128xf32>
    %30 = arith.mulf %28, %29 : vector<1x24x128xf32>
    %31 = vector.broadcast %0 : f32 to vector<1x24x128xf32>
    %32 = arith.subf %31, %30 : vector<1x24x128xf32>
    %33 = arith.addf %15, %18 : vector<1x24x128xf32>
    %cst_25 = arith.constant 5.000000e-01 : f32
    %34 = vector.broadcast %cst_25 : f32 to vector<1x24x128xf32>
    %35 = arith.mulf %33, %34 : vector<1x24x128xf32>
    %36 = vector.broadcast %1 : f32 to vector<1x24x128xf32>
    %37 = arith.subf %36, %35 : vector<1x24x128xf32>
    %38 = arith.addf %21, %24 : vector<1x24x128xf32>
    %cst_26 = arith.constant 5.000000e-01 : f32
    %39 = vector.broadcast %cst_26 : f32 to vector<1x24x128xf32>
    %40 = arith.mulf %38, %39 : vector<1x24x128xf32>
    %41 = vector.broadcast %2 : f32 to vector<1x24x128xf32>
    %42 = arith.subf %41, %40 : vector<1x24x128xf32>
    %43 = vector.broadcast %0 : f32 to vector<1x24x128xf32>
    %44 = arith.subf %9, %43 : vector<1x24x128xf32>
    %45 = vector.broadcast %1 : f32 to vector<1x24x128xf32>
    %46 = arith.subf %15, %45 : vector<1x24x128xf32>
    %47 = vector.broadcast %2 : f32 to vector<1x24x128xf32>
    %48 = arith.subf %21, %47 : vector<1x24x128xf32>
    %49 = arith.mulf %44, %44 : vector<1x24x128xf32>
    %50 = arith.mulf %46, %46 : vector<1x24x128xf32>
    %51 = arith.addf %49, %50 : vector<1x24x128xf32>
    %52 = arith.mulf %48, %48 : vector<1x24x128xf32>
    %53 = arith.addf %51, %52 : vector<1x24x128xf32>
    %54 = math.sqrt %53 : vector<1x24x128xf32>
    %55 = arith.mulf %32, %25 : vector<1x24x128xf32>
    %56 = arith.mulf %37, %26 : vector<1x24x128xf32>
    %57 = arith.addf %55, %56 : vector<1x24x128xf32>
    %58 = arith.mulf %42, %27 : vector<1x24x128xf32>
    %59 = arith.addf %57, %58 : vector<1x24x128xf32>
    %60 = arith.mulf %32, %32 : vector<1x24x128xf32>
    %61 = arith.mulf %37, %37 : vector<1x24x128xf32>
    %62 = arith.addf %60, %61 : vector<1x24x128xf32>
    %63 = arith.mulf %42, %42 : vector<1x24x128xf32>
    %64 = arith.addf %62, %63 : vector<1x24x128xf32>
    %65 = arith.mulf %25, %25 : vector<1x24x128xf32>
    %66 = arith.mulf %26, %26 : vector<1x24x128xf32>
    %67 = arith.addf %65, %66 : vector<1x24x128xf32>
    %68 = arith.mulf %27, %27 : vector<1x24x128xf32>
    %69 = arith.addf %67, %68 : vector<1x24x128xf32>
    %70 = math.sqrt %69 : vector<1x24x128xf32>
    %71 = arith.mulf %59, %59 : vector<1x24x128xf32>
    %72 = arith.mulf %64, %69 : vector<1x24x128xf32>
    %cst_27 = arith.constant 9.99999996E-13 : f32
    %73 = vector.broadcast %cst_27 : f32 to vector<1x24x128xf32>
    %74 = arith.addf %72, %73 : vector<1x24x128xf32>
    %75 = arith.divf %71, %74 : vector<1x24x128xf32>
    %cst_28 = arith.constant dense<0.000000e+00> : vector<1x128xf32>
    %76 = vector.multi_reduction <add>, %70, %cst_28 [1] : vector<1x24x128xf32> to vector<1x128xf32>
    %77 = vector.shape_cast %76 : vector<1x128xf32> to vector<1x1x128xf32>
    %cst_29 = arith.constant 2.400000e+01 : f32
    %78 = vector.broadcast %cst_29 : f32 to vector<1x1x128xf32>
    %79 = arith.divf %77, %78 : vector<1x1x128xf32>
    %80 = arith.mulf %79, %79 : vector<1x1x128xf32>
    %cst_30 = arith.constant 1.000000e+00 : f32
    %81 = vector.broadcast %cst_30 : f32 to vector<1x24x128xf32>
    %82 = arith.subf %81, %75 : vector<1x24x128xf32>
    %83 = vector.broadcast %80 : vector<1x1x128xf32> to vector<1x24x128xf32>
    %84 = arith.mulf %83, %75 : vector<1x24x128xf32>
    %85 = arith.addf %82, %84 : vector<1x24x128xf32>
    %86 = tpu.reciprocal %85 {approx = true} : vector<1x24x128xf32> -> vector<1x24x128xf32>
    %87 = vector.broadcast %79 : vector<1x1x128xf32> to vector<1x24x128xf32>
    %88 = arith.mulf %87, %86 : vector<1x24x128xf32>
    %89 = vector.broadcast %4 : f32 to vector<1x24x128xf32>
    %90 = arith.mulf %54, %89 : vector<1x24x128xf32>
    %91 = math.cos %90 : vector<1x24x128xf32>
    %92 = arith.mulf %88, %91 : vector<1x24x128xf32>
    %cst_31 = arith.constant dense<0.000000e+00> : vector<128xf32>
    %93 = vector.multi_reduction <add>, %92, %cst_31 [0, 1] : vector<1x24x128xf32> to vector<128xf32>
    %94 = vector.shape_cast %93 : vector<128xf32> to vector<1x1x128xf32>
    %95 = vector.shape_cast %94 : vector<1x1x128xf32> to vector<1x128xf32>
    %cst_32 = arith.constant 1.7724539 : f32
    %96 = vector.broadcast %cst_32 : f32 to vector<1x128xf32>
    %97 = arith.mulf %96, %95 : vector<1x128xf32>
    %98 = math.sin %90 : vector<1x24x128xf32>
    %99 = arith.mulf %88, %98 : vector<1x24x128xf32>
    %cst_33 = arith.constant dense<0.000000e+00> : vector<128xf32>
    %100 = vector.multi_reduction <add>, %99, %cst_33 [0, 1] : vector<1x24x128xf32> to vector<128xf32>
    %101 = vector.shape_cast %100 : vector<128xf32> to vector<1x1x128xf32>
    %102 = vector.shape_cast %101 : vector<1x1x128xf32> to vector<1x128xf32>
    %cst_34 = arith.constant 1.7724539 : f32
    %103 = vector.broadcast %cst_34 : f32 to vector<1x128xf32>
    %104 = arith.mulf %103, %102 : vector<1x128xf32>
    %105 = tpu.concatenate %97, %104 in 0 : vector<1x128xf32>, vector<1x128xf32> -> vector<2x128xf32>
    %c0_35 = arith.constant 0 : index
    %106 = arith.index_cast %6 : i32 to index
    %107 = vector.load %arg7[%c0_35, %106] : memref<2x256xf32, #tpu.memory_space<vmem>>, vector<2x128xf32>
    tpu.vector_store %arg7[%c0_35, %106], %105 {strides = array<i32>} : memref<2x256xf32, #tpu.memory_space<vmem>>, vector<2x128xf32>,
    %c1_i32 = arith.constant 1 : i32
    %c128_i32_36 = arith.constant 128 : i32
    %108 = arith.muli %c1_i32, %c128_i32_36 : i32
    %109 = tpu.assume_multiple %108, 128 : i32
    %c0_37 = arith.constant 0 : index
    %c0_38 = arith.constant 0 : index
    %c0_39 = arith.constant 0 : index
    %c0_40 = arith.constant 0 : index
    %110 = arith.index_cast %109 : i32 to index
    %111 = vector.load %arg3[%c0_37, %c0_38, %c0_39, %c0_40, %110] : memref<1x3x1x48x256xf32, #tpu.memory_space<vmem>>, vector<1x1x1x24x128xf32>
    %112 = vector.shape_cast %111 : vector<1x1x1x24x128xf32> to vector<1x24x128xf32>
    %c0_41 = arith.constant 0 : index
    %c0_42 = arith.constant 0 : index
    %c0_43 = arith.constant 0 : index
    %c24_44 = arith.constant 24 : index
    %113 = arith.index_cast %109 : i32 to index
    %114 = vector.load %arg3[%c0_41, %c0_42, %c0_43, %c24_44, %113] : memref<1x3x1x48x256xf32, #tpu.memory_space<vmem>>, vector<1x1x1x24x128xf32>
    %115 = vector.shape_cast %114 : vector<1x1x1x24x128xf32> to vector<1x24x128xf32>
    %c0_45 = arith.constant 0 : index
    %c1_46 = arith.constant 1 : index
    %c0_47 = arith.constant 0 : index
    %c0_48 = arith.constant 0 : index
    %116 = arith.index_cast %109 : i32 to index
    %117 = vector.load %arg3[%c0_45, %c1_46, %c0_47, %c0_48, %116] : memref<1x3x1x48x256xf32, #tpu.memory_space<vmem>>, vector<1x1x1x24x128xf32>
    %118 = vector.shape_cast %117 : vector<1x1x1x24x128xf32> to vector<1x24x128xf32>
    %c0_49 = arith.constant 0 : index
    %c1_50 = arith.constant 1 : index
    %c0_51 = arith.constant 0 : index
    %c24_52 = arith.constant 24 : index
    %119 = arith.index_cast %109 : i32 to index
    %120 = vector.load %arg3[%c0_49, %c1_50, %c0_51, %c24_52, %119] : memref<1x3x1x48x256xf32, #tpu.memory_space<vmem>>, vector<1x1x1x24x128xf32>
    %121 = vector.shape_cast %120 : vector<1x1x1x24x128xf32> to vector<1x24x128xf32>
    %c0_53 = arith.constant 0 : index
    %c2_54 = arith.constant 2 : index
    %c0_55 = arith.constant 0 : index
    %c0_56 = arith.constant 0 : index
    %122 = arith.index_cast %109 : i32 to index
    %123 = vector.load %arg3[%c0_53, %c2_54, %c0_55, %c0_56, %122] : memref<1x3x1x48x256xf32, #tpu.memory_space<vmem>>, vector<1x1x1x24x128xf32>
    %124 = vector.shape_cast %123 : vector<1x1x1x24x128xf32> to vector<1x24x128xf32>
    %c0_57 = arith.constant 0 : index
    %c2_58 = arith.constant 2 : index
    %c0_59 = arith.constant 0 : index
    %c24_60 = arith.constant 24 : index
    %125 = arith.index_cast %109 : i32 to index
    %126 = vector.load %arg3[%c0_57, %c2_58, %c0_59, %c24_60, %125] : memref<1x3x1x48x256xf32, #tpu.memory_space<vmem>>, vector<1x1x1x24x128xf32>
    %127 = vector.shape_cast %126 : vector<1x1x1x24x128xf32> to vector<1x24x128xf32>
    %128 = arith.subf %115, %112 : vector<1x24x128xf32>
    %129 = arith.subf %121, %118 : vector<1x24x128xf32>
    %130 = arith.subf %127, %124 : vector<1x24x128xf32>
    %131 = arith.addf %112, %115 : vector<1x24x128xf32>
    %cst_61 = arith.constant 5.000000e-01 : f32
    %132 = vector.broadcast %cst_61 : f32 to vector<1x24x128xf32>
    %133 = arith.mulf %131, %132 : vector<1x24x128xf32>
    %134 = vector.broadcast %0 : f32 to vector<1x24x128xf32>
    %135 = arith.subf %134, %133 : vector<1x24x128xf32>
    %136 = arith.addf %118, %121 : vector<1x24x128xf32>
    %cst_62 = arith.constant 5.000000e-01 : f32
    %137 = vector.broadcast %cst_62 : f32 to vector<1x24x128xf32>
    %138 = arith.mulf %136, %137 : vector<1x24x128xf32>
    %139 = vector.broadcast %1 : f32 to vector<1x24x128xf32>
    %140 = arith.subf %139, %138 : vector<1x24x128xf32>
    %141 = arith.addf %124, %127 : vector<1x24x128xf32>
    %cst_63 = arith.constant 5.000000e-01 : f32
    %142 = vector.broadcast %cst_63 : f32 to vector<1x24x128xf32>
    %143 = arith.mulf %141, %142 : vector<1x24x128xf32>
    %144 = vector.broadcast %2 : f32 to vector<1x24x128xf32>
    %145 = arith.subf %144, %143 : vector<1x24x128xf32>
    %146 = vector.broadcast %0 : f32 to vector<1x24x128xf32>
    %147 = arith.subf %112, %146 : vector<1x24x128xf32>
    %148 = vector.broadcast %1 : f32 to vector<1x24x128xf32>
    %149 = arith.subf %118, %148 : vector<1x24x128xf32>
    %150 = vector.broadcast %2 : f32 to vector<1x24x128xf32>
    %151 = arith.subf %124, %150 : vector<1x24x128xf32>
    %152 = arith.mulf %147, %147 : vector<1x24x128xf32>
    %153 = arith.mulf %149, %149 : vector<1x24x128xf32>
    %154 = arith.addf %152, %153 : vector<1x24x128xf32>
    %155 = arith.mulf %151, %151 : vector<1x24x128xf32>
    %156 = arith.addf %154, %155 : vector<1x24x128xf32>
    %157 = math.sqrt %156 : vector<1x24x128xf32>
    %158 = arith.mulf %135, %128 : vector<1x24x128xf32>
    %159 = arith.mulf %140, %129 : vector<1x24x128xf32>
    %160 = arith.addf %158, %159 : vector<1x24x128xf32>
    %161 = arith.mulf %145, %130 : vector<1x24x128xf32>
    %162 = arith.addf %160, %161 : vector<1x24x128xf32>
    %163 = arith.mulf %135, %135 : vector<1x24x128xf32>
    %164 = arith.mulf %140, %140 : vector<1x24x128xf32>
    %165 = arith.addf %163, %164 : vector<1x24x128xf32>
    %166 = arith.mulf %145, %145 : vector<1x24x128xf32>
    %167 = arith.addf %165, %166 : vector<1x24x128xf32>
    %168 = arith.mulf %128, %128 : vector<1x24x128xf32>
    %169 = arith.mulf %129, %129 : vector<1x24x128xf32>
    %170 = arith.addf %168, %169 : vector<1x24x128xf32>
    %171 = arith.mulf %130, %130 : vector<1x24x128xf32>
    %172 = arith.addf %170, %171 : vector<1x24x128xf32>
    %173 = math.sqrt %172 : vector<1x24x128xf32>
    %174 = arith.mulf %162, %162 : vector<1x24x128xf32>
    %175 = arith.mulf %167, %172 : vector<1x24x128xf32>
    %cst_64 = arith.constant 9.99999996E-13 : f32
    %176 = vector.broadcast %cst_64 : f32 to vector<1x24x128xf32>
    %177 = arith.addf %175, %176 : vector<1x24x128xf32>
    %178 = arith.divf %174, %177 : vector<1x24x128xf32>
    %cst_65 = arith.constant dense<0.000000e+00> : vector<1x128xf32>
    %179 = vector.multi_reduction <add>, %173, %cst_65 [1] : vector<1x24x128xf32> to vector<1x128xf32>
    %180 = vector.shape_cast %179 : vector<1x128xf32> to vector<1x1x128xf32>
    %cst_66 = arith.constant 2.400000e+01 : f32
    %181 = vector.broadcast %cst_66 : f32 to vector<1x1x128xf32>
    %182 = arith.divf %180, %181 : vector<1x1x128xf32>
    %183 = arith.mulf %182, %182 : vector<1x1x128xf32>
    %cst_67 = arith.constant 1.000000e+00 : f32
    %184 = vector.broadcast %cst_67 : f32 to vector<1x24x128xf32>
    %185 = arith.subf %184, %178 : vector<1x24x128xf32>
    %186 = vector.broadcast %183 : vector<1x1x128xf32> to vector<1x24x128xf32>
    %187 = arith.mulf %186, %178 : vector<1x24x128xf32>
    %188 = arith.addf %185, %187 : vector<1x24x128xf32>
    %189 = tpu.reciprocal %188 {approx = true} : vector<1x24x128xf32> -> vector<1x24x128xf32>
    %190 = vector.broadcast %182 : vector<1x1x128xf32> to vector<1x24x128xf32>
    %191 = arith.mulf %190, %189 : vector<1x24x128xf32>
    %192 = vector.broadcast %4 : f32 to vector<1x24x128xf32>
    %193 = arith.mulf %157, %192 : vector<1x24x128xf32>
    %194 = math.cos %193 : vector<1x24x128xf32>
    %195 = arith.mulf %191, %194 : vector<1x24x128xf32>
    %cst_68 = arith.constant dense<0.000000e+00> : vector<128xf32>
    %196 = vector.multi_reduction <add>, %195, %cst_68 [0, 1] : vector<1x24x128xf32> to vector<128xf32>
    %197 = vector.shape_cast %196 : vector<128xf32> to vector<1x1x128xf32>
    %198 = vector.shape_cast %197 : vector<1x1x128xf32> to vector<1x128xf32>
    %cst_69 = arith.constant 1.7724539 : f32
    %199 = vector.broadcast %cst_69 : f32 to vector<1x128xf32>
    %200 = arith.mulf %199, %198 : vector<1x128xf32>
    %201 = math.sin %193 : vector<1x24x128xf32>
    %202 = arith.mulf %191, %201 : vector<1x24x128xf32>
    %cst_70 = arith.constant dense<0.000000e+00> : vector<128xf32>
    %203 = vector.multi_reduction <add>, %202, %cst_70 [0, 1] : vector<1x24x128xf32> to vector<128xf32>
    %204 = vector.shape_cast %203 : vector<128xf32> to vector<1x1x128xf32>
    %205 = vector.shape_cast %204 : vector<1x1x128xf32> to vector<1x128xf32>
    %cst_71 = arith.constant 1.7724539 : f32
    %206 = vector.broadcast %cst_71 : f32 to vector<1x128xf32>
    %207 = arith.mulf %206, %205 : vector<1x128xf32>
    %208 = tpu.concatenate %200, %207 in 0 : vector<1x128xf32>, vector<1x128xf32> -> vector<2x128xf32>
    %c0_72 = arith.constant 0 : index
    %209 = arith.index_cast %109 : i32 to index
    %210 = vector.load %arg7[%c0_72, %209] : memref<2x256xf32, #tpu.memory_space<vmem>>, vector<2x128xf32>
    tpu.vector_store %arg7[%c0_72, %209], %208 {strides = array<i32>} : memref<2x256xf32, #tpu.memory_space<vmem>>, vector<2x128xf32>,
    %c2_i32 = arith.constant 2 : i32
    %c0_73 = arith.constant 0 : index
    %c0_74 = arith.constant 0 : index
    %211 = vector.load %arg7[%c0_73, %c0_74] : memref<2x256xf32, #tpu.memory_space<vmem>>, vector<2x256xf32>
    %212 = vector.extract_strided_slice %211 {offsets = [0, 1], sizes = [2, 128], strides = [1, 1]} : vector<2x256xf32> to vector<2x128xf32>
    %213 = vector.extract_strided_slice %211 {offsets = [0, 127], sizes = [2, 128], strides = [1, 1]} : vector<2x256xf32> to vector<2x128xf32>
    %214 = tpu.concatenate %212, %213 in 0 : vector<2x128xf32>, vector<2x128xf32> -> vector<4x128xf32>
    %c0_75 = arith.constant 0 : index
    %c0_76 = arith.constant 0 : index
    %215 = vector.load %arg5[%c0_75, %c0_76] : memref<128x128xf32, #tpu.memory_space<vmem>>, vector<128x128xf32>
    %cst_77 = arith.constant dense<0.000000e+00> : vector<4x128xf32>
    %216 = tpu.matmul %214, %215, %cst_77 {dimension_numbers = #tpu.dot_dimension_numbers<[1], [0], [0], [1], [0, 0, 1, 1], [], []>, precision = #tpu.contract_precision<fp32>} : vector<4x128xf32>, vector<128x128xf32>, vector<4x128xf32> -> vector<4x128xf32>
    %217 = vector.extract_strided_slice %216 {offsets = [0, 0], sizes = [2, 128], strides = [1, 1]} : vector<4x128xf32> to vector<2x128xf32>
    %218 = vector.extract_strided_slice %216 {offsets = [2, 0], sizes = [2, 128], strides = [1, 1]} : vector<4x128xf32> to vector<2x128xf32>
    %219 = tpu.concatenate %217, %211, %218 in 1 : vector<2x128xf32>, vector<2x256xf32>, vector<2x128xf32> -> vector<2x512xf32>
    %220 = vector.extract_strided_slice %219 {offsets = [0, 0], sizes = [2, 256], strides = [1, 1]} : vector<2x512xf32> to vector<2x256xf32>
    %221 = vector.extract_strided_slice %220 {offsets = [0, 0], sizes = [1, 256], strides = [1, 1]} : vector<2x256xf32> to vector<1x256xf32>
    %222 = vector.extract_strided_slice %220 {offsets = [1, 0], sizes = [1, 256], strides = [1, 1]} : vector<2x256xf32> to vector<1x256xf32>
    %223 = vector.extract_strided_slice %219 {offsets = [0, 16], sizes = [2, 256], strides = [1, 1]} : vector<2x512xf32> to vector<2x256xf32>
    %224 = vector.extract_strided_slice %223 {offsets = [0, 0], sizes = [1, 256], strides = [1, 1]} : vector<2x256xf32> to vector<1x256xf32>
    %225 = vector.extract_strided_slice %223 {offsets = [1, 0], sizes = [1, 256], strides = [1, 1]} : vector<2x256xf32> to vector<1x256xf32>
    %226 = vector.extract_strided_slice %219 {offsets = [0, 32], sizes = [2, 256], strides = [1, 1]} : vector<2x512xf32> to vector<2x256xf32>
    %227 = vector.extract_strided_slice %226 {offsets = [0, 0], sizes = [1, 256], strides = [1, 1]} : vector<2x256xf32> to vector<1x256xf32>
    %228 = vector.extract_strided_slice %226 {offsets = [1, 0], sizes = [1, 256], strides = [1, 1]} : vector<2x256xf32> to vector<1x256xf32>
    %229 = vector.extract_strided_slice %219 {offsets = [0, 48], sizes = [2, 256], strides = [1, 1]} : vector<2x512xf32> to vector<2x256xf32>
    %230 = vector.extract_strided_slice %229 {offsets = [0, 0], sizes = [1, 256], strides = [1, 1]} : vector<2x256xf32> to vector<1x256xf32>
    %231 = vector.extract_strided_slice %229 {offsets = [1, 0], sizes = [1, 256], strides = [1, 1]} : vector<2x256xf32> to vector<1x256xf32>
    %232 = vector.extract_strided_slice %219 {offsets = [0, 64], sizes = [2, 256], strides = [1, 1]} : vector<2x512xf32> to vector<2x256xf32>
    %233 = vector.extract_strided_slice %232 {offsets = [0, 0], sizes = [1, 256], strides = [1, 1]} : vector<2x256xf32> to vector<1x256xf32>
    %234 = vector.extract_strided_slice %232 {offsets = [1, 0], sizes = [1, 256], strides = [1, 1]} : vector<2x256xf32> to vector<1x256xf32>
    %235 = vector.extract_strided_slice %219 {offsets = [0, 80], sizes = [2, 256], strides = [1, 1]} : vector<2x512xf32> to vector<2x256xf32>
    %236 = vector.extract_strided_slice %235 {offsets = [0, 0], sizes = [1, 256], strides = [1, 1]} : vector<2x256xf32> to vector<1x256xf32>
    %237 = vector.extract_strided_slice %235 {offsets = [1, 0], sizes = [1, 256], strides = [1, 1]} : vector<2x256xf32> to vector<1x256xf32>
    %238 = vector.extract_strided_slice %219 {offsets = [0, 96], sizes = [2, 256], strides = [1, 1]} : vector<2x512xf32> to vector<2x256xf32>
    %239 = vector.extract_strided_slice %238 {offsets = [0, 0], sizes = [1, 256], strides = [1, 1]} : vector<2x256xf32> to vector<1x256xf32>
    %240 = vector.extract_strided_slice %238 {offsets = [1, 0], sizes = [1, 256], strides = [1, 1]} : vector<2x256xf32> to vector<1x256xf32>
    %241 = vector.extract_strided_slice %219 {offsets = [0, 112], sizes = [2, 256], strides = [1, 1]} : vector<2x512xf32> to vector<2x256xf32>
    %242 = vector.extract_strided_slice %241 {offsets = [0, 0], sizes = [1, 256], strides = [1, 1]} : vector<2x256xf32> to vector<1x256xf32>
    %243 = vector.extract_strided_slice %241 {offsets = [1, 0], sizes = [1, 256], strides = [1, 1]} : vector<2x256xf32> to vector<1x256xf32>
    %244 = tpu.concatenate %221, %224, %227, %230, %233, %236, %239, %242 in 0 : vector<1x256xf32>, vector<1x256xf32>, vector<1x256xf32>, vector<1x256xf32>, vector<1x256xf32>, vector<1x256xf32>, vector<1x256xf32>, vector<1x256xf32> -> vector<8x256xf32>
    %c0_78 = arith.constant 0 : index
    %c0_79 = arith.constant 0 : index
    %245 = vector.load %arg8[%c0_78, %c0_79] : memref<48x256xf32, #tpu.memory_space<vmem>>, vector<8x256xf32>
    tpu.vector_store %arg8[%c0_78, %c0_79], %244 {strides = array<i32>} : memref<48x256xf32, #tpu.memory_space<vmem>>, vector<8x256xf32>,
    %246 = tpu.concatenate %222, %225, %228, %231, %234, %237, %240, %243 in 0 : vector<1x256xf32>, vector<1x256xf32>, vector<1x256xf32>, vector<1x256xf32>, vector<1x256xf32>, vector<1x256xf32>, vector<1x256xf32>, vector<1x256xf32> -> vector<8x256xf32>
    %c24_80 = arith.constant 24 : index
    %c0_81 = arith.constant 0 : index
    %247 = vector.load %arg8[%c24_80, %c0_81] : memref<48x256xf32, #tpu.memory_space<vmem>>, vector<8x256xf32>
    tpu.vector_store %arg8[%c24_80, %c0_81], %246 {strides = array<i32>} : memref<48x256xf32, #tpu.memory_space<vmem>>, vector<8x256xf32>,
    %248 = vector.extract_strided_slice %219 {offsets = [0, 128], sizes = [2, 256], strides = [1, 1]} : vector<2x512xf32> to vector<2x256xf32>
    %249 = vector.extract_strided_slice %248 {offsets = [0, 0], sizes = [1, 256], strides = [1, 1]} : vector<2x256xf32> to vector<1x256xf32>
    %250 = vector.extract_strided_slice %248 {offsets = [1, 0], sizes = [1, 256], strides = [1, 1]} : vector<2x256xf32> to vector<1x256xf32>
    %251 = vector.extract_strided_slice %219 {offsets = [0, 144], sizes = [2, 256], strides = [1, 1]} : vector<2x512xf32> to vector<2x256xf32>
    %252 = vector.extract_strided_slice %251 {offsets = [0, 0], sizes = [1, 256], strides = [1, 1]} : vector<2x256xf32> to vector<1x256xf32>
    %253 = vector.extract_strided_slice %251 {offsets = [1, 0], sizes = [1, 256], strides = [1, 1]} : vector<2x256xf32> to vector<1x256xf32>
    %254 = vector.extract_strided_slice %219 {offsets = [0, 160], sizes = [2, 256], strides = [1, 1]} : vector<2x512xf32> to vector<2x256xf32>
    %255 = vector.extract_strided_slice %254 {offsets = [0, 0], sizes = [1, 256], strides = [1, 1]} : vector<2x256xf32> to vector<1x256xf32>
    %256 = vector.extract_strided_slice %254 {offsets = [1, 0], sizes = [1, 256], strides = [1, 1]} : vector<2x256xf32> to vector<1x256xf32>
    %257 = vector.extract_strided_slice %219 {offsets = [0, 176], sizes = [2, 256], strides = [1, 1]} : vector<2x512xf32> to vector<2x256xf32>
    %258 = vector.extract_strided_slice %257 {offsets = [0, 0], sizes = [1, 256], strides = [1, 1]} : vector<2x256xf32> to vector<1x256xf32>
    %259 = vector.extract_strided_slice %257 {offsets = [1, 0], sizes = [1, 256], strides = [1, 1]} : vector<2x256xf32> to vector<1x256xf32>
    %260 = vector.extract_strided_slice %219 {offsets = [0, 192], sizes = [2, 256], strides = [1, 1]} : vector<2x512xf32> to vector<2x256xf32>
    %261 = vector.extract_strided_slice %260 {offsets = [0, 0], sizes = [1, 256], strides = [1, 1]} : vector<2x256xf32> to vector<1x256xf32>
    %262 = vector.extract_strided_slice %260 {offsets = [1, 0], sizes = [1, 256], strides = [1, 1]} : vector<2x256xf32> to vector<1x256xf32>
    %263 = vector.extract_strided_slice %219 {offsets = [0, 208], sizes = [2, 256], strides = [1, 1]} : vector<2x512xf32> to vector<2x256xf32>
    %264 = vector.extract_strided_slice %263 {offsets = [0, 0], sizes = [1, 256], strides = [1, 1]} : vector<2x256xf32> to vector<1x256xf32>
    %265 = vector.extract_strided_slice %263 {offsets = [1, 0], sizes = [1, 256], strides = [1, 1]} : vector<2x256xf32> to vector<1x256xf32>
    %266 = vector.extract_strided_slice %219 {offsets = [0, 224], sizes = [2, 256], strides = [1, 1]} : vector<2x512xf32> to vector<2x256xf32>
    %267 = vector.extract_strided_slice %266 {offsets = [0, 0], sizes = [1, 256], strides = [1, 1]} : vector<2x256xf32> to vector<1x256xf32>
    %268 = vector.extract_strided_slice %266 {offsets = [1, 0], sizes = [1, 256], strides = [1, 1]} : vector<2x256xf32> to vector<1x256xf32>
    %269 = vector.extract_strided_slice %219 {offsets = [0, 240], sizes = [2, 256], strides = [1, 1]} : vector<2x512xf32> to vector<2x256xf32>
    %270 = vector.extract_strided_slice %269 {offsets = [0, 0], sizes = [1, 256], strides = [1, 1]} : vector<2x256xf32> to vector<1x256xf32>
    %271 = vector.extract_strided_slice %269 {offsets = [1, 0], sizes = [1, 256], strides = [1, 1]} : vector<2x256xf32> to vector<1x256xf32>
    %272 = tpu.concatenate %249, %252, %255, %258, %261, %264, %267, %270 in 0 : vector<1x256xf32>, vector<1x256xf32>, vector<1x256xf32>, vector<1x256xf32>, vector<1x256xf32>, vector<1x256xf32>, vector<1x256xf32>, vector<1x256xf32> -> vector<8x256xf32>
    %c8 = arith.constant 8 : index
    %c0_82 = arith.constant 0 : index
    %273 = vector.load %arg8[%c8, %c0_82] : memref<48x256xf32, #tpu.memory_space<vmem>>, vector<8x256xf32>
    tpu.vector_store %arg8[%c8, %c0_82], %272 {strides = array<i32>} : memref<48x256xf32, #tpu.memory_space<vmem>>, vector<8x256xf32>,
    %274 = tpu.concatenate %250, %253, %256, %259, %262, %265, %268, %271 in 0 : vector<1x256xf32>, vector<1x256xf32>, vector<1x256xf32>, vector<1x256xf32>, vector<1x256xf32>, vector<1x256xf32>, vector<1x256xf32>, vector<1x256xf32> -> vector<8x256xf32>
    %c32 = arith.constant 32 : index
    %c0_83 = arith.constant 0 : index
    %275 = vector.load %arg8[%c32, %c0_83] : memref<48x256xf32, #tpu.memory_space<vmem>>, vector<8x256xf32>
    tpu.vector_store %arg8[%c32, %c0_83], %274 {strides = array<i32>} : memref<48x256xf32, #tpu.memory_space<vmem>>, vector<8x256xf32>,
    %276 = vector.extract_strided_slice %219 {offsets = [0, 256], sizes = [2, 256], strides = [1, 1]} : vector<2x512xf32> to vector<2x256xf32>
    %277 = vector.extract_strided_slice %276 {offsets = [0, 0], sizes = [1, 256], strides = [1, 1]} : vector<2x256xf32> to vector<1x256xf32>
    %278 = vector.extract_strided_slice %276 {offsets = [1, 0], sizes = [1, 256], strides = [1, 1]} : vector<2x256xf32> to vector<1x256xf32>
    %279 = vector.extract_strided_slice %219 {offsets = [0, 256], sizes = [2, 256], strides = [1, 1]} : vector<2x512xf32> to vector<2x256xf32>
    %280 = vector.extract_strided_slice %279 {offsets = [0, 0], sizes = [1, 256], strides = [1, 1]} : vector<2x256xf32> to vector<1x256xf32>
    %281 = vector.extract_strided_slice %279 {offsets = [1, 0], sizes = [1, 256], strides = [1, 1]} : vector<2x256xf32> to vector<1x256xf32>
    %282 = vector.extract_strided_slice %219 {offsets = [0, 256], sizes = [2, 256], strides = [1, 1]} : vector<2x512xf32> to vector<2x256xf32>
    %283 = vector.extract_strided_slice %282 {offsets = [0, 0], sizes = [1, 256], strides = [1, 1]} : vector<2x256xf32> to vector<1x256xf32>
    %284 = vector.extract_strided_slice %282 {offsets = [1, 0], sizes = [1, 256], strides = [1, 1]} : vector<2x256xf32> to vector<1x256xf32>
    %285 = vector.extract_strided_slice %219 {offsets = [0, 256], sizes = [2, 256], strides = [1, 1]} : vector<2x512xf32> to vector<2x256xf32>
    %286 = vector.extract_strided_slice %285 {offsets = [0, 0], sizes = [1, 256], strides = [1, 1]} : vector<2x256xf32> to vector<1x256xf32>
    %287 = vector.extract_strided_slice %285 {offsets = [1, 0], sizes = [1, 256], strides = [1, 1]} : vector<2x256xf32> to vector<1x256xf32>
    %288 = vector.extract_strided_slice %219 {offsets = [0, 256], sizes = [2, 256], strides = [1, 1]} : vector<2x512xf32> to vector<2x256xf32>
    %289 = vector.extract_strided_slice %288 {offsets = [0, 0], sizes = [1, 256], strides = [1, 1]} : vector<2x256xf32> to vector<1x256xf32>
    %290 = vector.extract_strided_slice %288 {offsets = [1, 0], sizes = [1, 256], strides = [1, 1]} : vector<2x256xf32> to vector<1x256xf32>
    %291 = vector.extract_strided_slice %219 {offsets = [0, 256], sizes = [2, 256], strides = [1, 1]} : vector<2x512xf32> to vector<2x256xf32>
    %292 = vector.extract_strided_slice %291 {offsets = [0, 0], sizes = [1, 256], strides = [1, 1]} : vector<2x256xf32> to vector<1x256xf32>
    %293 = vector.extract_strided_slice %291 {offsets = [1, 0], sizes = [1, 256], strides = [1, 1]} : vector<2x256xf32> to vector<1x256xf32>
    %294 = vector.extract_strided_slice %219 {offsets = [0, 256], sizes = [2, 256], strides = [1, 1]} : vector<2x512xf32> to vector<2x256xf32>
    %295 = vector.extract_strided_slice %294 {offsets = [0, 0], sizes = [1, 256], strides = [1, 1]} : vector<2x256xf32> to vector<1x256xf32>
    %296 = vector.extract_strided_slice %294 {offsets = [1, 0], sizes = [1, 256], strides = [1, 1]} : vector<2x256xf32> to vector<1x256xf32>
    %297 = vector.extract_strided_slice %219 {offsets = [0, 256], sizes = [2, 256], strides = [1, 1]} : vector<2x512xf32> to vector<2x256xf32>
    %298 = vector.extract_strided_slice %297 {offsets = [0, 0], sizes = [1, 256], strides = [1, 1]} : vector<2x256xf32> to vector<1x256xf32>
    %299 = vector.extract_strided_slice %297 {offsets = [1, 0], sizes = [1, 256], strides = [1, 1]} : vector<2x256xf32> to vector<1x256xf32>
    %300 = tpu.concatenate %277, %280, %283, %286, %289, %292, %295, %298 in 0 : vector<1x256xf32>, vector<1x256xf32>, vector<1x256xf32>, vector<1x256xf32>, vector<1x256xf32>, vector<1x256xf32>, vector<1x256xf32>, vector<1x256xf32> -> vector<8x256xf32>
    %c16 = arith.constant 16 : index
    %c0_84 = arith.constant 0 : index
    %301 = vector.load %arg8[%c16, %c0_84] : memref<48x256xf32, #tpu.memory_space<vmem>>, vector<8x256xf32>
    tpu.vector_store %arg8[%c16, %c0_84], %300 {strides = array<i32>} : memref<48x256xf32, #tpu.memory_space<vmem>>, vector<8x256xf32>,
    %302 = tpu.concatenate %278, %281, %284, %287, %290, %293, %296, %299 in 0 : vector<1x256xf32>, vector<1x256xf32>, vector<1x256xf32>, vector<1x256xf32>, vector<1x256xf32>, vector<1x256xf32>, vector<1x256xf32>, vector<1x256xf32> -> vector<8x256xf32>
    %c40 = arith.constant 40 : index
    %c0_85 = arith.constant 0 : index
    %303 = vector.load %arg8[%c40, %c0_85] : memref<48x256xf32, #tpu.memory_space<vmem>>, vector<8x256xf32>
    tpu.vector_store %arg8[%c40, %c0_85], %302 {strides = array<i32>} : memref<48x256xf32, #tpu.memory_space<vmem>>, vector<8x256xf32>,
    %c0_86 = arith.constant 0 : index
    %c0_87 = arith.constant 0 : index
    %304 = vector.load %arg8[%c0_86, %c0_87] : memref<48x256xf32, #tpu.memory_space<vmem>>, vector<48x256xf32>
    %c0_88 = arith.constant 0 : index
    %c0_89 = arith.constant 0 : index
    %305 = vector.load %arg4[%c0_88, %c0_89] : memref<256x512xf32, #tpu.memory_space<vmem>>, vector<256x512xf32>
    %cst_90 = arith.constant dense<0.000000e+00> : vector<48x512xf32>
    %306 = tpu.matmul %304, %305, %cst_90 {dimension_numbers = #tpu.dot_dimension_numbers<[1], [0], [0], [1], [0, 0, 1, 1], [], []>, precision = #tpu.contract_precision<fp32>} : vector<48x256xf32>, vector<256x512xf32>, vector<48x512xf32> -> vector<48x512xf32>
    %307 = vector.extract_strided_slice %306 {offsets = [0, 0], sizes = [24, 256], strides = [1, 1]} : vector<48x512xf32> to vector<24x256xf32>
    %308 = vector.extract_strided_slice %306 {offsets = [0, 256], sizes = [24, 256], strides = [1, 1]} : vector<48x512xf32> to vector<24x256xf32>
    %309 = vector.extract_strided_slice %306 {offsets = [24, 0], sizes = [24, 256], strides = [1, 1]} : vector<48x512xf32> to vector<24x256xf32>
    %310 = vector.extract_strided_slice %306 {offsets = [24, 256], sizes = [24, 256], strides = [1, 1]} : vector<48x512xf32> to vector<24x256xf32>
    %311 = arith.addf %307, %310 : vector<24x256xf32>
    %312 = arith.subf %309, %308 : vector<24x256xf32>
    %313 = arith.mulf %311, %311 : vector<24x256xf32>
    %314 = arith.mulf %312, %312 : vector<24x256xf32>
    %315 = arith.addf %313, %314 : vector<24x256xf32>
    %316 = math.sqrt %315 : vector<24x256xf32>
    %cst_91 = arith.constant 9.99999997E-7 : f32
    %317 = vector.broadcast %cst_91 : f32 to vector<24x256xf32>
    %318 = arith.addf %316, %317 : vector<24x256xf32>
    %319 = math.log %318 : vector<24x256xf32>
    %c0_92 = arith.constant 0 : index
    %c0_93 = arith.constant 0 : index
    %c0_94 = arith.constant 0 : index
    %320 = vector.load %arg6[%c0_92, %c0_93, %c0_94] : memref<1x24x256xf32, #tpu.memory_space<vmem>>, vector<1x24x256xf32>
    %321 = vector.shape_cast %320 : vector<1x24x256xf32> to vector<24x256xf32>
    %322 = vector.shape_cast %319 : vector<24x256xf32> to vector<1x24x256xf32>
    tpu.vector_store %arg6[%c0_92, %c0_93, %c0_94], %322 {strides = array<i32>} : memref<1x24x256xf32, #tpu.memory_space<vmem>>, vector<1x24x256xf32>,
    return
  }
  func.func @transform_0(%arg0: i32) -> i32 {
    %c0_i32 = arith.constant 0 : i32
    %c0_i32_0 = arith.constant 0 : i32
    return %c0_i32 : i32
  }
  func.func @transform_1(%arg0: i32) -> i32 {
    %c0_i32 = arith.constant 0 : i32
    %c0_i32_0 = arith.constant 0 : i32
    return %c0_i32 : i32
  }
  func.func @transform_2(%arg0: i32) -> (i32, i32, i32, i32, i32) {
    %c0_i32 = arith.constant 0 : i32
    %c0_i32_0 = arith.constant 0 : i32
    %c0_i32_1 = arith.constant 0 : i32
    %c0_i32_2 = arith.constant 0 : i32
    %c0_i32_3 = arith.constant 0 : i32
    return %arg0, %c0_i32, %c0_i32_0, %c0_i32_1, %c0_i32_2 : i32, i32, i32, i32, i32
  }
  func.func @transform_3(%arg0: i32) -> (i32, i32) {
    %c0_i32 = arith.constant 0 : i32
    %c0_i32_0 = arith.constant 0 : i32
    %c0_i32_1 = arith.constant 0 : i32
    return %c0_i32, %c0_i32_0 : i32, i32
  }
  func.func @transform_4(%arg0: i32) -> (i32, i32) {
    %c0_i32 = arith.constant 0 : i32
    %c0_i32_0 = arith.constant 0 : i32
    %c0_i32_1 = arith.constant 0 : i32
    return %c0_i32, %c0_i32_0 : i32, i32
  }
  func.func @transform_5(%arg0: i32) -> (i32, i32, i32) {
    %c0_i32 = arith.constant 0 : i32
    %c0_i32_0 = arith.constant 0 : i32
    %c0_i32_1 = arith.constant 0 : i32
    return %arg0, %c0_i32, %c0_i32_0 : i32, i32, i32
  }
}

</mosaic_0001>

<llo_original>
// kernel: virtual_radar_forward.1
$region0: #{virtual_radar_forward.1}
  #allocation0 [shape = 'u32[]', space=smem, size = 0x4, offset = 0x4, fixed_abs, tag = 'smem constant byte address 0x4 - core index']
  #allocation1 [shape = 'u32[144,128]{1,0:T(1,128)}', space=vmem, size = 0x12000, scoped, tag = 'internal scratch']
  #allocation2 [shape = 'f32[2,256]{1,0:T(2,128)}', space=vmem, size = 0x800, scoped, tag = 'scratch operand']
  #allocation3 [shape = 'f32[48,256]{1,0:T(8,128)}', space=vmem, size = 0xc000, scoped, tag = 'scratch operand']
  #allocation4 [shape = 'f32[1]{0:T(128)S(6)}', space=smem, size = 0x200, scoped, tag = 'scoped memory for virtual_radar_forward.1']
  %s0 = inlined_call_operand.vmem [shape: f32[3], index: 0, kind: input, shape index: {}]
  %s1 = inlined_call_operand.<no memory space> [shape: f32[1], index: 1, kind: input, shape index: {}]
  %s2 = inlined_call_operand.vmem [shape: f32[2,3,1,48,256], index: 2, kind: input, shape index: {}]
  %s3 = inlined_call_operand.vmem [shape: f32[256,512], index: 3, kind: input, shape index: {}]
  %s4 = inlined_call_operand.vmem [shape: f32[128,128], index: 4, kind: input, shape index: {}]
  %s5 = inlined_call_operand.vmem [shape: f32[2,24,256], index: 5, kind: output, shape index: {}]
  %s6 = sld [smem:[#allocation0]]
  $region57: #{virtual_radar_forward.1} parent=0
    _
  %s8 = ssub.s32 1, %s6
  %s9 = scalar_select 0, %s8, %s6
  %10 = sst [smem:[#allocation4]] %s1
  $region1: #{virtual_radar_forward.1} parent=0
    #allocation5 [shape = 'u8[512]{0}', space=smem, size = 0x200, scoped, tag = 'input window, operand 0, single buffered']
    #allocation6 [shape = 's32[2]{0}', space=sflag, size = 0x8, scoped, tag = 'scoped memory for virtual_radar_forward.1']
    %11 = vsyncpa [#allocation6], 0
    loop: start=0, step=1, limit=4
    $region2: #{virtual_radar_forward.1} parent=1 // loop_pre_header
      _
    $region3: #{virtual_radar_forward.1} parent=1 // loop_header
      %s13 = sphi 0, %s17
      %p14 = scmp.ge.s32.totalorder %s13, 4
      %s21 = sphi 0, %s21
      %s23 = sphi 0, %s21
      %s24 = sphi 0, %s23
      %s38 = sphi 0, %s24
      %s42 = sphi 0, %s42
      %s44 = sphi 0, %s42
      %s45 = sphi 0, %s44
      %s59 = sphi 0, %s45
      %s65 = sphi 0, %s67
      %s68 = sphi 0, %s65
      %s69 = sphi 0, %s68
      %s85 = sphi 0, %s69
      %s89 = sphi 0, %s89
      %s91 = sphi 0, %s89
      %s92 = sphi 0, %s91
      %s106 = sphi 0, %s92
      %s110 = sphi 0, %s110
      %s112 = sphi 0, %s110
      %s113 = sphi 0, %s112
      %s127 = sphi 0, %s113
      %s133 = sphi 0, %s135
      %s136 = sphi 0, %s133
      %s137 = sphi 0, %s136
      %s153 = sphi 0, %s137
    $region4: #{virtual_radar_forward.1} parent=1 // loop_header_branch
      %16 = sbr.rel (%p14) target = $region8
    $region5: #{virtual_radar_forward.1} parent=1 // loop_body
      %s18 = ssub.s32 %s13, 1
      %s19 = ssub.s32 %s13, 2
      %s20 = sadd.s32 %s13, 1
      %s22 = sadd.s32 %s21, 1
      %p25 = scmp.eq.s32.totalorder %s13, 1
      %p26 = scmp.ne.s32.totalorder %s21, %s23
      %p27 = scmp.eq.s32.totalorder %s13, 0
      %p28 = por %p26, %p27
      %p29 = scmp.ne.s32.totalorder %s21, %s23
      %p30 = scmp.eq.s32.totalorder %s18, 1
      %p31 = por %p29, %p30
      %p32 = scmp.ne.s32.totalorder %s23, %s24
      %p33 = scmp.eq.s32.totalorder %s18, 0
      %p34 = por %p32, %p33
      %p35 = scmp.ne.s32.totalorder %s23, %s24
      %p36 = scmp.eq.s32.totalorder %s19, 1
      %p37 = por %p35, %p36
      %p39 = scmp.ne.s32.totalorder %s24, %s38
      %p40 = scmp.eq.s32.totalorder %s19, 0
      %p41 = por %p39, %p40
      %s43 = sadd.s32 %s42, 1
      %p46 = scmp.eq.s32.totalorder %s13, 1
      %p47 = scmp.ne.s32.totalorder %s42, %s44
      %p48 = scmp.eq.s32.totalorder %s13, 0
      %p49 = por %p47, %p48
      %p50 = scmp.ne.s32.totalorder %s42, %s44
      %p51 = scmp.eq.s32.totalorder %s18, 1
      %p52 = por %p50, %p51
      %p53 = scmp.ne.s32.totalorder %s44, %s45
      %p54 = scmp.eq.s32.totalorder %s18, 0
      %p55 = por %p53, %p54
      %p56 = scmp.ne.s32.totalorder %s44, %s45
      %p57 = scmp.eq.s32.totalorder %s19, 1
      %p58 = por %p56, %p57
      %p60 = scmp.ne.s32.totalorder %s45, %s59
      %p61 = scmp.eq.s32.totalorder %s19, 0
      %p62 = por %p60, %p61
      %s63 = ssub.s32 %s13, %s20
      %p64 = scmp.eq.s32.totalorder %s63, 0
      %s66 = sadd.s32 %s65, 1
      %s67 = scalar_select %p64, %s65, %s66
      %p70 = pneg %p64
      %p71 = scmp.eq.s32.totalorder %s13, 1
      %p72 = por %p70, %p71
      %p73 = scmp.ne.s32.totalorder %s65, %s68
      %p74 = scmp.eq.s32.totalorder %s13, 0
      %p75 = por %p73, %p74
      %p76 = scmp.ne.s32.totalorder %s65, %s68
      %p77 = scmp.eq.s32.totalorder %s18, 1
      %p78 = por %p76, %p77
      %p79 = scmp.ne.s32.totalorder %s68, %s69
      %p80 = scmp.eq.s32.totalorder %s18, 0
      %p81 = por %p79, %p80
      %p82 = scmp.ne.s32.totalorder %s68, %s69
      %p83 = scmp.eq.s32.totalorder %s19, 1
      %p84 = por %p82, %p83
      %p86 = scmp.ne.s32.totalorder %s69, %s85
      %p87 = scmp.eq.s32.totalorder %s19, 0
      %p88 = por %p86, %p87
      %s90 = sadd.s32 %s89, 1
      %p93 = scmp.eq.s32.totalorder %s13, 1
      %p94 = scmp.ne.s32.totalorder %s89, %s91
      %p95 = scmp.eq.s32.totalorder %s13, 0
      %p96 = por %p94, %p95
      %p97 = scmp.ne.s32.totalorder %s89, %s91
      %p98 = scmp.eq.s32.totalorder %s18, 1
      %p99 = por %p97, %p98
      %p100 = scmp.ne.s32.totalorder %s91, %s92
      %p101 = scmp.eq.s32.totalorder %s18, 0
      %p102 = por %p100, %p101
      %p103 = scmp.ne.s32.totalorder %s91, %s92
      %p104 = scmp.eq.s32.totalorder %s19, 1
      %p105 = por %p103, %p104
      %p107 = scmp.ne.s32.totalorder %s92, %s106
      %p108 = scmp.eq.s32.totalorder %s19, 0
      %p109 = por %p107, %p108
      %s111 = sadd.s32 %s110, 1
      %p114 = scmp.eq.s32.totalorder %s13, 1
      %p115 = scmp.ne.s32.totalorder %s110, %s112
      %p116 = scmp.eq.s32.totalorder %s13, 0
      %p117 = por %p115, %p116
      %p118 = scmp.ne.s32.totalorder %s110, %s112
      %p119 = scmp.eq.s32.totalorder %s18, 1
      %p120 = por %p118, %p119
      %p121 = scmp.ne.s32.totalorder %s112, %s113
      %p122 = scmp.eq.s32.totalorder %s18, 0
      %p123 = por %p121, %p122
      %p124 = scmp.ne.s32.totalorder %s112, %s113
      %p125 = scmp.eq.s32.totalorder %s19, 1
      %p126 = por %p124, %p125
      %p128 = scmp.ne.s32.totalorder %s113, %s127
      %p129 = scmp.eq.s32.totalorder %s19, 0
      %p130 = por %p128, %p129
      %s131 = ssub.s32 %s13, %s20
      %p132 = scmp.eq.s32.totalorder %s131, 0
      %s134 = sadd.s32 %s133, 1
      %s135 = scalar_select %p132, %s133, %s134
      %p138 = pneg %p132
      %p139 = scmp.eq.s32.totalorder %s13, 1
      %p140 = por %p138, %p139
      %p141 = scmp.ne.s32.totalorder %s133, %s136
      %p142 = scmp.eq.s32.totalorder %s13, 0
      %p143 = por %p141, %p142
      %p144 = scmp.ne.s32.totalorder %s133, %s136
      %p145 = scmp.eq.s32.totalorder %s18, 1
      %p146 = por %p144, %p145
      %p147 = scmp.ne.s32.totalorder %s136, %s137
      %p148 = scmp.eq.s32.totalorder %s18, 0
      %p149 = por %p147, %p148
      %p150 = scmp.ne.s32.totalorder %s136, %s137
      %p151 = scmp.eq.s32.totalorder %s19, 1
      %p152 = por %p150, %p151
      %p154 = scmp.ne.s32.totalorder %s137, %s153
      %p155 = scmp.eq.s32.totalorder %s19, 0
      %p156 = por %p154, %p155
      %p157 = scmp.le.s32.totalorder 1, %s13
      %p158 = scmp.lt.s32.totalorder %s13, 3
      %p159 = pnand %p157, %p158
      %p160 = pneg %p159
      // Predicated region
      $region9: #{virtual_radar_forward.1} parent=5 // pred_check
        _
      $region10: #{virtual_radar_forward.1} parent=5 // pred_check_branch
        %162 = sbr.rel (%p159) target = $region12
      $region11: #{virtual_radar_forward.1} parent=5 // pred_region
        %s163 = ssub.s32 %s13, 1
        // Predicated region
        $region13: #{virtual_radar_forward.1} parent=11 // pred_check
          %p164 = pneg %p34
        $region14: #{virtual_radar_forward.1} parent=11 // pred_check_branch
          %166 = sbr.rel (%p164) target = $region16
        $region15: #{virtual_radar_forward.1} parent=11 // pred_region
          %s168 = ssub.s32 16, 16
          %169 = vsyncadd [#allocation6], %s168
          %s171 = sshll.u32 %s0, 4
          %s172 = int_to_ptr.vmem [resolvable:$true] %s171
          %174 = dma.vmem_to_smem %s172, 16, [#allocation5], [#allocation6]
        $region16: #{virtual_radar_forward.1} parent=11 // pred_fallthru
          _
        // Predicated region
        $region17: #{virtual_radar_forward.1} parent=11 // pred_check
          %p175 = pneg %p55
        $region18: #{virtual_radar_forward.1} parent=11 // pred_check_branch
          %177 = sbr.rel (%p175) target = $region20
        $region19: #{virtual_radar_forward.1} parent=11 // pred_region
          _
        $region20: #{virtual_radar_forward.1} parent=11 // pred_fallthru
          _
        // Predicated region
        $region21: #{virtual_radar_forward.1} parent=11 // pred_check
          %p178 = pneg %p102
        $region22: #{virtual_radar_forward.1} parent=11 // pred_check_branch
          %180 = sbr.rel (%p178) target = $region24
        $region23: #{virtual_radar_forward.1} parent=11 // pred_region
          _
        $region24: #{virtual_radar_forward.1} parent=11 // pred_fallthru
          _
        // Predicated region
        $region25: #{virtual_radar_forward.1} parent=11 // pred_check
          %p181 = pneg %p123
        $region26: #{virtual_radar_forward.1} parent=11 // pred_check_branch
          %183 = sbr.rel (%p181) target = $region28
        $region27: #{virtual_radar_forward.1} parent=11 // pred_region
          _
        $region28: #{virtual_radar_forward.1} parent=11 // pred_fallthru
          _
      $region12: #{virtual_radar_forward.1} parent=5 // pred_fallthru
        _
      %p184 = scmp.lt.s32.totalorder %s13, 2
      // Predicated region
      $region29: #{virtual_radar_forward.1} parent=5 // pred_check
        %p185 = pneg %p184
      $region30: #{virtual_radar_forward.1} parent=5 // pred_check_branch
        %187 = sbr.rel (%p185) target = $region32
      $region31: #{virtual_radar_forward.1} parent=5 // pred_region
        // Predicated region
        $region33: #{virtual_radar_forward.1} parent=31 // pred_check
          %p188 = pneg %p75
        $region34: #{virtual_radar_forward.1} parent=31 // pred_check_branch
          %190 = sbr.rel (%p188) target = $region36
        $region35: #{virtual_radar_forward.1} parent=31 // pred_region
          %p191 = scmp.lt.s32.totalorder %s13, 1
          %s192 = scalar_select %p191, %s13, 1
          %s193 = smul.addr %s192, 36
          %s194 = smul.addr %s193, 8
          %s195 = scalar_lea.vmem %s2, %s194
        $region36: #{virtual_radar_forward.1} parent=31 // pred_fallthru
          _
      $region32: #{virtual_radar_forward.1} parent=5 // pred_fallthru
        _
      %p196 = scmp.le.s32.totalorder 1, %s13
      %p197 = scmp.lt.s32.totalorder %s13, 3
      %p198 = pnand %p196, %p197
      %p199 = pneg %p198
      // Predicated region
      $region37: #{virtual_radar_forward.1} parent=5 // pred_check
        _
      $region38: #{virtual_radar_forward.1} parent=5 // pred_check_branch
        %201 = sbr.rel (%p198) target = $region40
      $region39: #{virtual_radar_forward.1} parent=5 // pred_region
        %s202 = ssub.s32 %s13, 1
        // Predicated region
        $region41: #{virtual_radar_forward.1} parent=39 // pred_check
          %p203 = pneg %p34
        $region42: #{virtual_radar_forward.1} parent=39 // pred_check_branch
          %205 = sbr.rel (%p203) target = $region44
        $region43: #{virtual_radar_forward.1} parent=39 // pred_region
          %206 = dma.done [#allocation6], 16
        $region44: #{virtual_radar_forward.1} parent=39 // pred_fallthru
          _
        %207 = sfence
        %p208 = pneg %p34
        %p209 = pneg %p31
        %p210 = pneg %p55
        %p211 = pneg %p52
        %p212 = scmp.lt.s32.totalorder %s18, 1
        %s213 = scalar_select %p212, %s18, 1
        %s214 = smul.addr %s213, 36
        %s215 = smul.addr %s214, 8
        %s216 = scalar_lea.vmem %s2, %s215
        %p217 = pneg %p81
        %p218 = pneg %p78
        %p219 = pneg %p102
        %p220 = pneg %p99
        %p221 = pneg %p123
        %p222 = pneg %p120
        %p223 = pneg %p149
        %p224 = pneg %p146
        %p225 = scmp.lt.s32.totalorder %s18, 1
        %s226 = scalar_select %p225, %s18, 1
        %s227 = smul.addr %s226, 6
        %s228 = smul.addr %s227, 8
        %s229 = scalar_lea.vmem %s5, %s228
        %p230 = scmp.lt.s32.totalorder %s18, 1
        %s231 = scalar_select %p230, %s18, 1
        %s232 = smul.addr %s231, 36
        %s233 = smul.addr %s232, 8
        %s234 = scalar_lea.vmem %s2, %s233
        %p235 = scmp.lt.s32.totalorder %s18, 1
        %s236 = scalar_select %p235, %s18, 1
        %s237 = smul.addr %s236, 6
        %s238 = smul.addr %s237, 8
        %s239 = scalar_lea.vmem %s5, %s238
        %s240 = sld [smem:[#allocation5]]
        %s241 = sld [smem:[#allocation5 + $0x1]]
        %s242 = sld [smem:[#allocation5 + $0x2]]
        %s243 = sld [smem:[#allocation4]]
        %v244 = vstv %s243
        %v245 = vrcp.pop %v244
        %s246 = vtos %v245
        %s247 = smul.f32 12.566371, %s246
        %v248 = vld [vmem:[%s234] sm:$0xff]
        %v249 = vld [vmem:[%s234 + $0x10] sm:$0xff]
        %v250 = vld [vmem:[%s234 + $0x20] sm:$0xff]
        %v251 = vld [vmem:[%s234 + $0x30] sm:$0xff]
        %v252 = vld [vmem:[%s234 + $0x40] sm:$0xff]
        %v253 = vld [vmem:[%s234 + $0x50] sm:$0xff]
        %s254 = sadd.s32 0, 12
        %s255 = smul.addr %s254, 8
        %s256 = scalar_lea.vmem %s234, %s255
        %v257 = vld [vmem:[%s256] sm:$0xff]
        %v258 = vld [vmem:[%s256 + $0x10] sm:$0xff]
        %v259 = vld [vmem:[%s256 + $0x20] sm:$0xff]
        %v260 = vld [vmem:[%s256 + $0x30] sm:$0xff]
        %v261 = vld [vmem:[%s256 + $0x40] sm:$0xff]
        %v262 = vld [vmem:[%s256 + $0x50] sm:$0xff]
        %s263 = sadd.s32 0, 24
        %s264 = smul.addr %s263, 8
        %s265 = scalar_lea.vmem %s234, %s264
        %v266 = vld [vmem:[%s265] sm:$0xff]
        %v267 = vld [vmem:[%s265 + $0x10] sm:$0xff]
        %v268 = vld [vmem:[%s265 + $0x20] sm:$0xff]
        %v269 = vld [vmem:[%s265 + $0x30] sm:$0xff]
        %v270 = vld [vmem:[%s265 + $0x40] sm:$0xff]
        %v271 = vld [vmem:[%s265 + $0x50] sm:$0xff]
        %v272 = vsub.f32 %v251, %v248
        %v273 = vsub.f32 %v252, %v249
        %v274 = vsub.f32 %v253, %v250
        %v275 = vsub.f32 %v260, %v257
        %v276 = vsub.f32 %v261, %v258
        %v277 = vsub.f32 %v262, %v259
        %v278 = vsub.f32 %v269, %v266
        %v279 = vsub.f32 %v270, %v267
        %v280 = vsub.f32 %v271, %v268
        %v281 = vadd.f32 %v248, %v251
        %v282 = vadd.f32 %v249, %v252
        %v283 = vadd.f32 %v250, %v253
        %v284 = vmul.f32 %v281, 0.5
        %v285 = vmul.f32 %v282, 0.5
        %v286 = vmul.f32 %v283, 0.5
        %v287 = vstv %s240
        %v288 = vsub.f32 %v287, %v284
        %v289 = vsub.f32 %v287, %v285
        %v290 = vsub.f32 %v287, %v286
        %v291 = vadd.f32 %v257, %v260
        %v292 = vadd.f32 %v258, %v261
        %v293 = vadd.f32 %v259, %v262
        %v294 = vmul.f32 %v291, 0.5
        %v295 = vmul.f32 %v292, 0.5
        %v296 = vmul.f32 %v293, 0.5
        %v297 = vstv %s241
        %v298 = vsub.f32 %v297, %v294
        %v299 = vsub.f32 %v297, %v295
        %v300 = vsub.f32 %v297, %v296
        %v301 = vadd.f32 %v266, %v269
        %v302 = vadd.f32 %v267, %v270
        %v303 = vadd.f32 %v268, %v271
        %v304 = vmul.f32 %v301, 0.5
        %v305 = vmul.f32 %v302, 0.5
        %v306 = vmul.f32 %v303, 0.5
        %v307 = vstv %s242
        %v308 = vsub.f32 %v307, %v304
        %v309 = vsub.f32 %v307, %v305
        %v310 = vsub.f32 %v307, %v306
        %v311 = vsub.f32 %v248, %v287
        %v312 = vsub.f32 %v249, %v287
        %v313 = vsub.f32 %v250, %v287
        %v314 = vsub.f32 %v257, %v297
        %v315 = vsub.f32 %v258, %v297
        %v316 = vsub.f32 %v259, %v297
        %v317 = vsub.f32 %v266, %v307
        %v318 = vsub.f32 %v267, %v307
        %v319 = vsub.f32 %v268, %v307
        %v320 = vmul.f32 %v311, %v311
        %v321 = vmul.f32 %v312, %v312
        %v322 = vmul.f32 %v313, %v313
        %v323 = vmul.f32 %v314, %v314
        %v324 = vmul.f32 %v315, %v315
        %v325 = vmul.f32 %v316, %v316
        %v326 = vadd.f32 %v320, %v323
        %v327 = vadd.f32 %v321, %v324
        %v328 = vadd.f32 %v322, %v325
        %v329 = vmul.f32 %v317, %v317
        %v330 = vmul.f32 %v318, %v318
        %v331 = vmul.f32 %v319, %v319
        %v332 = vadd.f32 %v326, %v329
        %v333 = vadd.f32 %v327, %v330
        %v334 = vadd.f32 %v328, %v331
        %v335 = vrsqrt.pop %v332
        %v336 = vmul.f32 %v332, %v335
        %vm337 = vcmp.eq.f32.partialorder %v332, inf
        %v338 = vsel %vm337, %v332, %v336
        %vm339 = vcmp.eq.f32.partialorder %v332, 0.0
        %v340 = vand.u32 %v332, 2147483648
        %v341 = vsel %vm339, %v340, %v338
        %v342 = vrsqrt.pop %v333
        %v343 = vmul.f32 %v333, %v342
        %vm344 = vcmp.eq.f32.partialorder %v333, inf
        %v345 = vsel %vm344, %v333, %v343
        %vm346 = vcmp.eq.f32.partialorder %v333, 0.0
        %v347 = vand.u32 %v333, 2147483648
        %v348 = vsel %vm346, %v347, %v345
        %v349 = vrsqrt.pop %v334
        %v350 = vmul.f32 %v334, %v349
        %vm351 = vcmp.eq.f32.partialorder %v334, inf
        %v352 = vsel %vm351, %v334, %v350
        %vm353 = vcmp.eq.f32.partialorder %v334, 0.0
        %v354 = vand.u32 %v334, 2147483648
        %v355 = vsel %vm353, %v354, %v352
        %v356 = vmul.f32 %v288, %v272
        %v357 = vmul.f32 %v289, %v273
        %v358 = vmul.f32 %v290, %v274
        %v359 = vmul.f32 %v298, %v275
        %v360 = vmul.f32 %v299, %v276
        %v361 = vmul.f32 %v300, %v277
        %v362 = vadd.f32 %v356, %v359
        %v363 = vadd.f32 %v357, %v360
        %v364 = vadd.f32 %v358, %v361
        %v365 = vmul.f32 %v308, %v278
        %v366 = vmul.f32 %v309, %v279
        %v367 = vmul.f32 %v310, %v280
        %v368 = vadd.f32 %v362, %v365
        %v369 = vadd.f32 %v363, %v366
        %v370 = vadd.f32 %v364, %v367
        %v371 = vmul.f32 %v288, %v288
        %v372 = vmul.f32 %v289, %v289
        %v373 = vmul.f32 %v290, %v290
        %v374 = vmul.f32 %v298, %v298
        %v375 = vmul.f32 %v299, %v299
        %v376 = vmul.f32 %v300, %v300
        %v377 = vadd.f32 %v371, %v374
        %v378 = vadd.f32 %v372, %v375
        %v379 = vadd.f32 %v373, %v376
        %v380 = vmul.f32 %v308, %v308
        %v381 = vmul.f32 %v309, %v309
        %v382 = vmul.f32 %v310, %v310
        %v383 = vadd.f32 %v377, %v380
        %v384 = vadd.f32 %v378, %v381
        %v385 = vadd.f32 %v379, %v382
        %v386 = vmul.f32 %v272, %v272
        %v387 = vmul.f32 %v273, %v273
        %v388 = vmul.f32 %v274, %v274
        %v389 = vmul.f32 %v275, %v275
        %v390 = vmul.f32 %v276, %v276
        %v391 = vmul.f32 %v277, %v277
        %v392 = vadd.f32 %v386, %v389
        %v393 = vadd.f32 %v387, %v390
        %v394 = vadd.f32 %v388, %v391
        %v395 = vmul.f32 %v278, %v278
        %v396 = vmul.f32 %v279, %v279
        %v397 = vmul.f32 %v280, %v280
        %v398 = vadd.f32 %v392, %v395
        %v399 = vadd.f32 %v393, %v396
        %v400 = vadd.f32 %v394, %v397
        %v401 = vrsqrt.pop %v398
        %v402 = vmul.f32 %v398, %v401
        %vm403 = vcmp.eq.f32.partialorder %v398, inf
        %v404 = vsel %vm403, %v398, %v402
        %vm405 = vcmp.eq.f32.partialorder %v398, 0.0
        %v406 = vand.u32 %v398, 2147483648
        %v407 = vsel %vm405, %v406, %v404
        %v408 = vrsqrt.pop %v399
        %v409 = vmul.f32 %v399, %v408
        %vm410 = vcmp.eq.f32.partialorder %v399, inf
        %v411 = vsel %vm410, %v399, %v409
        %vm412 = vcmp.eq.f32.partialorder %v399, 0.0
        %v413 = vand.u32 %v399, 2147483648
        %v414 = vsel %vm412, %v413, %v411
        %v415 = vrsqrt.pop %v400
        %v416 = vmul.f32 %v400, %v415
        %vm417 = vcmp.eq.f32.partialorder %v400, inf
        %v418 = vsel %vm417, %v400, %v416
        %vm419 = vcmp.eq.f32.partialorder %v400, 0.0
        %v420 = vand.u32 %v400, 2147483648
        %v421 = vsel %vm419, %v420, %v418
        %v422 = vmul.f32 %v368, %v368
        %v423 = vmul.f32 %v369, %v369
        %v424 = vmul.f32 %v370, %v370
        %v425 = vmul.f32 %v383, %v398
        %v426 = vmul.f32 %v384, %v399
        %v427 = vmul.f32 %v385, %v400
        %v428 = vadd.f32 %v425, 1e-12
        %v429 = vadd.f32 %v426, 1e-12
        %v430 = vadd.f32 %v427, 1e-12
        %v431 = vrcp.pop %v428
        %v432 = vmul.f32 %v422, %v431
        %v433 = vrcp.pop %v429
        %v434 = vmul.f32 %v423, %v433
        %v435 = vrcp.pop %v430
        %v436 = vmul.f32 %v424, %v435
        %v437 = vadd.f32 %v407, %v414
        %v438 = vadd.f32 %v437, %v421
        %v439 = vrot.slane %v438, 4
        %v440 = vadd.f32 %v438, %v439
        %v441 = vrot.slane %v440, 2
        %v442 = vadd.f32 %v440, %v441
        %v443 = vrot.slane %v442, 1
        %v444 = vadd.f32 %v442, %v443
        %v445 = vrcp.pop 24.0
        %v446 = vmul.f32 %v444, %v445
        %v447 = vmul.f32 %v446, %v446
        %v448 = vsub.f32 1.0, %v432
        %v449 = vsub.f32 1.0, %v434
        %v450 = vsub.f32 1.0, %v436
        %v451 = vmul.f32 %v447, %v432
        %v452 = vmul.f32 %v447, %v434
        %v453 = vmul.f32 %v447, %v436
        %v454 = vadd.f32 %v448, %v451
        %v455 = vadd.f32 %v449, %v452
        %v456 = vadd.f32 %v450, %v453
        %v457 = vrcp.pop %v454
        %v458 = vrcp.pop %v455
        %v459 = vrcp.pop %v456
        %v460 = vmul.f32 %v446, %v457
        %v461 = vmul.f32 %v446, %v458
        %v462 = vmul.f32 %v446, %v459
        %v463 = vstv %s247
        %v464 = vmul.f32 %v341, %v463
        %v465 = vmul.f32 %v348, %v463
        %v466 = vmul.f32 %v355, %v463
        %v467 = vand.u32 2147483647, %v464
        %vm468 = vcmp.le.f32.partialorder %v467, 0.7853982
        %vm469 = vcmp.lt.s32.totalorder %v464, 0
        %v470 = vand.u32 %v464, 2139095040
        %v471 = vshrl.u32 %v470, 23
        %v472 = vsub.s32 %v471, 127
        %v473 = vand.u32 2147483647, %v464
        %v474 = vand.u32 %v473, 8388607
        %v475 = vor.u32 %v474, 8388608
        %v476 = vsub.s32 0, %v475
        %v477 = vadd.s32 %v472, 1
        %vm478 = vcmp.gt.s32.totalorder %v477, 0
        %v479 = vsel %vm478, %v477, 0
        %v480 = vshrl.u32 %v479, 5
        %v481 = vand.u32 %v479, 31
        %v482 = vsub.s32 32, %v481
        %v483 = vshrl.u32 683565275, %v482
        %v484 = vshll.u32 683565275, %v481
        %v485 = vshrl.u32 2475754826, %v482
        %v486 = vor.u32 %v484, %v485
        %v487 = vshll.u32 2475754826, %v481
        %v488 = vshrl.u32 2131351028, %v482
        %v489 = vor.u32 %v487, %v488
        %v490 = vshll.u32 2131351028, %v481
        %v491 = vshrl.u32 2102212464, %v482
        %v492 = vor.u32 %v490, %v491
        %v493 = vshll.u32 2102212464, %v481
        %v494 = vshrl.u32 920167782, %v482
        %v495 = vor.u32 %v493, %v494
        %v496 = vshll.u32 920167782, %v481
        %v497 = vshrl.u32 1326507024, %v482
        %v498 = vor.u32 %v496, %v497
        %vm499 = vcmp.lt.s32.totalorder %v480, 1
        %vm500 = vcmp.lt.s32.totalorder %v480, 2
        %vm501 = vcmp.lt.s32.totalorder %v480, 3
        %vm502 = vcmp.lt.s32.totalorder %v480, 4
        %v503 = vsel %vm499, %v483, %v486
        %v504 = vsel %vm502, %v492, 2102212464
        %v505 = vsel %vm501, %v489, %v504
        %v506 = vsel %vm500, %v503, %v505
        %v507 = vsel %vm499, %v486, %v489
        %v508 = vsel %vm502, %v495, 920167782
        %v509 = vsel %vm501, %v492, %v508
        %v510 = vsel %vm500, %v507, %v509
        %v511 = vsel %vm499, %v489, %v492
        %v512 = vsel %vm502, %v498, 1326507024
        %v513 = vsel %vm501, %v495, %v512
        %v514 = vsel %vm500, %v511, %v513
        %v515 = vshll.u32 %v475, 8
        %v516 = vmul.u32.u64.compose %v515, %v514
        %v517 = vextract.low.u32 %v516
        %v518 = vextract.high.u32 %v516
        %v519 = vmul.u32.u64.compose %v515, %v510
        %v520 = vextract.low.u32 %v519
        %v521 = vextract.high.u32 %v519
        %v522 = vmul.u32 %v515, %v506
        %v523 = vadd.s32 %v518, %v520
        %vm524 = vc.u32 %v518, %v520
        %v525 = vadd.s32 %v521, 1
        %v526 = vsel %vm524, %v525, %v521
        %v527 = vadd.s32 %v522, %v526
        %v528 = vadd.s32 %v527, 536870912
        %v529 = vshrl.u32 %v528, 30
        %v530 = vshll.u32 %v529, 30
        %v531 = vsub.s32 %v527, %v530
        %vm532 = vcmp.lt.s32.totalorder %v531, 0
        %v533 = vsub.s32 0, %v531
        %v534 = vsel %vm532, %v533, %v531
        %v535 = vclz %v534
        %v536 = vsub.s32 %v535, 2
        %vm537 = vcmp.gt.s32.totalorder 0, %v536
        %v538 = vsel %vm537, 0, %v536
        %v539 = vsub.s32 32, %v538
        %v540 = vshll.u32 %v531, %v538
        %v541 = vshrl.u32 %v523, %v539
        %v542 = vor.u32 %v540, %v541
        %v543 = vsub.s32 4294967266, %v538
        %v544 = vadd.s32 %v543, 127
        %v545 = vshll.u32 %v544, 23
        %v546 = vor.u32 4788187, %v545
        %v547 = vand.u32 2147483647, %v546
        %v549 = vcvt.s32.f32 %v542
        %v550 = vmul.f32 %v549, %v547
        %v551 = vxor.u32 %v550, 2147483648
        %v552 = vsel %vm469, %v551, %v550
        %v553 = vsub.s32 4, %v529
        %v554 = vsel %vm469, %v553, %v529
        %v555 = vsel %vm468, %v464, %v552
        %v556 = vsel %vm468, 0, %v554
        %v557 = vcosq.f32.pop %v555
        %v558 = vsinq.f32.pop %v555
        %vm559 = vweird.f32 %v464
        %v560 = vand.u32 %v556, 3
        %vm561 = vcmp.lt.s32.totalorder %v560, 2
        %vm562 = vcmp.eq.s32.totalorder %v560, 0
        %v563 = vxor.u32 %v558, 2147483648
        %v564 = vsel %vm562, %v557, %v563
        %vm565 = vcmp.eq.s32.totalorder %v560, 2
        %v566 = vxor.u32 %v557, 2147483648
        %v567 = vsel %vm565, %v566, %v558
        %v568 = vsel %vm561, %v564, %v567
        %v569 = vsel %vm559, nan, %v568
        %v570 = vand.u32 2147483647, %v465
        %vm571 = vcmp.le.f32.partialorder %v570, 0.7853982
        %vm572 = vcmp.lt.s32.totalorder %v465, 0
        %v573 = vand.u32 %v465, 2139095040
        %v574 = vshrl.u32 %v573, 23
        %v575 = vsub.s32 %v574, 127
        %v576 = vand.u32 2147483647, %v465
        %v577 = vand.u32 %v576, 8388607
        %v578 = vor.u32 %v577, 8388608
        %v579 = vsub.s32 0, %v578
        %v580 = vadd.s32 %v575, 1
        %vm581 = vcmp.gt.s32.totalorder %v580, 0
        %v582 = vsel %vm581, %v580, 0
        %v583 = vshrl.u32 %v582, 5
        %v584 = vand.u32 %v582, 31
        %v585 = vsub.s32 32, %v584
        %v586 = vshrl.u32 683565275, %v585
        %v587 = vshll.u32 683565275, %v584
        %v588 = vshrl.u32 2475754826, %v585
        %v589 = vor.u32 %v587, %v588
        %v590 = vshll.u32 2475754826, %v584
        %v591 = vshrl.u32 2131351028, %v585
        %v592 = vor.u32 %v590, %v591
        %v593 = vshll.u32 2131351028, %v584
        %v594 = vshrl.u32 2102212464, %v585
        %v595 = vor.u32 %v593, %v594
        %v596 = vshll.u32 2102212464, %v584
        %v597 = vshrl.u32 920167782, %v585
        %v598 = vor.u32 %v596, %v597
        %v599 = vshll.u32 920167782, %v584
        %v600 = vshrl.u32 1326507024, %v585
        %v601 = vor.u32 %v599, %v600
        %vm602 = vcmp.lt.s32.totalorder %v583, 1
        %vm603 = vcmp.lt.s32.totalorder %v583, 2
        %vm604 = vcmp.lt.s32.totalorder %v583, 3
        %vm605 = vcmp.lt.s32.totalorder %v583, 4
        %v606 = vsel %vm602, %v586, %v589
        %v607 = vsel %vm605, %v595, 2102212464
        %v608 = vsel %vm604, %v592, %v607
        %v609 = vsel %vm603, %v606, %v608
        %v610 = vsel %vm602, %v589, %v592
        %v611 = vsel %vm605, %v598, 920167782
        %v612 = vsel %vm604, %v595, %v611
        %v613 = vsel %vm603, %v610, %v612
        %v614 = vsel %vm602, %v592, %v595
        %v615 = vsel %vm605, %v601, 1326507024
        %v616 = vsel %vm604, %v598, %v615
        %v617 = vsel %vm603, %v614, %v616
        %v618 = vshll.u32 %v578, 8
        %v619 = vmul.u32.u64.compose %v618, %v617
        %v620 = vextract.low.u32 %v619
        %v621 = vextract.high.u32 %v619
        %v622 = vmul.u32.u64.compose %v618, %v613
        %v623 = vextract.low.u32 %v622
        %v624 = vextract.high.u32 %v622
        %v625 = vmul.u32 %v618, %v609
        %v626 = vadd.s32 %v621, %v623
        %vm627 = vc.u32 %v621, %v623
        %v628 = vadd.s32 %v624, 1
        %v629 = vsel %vm627, %v628, %v624
        %v630 = vadd.s32 %v625, %v629
        %v631 = vadd.s32 %v630, 536870912
        %v632 = vshrl.u32 %v631, 30
        %v633 = vshll.u32 %v632, 30
        %v634 = vsub.s32 %v630, %v633
        %vm635 = vcmp.lt.s32.totalorder %v634, 0
        %v636 = vsub.s32 0, %v634
        %v637 = vsel %vm635, %v636, %v634
        %v638 = vclz %v637
        %v639 = vsub.s32 %v638, 2
        %vm640 = vcmp.gt.s32.totalorder 0, %v639
        %v641 = vsel %vm640, 0, %v639
        %v642 = vsub.s32 32, %v641
        %v643 = vshll.u32 %v634, %v641
        %v644 = vshrl.u32 %v626, %v642
        %v645 = vor.u32 %v643, %v644
        %v646 = vsub.s32 4294967266, %v641
        %v647 = vadd.s32 %v646, 127
        %v648 = vshll.u32 %v647, 23
        %v649 = vor.u32 4788187, %v648
        %v650 = vand.u32 2147483647, %v649
        %v652 = vcvt.s32.f32 %v645
        %v653 = vmul.f32 %v652, %v650
        %v654 = vxor.u32 %v653, 2147483648
        %v655 = vsel %vm572, %v654, %v653
        %v656 = vsub.s32 4, %v632
        %v657 = vsel %vm572, %v656, %v632
        %v658 = vsel %vm571, %v465, %v655
        %v659 = vsel %vm571, 0, %v657
        %v660 = vcosq.f32.pop %v658
        %v661 = vsinq.f32.pop %v658
        %vm662 = vweird.f32 %v465
        %v663 = vand.u32 %v659, 3
        %vm664 = vcmp.lt.s32.totalorder %v663, 2
        %vm665 = vcmp.eq.s32.totalorder %v663, 0
        %v666 = vxor.u32 %v661, 2147483648
        %v667 = vsel %vm665, %v660, %v666
        %vm668 = vcmp.eq.s32.totalorder %v663, 2
        %v669 = vxor.u32 %v660, 2147483648
        %v670 = vsel %vm668, %v669, %v661
        %v671 = vsel %vm664, %v667, %v670
        %v672 = vsel %vm662, nan, %v671
        %v673 = vand.u32 2147483647, %v466
        %vm674 = vcmp.le.f32.partialorder %v673, 0.7853982
        %vm675 = vcmp.lt.s32.totalorder %v466, 0
        %v676 = vand.u32 %v466, 2139095040
        %v677 = vshrl.u32 %v676, 23
        %v678 = vsub.s32 %v677, 127
        %v679 = vand.u32 2147483647, %v466
        %v680 = vand.u32 %v679, 8388607
        %v681 = vor.u32 %v680, 8388608
        %v682 = vsub.s32 0, %v681
        %v683 = vadd.s32 %v678, 1
        %vm684 = vcmp.gt.s32.totalorder %v683, 0
        %v685 = vsel %vm684, %v683, 0
        %v686 = vshrl.u32 %v685, 5
        %v687 = vand.u32 %v685, 31
        %v688 = vsub.s32 32, %v687
        %v689 = vshrl.u32 683565275, %v688
        %v690 = vshll.u32 683565275, %v687
        %v691 = vshrl.u32 2475754826, %v688
        %v692 = vor.u32 %v690, %v691
        %v693 = vshll.u32 2475754826, %v687
        %v694 = vshrl.u32 2131351028, %v688
        %v695 = vor.u32 %v693, %v694
        %v696 = vshll.u32 2131351028, %v687
        %v697 = vshrl.u32 2102212464, %v688
        %v698 = vor.u32 %v696, %v697
        %v699 = vshll.u32 2102212464, %v687
        %v700 = vshrl.u32 920167782, %v688
        %v701 = vor.u32 %v699, %v700
        %v702 = vshll.u32 920167782, %v687
        %v703 = vshrl.u32 1326507024, %v688
        %v704 = vor.u32 %v702, %v703
        %vm705 = vcmp.lt.s32.totalorder %v686, 1
        %vm706 = vcmp.lt.s32.totalorder %v686, 2
        %vm707 = vcmp.lt.s32.totalorder %v686, 3
        %vm708 = vcmp.lt.s32.totalorder %v686, 4
        %v709 = vsel %vm705, %v689, %v692
        %v710 = vsel %vm708, %v698, 2102212464
        %v711 = vsel %vm707, %v695, %v710
        %v712 = vsel %vm706, %v709, %v711
        %v713 = vsel %vm705, %v692, %v695
        %v714 = vsel %vm708, %v701, 920167782
        %v715 = vsel %vm707, %v698, %v714
        %v716 = vsel %vm706, %v713, %v715
        %v717 = vsel %vm705, %v695, %v698
        %v718 = vsel %vm708, %v704, 1326507024
        %v719 = vsel %vm707, %v701, %v718
        %v720 = vsel %vm706, %v717, %v719
        %v721 = vshll.u32 %v681, 8
        %v722 = vmul.u32.u64.compose %v721, %v720
        %v723 = vextract.low.u32 %v722
        %v724 = vextract.high.u32 %v722
        %v725 = vmul.u32.u64.compose %v721, %v716
        %v726 = vextract.low.u32 %v725
        %v727 = vextract.high.u32 %v725
        %v728 = vmul.u32 %v721, %v712
        %v729 = vadd.s32 %v724, %v726
        %vm730 = vc.u32 %v724, %v726
        %v731 = vadd.s32 %v727, 1
        %v732 = vsel %vm730, %v731, %v727
        %v733 = vadd.s32 %v728, %v732
        %v734 = vadd.s32 %v733, 536870912
        %v735 = vshrl.u32 %v734, 30
        %v736 = vshll.u32 %v735, 30
        %v737 = vsub.s32 %v733, %v736
        %vm738 = vcmp.lt.s32.totalorder %v737, 0
        %v739 = vsub.s32 0, %v737
        %v740 = vsel %vm738, %v739, %v737
        %v741 = vclz %v740
        %v742 = vsub.s32 %v741, 2
        %vm743 = vcmp.gt.s32.totalorder 0, %v742
        %v744 = vsel %vm743, 0, %v742
        %v745 = vsub.s32 32, %v744
        %v746 = vshll.u32 %v737, %v744
        %v747 = vshrl.u32 %v729, %v745
        %v748 = vor.u32 %v746, %v747
        %v749 = vsub.s32 4294967266, %v744
        %v750 = vadd.s32 %v749, 127
        %v751 = vshll.u32 %v750, 23
        %v752 = vor.u32 4788187, %v751
        %v753 = vand.u32 2147483647, %v752
        %v755 = vcvt.s32.f32 %v748
        %v756 = vmul.f32 %v755, %v753
        %v757 = vxor.u32 %v756, 2147483648
        %v758 = vsel %vm675, %v757, %v756
        %v759 = vsub.s32 4, %v735
        %v760 = vsel %vm675, %v759, %v735
        %v761 = vsel %vm674, %v466, %v758
        %v762 = vsel %vm674, 0, %v760
        %v763 = vcosq.f32.pop %v761
        %v764 = vsinq.f32.pop %v761
        %vm765 = vweird.f32 %v466
        %v766 = vand.u32 %v762, 3
        %vm767 = vcmp.lt.s32.totalorder %v766, 2
        %vm768 = vcmp.eq.s32.totalorder %v766, 0
        %v769 = vxor.u32 %v764, 2147483648
        %v770 = vsel %vm768, %v763, %v769
        %vm771 = vcmp.eq.s32.totalorder %v766, 2
        %v772 = vxor.u32 %v763, 2147483648
        %v773 = vsel %vm771, %v772, %v764
        %v774 = vsel %vm767, %v770, %v773
        %v775 = vsel %vm765, nan, %v774
        %v776 = vmul.f32 %v460, %v569
        %v777 = vmul.f32 %v461, %v672
        %v778 = vmul.f32 %v462, %v775
        %v779 = vadd.f32 %v776, %v777
        %v780 = vadd.f32 %v779, %v778
        %v781 = vrot.slane %v780, 4
        %v782 = vadd.f32 %v780, %v781
        %v783 = vrot.slane %v782, 2
        %v784 = vadd.f32 %v782, %v783
        %v785 = vrot.slane %v784, 1
        %v786 = vadd.f32 %v784, %v785
        %v787 = vmul.f32 %v786, 1.7724539
        %v788 = vand.u32 2147483647, %v464
        %vm789 = vcmp.le.f32.partialorder %v788, 0.7853982
        %vm790 = vcmp.lt.s32.totalorder %v464, 0
        %v791 = vand.u32 %v464, 2139095040
        %v792 = vshrl.u32 %v791, 23
        %v793 = vsub.s32 %v792, 127
        %v794 = vand.u32 2147483647, %v464
        %v795 = vand.u32 %v794, 8388607
        %v796 = vor.u32 %v795, 8388608
        %v797 = vsub.s32 0, %v796
        %v798 = vadd.s32 %v793, 1
        %vm799 = vcmp.gt.s32.totalorder %v798, 0
        %v800 = vsel %vm799, %v798, 0
        %v801 = vshrl.u32 %v800, 5
        %v802 = vand.u32 %v800, 31
        %v803 = vsub.s32 32, %v802
        %v804 = vshrl.u32 683565275, %v803
        %v805 = vshll.u32 683565275, %v802
        %v806 = vshrl.u32 2475754826, %v803
        %v807 = vor.u32 %v805, %v806
        %v808 = vshll.u32 2475754826, %v802
        %v809 = vshrl.u32 2131351028, %v803
        %v810 = vor.u32 %v808, %v809
        %v811 = vshll.u32 2131351028, %v802
        %v812 = vshrl.u32 2102212464, %v803
        %v813 = vor.u32 %v811, %v812
        %v814 = vshll.u32 2102212464, %v802
        %v815 = vshrl.u32 920167782, %v803
        %v816 = vor.u32 %v814, %v815
        %v817 = vshll.u32 920167782, %v802
        %v818 = vshrl.u32 1326507024, %v803
        %v819 = vor.u32 %v817, %v818
        %vm820 = vcmp.lt.s32.totalorder %v801, 1
        %vm821 = vcmp.lt.s32.totalorder %v801, 2
        %vm822 = vcmp.lt.s32.totalorder %v801, 3
        %vm823 = vcmp.lt.s32.totalorder %v801, 4
        %v824 = vsel %vm820, %v804, %v807
        %v825 = vsel %vm823, %v813, 2102212464
        %v826 = vsel %vm822, %v810, %v825
        %v827 = vsel %vm821, %v824, %v826
        %v828 = vsel %vm820, %v807, %v810
        %v829 = vsel %vm823, %v816, 920167782
        %v830 = vsel %vm822, %v813, %v829
        %v831 = vsel %vm821, %v828, %v830
        %v832 = vsel %vm820, %v810, %v813
        %v833 = vsel %vm823, %v819, 1326507024
        %v834 = vsel %vm822, %v816, %v833
        %v835 = vsel %vm821, %v832, %v834
        %v836 = vshll.u32 %v796, 8
        %v837 = vmul.u32.u64.compose %v836, %v835
        %v838 = vextract.low.u32 %v837
        %v839 = vextract.high.u32 %v837
        %v840 = vmul.u32.u64.compose %v836, %v831
        %v841 = vextract.low.u32 %v840
        %v842 = vextract.high.u32 %v840
        %v843 = vmul.u32 %v836, %v827
        %v844 = vadd.s32 %v839, %v841
        %vm845 = vc.u32 %v839, %v841
        %v846 = vadd.s32 %v842, 1
        %v847 = vsel %vm845, %v846, %v842
        %v848 = vadd.s32 %v843, %v847
        %v849 = vadd.s32 %v848, 536870912
        %v850 = vshrl.u32 %v849, 30
        %v851 = vshll.u32 %v850, 30
        %v852 = vsub.s32 %v848, %v851
        %vm853 = vcmp.lt.s32.totalorder %v852, 0
        %v854 = vsub.s32 0, %v852
        %v855 = vsel %vm853, %v854, %v852
        %v856 = vclz %v855
        %v857 = vsub.s32 %v856, 2
        %vm858 = vcmp.gt.s32.totalorder 0, %v857
        %v859 = vsel %vm858, 0, %v857
        %v860 = vsub.s32 32, %v859
        %v861 = vshll.u32 %v852, %v859
        %v862 = vshrl.u32 %v844, %v860
        %v863 = vor.u32 %v861, %v862
        %v864 = vsub.s32 4294967266, %v859
        %v865 = vadd.s32 %v864, 127
        %v866 = vshll.u32 %v865, 23
        %v867 = vor.u32 4788187, %v866
        %v868 = vand.u32 2147483647, %v867
        %v870 = vcvt.s32.f32 %v863
        %v871 = vmul.f32 %v870, %v868
        %v872 = vxor.u32 %v871, 2147483648
        %v873 = vsel %vm790, %v872, %v871
        %v874 = vsub.s32 4, %v850
        %v875 = vsel %vm790, %v874, %v850
        %v876 = vsel %vm789, %v464, %v873
        %v877 = vsel %vm789, 0, %v875
        %v878 = vcosq.f32.pop %v876
        %v879 = vsinq.f32.pop %v876
        %vm880 = vweird.f32 %v464
        %v881 = vadd.s32 %v877, 3
        %v882 = vand.u32 %v881, 3
        %vm883 = vcmp.lt.s32.totalorder %v882, 2
        %vm884 = vcmp.eq.s32.totalorder %v882, 0
        %v885 = vxor.u32 %v879, 2147483648
        %v886 = vsel %vm884, %v878, %v885
        %vm887 = vcmp.eq.s32.totalorder %v882, 2
        %v888 = vxor.u32 %v878, 2147483648
        %v889 = vsel %vm887, %v888, %v879
        %v890 = vsel %vm883, %v886, %v889
        %v891 = vsel %vm880, nan, %v890
        %v892 = vand.u32 2147483647, %v465
        %vm893 = vcmp.le.f32.partialorder %v892, 0.7853982
        %vm894 = vcmp.lt.s32.totalorder %v465, 0
        %v895 = vand.u32 %v465, 2139095040
        %v896 = vshrl.u32 %v895, 23
        %v897 = vsub.s32 %v896, 127
        %v898 = vand.u32 2147483647, %v465
        %v899 = vand.u32 %v898, 8388607
        %v900 = vor.u32 %v899, 8388608
        %v901 = vsub.s32 0, %v900
        %v902 = vadd.s32 %v897, 1
        %vm903 = vcmp.gt.s32.totalorder %v902, 0
        %v904 = vsel %vm903, %v902, 0
        %v905 = vshrl.u32 %v904, 5
        %v906 = vand.u32 %v904, 31
        %v907 = vsub.s32 32, %v906
        %v908 = vshrl.u32 683565275, %v907
        %v909 = vshll.u32 683565275, %v906
        %v910 = vshrl.u32 2475754826, %v907
        %v911 = vor.u32 %v909, %v910
        %v912 = vshll.u32 2475754826, %v906
        %v913 = vshrl.u32 2131351028, %v907
        %v914 = vor.u32 %v912, %v913
        %v915 = vshll.u32 2131351028, %v906
        %v916 = vshrl.u32 2102212464, %v907
        %v917 = vor.u32 %v915, %v916
        %v918 = vshll.u32 2102212464, %v906
        %v919 = vshrl.u32 920167782, %v907
        %v920 = vor.u32 %v918, %v919
        %v921 = vshll.u32 920167782, %v906
        %v922 = vshrl.u32 1326507024, %v907
        %v923 = vor.u32 %v921, %v922
        %vm924 = vcmp.lt.s32.totalorder %v905, 1
        %vm925 = vcmp.lt.s32.totalorder %v905, 2
        %vm926 = vcmp.lt.s32.totalorder %v905, 3
        %vm927 = vcmp.lt.s32.totalorder %v905, 4
        %v928 = vsel %vm924, %v908, %v911
        %v929 = vsel %vm927, %v917, 2102212464
        %v930 = vsel %vm926, %v914, %v929
        %v931 = vsel %vm925, %v928, %v930
        %v932 = vsel %vm924, %v911, %v914
        %v933 = vsel %vm927, %v920, 920167782
        %v934 = vsel %vm926, %v917, %v933
        %v935 = vsel %vm925, %v932, %v934
        %v936 = vsel %vm924, %v914, %v917
        %v937 = vsel %vm927, %v923, 1326507024
        %v938 = vsel %vm926, %v920, %v937
        %v939 = vsel %vm925, %v936, %v938
        %v940 = vshll.u32 %v900, 8
        %v941 = vmul.u32.u64.compose %v940, %v939
        %v942 = vextract.low.u32 %v941
        %v943 = vextract.high.u32 %v941
        %v944 = vmul.u32.u64.compose %v940, %v935
        %v945 = vextract.low.u32 %v944
        %v946 = vextract.high.u32 %v944
        %v947 = vmul.u32 %v940, %v931
        %v948 = vadd.s32 %v943, %v945
        %vm949 = vc.u32 %v943, %v945
        %v950 = vadd.s32 %v946, 1
        %v951 = vsel %vm949, %v950, %v946
        %v952 = vadd.s32 %v947, %v951
        %v953 = vadd.s32 %v952, 536870912
        %v954 = vshrl.u32 %v953, 30
        %v955 = vshll.u32 %v954, 30
        %v956 = vsub.s32 %v952, %v955
        %vm957 = vcmp.lt.s32.totalorder %v956, 0
        %v958 = vsub.s32 0, %v956
        %v959 = vsel %vm957, %v958, %v956
        %v960 = vclz %v959
        %v961 = vsub.s32 %v960, 2
        %vm962 = vcmp.gt.s32.totalorder 0, %v961
        %v963 = vsel %vm962, 0, %v961
        %v964 = vsub.s32 32, %v963
        %v965 = vshll.u32 %v956, %v963
        %v966 = vshrl.u32 %v948, %v964
        %v967 = vor.u32 %v965, %v966
        %v968 = vsub.s32 4294967266, %v963
        %v969 = vadd.s32 %v968, 127
        %v970 = vshll.u32 %v969, 23
        %v971 = vor.u32 4788187, %v970
        %v972 = vand.u32 2147483647, %v971
        %v974 = vcvt.s32.f32 %v967
        %v975 = vmul.f32 %v974, %v972
        %v976 = vxor.u32 %v975, 2147483648
        %v977 = vsel %vm894, %v976, %v975
        %v978 = vsub.s32 4, %v954
        %v979 = vsel %vm894, %v978, %v954
        %v980 = vsel %vm893, %v465, %v977
        %v981 = vsel %vm893, 0, %v979
        %v982 = vcosq.f32.pop %v980
        %v983 = vsinq.f32.pop %v980
        %vm984 = vweird.f32 %v465
        %v985 = vadd.s32 %v981, 3
        %v986 = vand.u32 %v985, 3
        %vm987 = vcmp.lt.s32.totalorder %v986, 2
        %vm988 = vcmp.eq.s32.totalorder %v986, 0
        %v989 = vxor.u32 %v983, 2147483648
        %v990 = vsel %vm988, %v982, %v989
        %vm991 = vcmp.eq.s32.totalorder %v986, 2
        %v992 = vxor.u32 %v982, 2147483648
        %v993 = vsel %vm991, %v992, %v983
        %v994 = vsel %vm987, %v990, %v993
        %v995 = vsel %vm984, nan, %v994
        %v996 = vand.u32 2147483647, %v466
        %vm997 = vcmp.le.f32.partialorder %v996, 0.7853982
        %vm998 = vcmp.lt.s32.totalorder %v466, 0
        %v999 = vand.u32 %v466, 2139095040
        %v1000 = vshrl.u32 %v999, 23
        %v1001 = vsub.s32 %v1000, 127
        %v1002 = vand.u32 2147483647, %v466
        %v1003 = vand.u32 %v1002, 8388607
        %v1004 = vor.u32 %v1003, 8388608
        %v1005 = vsub.s32 0, %v1004
        %v1006 = vadd.s32 %v1001, 1
        %vm1007 = vcmp.gt.s32.totalorder %v1006, 0
        %v1008 = vsel %vm1007, %v1006, 0
        %v1009 = vshrl.u32 %v1008, 5
        %v1010 = vand.u32 %v1008, 31
        %v1011 = vsub.s32 32, %v1010
        %v1012 = vshrl.u32 683565275, %v1011
        %v1013 = vshll.u32 683565275, %v1010
        %v1014 = vshrl.u32 2475754826, %v1011
        %v1015 = vor.u32 %v1013, %v1014
        %v1016 = vshll.u32 2475754826, %v1010
        %v1017 = vshrl.u32 2131351028, %v1011
        %v1018 = vor.u32 %v1016, %v1017
        %v1019 = vshll.u32 2131351028, %v1010
        %v1020 = vshrl.u32 2102212464, %v1011
        %v1021 = vor.u32 %v1019, %v1020
        %v1022 = vshll.u32 2102212464, %v1010
        %v1023 = vshrl.u32 920167782, %v1011
        %v1024 = vor.u32 %v1022, %v1023
        %v1025 = vshll.u32 920167782, %v1010
        %v1026 = vshrl.u32 1326507024, %v1011
        %v1027 = vor.u32 %v1025, %v1026
        %vm1028 = vcmp.lt.s32.totalorder %v1009, 1
        %vm1029 = vcmp.lt.s32.totalorder %v1009, 2
        %vm1030 = vcmp.lt.s32.totalorder %v1009, 3
        %vm1031 = vcmp.lt.s32.totalorder %v1009, 4
        %v1032 = vsel %vm1028, %v1012, %v1015
        %v1033 = vsel %vm1031, %v1021, 2102212464
        %v1034 = vsel %vm1030, %v1018, %v1033
        %v1035 = vsel %vm1029, %v1032, %v1034
        %v1036 = vsel %vm1028, %v1015, %v1018
        %v1037 = vsel %vm1031, %v1024, 920167782
        %v1038 = vsel %vm1030, %v1021, %v1037
        %v1039 = vsel %vm1029, %v1036, %v1038
        %v1040 = vsel %vm1028, %v1018, %v1021
        %v1041 = vsel %vm1031, %v1027, 1326507024
        %v1042 = vsel %vm1030, %v1024, %v1041
        %v1043 = vsel %vm1029, %v1040, %v1042
        %v1044 = vshll.u32 %v1004, 8
        %v1045 = vmul.u32.u64.compose %v1044, %v1043
        %v1046 = vextract.low.u32 %v1045
        %v1047 = vextract.high.u32 %v1045
        %v1048 = vmul.u32.u64.compose %v1044, %v1039
        %v1049 = vextract.low.u32 %v1048
        %v1050 = vextract.high.u32 %v1048
        %v1051 = vmul.u32 %v1044, %v1035
        %v1052 = vadd.s32 %v1047, %v1049
        %vm1053 = vc.u32 %v1047, %v1049
        %v1054 = vadd.s32 %v1050, 1
        %v1055 = vsel %vm1053, %v1054, %v1050
        %v1056 = vadd.s32 %v1051, %v1055
        %v1057 = vadd.s32 %v1056, 536870912
        %v1058 = vshrl.u32 %v1057, 30
        %v1059 = vshll.u32 %v1058, 30
        %v1060 = vsub.s32 %v1056, %v1059
        %vm1061 = vcmp.lt.s32.totalorder %v1060, 0
        %v1062 = vsub.s32 0, %v1060
        %v1063 = vsel %vm1061, %v1062, %v1060
        %v1064 = vclz %v1063
        %v1065 = vsub.s32 %v1064, 2
        %vm1066 = vcmp.gt.s32.totalorder 0, %v1065
        %v1067 = vsel %vm1066, 0, %v1065
        %v1068 = vsub.s32 32, %v1067
        %v1069 = vshll.u32 %v1060, %v1067
        %v1070 = vshrl.u32 %v1052, %v1068
        %v1071 = vor.u32 %v1069, %v1070
        %v1072 = vsub.s32 4294967266, %v1067
        %v1073 = vadd.s32 %v1072, 127
        %v1074 = vshll.u32 %v1073, 23
        %v1075 = vor.u32 4788187, %v1074
        %v1076 = vand.u32 2147483647, %v1075
        %v1078 = vcvt.s32.f32 %v1071
        %v1079 = vmul.f32 %v1078, %v1076
        %v1080 = vxor.u32 %v1079, 2147483648
        %v1081 = vsel %vm998, %v1080, %v1079
        %v1082 = vsub.s32 4, %v1058
        %v1083 = vsel %vm998, %v1082, %v1058
        %v1084 = vsel %vm997, %v466, %v1081
        %v1085 = vsel %vm997, 0, %v1083
        %v1086 = vcosq.f32.pop %v1084
        %v1087 = vsinq.f32.pop %v1084
        %vm1088 = vweird.f32 %v466
        %v1089 = vadd.s32 %v1085, 3
        %v1090 = vand.u32 %v1089, 3
        %vm1091 = vcmp.lt.s32.totalorder %v1090, 2
        %vm1092 = vcmp.eq.s32.totalorder %v1090, 0
        %v1093 = vxor.u32 %v1087, 2147483648
        %v1094 = vsel %vm1092, %v1086, %v1093
        %vm1095 = vcmp.eq.s32.totalorder %v1090, 2
        %v1096 = vxor.u32 %v1086, 2147483648
        %v1097 = vsel %vm1095, %v1096, %v1087
        %v1098 = vsel %vm1091, %v1094, %v1097
        %v1099 = vsel %vm1088, nan, %v1098
        %v1100 = vmul.f32 %v460, %v891
        %v1101 = vmul.f32 %v461, %v995
        %v1102 = vmul.f32 %v462, %v1099
        %v1103 = vadd.f32 %v1100, %v1101
        %v1104 = vadd.f32 %v1103, %v1102
        %v1105 = vrot.slane %v1104, 4
        %v1106 = vadd.f32 %v1104, %v1105
        %v1107 = vrot.slane %v1106, 2
        %v1108 = vadd.f32 %v1106, %v1107
        %v1109 = vrot.slane %v1108, 1
        %v1110 = vadd.f32 %v1108, %v1109
        %v1111 = vmul.f32 %v1110, 1.7724539
        %vm1112 = vcmask 1040384
        %v1113 = vsel %vm1112, %v787, %v1111
        %1114 = vst [vmem:[#allocation2] sm:$0x3] %v1113
        %s1115 = scalar_lea.vmem %s234, 8
        %v1116 = vld [vmem:[%s1115] sm:$0xff]
        %v1117 = vld [vmem:[%s1115 + $0x10] sm:$0xff]
        %v1118 = vld [vmem:[%s1115 + $0x20] sm:$0xff]
        %v1119 = vld [vmem:[%s1115 + $0x30] sm:$0xff]
        %v1120 = vld [vmem:[%s1115 + $0x40] sm:$0xff]
        %v1121 = vld [vmem:[%s1115 + $0x50] sm:$0xff]
        %s1122 = sadd.s32 1, 12
        %s1123 = smul.addr %s1122, 8
        %s1124 = scalar_lea.vmem %s234, %s1123
        %v1125 = vld [vmem:[%s1124] sm:$0xff]
        %v1126 = vld [vmem:[%s1124 + $0x10] sm:$0xff]
        %v1127 = vld [vmem:[%s1124 + $0x20] sm:$0xff]
        %v1128 = vld [vmem:[%s1124 + $0x30] sm:$0xff]
        %v1129 = vld [vmem:[%s1124 + $0x40] sm:$0xff]
        %v1130 = vld [vmem:[%s1124 + $0x50] sm:$0xff]
        %s1131 = sadd.s32 1, 24
        %s1132 = smul.addr %s1131, 8
        %s1133 = scalar_lea.vmem %s234, %s1132
        %v1134 = vld [vmem:[%s1133] sm:$0xff]
        %v1135 = vld [vmem:[%s1133 + $0x10] sm:$0xff]
        %v1136 = vld [vmem:[%s1133 + $0x20] sm:$0xff]
        %v1137 = vld [vmem:[%s1133 + $0x30] sm:$0xff]
        %v1138 = vld [vmem:[%s1133 + $0x40] sm:$0xff]
        %v1139 = vld [vmem:[%s1133 + $0x50] sm:$0xff]
        %v1140 = vsub.f32 %v1119, %v1116
        %v1141 = vsub.f32 %v1120, %v1117
        %v1142 = vsub.f32 %v1121, %v1118
        %v1143 = vsub.f32 %v1128, %v1125
        %v1144 = vsub.f32 %v1129, %v1126
        %v1145 = vsub.f32 %v1130, %v1127
        %v1146 = vsub.f32 %v1137, %v1134
        %v1147 = vsub.f32 %v1138, %v1135
        %v1148 = vsub.f32 %v1139, %v1136
        %v1149 = vadd.f32 %v1116, %v1119
        %v1150 = vadd.f32 %v1117, %v1120
        %v1151 = vadd.f32 %v1118, %v1121
        %v1152 = vmul.f32 %v1149, 0.5
        %v1153 = vmul.f32 %v1150, 0.5
        %v1154 = vmul.f32 %v1151, 0.5
        %v1155 = vsub.f32 %v287, %v1152
        %v1156 = vsub.f32 %v287, %v1153
        %v1157 = vsub.f32 %v287, %v1154
        %v1158 = vadd.f32 %v1125, %v1128
        %v1159 = vadd.f32 %v1126, %v1129
        %v1160 = vadd.f32 %v1127, %v1130
        %v1161 = vmul.f32 %v1158, 0.5
        %v1162 = vmul.f32 %v1159, 0.5
        %v1163 = vmul.f32 %v1160, 0.5
        %v1164 = vsub.f32 %v297, %v1161
        %v1165 = vsub.f32 %v297, %v1162
        %v1166 = vsub.f32 %v297, %v1163
        %v1167 = vadd.f32 %v1134, %v1137
        %v1168 = vadd.f32 %v1135, %v1138
        %v1169 = vadd.f32 %v1136, %v1139
        %v1170 = vmul.f32 %v1167, 0.5
        %v1171 = vmul.f32 %v1168, 0.5
        %v1172 = vmul.f32 %v1169, 0.5
        %v1173 = vsub.f32 %v307, %v1170
        %v1174 = vsub.f32 %v307, %v1171
        %v1175 = vsub.f32 %v307, %v1172
        %v1176 = vsub.f32 %v1116, %v287
        %v1177 = vsub.f32 %v1117, %v287
        %v1178 = vsub.f32 %v1118, %v287
        %v1179 = vsub.f32 %v1125, %v297
        %v1180 = vsub.f32 %v1126, %v297
        %v1181 = vsub.f32 %v1127, %v297
        %v1182 = vsub.f32 %v1134, %v307
        %v1183 = vsub.f32 %v1135, %v307
        %v1184 = vsub.f32 %v1136, %v307
        %v1185 = vmul.f32 %v1176, %v1176
        %v1186 = vmul.f32 %v1177, %v1177
        %v1187 = vmul.f32 %v1178, %v1178
        %v1188 = vmul.f32 %v1179, %v1179
        %v1189 = vmul.f32 %v1180, %v1180
        %v1190 = vmul.f32 %v1181, %v1181
        %v1191 = vadd.f32 %v1185, %v1188
        %v1192 = vadd.f32 %v1186, %v1189
        %v1193 = vadd.f32 %v1187, %v1190
        %v1194 = vmul.f32 %v1182, %v1182
        %v1195 = vmul.f32 %v1183, %v1183
        %v1196 = vmul.f32 %v1184, %v1184
        %v1197 = vadd.f32 %v1191, %v1194
        %v1198 = vadd.f32 %v1192, %v1195
        %v1199 = vadd.f32 %v1193, %v1196
        %v1200 = vrsqrt.pop %v1197
        %v1201 = vmul.f32 %v1197, %v1200
        %vm1202 = vcmp.eq.f32.partialorder %v1197, inf
        %v1203 = vsel %vm1202, %v1197, %v1201
        %vm1204 = vcmp.eq.f32.partialorder %v1197, 0.0
        %v1205 = vand.u32 %v1197, 2147483648
        %v1206 = vsel %vm1204, %v1205, %v1203
        %v1207 = vrsqrt.pop %v1198
        %v1208 = vmul.f32 %v1198, %v1207
        %vm1209 = vcmp.eq.f32.partialorder %v1198, inf
        %v1210 = vsel %vm1209, %v1198, %v1208
        %vm1211 = vcmp.eq.f32.partialorder %v1198, 0.0
        %v1212 = vand.u32 %v1198, 2147483648
        %v1213 = vsel %vm1211, %v1212, %v1210
        %v1214 = vrsqrt.pop %v1199
        %v1215 = vmul.f32 %v1199, %v1214
        %vm1216 = vcmp.eq.f32.partialorder %v1199, inf
        %v1217 = vsel %vm1216, %v1199, %v1215
        %vm1218 = vcmp.eq.f32.partialorder %v1199, 0.0
        %v1219 = vand.u32 %v1199, 2147483648
        %v1220 = vsel %vm1218, %v1219, %v1217
        %v1221 = vmul.f32 %v1155, %v1140
        %v1222 = vmul.f32 %v1156, %v1141
        %v1223 = vmul.f32 %v1157, %v1142
        %v1224 = vmul.f32 %v1164, %v1143
        %v1225 = vmul.f32 %v1165, %v1144
        %v1226 = vmul.f32 %v1166, %v1145
        %v1227 = vadd.f32 %v1221, %v1224
        %v1228 = vadd.f32 %v1222, %v1225
        %v1229 = vadd.f32 %v1223, %v1226
        %v1230 = vmul.f32 %v1173, %v1146
        %v1231 = vmul.f32 %v1174, %v1147
        %v1232 = vmul.f32 %v1175, %v1148
        %v1233 = vadd.f32 %v1227, %v1230
        %v1234 = vadd.f32 %v1228, %v1231
        %v1235 = vadd.f32 %v1229, %v1232
        %v1236 = vmul.f32 %v1155, %v1155
        %v1237 = vmul.f32 %v1156, %v1156
        %v1238 = vmul.f32 %v1157, %v1157
        %v1239 = vmul.f32 %v1164, %v1164
        %v1240 = vmul.f32 %v1165, %v1165
        %v1241 = vmul.f32 %v1166, %v1166
        %v1242 = vadd.f32 %v1236, %v1239
        %v1243 = vadd.f32 %v1237, %v1240
        %v1244 = vadd.f32 %v1238, %v1241
        %v1245 = vmul.f32 %v1173, %v1173
        %v1246 = vmul.f32 %v1174, %v1174
        %v1247 = vmul.f32 %v1175, %v1175
        %v1248 = vadd.f32 %v1242, %v1245
        %v1249 = vadd.f32 %v1243, %v1246
        %v1250 = vadd.f32 %v1244, %v1247
        %v1251 = vmul.f32 %v1140, %v1140
        %v1252 = vmul.f32 %v1141, %v1141
        %v1253 = vmul.f32 %v1142, %v1142
        %v1254 = vmul.f32 %v1143, %v1143
        %v1255 = vmul.f32 %v1144, %v1144
        %v1256 = vmul.f32 %v1145, %v1145
        %v1257 = vadd.f32 %v1251, %v1254
        %v1258 = vadd.f32 %v1252, %v1255
        %v1259 = vadd.f32 %v1253, %v1256
        %v1260 = vmul.f32 %v1146, %v1146
        %v1261 = vmul.f32 %v1147, %v1147
        %v1262 = vmul.f32 %v1148, %v1148
        %v1263 = vadd.f32 %v1257, %v1260
        %v1264 = vadd.f32 %v1258, %v1261
        %v1265 = vadd.f32 %v1259, %v1262
        %v1266 = vrsqrt.pop %v1263
        %v1267 = vmul.f32 %v1263, %v1266
        %vm1268 = vcmp.eq.f32.partialorder %v1263, inf
        %v1269 = vsel %vm1268, %v1263, %v1267
        %vm1270 = vcmp.eq.f32.partialorder %v1263, 0.0
        %v1271 = vand.u32 %v1263, 2147483648
        %v1272 = vsel %vm1270, %v1271, %v1269
        %v1273 = vrsqrt.pop %v1264
        %v1274 = vmul.f32 %v1264, %v1273
        %vm1275 = vcmp.eq.f32.partialorder %v1264, inf
        %v1276 = vsel %vm1275, %v1264, %v1274
        %vm1277 = vcmp.eq.f32.partialorder %v1264, 0.0
        %v1278 = vand.u32 %v1264, 2147483648
        %v1279 = vsel %vm1277, %v1278, %v1276
        %v1280 = vrsqrt.pop %v1265
        %v1281 = vmul.f32 %v1265, %v1280
        %vm1282 = vcmp.eq.f32.partialorder %v1265, inf
        %v1283 = vsel %vm1282, %v1265, %v1281
        %vm1284 = vcmp.eq.f32.partialorder %v1265, 0.0
        %v1285 = vand.u32 %v1265, 2147483648
        %v1286 = vsel %vm1284, %v1285, %v1283
        %v1287 = vmul.f32 %v1233, %v1233
        %v1288 = vmul.f32 %v1234, %v1234
        %v1289 = vmul.f32 %v1235, %v1235
        %v1290 = vmul.f32 %v1248, %v1263
        %v1291 = vmul.f32 %v1249, %v1264
        %v1292 = vmul.f32 %v1250, %v1265
        %v1293 = vadd.f32 %v1290, 1e-12
        %v1294 = vadd.f32 %v1291, 1e-12
        %v1295 = vadd.f32 %v1292, 1e-12
        %v1296 = vrcp.pop %v1293
        %v1297 = vmul.f32 %v1287, %v1296
        %v1298 = vrcp.pop %v1294
        %v1299 = vmul.f32 %v1288, %v1298
        %v1300 = vrcp.pop %v1295
        %v1301 = vmul.f32 %v1289, %v1300
        %v1302 = vadd.f32 %v1272, %v1279
        %v1303 = vadd.f32 %v1302, %v1286
        %v1304 = vrot.slane %v1303, 4
        %v1305 = vadd.f32 %v1303, %v1304
        %v1306 = vrot.slane %v1305, 2
        %v1307 = vadd.f32 %v1305, %v1306
        %v1308 = vrot.slane %v1307, 1
        %v1309 = vadd.f32 %v1307, %v1308
        %v1310 = vmul.f32 %v1309, %v445
        %v1311 = vmul.f32 %v1310, %v1310
        %v1312 = vsub.f32 1.0, %v1297
        %v1313 = vsub.f32 1.0, %v1299
        %v1314 = vsub.f32 1.0, %v1301
        %v1315 = vmul.f32 %v1311, %v1297
        %v1316 = vmul.f32 %v1311, %v1299
        %v1317 = vmul.f32 %v1311, %v1301
        %v1318 = vadd.f32 %v1312, %v1315
        %v1319 = vadd.f32 %v1313, %v1316
        %v1320 = vadd.f32 %v1314, %v1317
        %v1321 = vrcp.pop %v1318
        %v1322 = vrcp.pop %v1319
        %v1323 = vrcp.pop %v1320
        %v1324 = vmul.f32 %v1310, %v1321
        %v1325 = vmul.f32 %v1310, %v1322
        %v1326 = vmul.f32 %v1310, %v1323
        %v1327 = vmul.f32 %v1206, %v463
        %v1328 = vmul.f32 %v1213, %v463
        %v1329 = vmul.f32 %v1220, %v463
        %v1330 = vand.u32 2147483647, %v1327
        %vm1331 = vcmp.le.f32.partialorder %v1330, 0.7853982
        %vm1332 = vcmp.lt.s32.totalorder %v1327, 0
        %v1333 = vand.u32 %v1327, 2139095040
        %v1334 = vshrl.u32 %v1333, 23
        %v1335 = vsub.s32 %v1334, 127
        %v1336 = vand.u32 2147483647, %v1327
        %v1337 = vand.u32 %v1336, 8388607
        %v1338 = vor.u32 %v1337, 8388608
        %v1339 = vsub.s32 0, %v1338
        %v1340 = vadd.s32 %v1335, 1
        %vm1341 = vcmp.gt.s32.totalorder %v1340, 0
        %v1342 = vsel %vm1341, %v1340, 0
        %v1343 = vshrl.u32 %v1342, 5
        %v1344 = vand.u32 %v1342, 31
        %v1345 = vsub.s32 32, %v1344
        %v1346 = vshrl.u32 683565275, %v1345
        %v1347 = vshll.u32 683565275, %v1344
        %v1348 = vshrl.u32 2475754826, %v1345
        %v1349 = vor.u32 %v1347, %v1348
        %v1350 = vshll.u32 2475754826, %v1344
        %v1351 = vshrl.u32 2131351028, %v1345
        %v1352 = vor.u32 %v1350, %v1351
        %v1353 = vshll.u32 2131351028, %v1344
        %v1354 = vshrl.u32 2102212464, %v1345
        %v1355 = vor.u32 %v1353, %v1354
        %v1356 = vshll.u32 2102212464, %v1344
        %v1357 = vshrl.u32 920167782, %v1345
        %v1358 = vor.u32 %v1356, %v1357
        %v1359 = vshll.u32 920167782, %v1344
        %v1360 = vshrl.u32 1326507024, %v1345
        %v1361 = vor.u32 %v1359, %v1360
        %vm1362 = vcmp.lt.s32.totalorder %v1343, 1
        %vm1363 = vcmp.lt.s32.totalorder %v1343, 2
        %vm1364 = vcmp.lt.s32.totalorder %v1343, 3
        %vm1365 = vcmp.lt.s32.totalorder %v1343, 4
        %v1366 = vsel %vm1362, %v1346, %v1349
        %v1367 = vsel %vm1365, %v1355, 2102212464
        %v1368 = vsel %vm1364, %v1352, %v1367
        %v1369 = vsel %vm1363, %v1366, %v1368
        %v1370 = vsel %vm1362, %v1349, %v1352
        %v1371 = vsel %vm1365, %v1358, 920167782
        %v1372 = vsel %vm1364, %v1355, %v1371
        %v1373 = vsel %vm1363, %v1370, %v1372
        %v1374 = vsel %vm1362, %v1352, %v1355
        %v1375 = vsel %vm1365, %v1361, 1326507024
        %v1376 = vsel %vm1364, %v1358, %v1375
        %v1377 = vsel %vm1363, %v1374, %v1376
        %v1378 = vshll.u32 %v1338, 8
        %v1379 = vmul.u32.u64.compose %v1378, %v1377
        %v1380 = vextract.low.u32 %v1379
        %v1381 = vextract.high.u32 %v1379
        %v1382 = vmul.u32.u64.compose %v1378, %v1373
        %v1383 = vextract.low.u32 %v1382
        %v1384 = vextract.high.u32 %v1382
        %v1385 = vmul.u32 %v1378, %v1369
        %v1386 = vadd.s32 %v1381, %v1383
        %vm1387 = vc.u32 %v1381, %v1383
        %v1388 = vadd.s32 %v1384, 1
        %v1389 = vsel %vm1387, %v1388, %v1384
        %v1390 = vadd.s32 %v1385, %v1389
        %v1391 = vadd.s32 %v1390, 536870912
        %v1392 = vshrl.u32 %v1391, 30
        %v1393 = vshll.u32 %v1392, 30
        %v1394 = vsub.s32 %v1390, %v1393
        %vm1395 = vcmp.lt.s32.totalorder %v1394, 0
        %v1396 = vsub.s32 0, %v1394
        %v1397 = vsel %vm1395, %v1396, %v1394
        %v1398 = vclz %v1397
        %v1399 = vsub.s32 %v1398, 2
        %vm1400 = vcmp.gt.s32.totalorder 0, %v1399
        %v1401 = vsel %vm1400, 0, %v1399
        %v1402 = vsub.s32 32, %v1401
        %v1403 = vshll.u32 %v1394, %v1401
        %v1404 = vshrl.u32 %v1386, %v1402
        %v1405 = vor.u32 %v1403, %v1404
        %v1406 = vsub.s32 4294967266, %v1401
        %v1407 = vadd.s32 %v1406, 127
        %v1408 = vshll.u32 %v1407, 23
        %v1409 = vor.u32 4788187, %v1408
        %v1410 = vand.u32 2147483647, %v1409
        %v1412 = vcvt.s32.f32 %v1405
        %v1413 = vmul.f32 %v1412, %v1410
        %v1414 = vxor.u32 %v1413, 2147483648
        %v1415 = vsel %vm1332, %v1414, %v1413
        %v1416 = vsub.s32 4, %v1392
        %v1417 = vsel %vm1332, %v1416, %v1392
        %v1418 = vsel %vm1331, %v1327, %v1415
        %v1419 = vsel %vm1331, 0, %v1417
        %v1420 = vcosq.f32.pop %v1418
        %v1421 = vsinq.f32.pop %v1418
        %vm1422 = vweird.f32 %v1327
        %v1423 = vand.u32 %v1419, 3
        %vm1424 = vcmp.lt.s32.totalorder %v1423, 2
        %vm1425 = vcmp.eq.s32.totalorder %v1423, 0
        %v1426 = vxor.u32 %v1421, 2147483648
        %v1427 = vsel %vm1425, %v1420, %v1426
        %vm1428 = vcmp.eq.s32.totalorder %v1423, 2
        %v1429 = vxor.u32 %v1420, 2147483648
        %v1430 = vsel %vm1428, %v1429, %v1421
        %v1431 = vsel %vm1424, %v1427, %v1430
        %v1432 = vsel %vm1422, nan, %v1431
        %v1433 = vand.u32 2147483647, %v1328
        %vm1434 = vcmp.le.f32.partialorder %v1433, 0.7853982
        %vm1435 = vcmp.lt.s32.totalorder %v1328, 0
        %v1436 = vand.u32 %v1328, 2139095040
        %v1437 = vshrl.u32 %v1436, 23
        %v1438 = vsub.s32 %v1437, 127
        %v1439 = vand.u32 2147483647, %v1328
        %v1440 = vand.u32 %v1439, 8388607
        %v1441 = vor.u32 %v1440, 8388608
        %v1442 = vsub.s32 0, %v1441
        %v1443 = vadd.s32 %v1438, 1
        %vm1444 = vcmp.gt.s32.totalorder %v1443, 0
        %v1445 = vsel %vm1444, %v1443, 0
        %v1446 = vshrl.u32 %v1445, 5
        %v1447 = vand.u32 %v1445, 31
        %v1448 = vsub.s32 32, %v1447
        %v1449 = vshrl.u32 683565275, %v1448
        %v1450 = vshll.u32 683565275, %v1447
        %v1451 = vshrl.u32 2475754826, %v1448
        %v1452 = vor.u32 %v1450, %v1451
        %v1453 = vshll.u32 2475754826, %v1447
        %v1454 = vshrl.u32 2131351028, %v1448
        %v1455 = vor.u32 %v1453, %v1454
        %v1456 = vshll.u32 2131351028, %v1447
        %v1457 = vshrl.u32 2102212464, %v1448
        %v1458 = vor.u32 %v1456, %v1457
        %v1459 = vshll.u32 2102212464, %v1447
        %v1460 = vshrl.u32 920167782, %v1448
        %v1461 = vor.u32 %v1459, %v1460
        %v1462 = vshll.u32 920167782, %v1447
        %v1463 = vshrl.u32 1326507024, %v1448
        %v1464 = vor.u32 %v1462, %v1463
        %vm1465 = vcmp.lt.s32.totalorder %v1446, 1
        %vm1466 = vcmp.lt.s32.totalorder %v1446, 2
        %vm1467 = vcmp.lt.s32.totalorder %v1446, 3
        %vm1468 = vcmp.lt.s32.totalorder %v1446, 4
        %v1469 = vsel %vm1465, %v1449, %v1452
        %v1470 = vsel %vm1468, %v1458, 2102212464
        %v1471 = vsel %vm1467, %v1455, %v1470
        %v1472 = vsel %vm1466, %v1469, %v1471
        %v1473 = vsel %vm1465, %v1452, %v1455
        %v1474 = vsel %vm1468, %v1461, 920167782
        %v1475 = vsel %vm1467, %v1458, %v1474
        %v1476 = vsel %vm1466, %v1473, %v1475
        %v1477 = vsel %vm1465, %v1455, %v1458
        %v1478 = vsel %vm1468, %v1464, 1326507024
        %v1479 = vsel %vm1467, %v1461, %v1478
        %v1480 = vsel %vm1466, %v1477, %v1479
        %v1481 = vshll.u32 %v1441, 8
        %v1482 = vmul.u32.u64.compose %v1481, %v1480
        %v1483 = vextract.low.u32 %v1482
        %v1484 = vextract.high.u32 %v1482
        %v1485 = vmul.u32.u64.compose %v1481, %v1476
        %v1486 = vextract.low.u32 %v1485
        %v1487 = vextract.high.u32 %v1485
        %v1488 = vmul.u32 %v1481, %v1472
        %v1489 = vadd.s32 %v1484, %v1486
        %vm1490 = vc.u32 %v1484, %v1486
        %v1491 = vadd.s32 %v1487, 1
        %v1492 = vsel %vm1490, %v1491, %v1487
        %v1493 = vadd.s32 %v1488, %v1492
        %v1494 = vadd.s32 %v1493, 536870912
        %v1495 = vshrl.u32 %v1494, 30
        %v1496 = vshll.u32 %v1495, 30
        %v1497 = vsub.s32 %v1493, %v1496
        %vm1498 = vcmp.lt.s32.totalorder %v1497, 0
        %v1499 = vsub.s32 0, %v1497
        %v1500 = vsel %vm1498, %v1499, %v1497
        %v1501 = vclz %v1500
        %v1502 = vsub.s32 %v1501, 2
        %vm1503 = vcmp.gt.s32.totalorder 0, %v1502
        %v1504 = vsel %vm1503, 0, %v1502
        %v1505 = vsub.s32 32, %v1504
        %v1506 = vshll.u32 %v1497, %v1504
        %v1507 = vshrl.u32 %v1489, %v1505
        %v1508 = vor.u32 %v1506, %v1507
        %v1509 = vsub.s32 4294967266, %v1504
        %v1510 = vadd.s32 %v1509, 127
        %v1511 = vshll.u32 %v1510, 23
        %v1512 = vor.u32 4788187, %v1511
        %v1513 = vand.u32 2147483647, %v1512
        %v1515 = vcvt.s32.f32 %v1508
        %v1516 = vmul.f32 %v1515, %v1513
        %v1517 = vxor.u32 %v1516, 2147483648
        %v1518 = vsel %vm1435, %v1517, %v1516
        %v1519 = vsub.s32 4, %v1495
        %v1520 = vsel %vm1435, %v1519, %v1495
        %v1521 = vsel %vm1434, %v1328, %v1518
        %v1522 = vsel %vm1434, 0, %v1520
        %v1523 = vcosq.f32.pop %v1521
        %v1524 = vsinq.f32.pop %v1521
        %vm1525 = vweird.f32 %v1328
        %v1526 = vand.u32 %v1522, 3
        %vm1527 = vcmp.lt.s32.totalorder %v1526, 2
        %vm1528 = vcmp.eq.s32.totalorder %v1526, 0
        %v1529 = vxor.u32 %v1524, 2147483648
        %v1530 = vsel %vm1528, %v1523, %v1529
        %vm1531 = vcmp.eq.s32.totalorder %v1526, 2
        %v1532 = vxor.u32 %v1523, 2147483648
        %v1533 = vsel %vm1531, %v1532, %v1524
        %v1534 = vsel %vm1527, %v1530, %v1533
        %v1535 = vsel %vm1525, nan, %v1534
        %v1536 = vand.u32 2147483647, %v1329
        %vm1537 = vcmp.le.f32.partialorder %v1536, 0.7853982
        %vm1538 = vcmp.lt.s32.totalorder %v1329, 0
        %v1539 = vand.u32 %v1329, 2139095040
        %v1540 = vshrl.u32 %v1539, 23
        %v1541 = vsub.s32 %v1540, 127
        %v1542 = vand.u32 2147483647, %v1329
        %v1543 = vand.u32 %v1542, 8388607
        %v1544 = vor.u32 %v1543, 8388608
        %v1545 = vsub.s32 0, %v1544
        %v1546 = vadd.s32 %v1541, 1
        %vm1547 = vcmp.gt.s32.totalorder %v1546, 0
        %v1548 = vsel %vm1547, %v1546, 0
        %v1549 = vshrl.u32 %v1548, 5
        %v1550 = vand.u32 %v1548, 31
        %v1551 = vsub.s32 32, %v1550
        %v1552 = vshrl.u32 683565275, %v1551
        %v1553 = vshll.u32 683565275, %v1550
        %v1554 = vshrl.u32 2475754826, %v1551
        %v1555 = vor.u32 %v1553, %v1554
        %v1556 = vshll.u32 2475754826, %v1550
        %v1557 = vshrl.u32 2131351028, %v1551
        %v1558 = vor.u32 %v1556, %v1557
        %v1559 = vshll.u32 2131351028, %v1550
        %v1560 = vshrl.u32 2102212464, %v1551
        %v1561 = vor.u32 %v1559, %v1560
        %v1562 = vshll.u32 2102212464, %v1550
        %v1563 = vshrl.u32 920167782, %v1551
        %v1564 = vor.u32 %v1562, %v1563
        %v1565 = vshll.u32 920167782, %v1550
        %v1566 = vshrl.u32 1326507024, %v1551
        %v1567 = vor.u32 %v1565, %v1566
        %vm1568 = vcmp.lt.s32.totalorder %v1549, 1
        %vm1569 = vcmp.lt.s32.totalorder %v1549, 2
        %vm1570 = vcmp.lt.s32.totalorder %v1549, 3
        %vm1571 = vcmp.lt.s32.totalorder %v1549, 4
        %v1572 = vsel %vm1568, %v1552, %v1555
        %v1573 = vsel %vm1571, %v1561, 2102212464
        %v1574 = vsel %vm1570, %v1558, %v1573
        %v1575 = vsel %vm1569, %v1572, %v1574
        %v1576 = vsel %vm1568, %v1555, %v1558
        %v1577 = vsel %vm1571, %v1564, 920167782
        %v1578 = vsel %vm1570, %v1561, %v1577
        %v1579 = vsel %vm1569, %v1576, %v1578
        %v1580 = vsel %vm1568, %v1558, %v1561
        %v1581 = vsel %vm1571, %v1567, 1326507024
        %v1582 = vsel %vm1570, %v1564, %v1581
        %v1583 = vsel %vm1569, %v1580, %v1582
        %v1584 = vshll.u32 %v1544, 8
        %v1585 = vmul.u32.u64.compose %v1584, %v1583
        %v1586 = vextract.low.u32 %v1585
        %v1587 = vextract.high.u32 %v1585
        %v1588 = vmul.u32.u64.compose %v1584, %v1579
        %v1589 = vextract.low.u32 %v1588
        %v1590 = vextract.high.u32 %v1588
        %v1591 = vmul.u32 %v1584, %v1575
        %v1592 = vadd.s32 %v1587, %v1589
        %vm1593 = vc.u32 %v1587, %v1589
        %v1594 = vadd.s32 %v1590, 1
        %v1595 = vsel %vm1593, %v1594, %v1590
        %v1596 = vadd.s32 %v1591, %v1595
        %v1597 = vadd.s32 %v1596, 536870912
        %v1598 = vshrl.u32 %v1597, 30
        %v1599 = vshll.u32 %v1598, 30
        %v1600 = vsub.s32 %v1596, %v1599
        %vm1601 = vcmp.lt.s32.totalorder %v1600, 0
        %v1602 = vsub.s32 0, %v1600
        %v1603 = vsel %vm1601, %v1602, %v1600
        %v1604 = vclz %v1603
        %v1605 = vsub.s32 %v1604, 2
        %vm1606 = vcmp.gt.s32.totalorder 0, %v1605
        %v1607 = vsel %vm1606, 0, %v1605
        %v1608 = vsub.s32 32, %v1607
        %v1609 = vshll.u32 %v1600, %v1607
        %v1610 = vshrl.u32 %v1592, %v1608
        %v1611 = vor.u32 %v1609, %v1610
        %v1612 = vsub.s32 4294967266, %v1607
        %v1613 = vadd.s32 %v1612, 127
        %v1614 = vshll.u32 %v1613, 23
        %v1615 = vor.u32 4788187, %v1614
        %v1616 = vand.u32 2147483647, %v1615
        %v1618 = vcvt.s32.f32 %v1611
        %v1619 = vmul.f32 %v1618, %v1616
        %v1620 = vxor.u32 %v1619, 2147483648
        %v1621 = vsel %vm1538, %v1620, %v1619
        %v1622 = vsub.s32 4, %v1598
        %v1623 = vsel %vm1538, %v1622, %v1598
        %v1624 = vsel %vm1537, %v1329, %v1621
        %v1625 = vsel %vm1537, 0, %v1623
        %v1626 = vcosq.f32.pop %v1624
        %v1627 = vsinq.f32.pop %v1624
        %vm1628 = vweird.f32 %v1329
        %v1629 = vand.u32 %v1625, 3
        %vm1630 = vcmp.lt.s32.totalorder %v1629, 2
        %vm1631 = vcmp.eq.s32.totalorder %v1629, 0
        %v1632 = vxor.u32 %v1627, 2147483648
        %v1633 = vsel %vm1631, %v1626, %v1632
        %vm1634 = vcmp.eq.s32.totalorder %v1629, 2
        %v1635 = vxor.u32 %v1626, 2147483648
        %v1636 = vsel %vm1634, %v1635, %v1627
        %v1637 = vsel %vm1630, %v1633, %v1636
        %v1638 = vsel %vm1628, nan, %v1637
        %v1639 = vmul.f32 %v1324, %v1432
        %v1640 = vmul.f32 %v1325, %v1535
        %v1641 = vmul.f32 %v1326, %v1638
        %v1642 = vadd.f32 %v1639, %v1640
        %v1643 = vadd.f32 %v1642, %v1641
        %v1644 = vrot.slane %v1643, 4
        %v1645 = vadd.f32 %v1643, %v1644
        %v1646 = vrot.slane %v1645, 2
        %v1647 = vadd.f32 %v1645, %v1646
        %v1648 = vrot.slane %v1647, 1
        %v1649 = vadd.f32 %v1647, %v1648
        %v1650 = vmul.f32 %v1649, 1.7724539
        %v1651 = vand.u32 2147483647, %v1327
        %vm1652 = vcmp.le.f32.partialorder %v1651, 0.7853982
        %vm1653 = vcmp.lt.s32.totalorder %v1327, 0
        %v1654 = vand.u32 %v1327, 2139095040
        %v1655 = vshrl.u32 %v1654, 23
        %v1656 = vsub.s32 %v1655, 127
        %v1657 = vand.u32 2147483647, %v1327
        %v1658 = vand.u32 %v1657, 8388607
        %v1659 = vor.u32 %v1658, 8388608
        %v1660 = vsub.s32 0, %v1659
        %v1661 = vadd.s32 %v1656, 1
        %vm1662 = vcmp.gt.s32.totalorder %v1661, 0
        %v1663 = vsel %vm1662, %v1661, 0
        %v1664 = vshrl.u32 %v1663, 5
        %v1665 = vand.u32 %v1663, 31
        %v1666 = vsub.s32 32, %v1665
        %v1667 = vshrl.u32 683565275, %v1666
        %v1668 = vshll.u32 683565275, %v1665
        %v1669 = vshrl.u32 2475754826, %v1666
        %v1670 = vor.u32 %v1668, %v1669
        %v1671 = vshll.u32 2475754826, %v1665
        %v1672 = vshrl.u32 2131351028, %v1666
        %v1673 = vor.u32 %v1671, %v1672
        %v1674 = vshll.u32 2131351028, %v1665
        %v1675 = vshrl.u32 2102212464, %v1666
        %v1676 = vor.u32 %v1674, %v1675
        %v1677 = vshll.u32 2102212464, %v1665
        %v1678 = vshrl.u32 920167782, %v1666
        %v1679 = vor.u32 %v1677, %v1678
        %v1680 = vshll.u32 920167782, %v1665
        %v1681 = vshrl.u32 1326507024, %v1666
        %v1682 = vor.u32 %v1680, %v1681
        %vm1683 = vcmp.lt.s32.totalorder %v1664, 1
        %vm1684 = vcmp.lt.s32.totalorder %v1664, 2
        %vm1685 = vcmp.lt.s32.totalorder %v1664, 3
        %vm1686 = vcmp.lt.s32.totalorder %v1664, 4
        %v1687 = vsel %vm1683, %v1667, %v1670
        %v1688 = vsel %vm1686, %v1676, 2102212464
        %v1689 = vsel %vm1685, %v1673, %v1688
        %v1690 = vsel %vm1684, %v1687, %v1689
        %v1691 = vsel %vm1683, %v1670, %v1673
        %v1692 = vsel %vm1686, %v1679, 920167782
        %v1693 = vsel %vm1685, %v1676, %v1692
        %v1694 = vsel %vm1684, %v1691, %v1693
        %v1695 = vsel %vm1683, %v1673, %v1676
        %v1696 = vsel %vm1686, %v1682, 1326507024
        %v1697 = vsel %vm1685, %v1679, %v1696
        %v1698 = vsel %vm1684, %v1695, %v1697
        %v1699 = vshll.u32 %v1659, 8
        %v1700 = vmul.u32.u64.compose %v1699, %v1698
        %v1701 = vextract.low.u32 %v1700
        %v1702 = vextract.high.u32 %v1700
        %v1703 = vmul.u32.u64.compose %v1699, %v1694
        %v1704 = vextract.low.u32 %v1703
        %v1705 = vextract.high.u32 %v1703
        %v1706 = vmul.u32 %v1699, %v1690
        %v1707 = vadd.s32 %v1702, %v1704
        %vm1708 = vc.u32 %v1702, %v1704
        %v1709 = vadd.s32 %v1705, 1
        %v1710 = vsel %vm1708, %v1709, %v1705
        %v1711 = vadd.s32 %v1706, %v1710
        %v1712 = vadd.s32 %v1711, 536870912
        %v1713 = vshrl.u32 %v1712, 30
        %v1714 = vshll.u32 %v1713, 30
        %v1715 = vsub.s32 %v1711, %v1714
        %vm1716 = vcmp.lt.s32.totalorder %v1715, 0
        %v1717 = vsub.s32 0, %v1715
        %v1718 = vsel %vm1716, %v1717, %v1715
        %v1719 = vclz %v1718
        %v1720 = vsub.s32 %v1719, 2
        %vm1721 = vcmp.gt.s32.totalorder 0, %v1720
        %v1722 = vsel %vm1721, 0, %v1720
        %v1723 = vsub.s32 32, %v1722
        %v1724 = vshll.u32 %v1715, %v1722
        %v1725 = vshrl.u32 %v1707, %v1723
        %v1726 = vor.u32 %v1724, %v1725
        %v1727 = vsub.s32 4294967266, %v1722
        %v1728 = vadd.s32 %v1727, 127
        %v1729 = vshll.u32 %v1728, 23
        %v1730 = vor.u32 4788187, %v1729
        %v1731 = vand.u32 2147483647, %v1730
        %v1733 = vcvt.s32.f32 %v1726
        %v1734 = vmul.f32 %v1733, %v1731
        %v1735 = vxor.u32 %v1734, 2147483648
        %v1736 = vsel %vm1653, %v1735, %v1734
        %v1737 = vsub.s32 4, %v1713
        %v1738 = vsel %vm1653, %v1737, %v1713
        %v1739 = vsel %vm1652, %v1327, %v1736
        %v1740 = vsel %vm1652, 0, %v1738
        %v1741 = vcosq.f32.pop %v1739
        %v1742 = vsinq.f32.pop %v1739
        %vm1743 = vweird.f32 %v1327
        %v1744 = vadd.s32 %v1740, 3
        %v1745 = vand.u32 %v1744, 3
        %vm1746 = vcmp.lt.s32.totalorder %v1745, 2
        %vm1747 = vcmp.eq.s32.totalorder %v1745, 0
        %v1748 = vxor.u32 %v1742, 2147483648
        %v1749 = vsel %vm1747, %v1741, %v1748
        %vm1750 = vcmp.eq.s32.totalorder %v1745, 2
        %v1751 = vxor.u32 %v1741, 2147483648
        %v1752 = vsel %vm1750, %v1751, %v1742
        %v1753 = vsel %vm1746, %v1749, %v1752
        %v1754 = vsel %vm1743, nan, %v1753
        %v1755 = vand.u32 2147483647, %v1328
        %vm1756 = vcmp.le.f32.partialorder %v1755, 0.7853982
        %vm1757 = vcmp.lt.s32.totalorder %v1328, 0
        %v1758 = vand.u32 %v1328, 2139095040
        %v1759 = vshrl.u32 %v1758, 23
        %v1760 = vsub.s32 %v1759, 127
        %v1761 = vand.u32 2147483647, %v1328
        %v1762 = vand.u32 %v1761, 8388607
        %v1763 = vor.u32 %v1762, 8388608
        %v1764 = vsub.s32 0, %v1763
        %v1765 = vadd.s32 %v1760, 1
        %vm1766 = vcmp.gt.s32.totalorder %v1765, 0
        %v1767 = vsel %vm1766, %v1765, 0
        %v1768 = vshrl.u32 %v1767, 5
        %v1769 = vand.u32 %v1767, 31
        %v1770 = vsub.s32 32, %v1769
        %v1771 = vshrl.u32 683565275, %v1770
        %v1772 = vshll.u32 683565275, %v1769
        %v1773 = vshrl.u32 2475754826, %v1770
        %v1774 = vor.u32 %v1772, %v1773
        %v1775 = vshll.u32 2475754826, %v1769
        %v1776 = vshrl.u32 2131351028, %v1770
        %v1777 = vor.u32 %v1775, %v1776
        %v1778 = vshll.u32 2131351028, %v1769
        %v1779 = vshrl.u32 2102212464, %v1770
        %v1780 = vor.u32 %v1778, %v1779
        %v1781 = vshll.u32 2102212464, %v1769
        %v1782 = vshrl.u32 920167782, %v1770
        %v1783 = vor.u32 %v1781, %v1782
        %v1784 = vshll.u32 920167782, %v1769
        %v1785 = vshrl.u32 1326507024, %v1770
        %v1786 = vor.u32 %v1784, %v1785
        %vm1787 = vcmp.lt.s32.totalorder %v1768, 1
        %vm1788 = vcmp.lt.s32.totalorder %v1768, 2
        %vm1789 = vcmp.lt.s32.totalorder %v1768, 3
        %vm1790 = vcmp.lt.s32.totalorder %v1768, 4
        %v1791 = vsel %vm1787, %v1771, %v1774
        %v1792 = vsel %vm1790, %v1780, 2102212464
        %v1793 = vsel %vm1789, %v1777, %v1792
        %v1794 = vsel %vm1788, %v1791, %v1793
        %v1795 = vsel %vm1787, %v1774, %v1777
        %v1796 = vsel %vm1790, %v1783, 920167782
        %v1797 = vsel %vm1789, %v1780, %v1796
        %v1798 = vsel %vm1788, %v1795, %v1797
        %v1799 = vsel %vm1787, %v1777, %v1780
        %v1800 = vsel %vm1790, %v1786, 1326507024
        %v1801 = vsel %vm1789, %v1783, %v1800
        %v1802 = vsel %vm1788, %v1799, %v1801
        %v1803 = vshll.u32 %v1763, 8
        %v1804 = vmul.u32.u64.compose %v1803, %v1802
        %v1805 = vextract.low.u32 %v1804
        %v1806 = vextract.high.u32 %v1804
        %v1807 = vmul.u32.u64.compose %v1803, %v1798
        %v1808 = vextract.low.u32 %v1807
        %v1809 = vextract.high.u32 %v1807
        %v1810 = vmul.u32 %v1803, %v1794
        %v1811 = vadd.s32 %v1806, %v1808
        %vm1812 = vc.u32 %v1806, %v1808
        %v1813 = vadd.s32 %v1809, 1
        %v1814 = vsel %vm1812, %v1813, %v1809
        %v1815 = vadd.s32 %v1810, %v1814
        %v1816 = vadd.s32 %v1815, 536870912
        %v1817 = vshrl.u32 %v1816, 30
        %v1818 = vshll.u32 %v1817, 30
        %v1819 = vsub.s32 %v1815, %v1818
        %vm1820 = vcmp.lt.s32.totalorder %v1819, 0
        %v1821 = vsub.s32 0, %v1819
        %v1822 = vsel %vm1820, %v1821, %v1819
        %v1823 = vclz %v1822
        %v1824 = vsub.s32 %v1823, 2
        %vm1825 = vcmp.gt.s32.totalorder 0, %v1824
        %v1826 = vsel %vm1825, 0, %v1824
        %v1827 = vsub.s32 32, %v1826
        %v1828 = vshll.u32 %v1819, %v1826
        %v1829 = vshrl.u32 %v1811, %v1827
        %v1830 = vor.u32 %v1828, %v1829
        %v1831 = vsub.s32 4294967266, %v1826
        %v1832 = vadd.s32 %v1831, 127
        %v1833 = vshll.u32 %v1832, 23
        %v1834 = vor.u32 4788187, %v1833
        %v1835 = vand.u32 2147483647, %v1834
        %v1837 = vcvt.s32.f32 %v1830
        %v1838 = vmul.f32 %v1837, %v1835
        %v1839 = vxor.u32 %v1838, 2147483648
        %v1840 = vsel %vm1757, %v1839, %v1838
        %v1841 = vsub.s32 4, %v1817
        %v1842 = vsel %vm1757, %v1841, %v1817
        %v1843 = vsel %vm1756, %v1328, %v1840
        %v1844 = vsel %vm1756, 0, %v1842
        %v1845 = vcosq.f32.pop %v1843
        %v1846 = vsinq.f32.pop %v1843
        %vm1847 = vweird.f32 %v1328
        %v1848 = vadd.s32 %v1844, 3
        %v1849 = vand.u32 %v1848, 3
        %vm1850 = vcmp.lt.s32.totalorder %v1849, 2
        %vm1851 = vcmp.eq.s32.totalorder %v1849, 0
        %v1852 = vxor.u32 %v1846, 2147483648
        %v1853 = vsel %vm1851, %v1845, %v1852
        %vm1854 = vcmp.eq.s32.totalorder %v1849, 2
        %v1855 = vxor.u32 %v1845, 2147483648
        %v1856 = vsel %vm1854, %v1855, %v1846
        %v1857 = vsel %vm1850, %v1853, %v1856
        %v1858 = vsel %vm1847, nan, %v1857
        %v1859 = vand.u32 2147483647, %v1329
        %vm1860 = vcmp.le.f32.partialorder %v1859, 0.7853982
        %vm1861 = vcmp.lt.s32.totalorder %v1329, 0
        %v1862 = vand.u32 %v1329, 2139095040
        %v1863 = vshrl.u32 %v1862, 23
        %v1864 = vsub.s32 %v1863, 127
        %v1865 = vand.u32 2147483647, %v1329
        %v1866 = vand.u32 %v1865, 8388607
        %v1867 = vor.u32 %v1866, 8388608
        %v1868 = vsub.s32 0, %v1867
        %v1869 = vadd.s32 %v1864, 1
        %vm1870 = vcmp.gt.s32.totalorder %v1869, 0
        %v1871 = vsel %vm1870, %v1869, 0
        %v1872 = vshrl.u32 %v1871, 5
        %v1873 = vand.u32 %v1871, 31
        %v1874 = vsub.s32 32, %v1873
        %v1875 = vshrl.u32 683565275, %v1874
        %v1876 = vshll.u32 683565275, %v1873
        %v1877 = vshrl.u32 2475754826, %v1874
        %v1878 = vor.u32 %v1876, %v1877
        %v1879 = vshll.u32 2475754826, %v1873
        %v1880 = vshrl.u32 2131351028, %v1874
        %v1881 = vor.u32 %v1879, %v1880
        %v1882 = vshll.u32 2131351028, %v1873
        %v1883 = vshrl.u32 2102212464, %v1874
        %v1884 = vor.u32 %v1882, %v1883
        %v1885 = vshll.u32 2102212464, %v1873
        %v1886 = vshrl.u32 920167782, %v1874
        %v1887 = vor.u32 %v1885, %v1886
        %v1888 = vshll.u32 920167782, %v1873
        %v1889 = vshrl.u32 1326507024, %v1874
        %v1890 = vor.u32 %v1888, %v1889
        %vm1891 = vcmp.lt.s32.totalorder %v1872, 1
        %vm1892 = vcmp.lt.s32.totalorder %v1872, 2
        %vm1893 = vcmp.lt.s32.totalorder %v1872, 3
        %vm1894 = vcmp.lt.s32.totalorder %v1872, 4
        %v1895 = vsel %vm1891, %v1875, %v1878
        %v1896 = vsel %vm1894, %v1884, 2102212464
        %v1897 = vsel %vm1893, %v1881, %v1896
        %v1898 = vsel %vm1892, %v1895, %v1897
        %v1899 = vsel %vm1891, %v1878, %v1881
        %v1900 = vsel %vm1894, %v1887, 920167782
        %v1901 = vsel %vm1893, %v1884, %v1900
        %v1902 = vsel %vm1892, %v1899, %v1901
        %v1903 = vsel %vm1891, %v1881, %v1884
        %v1904 = vsel %vm1894, %v1890, 1326507024
        %v1905 = vsel %vm1893, %v1887, %v1904
        %v1906 = vsel %vm1892, %v1903, %v1905
        %v1907 = vshll.u32 %v1867, 8
        %v1908 = vmul.u32.u64.compose %v1907, %v1906
        %v1909 = vextract.low.u32 %v1908
        %v1910 = vextract.high.u32 %v1908
        %v1911 = vmul.u32.u64.compose %v1907, %v1902
        %v1912 = vextract.low.u32 %v1911
        %v1913 = vextract.high.u32 %v1911
        %v1914 = vmul.u32 %v1907, %v1898
        %v1915 = vadd.s32 %v1910, %v1912
        %vm1916 = vc.u32 %v1910, %v1912
        %v1917 = vadd.s32 %v1913, 1
        %v1918 = vsel %vm1916, %v1917, %v1913
        %v1919 = vadd.s32 %v1914, %v1918
        %v1920 = vadd.s32 %v1919, 536870912
        %v1921 = vshrl.u32 %v1920, 30
        %v1922 = vshll.u32 %v1921, 30
        %v1923 = vsub.s32 %v1919, %v1922
        %vm1924 = vcmp.lt.s32.totalorder %v1923, 0
        %v1925 = vsub.s32 0, %v1923
        %v1926 = vsel %vm1924, %v1925, %v1923
        %v1927 = vclz %v1926
        %v1928 = vsub.s32 %v1927, 2
        %vm1929 = vcmp.gt.s32.totalorder 0, %v1928
        %v1930 = vsel %vm1929, 0, %v1928
        %v1931 = vsub.s32 32, %v1930
        %v1932 = vshll.u32 %v1923, %v1930
        %v1933 = vshrl.u32 %v1915, %v1931
        %v1934 = vor.u32 %v1932, %v1933
        %v1935 = vsub.s32 4294967266, %v1930
        %v1936 = vadd.s32 %v1935, 127
        %v1937 = vshll.u32 %v1936, 23
        %v1938 = vor.u32 4788187, %v1937
        %v1939 = vand.u32 2147483647, %v1938
        %v1941 = vcvt.s32.f32 %v1934
        %v1942 = vmul.f32 %v1941, %v1939
        %v1943 = vxor.u32 %v1942, 2147483648
        %v1944 = vsel %vm1861, %v1943, %v1942
        %v1945 = vsub.s32 4, %v1921
        %v1946 = vsel %vm1861, %v1945, %v1921
        %v1947 = vsel %vm1860, %v1329, %v1944
        %v1948 = vsel %vm1860, 0, %v1946
        %v1949 = vcosq.f32.pop %v1947
        %v1950 = vsinq.f32.pop %v1947
        %vm1951 = vweird.f32 %v1329
        %v1952 = vadd.s32 %v1948, 3
        %v1953 = vand.u32 %v1952, 3
        %vm1954 = vcmp.lt.s32.totalorder %v1953, 2
        %vm1955 = vcmp.eq.s32.totalorder %v1953, 0
        %v1956 = vxor.u32 %v1950, 2147483648
        %v1957 = vsel %vm1955, %v1949, %v1956
        %vm1958 = vcmp.eq.s32.totalorder %v1953, 2
        %v1959 = vxor.u32 %v1949, 2147483648
        %v1960 = vsel %vm1958, %v1959, %v1950
        %v1961 = vsel %vm1954, %v1957, %v1960
        %v1962 = vsel %vm1951, nan, %v1961
        %v1963 = vmul.f32 %v1324, %v1754
        %v1964 = vmul.f32 %v1325, %v1858
        %v1965 = vmul.f32 %v1326, %v1962
        %v1966 = vadd.f32 %v1963, %v1964
        %v1967 = vadd.f32 %v1966, %v1965
        %v1968 = vrot.slane %v1967, 4
        %v1969 = vadd.f32 %v1967, %v1968
        %v1970 = vrot.slane %v1969, 2
        %v1971 = vadd.f32 %v1969, %v1970
        %v1972 = vrot.slane %v1971, 1
        %v1973 = vadd.f32 %v1971, %v1972
        %v1974 = vmul.f32 %v1973, 1.7724539
        %v1975 = vsel %vm1112, %v1650, %v1974
        %s1976 = scalar_lea.vmem [#allocation2], 2
        %1977 = vst [vmem:[%s1976] sm:$0x3] %v1975
        %v1978 = vld [vmem:[#allocation2] sm:$0xf]
        %v1981 = vunpack.c.l.s4 1983009808
        %v1982 = vunpack.c.0.s8 %v1981
        %v1983 = vlaneseq
        %v1984 = vshrl.u32 %v1983, 7
        %v1985 = vsub.s32 %v1982, %v1984
        %v1986 = vrot.slane %v1978, %v1985
        %v1987 = vcombine.high %v1986, %v1986
        %v1990 = vcombine.low %v1978, %v1978
        %v1992 = vunpack.c.l.s4 1983009808
        %v1993 = vunpack.c.0.s8 %v1992
        %v1994 = vlaneseq
        %v1995 = vshrl.u32 %v1994, 7
        %v1996 = vsub.s32 %v1993, %v1995
        %v1997 = vrot.slane %v1990, %v1996
        %v1998 = vcombine.high %v1997, %v1997
        %1999 = vrot.lane.b32.xlu0 %v1997, 2
        %v2000 = vpop.permute.xlu0 %1999
        %2001 = vrot.lane.b32.xlu0 %v1998, 2
        %v2002 = vpop.permute.xlu0 %2001
        %vm2003 = vcmask 15360
        %v2004 = vsel %vm2003, %v2000, %v2002
        %vm2007 = vcmask 1041408
        %v2008 = vsel %vm2007, %v1986, %v2004
        %v2009 = vsel %vm2007, %v1987, %v2002
        %v2010 = vld [vmem:[%s4] sm:$0xff]
        %v2011 = vld [vmem:[%s4 + $0x8] sm:$0xff]
        %v2012 = vld [vmem:[%s4 + $0x10] sm:$0xff]
        %v2013 = vld [vmem:[%s4 + $0x18] sm:$0xff]
        %v2014 = vld [vmem:[%s4 + $0x20] sm:$0xff]
        %v2015 = vld [vmem:[%s4 + $0x28] sm:$0xff]
        %v2016 = vld [vmem:[%s4 + $0x30] sm:$0xff]
        %v2017 = vld [vmem:[%s4 + $0x38] sm:$0xff]
        %v2018 = vld [vmem:[%s4 + $0x40] sm:$0xff]
        %v2019 = vld [vmem:[%s4 + $0x48] sm:$0xff]
        %v2020 = vld [vmem:[%s4 + $0x50] sm:$0xff]
        %v2021 = vld [vmem:[%s4 + $0x58] sm:$0xff]
        %v2022 = vld [vmem:[%s4 + $0x60] sm:$0xff]
        %v2023 = vld [vmem:[%s4 + $0x68] sm:$0xff]
        %v2024 = vld [vmem:[%s4 + $0x70] sm:$0xff]
        %v2025 = vld [vmem:[%s4 + $0x78] sm:$0xff]
        %2028 = vrot.lane.b32.xlu0 %v2008, 127
        %v2029 = vpop.permute.xlu0 %2028
        %2030 = vrot.lane.b32.xlu0 %v2009, 127
        %v2031 = vpop.permute.xlu0 %2030
        %vm2032 = vcmask 1039360
        %v2033 = vsel %vm2032, %v2029, %v2031
        %2035 = vmatprep.subr.mxu0 0.0
        %v2036 = vand.u32 %v2025, 4294901760
        %2037 = vmatpush1.msra.mxu0 %v2036
        %2038 = vmatprep.subr.mxu0 0.0
        %v2039 = vand.u32 %v2024, 4294901760
        %2040 = vmatpush1.msra.mxu0 %v2039
        %2041 = vmatprep.subr.mxu0 0.0
        %v2042 = vand.u32 %v2023, 4294901760
        %2043 = vmatpush1.msra.mxu0 %v2042
        %2044 = vmatprep.subr.mxu0 0.0
        %v2045 = vand.u32 %v2022, 4294901760
        %2046 = vmatpush1.msra.mxu0 %v2045
        %2047 = vmatprep.subr.mxu0 0.0
        %v2048 = vand.u32 %v2021, 4294901760
        %2049 = vmatpush1.msra.mxu0 %v2048
        %2050 = vmatprep.subr.mxu0 0.0
        %v2051 = vand.u32 %v2020, 4294901760
        %2052 = vmatpush1.msra.mxu0 %v2051
        %2053 = vmatprep.subr.mxu0 0.0
        %v2054 = vand.u32 %v2019, 4294901760
        %2055 = vmatpush1.msra.mxu0 %v2054
        %2056 = vmatprep.subr.mxu0 0.0
        %v2057 = vand.u32 %v2018, 4294901760
        %2058 = vmatpush1.msra.mxu0 %v2057
        %2059 = vmatprep.subr.mxu0 0.0
        %v2060 = vand.u32 %v2017, 4294901760
        %2061 = vmatpush1.msra.mxu0 %v2060
        %2062 = vmatprep.subr.mxu0 0.0
        %v2063 = vand.u32 %v2016, 4294901760
        %2064 = vmatpush1.msra.mxu0 %v2063
        %2065 = vmatprep.subr.mxu0 0.0
        %v2066 = vand.u32 %v2015, 4294901760
        %2067 = vmatpush1.msra.mxu0 %v2066
        %2068 = vmatprep.subr.mxu0 0.0
        %v2069 = vand.u32 %v2014, 4294901760
        %2070 = vmatpush1.msra.mxu0 %v2069
        %2071 = vmatprep.subr.mxu0 0.0
        %v2072 = vand.u32 %v2013, 4294901760
        %2073 = vmatpush1.msra.mxu0 %v2072
        %2074 = vmatprep.subr.mxu0 0.0
        %v2075 = vand.u32 %v2012, 4294901760
        %2076 = vmatpush1.msra.mxu0 %v2075
        %2077 = vmatprep.subr.mxu0 0.0
        %v2078 = vand.u32 %v2011, 4294901760
        %2079 = vmatpush1.msra.mxu0 %v2078
        %2080 = vmatprep.subr.mxu0 0.0
        %v2081 = vand.u32 %v2010, 4294901760
        %2082 = vmatpush1.msra.mxu0 %v2081
        %2083 = vmatprep.subr.mxu0 0.0
        %2084 = vmatpush2.msra.mxu0 0.0
        %2085 = vmatprep.subr.mxu0 0.0
        %2086 = vmatpush2.msra.mxu0 0.0
        %2087 = vmatprep.subr.mxu0 0.0
        %2088 = vmatpush2.msra.mxu0 0.0
        %2089 = vmatprep.subr.mxu0 0.0
        %2090 = vmatpush2.msra.mxu0 0.0
        %2091 = vmatprep.subr.mxu0 0.0
        %2092 = vmatpush2.msra.mxu0 0.0
        %2093 = vmatprep.subr.mxu0 0.0
        %2094 = vmatpush2.msra.mxu0 0.0
        %2095 = vmatprep.subr.mxu0 0.0
        %2096 = vmatpush2.msra.mxu0 0.0
        %2097 = vmatprep.subr.mxu0 0.0
        %2098 = vmatpush2.msra.mxu0 0.0
        %2099 = vmatprep.subr.mxu0 0.0
        %2100 = vmatpush2.msra.mxu0 0.0
        %2101 = vmatprep.subr.mxu0 0.0
        %2102 = vmatpush2.msra.mxu0 0.0
        %2103 = vmatprep.subr.mxu0 0.0
        %2104 = vmatpush2.msra.mxu0 0.0
        %2105 = vmatprep.subr.mxu0 0.0
        %2106 = vmatpush2.msra.mxu0 0.0
        %2107 = vmatprep.subr.mxu0 0.0
        %2108 = vmatpush2.msra.mxu0 0.0
        %2109 = vmatprep.subr.mxu0 0.0
        %2110 = vmatpush2.msra.mxu0 0.0
        %2111 = vmatprep.subr.mxu0 0.0
        %2112 = vmatpush2.msra.mxu0 0.0
        %2113 = vmatprep.subr.mxu0 0.0
        %2114 = vmatpush2.msra.mxu0 0.0
        %2115 = vmatprep.mubr.f32.mxu0 0.0
        %v2116 = vand.u32 %v2033, 4294901760
        %v2117 = vsub.f32 %v2033, %v2116
        %v2118 = vand.u32 %v2117, 4294901760
        %v2119 = vsub.f32 %v2117, %v2118
        %v2120 = vand.u32 %v2119, 4294901760
        %2121 = vmatmul.mubr.f32.gmra.mxu0 %v2120
        %v2122 = vpop.f32.mrf.mxu0
        %v2123 = vadd.f32 0.0, %v2122
        %v2124 = vpop.f32.mrf.mxu0
        %2125 = vdwg.mxu0
        %2126 = vmatprep.subr.mxu0 0.0
        %v2127 = vand.u32 %v2025, 4294901760
        %v2128 = vsub.f32 %v2025, %v2127
        %v2129 = vand.u32 %v2128, 4294901760
        %v2130 = vsub.f32 %v2128, %v2129
        %v2131 = vand.u32 %v2130, 4294901760
        %2132 = vmatpush1.msra.mxu0 %v2131
        %2133 = vmatprep.subr.mxu0 0.0
        %v2134 = vand.u32 %v2024, 4294901760
        %v2135 = vsub.f32 %v2024, %v2134
        %v2136 = vand.u32 %v2135, 4294901760
        %v2137 = vsub.f32 %v2135, %v2136
        %v2138 = vand.u32 %v2137, 4294901760
        %2139 = vmatpush1.msra.mxu0 %v2138
        %2140 = vmatprep.subr.mxu0 0.0
        %v2141 = vand.u32 %v2023, 4294901760
        %v2142 = vsub.f32 %v2023, %v2141
        %v2143 = vand.u32 %v2142, 4294901760
        %v2144 = vsub.f32 %v2142, %v2143
        %v2145 = vand.u32 %v2144, 4294901760
        %2146 = vmatpush1.msra.mxu0 %v2145
        %2147 = vmatprep.subr.mxu0 0.0
        %v2148 = vand.u32 %v2022, 4294901760
        %v2149 = vsub.f32 %v2022, %v2148
        %v2150 = vand.u32 %v2149, 4294901760
        %v2151 = vsub.f32 %v2149, %v2150
        %v2152 = vand.u32 %v2151, 4294901760
        %2153 = vmatpush1.msra.mxu0 %v2152
        %2154 = vmatprep.subr.mxu0 0.0
        %v2155 = vand.u32 %v2021, 4294901760
        %v2156 = vsub.f32 %v2021, %v2155
        %v2157 = vand.u32 %v2156, 4294901760
        %v2158 = vsub.f32 %v2156, %v2157
        %v2159 = vand.u32 %v2158, 4294901760
        %2160 = vmatpush1.msra.mxu0 %v2159
        %2161 = vmatprep.subr.mxu0 0.0
        %v2162 = vand.u32 %v2020, 4294901760
        %v2163 = vsub.f32 %v2020, %v2162
        %v2164 = vand.u32 %v2163, 4294901760
        %v2165 = vsub.f32 %v2163, %v2164
        %v2166 = vand.u32 %v2165, 4294901760
        %2167 = vmatpush1.msra.mxu0 %v2166
        %2168 = vmatprep.subr.mxu0 0.0
        %v2169 = vand.u32 %v2019, 4294901760
        %v2170 = vsub.f32 %v2019, %v2169
        %v2171 = vand.u32 %v2170, 4294901760
        %v2172 = vsub.f32 %v2170, %v2171
        %v2173 = vand.u32 %v2172, 4294901760
        %2174 = vmatpush1.msra.mxu0 %v2173
        %2175 = vmatprep.subr.mxu0 0.0
        %v2176 = vand.u32 %v2018, 4294901760
        %v2177 = vsub.f32 %v2018, %v2176
        %v2178 = vand.u32 %v2177, 4294901760
        %v2179 = vsub.f32 %v2177, %v2178
        %v2180 = vand.u32 %v2179, 4294901760
        %2181 = vmatpush1.msra.mxu0 %v2180
        %2182 = vmatprep.subr.mxu0 0.0
        %v2183 = vand.u32 %v2017, 4294901760
        %v2184 = vsub.f32 %v2017, %v2183
        %v2185 = vand.u32 %v2184, 4294901760
        %v2186 = vsub.f32 %v2184, %v2185
        %v2187 = vand.u32 %v2186, 4294901760
        %2188 = vmatpush1.msra.mxu0 %v2187
        %2189 = vmatprep.subr.mxu0 0.0
        %v2190 = vand.u32 %v2016, 4294901760
        %v2191 = vsub.f32 %v2016, %v2190
        %v2192 = vand.u32 %v2191, 4294901760
        %v2193 = vsub.f32 %v2191, %v2192
        %v2194 = vand.u32 %v2193, 4294901760
        %2195 = vmatpush1.msra.mxu0 %v2194
        %2196 = vmatprep.subr.mxu0 0.0
        %v2197 = vand.u32 %v2015, 4294901760
        %v2198 = vsub.f32 %v2015, %v2197
        %v2199 = vand.u32 %v2198, 4294901760
        %v2200 = vsub.f32 %v2198, %v2199
        %v2201 = vand.u32 %v2200, 4294901760
        %2202 = vmatpush1.msra.mxu0 %v2201
        %2203 = vmatprep.subr.mxu0 0.0
        %v2204 = vand.u32 %v2014, 4294901760
        %v2205 = vsub.f32 %v2014, %v2204
        %v2206 = vand.u32 %v2205, 4294901760
        %v2207 = vsub.f32 %v2205, %v2206
        %v2208 = vand.u32 %v2207, 4294901760
        %2209 = vmatpush1.msra.mxu0 %v2208
        %2210 = vmatprep.subr.mxu0 0.0
        %v2211 = vand.u32 %v2013, 4294901760
        %v2212 = vsub.f32 %v2013, %v2211
        %v2213 = vand.u32 %v2212, 4294901760
        %v2214 = vsub.f32 %v2212, %v2213
        %v2215 = vand.u32 %v2214, 4294901760
        %2216 = vmatpush1.msra.mxu0 %v2215
        %2217 = vmatprep.subr.mxu0 0.0
        %v2218 = vand.u32 %v2012, 4294901760
        %v2219 = vsub.f32 %v2012, %v2218
        %v2220 = vand.u32 %v2219, 4294901760
        %v2221 = vsub.f32 %v2219, %v2220
        %v2222 = vand.u32 %v2221, 4294901760
        %2223 = vmatpush1.msra.mxu0 %v2222
        %2224 = vmatprep.subr.mxu0 0.0
        %v2225 = vand.u32 %v2011, 4294901760
        %v2226 = vsub.f32 %v2011, %v2225
        %v2227 = vand.u32 %v2226, 4294901760
        %v2228 = vsub.f32 %v2226, %v2227
        %v2229 = vand.u32 %v2228, 4294901760
        %2230 = vmatpush1.msra.mxu0 %v2229
        %2231 = vmatprep.subr.mxu0 0.0
        %v2232 = vand.u32 %v2010, 4294901760
        %v2233 = vsub.f32 %v2010, %v2232
        %v2234 = vand.u32 %v2233, 4294901760
        %v2235 = vsub.f32 %v2233, %v2234
        %v2236 = vand.u32 %v2235, 4294901760
        %2237 = vmatpush1.msra.mxu0 %v2236
        %2238 = vmatprep.subr.mxu0 0.0
        %2239 = vmatpush2.msra.mxu0 0.0
        %2240 = vmatprep.subr.mxu0 0.0
        %2241 = vmatpush2.msra.mxu0 0.0
        %2242 = vmatprep.subr.mxu0 0.0
        %2243 = vmatpush2.msra.mxu0 0.0
        %2244 = vmatprep.subr.mxu0 0.0
        %2245 = vmatpush2.msra.mxu0 0.0
        %2246 = vmatprep.subr.mxu0 0.0
        %2247 = vmatpush2.msra.mxu0 0.0
        %2248 = vmatprep.subr.mxu0 0.0
        %2249 = vmatpush2.msra.mxu0 0.0
        %2250 = vmatprep.subr.mxu0 0.0
        %2251 = vmatpush2.msra.mxu0 0.0
        %2252 = vmatprep.subr.mxu0 0.0
        %2253 = vmatpush2.msra.mxu0 0.0
        %2254 = vmatprep.subr.mxu0 0.0
        %2255 = vmatpush2.msra.mxu0 0.0
        %2256 = vmatprep.subr.mxu0 0.0
        %2257 = vmatpush2.msra.mxu0 0.0
        %2258 = vmatprep.subr.mxu0 0.0
        %2259 = vmatpush2.msra.mxu0 0.0
        %2260 = vmatprep.subr.mxu0 0.0
        %2261 = vmatpush2.msra.mxu0 0.0
        %2262 = vmatprep.subr.mxu0 0.0
        %2263 = vmatpush2.msra.mxu0 0.0
        %2264 = vmatprep.subr.mxu0 0.0
        %2265 = vmatpush2.msra.mxu0 0.0
        %2266 = vmatprep.subr.mxu0 0.0
        %2267 = vmatpush2.msra.mxu0 0.0
        %2268 = vmatprep.subr.mxu0 0.0
        %2269 = vmatpush2.msra.mxu0 0.0
        %2270 = vmatprep.mubr.f32.mxu0 0.0
        %v2271 = vand.u32 %v2033, 4294901760
        %2272 = vmatmul.mubr.f32.gmra.mxu0 %v2271
        %v2273 = vpop.f32.mrf.mxu0
        %v2274 = vadd.f32 %v2123, %v2273
        %v2275 = vpop.f32.mrf.mxu0
        %2276 = vdwg.mxu0
        %2277 = vmatprep.subr.mxu0 0.0
        %v2278 = vand.u32 %v2025, 4294901760
        %v2279 = vsub.f32 %v2025, %v2278
        %2280 = vmatpush1.msra.mxu0 %v2279
        %2281 = vmatprep.subr.mxu0 0.0
        %v2282 = vand.u32 %v2024, 4294901760
        %v2283 = vsub.f32 %v2024, %v2282
        %2284 = vmatpush1.msra.mxu0 %v2283
        %2285 = vmatprep.subr.mxu0 0.0
        %v2286 = vand.u32 %v2023, 4294901760
        %v2287 = vsub.f32 %v2023, %v2286
        %2288 = vmatpush1.msra.mxu0 %v2287
        %2289 = vmatprep.subr.mxu0 0.0
        %v2290 = vand.u32 %v2022, 4294901760
        %v2291 = vsub.f32 %v2022, %v2290
        %2292 = vmatpush1.msra.mxu0 %v2291
        %2293 = vmatprep.subr.mxu0 0.0
        %v2294 = vand.u32 %v2021, 4294901760
        %v2295 = vsub.f32 %v2021, %v2294
        %2296 = vmatpush1.msra.mxu0 %v2295
        %2297 = vmatprep.subr.mxu0 0.0
        %v2298 = vand.u32 %v2020, 4294901760
        %v2299 = vsub.f32 %v2020, %v2298
        %2300 = vmatpush1.msra.mxu0 %v2299
        %2301 = vmatprep.subr.mxu0 0.0
        %v2302 = vand.u32 %v2019, 4294901760
        %v2303 = vsub.f32 %v2019, %v2302
        %2304 = vmatpush1.msra.mxu0 %v2303
        %2305 = vmatprep.subr.mxu0 0.0
        %v2306 = vand.u32 %v2018, 4294901760
        %v2307 = vsub.f32 %v2018, %v2306
        %2308 = vmatpush1.msra.mxu0 %v2307
        %2309 = vmatprep.subr.mxu0 0.0
        %v2310 = vand.u32 %v2017, 4294901760
        %v2311 = vsub.f32 %v2017, %v2310
        %2312 = vmatpush1.msra.mxu0 %v2311
        %2313 = vmatprep.subr.mxu0 0.0
        %v2314 = vand.u32 %v2016, 4294901760
        %v2315 = vsub.f32 %v2016, %v2314
        %2316 = vmatpush1.msra.mxu0 %v2315
        %2317 = vmatprep.subr.mxu0 0.0
        %v2318 = vand.u32 %v2015, 4294901760
        %v2319 = vsub.f32 %v2015, %v2318
        %2320 = vmatpush1.msra.mxu0 %v2319
        %2321 = vmatprep.subr.mxu0 0.0
        %v2322 = vand.u32 %v2014, 4294901760
        %v2323 = vsub.f32 %v2014, %v2322
        %2324 = vmatpush1.msra.mxu0 %v2323
        %2325 = vmatprep.subr.mxu0 0.0
        %v2326 = vand.u32 %v2013, 4294901760
        %v2327 = vsub.f32 %v2013, %v2326
        %2328 = vmatpush1.msra.mxu0 %v2327
        %2329 = vmatprep.subr.mxu0 0.0
        %v2330 = vand.u32 %v2012, 4294901760
        %v2331 = vsub.f32 %v2012, %v2330
        %2332 = vmatpush1.msra.mxu0 %v2331
        %2333 = vmatprep.subr.mxu0 0.0
        %v2334 = vand.u32 %v2011, 4294901760
        %v2335 = vsub.f32 %v2011, %v2334
        %2336 = vmatpush1.msra.mxu0 %v2335
        %2337 = vmatprep.subr.mxu0 0.0
        %v2338 = vand.u32 %v2010, 4294901760
        %v2339 = vsub.f32 %v2010, %v2338
        %2340 = vmatpush1.msra.mxu0 %v2339
        %2341 = vmatprep.subr.mxu0 0.0
        %2342 = vmatpush2.msra.mxu0 0.0
        %2343 = vmatprep.subr.mxu0 0.0
        %2344 = vmatpush2.msra.mxu0 0.0
        %2345 = vmatprep.subr.mxu0 0.0
        %2346 = vmatpush2.msra.mxu0 0.0
        %2347 = vmatprep.subr.mxu0 0.0
        %2348 = vmatpush2.msra.mxu0 0.0
        %2349 = vmatprep.subr.mxu0 0.0
        %2350 = vmatpush2.msra.mxu0 0.0
        %2351 = vmatprep.subr.mxu0 0.0
        %2352 = vmatpush2.msra.mxu0 0.0
        %2353 = vmatprep.subr.mxu0 0.0
        %2354 = vmatpush2.msra.mxu0 0.0
        %2355 = vmatprep.subr.mxu0 0.0
        %2356 = vmatpush2.msra.mxu0 0.0
        %2357 = vmatprep.subr.mxu0 0.0
        %2358 = vmatpush2.msra.mxu0 0.0
        %2359 = vmatprep.subr.mxu0 0.0
        %2360 = vmatpush2.msra.mxu0 0.0
        %2361 = vmatprep.subr.mxu0 0.0
        %2362 = vmatpush2.msra.mxu0 0.0
        %2363 = vmatprep.subr.mxu0 0.0
        %2364 = vmatpush2.msra.mxu0 0.0
        %2365 = vmatprep.subr.mxu0 0.0
        %2366 = vmatpush2.msra.mxu0 0.0
        %2367 = vmatprep.subr.mxu0 0.0
        %2368 = vmatpush2.msra.mxu0 0.0
        %2369 = vmatprep.subr.mxu0 0.0
        %2370 = vmatpush2.msra.mxu0 0.0
        %2371 = vmatprep.subr.mxu0 0.0
        %2372 = vmatpush2.msra.mxu0 0.0
        %2373 = vmatprep.mubr.f32.mxu0 0.0
        %v2374 = vand.u32 %v2033, 4294901760
        %v2375 = vsub.f32 %v2033, %v2374
        %2376 = vmatmul.mubr.f32.gmra.mxu0 %v2375
        %v2377 = vpop.f32.mrf.mxu0
        %v2378 = vadd.f32 %v2274, %v2377
        %v2379 = vpop.f32.mrf.mxu0
        %2380 = vdwg.mxu0
        %2381 = vmatprep.subr.mxu0 0.0
        %v2382 = vand.u32 %v2025, 4294901760
        %2383 = vmatpush1.msra.mxu0 %v2382
        %2384 = vmatprep.subr.mxu0 0.0
        %v2385 = vand.u32 %v2024, 4294901760
        %2386 = vmatpush1.msra.mxu0 %v2385
        %2387 = vmatprep.subr.mxu0 0.0
        %v2388 = vand.u32 %v2023, 4294901760
        %2389 = vmatpush1.msra.mxu0 %v2388
        %2390 = vmatprep.subr.mxu0 0.0
        %v2391 = vand.u32 %v2022, 4294901760
        %2392 = vmatpush1.msra.mxu0 %v2391
        %2393 = vmatprep.subr.mxu0 0.0
        %v2394 = vand.u32 %v2021, 4294901760
        %2395 = vmatpush1.msra.mxu0 %v2394
        %2396 = vmatprep.subr.mxu0 0.0
        %v2397 = vand.u32 %v2020, 4294901760
        %2398 = vmatpush1.msra.mxu0 %v2397
        %2399 = vmatprep.subr.mxu0 0.0
        %v2400 = vand.u32 %v2019, 4294901760
        %2401 = vmatpush1.msra.mxu0 %v2400
        %2402 = vmatprep.subr.mxu0 0.0
        %v2403 = vand.u32 %v2018, 4294901760
        %2404 = vmatpush1.msra.mxu0 %v2403
        %2405 = vmatprep.subr.mxu0 0.0
        %v2406 = vand.u32 %v2017, 4294901760
        %2407 = vmatpush1.msra.mxu0 %v2406
        %2408 = vmatprep.subr.mxu0 0.0
        %v2409 = vand.u32 %v2016, 4294901760
        %2410 = vmatpush1.msra.mxu0 %v2409
        %2411 = vmatprep.subr.mxu0 0.0
        %v2412 = vand.u32 %v2015, 4294901760
        %2413 = vmatpush1.msra.mxu0 %v2412
        %2414 = vmatprep.subr.mxu0 0.0
        %v2415 = vand.u32 %v2014, 4294901760
        %2416 = vmatpush1.msra.mxu0 %v2415
        %2417 = vmatprep.subr.mxu0 0.0
        %v2418 = vand.u32 %v2013, 4294901760
        %2419 = vmatpush1.msra.mxu0 %v2418
        %2420 = vmatprep.subr.mxu0 0.0
        %v2421 = vand.u32 %v2012, 4294901760
        %2422 = vmatpush1.msra.mxu0 %v2421
        %2423 = vmatprep.subr.mxu0 0.0
        %v2424 = vand.u32 %v2011, 4294901760
        %2425 = vmatpush1.msra.mxu0 %v2424
        %2426 = vmatprep.subr.mxu0 0.0
        %v2427 = vand.u32 %v2010, 4294901760
        %2428 = vmatpush1.msra.mxu0 %v2427
        %2429 = vmatprep.subr.mxu0 0.0
        %2430 = vmatpush2.msra.mxu0 0.0
        %2431 = vmatprep.subr.mxu0 0.0
        %2432 = vmatpush2.msra.mxu0 0.0
        %2433 = vmatprep.subr.mxu0 0.0
        %2434 = vmatpush2.msra.mxu0 0.0
        %2435 = vmatprep.subr.mxu0 0.0
        %2436 = vmatpush2.msra.mxu0 0.0
        %2437 = vmatprep.subr.mxu0 0.0
        %2438 = vmatpush2.msra.mxu0 0.0
        %2439 = vmatprep.subr.mxu0 0.0
        %2440 = vmatpush2.msra.mxu0 0.0
        %2441 = vmatprep.subr.mxu0 0.0
        %2442 = vmatpush2.msra.mxu0 0.0
        %2443 = vmatprep.subr.mxu0 0.0
        %2444 = vmatpush2.msra.mxu0 0.0
        %2445 = vmatprep.subr.mxu0 0.0
        %2446 = vmatpush2.msra.mxu0 0.0
        %2447 = vmatprep.subr.mxu0 0.0
        %2448 = vmatpush2.msra.mxu0 0.0
        %2449 = vmatprep.subr.mxu0 0.0
        %2450 = vmatpush2.msra.mxu0 0.0
        %2451 = vmatprep.subr.mxu0 0.0
        %2452 = vmatpush2.msra.mxu0 0.0
        %2453 = vmatprep.subr.mxu0 0.0
        %2454 = vmatpush2.msra.mxu0 0.0
        %2455 = vmatprep.subr.mxu0 0.0
        %2456 = vmatpush2.msra.mxu0 0.0
        %2457 = vmatprep.subr.mxu0 0.0
        %2458 = vmatpush2.msra.mxu0 0.0
        %2459 = vmatprep.subr.mxu0 0.0
        %2460 = vmatpush2.msra.mxu0 0.0
        %2461 = vmatprep.mubr.f32.mxu0 0.0
        %v2462 = vand.u32 %v2033, 4294901760
        %v2463 = vsub.f32 %v2033, %v2462
        %v2464 = vand.u32 %v2463, 4294901760
        %2465 = vmatmul.mubr.f32.gmra.mxu0 %v2464
        %v2466 = vpop.f32.mrf.mxu0
        %v2467 = vadd.f32 %v2378, %v2466
        %v2468 = vpop.f32.mrf.mxu0
        %2469 = vdwg.mxu0
        %2470 = vmatprep.subr.mxu0 0.0
        %v2471 = vand.u32 %v2025, 4294901760
        %v2472 = vsub.f32 %v2025, %v2471
        %v2473 = vand.u32 %v2472, 4294901760
        %2474 = vmatpush1.msra.mxu0 %v2473
        %2475 = vmatprep.subr.mxu0 0.0
        %v2476 = vand.u32 %v2024, 4294901760
        %v2477 = vsub.f32 %v2024, %v2476
        %v2478 = vand.u32 %v2477, 4294901760
        %2479 = vmatpush1.msra.mxu0 %v2478
        %2480 = vmatprep.subr.mxu0 0.0
        %v2481 = vand.u32 %v2023, 4294901760
        %v2482 = vsub.f32 %v2023, %v2481
        %v2483 = vand.u32 %v2482, 4294901760
        %2484 = vmatpush1.msra.mxu0 %v2483
        %2485 = vmatprep.subr.mxu0 0.0
        %v2486 = vand.u32 %v2022, 4294901760
        %v2487 = vsub.f32 %v2022, %v2486
        %v2488 = vand.u32 %v2487, 4294901760
        %2489 = vmatpush1.msra.mxu0 %v2488
        %2490 = vmatprep.subr.mxu0 0.0
        %v2491 = vand.u32 %v2021, 4294901760
        %v2492 = vsub.f32 %v2021, %v2491
        %v2493 = vand.u32 %v2492, 4294901760
        %2494 = vmatpush1.msra.mxu0 %v2493
        %2495 = vmatprep.subr.mxu0 0.0
        %v2496 = vand.u32 %v2020, 4294901760
        %v2497 = vsub.f32 %v2020, %v2496
        %v2498 = vand.u32 %v2497, 4294901760
        %2499 = vmatpush1.msra.mxu0 %v2498
        %2500 = vmatprep.subr.mxu0 0.0
        %v2501 = vand.u32 %v2019, 4294901760
        %v2502 = vsub.f32 %v2019, %v2501
        %v2503 = vand.u32 %v2502, 4294901760
        %2504 = vmatpush1.msra.mxu0 %v2503
        %2505 = vmatprep.subr.mxu0 0.0
        %v2506 = vand.u32 %v2018, 4294901760
        %v2507 = vsub.f32 %v2018, %v2506
        %v2508 = vand.u32 %v2507, 4294901760
        %2509 = vmatpush1.msra.mxu0 %v2508
        %2510 = vmatprep.subr.mxu0 0.0
        %v2511 = vand.u32 %v2017, 4294901760
        %v2512 = vsub.f32 %v2017, %v2511
        %v2513 = vand.u32 %v2512, 4294901760
        %2514 = vmatpush1.msra.mxu0 %v2513
        %2515 = vmatprep.subr.mxu0 0.0
        %v2516 = vand.u32 %v2016, 4294901760
        %v2517 = vsub.f32 %v2016, %v2516
        %v2518 = vand.u32 %v2517, 4294901760
        %2519 = vmatpush1.msra.mxu0 %v2518
        %2520 = vmatprep.subr.mxu0 0.0
        %v2521 = vand.u32 %v2015, 4294901760
        %v2522 = vsub.f32 %v2015, %v2521
        %v2523 = vand.u32 %v2522, 4294901760
        %2524 = vmatpush1.msra.mxu0 %v2523
        %2525 = vmatprep.subr.mxu0 0.0
        %v2526 = vand.u32 %v2014, 4294901760
        %v2527 = vsub.f32 %v2014, %v2526
        %v2528 = vand.u32 %v2527, 4294901760
        %2529 = vmatpush1.msra.mxu0 %v2528
        %2530 = vmatprep.subr.mxu0 0.0
        %v2531 = vand.u32 %v2013, 4294901760
        %v2532 = vsub.f32 %v2013, %v2531
        %v2533 = vand.u32 %v2532, 4294901760
        %2534 = vmatpush1.msra.mxu0 %v2533
        %2535 = vmatprep.subr.mxu0 0.0
        %v2536 = vand.u32 %v2012, 4294901760
        %v2537 = vsub.f32 %v2012, %v2536
        %v2538 = vand.u32 %v2537, 4294901760
        %2539 = vmatpush1.msra.mxu0 %v2538
        %2540 = vmatprep.subr.mxu0 0.0
        %v2541 = vand.u32 %v2011, 4294901760
        %v2542 = vsub.f32 %v2011, %v2541
        %v2543 = vand.u32 %v2542, 4294901760
        %2544 = vmatpush1.msra.mxu0 %v2543
        %2545 = vmatprep.subr.mxu0 0.0
        %v2546 = vand.u32 %v2010, 4294901760
        %v2547 = vsub.f32 %v2010, %v2546
        %v2548 = vand.u32 %v2547, 4294901760
        %2549 = vmatpush1.msra.mxu0 %v2548
        %2550 = vmatprep.subr.mxu0 0.0
        %2551 = vmatpush2.msra.mxu0 0.0
        %2552 = vmatprep.subr.mxu0 0.0
        %2553 = vmatpush2.msra.mxu0 0.0
        %2554 = vmatprep.subr.mxu0 0.0
        %2555 = vmatpush2.msra.mxu0 0.0
        %2556 = vmatprep.subr.mxu0 0.0
        %2557 = vmatpush2.msra.mxu0 0.0
        %2558 = vmatprep.subr.mxu0 0.0
        %2559 = vmatpush2.msra.mxu0 0.0
        %2560 = vmatprep.subr.mxu0 0.0
        %2561 = vmatpush2.msra.mxu0 0.0
        %2562 = vmatprep.subr.mxu0 0.0
        %2563 = vmatpush2.msra.mxu0 0.0
        %2564 = vmatprep.subr.mxu0 0.0
        %2565 = vmatpush2.msra.mxu0 0.0
        %2566 = vmatprep.subr.mxu0 0.0
        %2567 = vmatpush2.msra.mxu0 0.0
        %2568 = vmatprep.subr.mxu0 0.0
        %2569 = vmatpush2.msra.mxu0 0.0
        %2570 = vmatprep.subr.mxu0 0.0
        %2571 = vmatpush2.msra.mxu0 0.0
        %2572 = vmatprep.subr.mxu0 0.0
        %2573 = vmatpush2.msra.mxu0 0.0
        %2574 = vmatprep.subr.mxu0 0.0
        %2575 = vmatpush2.msra.mxu0 0.0
        %2576 = vmatprep.subr.mxu0 0.0
        %2577 = vmatpush2.msra.mxu0 0.0
        %2578 = vmatprep.subr.mxu0 0.0
        %2579 = vmatpush2.msra.mxu0 0.0
        %2580 = vmatprep.subr.mxu0 0.0
        %2581 = vmatpush2.msra.mxu0 0.0
        %2582 = vmatprep.mubr.f32.mxu0 0.0
        %v2583 = vand.u32 %v2033, 4294901760
        %2584 = vmatmul.mubr.f32.gmra.mxu0 %v2583
        %v2585 = vpop.f32.mrf.mxu0
        %v2586 = vadd.f32 %v2467, %v2585
        %v2587 = vpop.f32.mrf.mxu0
        %2588 = vdwg.mxu0
        %2589 = vmatprep.subr.mxu0 0.0
        %v2590 = vand.u32 %v2025, 4294901760
        %2591 = vmatpush1.msra.mxu0 %v2590
        %2592 = vmatprep.subr.mxu0 0.0
        %v2593 = vand.u32 %v2024, 4294901760
        %2594 = vmatpush1.msra.mxu0 %v2593
        %2595 = vmatprep.subr.mxu0 0.0
        %v2596 = vand.u32 %v2023, 4294901760
        %2597 = vmatpush1.msra.mxu0 %v2596
        %2598 = vmatprep.subr.mxu0 0.0
        %v2599 = vand.u32 %v2022, 4294901760
        %2600 = vmatpush1.msra.mxu0 %v2599
        %2601 = vmatprep.subr.mxu0 0.0
        %v2602 = vand.u32 %v2021, 4294901760
        %2603 = vmatpush1.msra.mxu0 %v2602
        %2604 = vmatprep.subr.mxu0 0.0
        %v2605 = vand.u32 %v2020, 4294901760
        %2606 = vmatpush1.msra.mxu0 %v2605
        %2607 = vmatprep.subr.mxu0 0.0
        %v2608 = vand.u32 %v2019, 4294901760
        %2609 = vmatpush1.msra.mxu0 %v2608
        %2610 = vmatprep.subr.mxu0 0.0
        %v2611 = vand.u32 %v2018, 4294901760
        %2612 = vmatpush1.msra.mxu0 %v2611
        %2613 = vmatprep.subr.mxu0 0.0
        %v2614 = vand.u32 %v2017, 4294901760
        %2615 = vmatpush1.msra.mxu0 %v2614
        %2616 = vmatprep.subr.mxu0 0.0
        %v2617 = vand.u32 %v2016, 4294901760
        %2618 = vmatpush1.msra.mxu0 %v2617
        %2619 = vmatprep.subr.mxu0 0.0
        %v2620 = vand.u32 %v2015, 4294901760
        %2621 = vmatpush1.msra.mxu0 %v2620
        %2622 = vmatprep.subr.mxu0 0.0
        %v2623 = vand.u32 %v2014, 4294901760
        %2624 = vmatpush1.msra.mxu0 %v2623
        %2625 = vmatprep.subr.mxu0 0.0
        %v2626 = vand.u32 %v2013, 4294901760
        %2627 = vmatpush1.msra.mxu0 %v2626
        %2628 = vmatprep.subr.mxu0 0.0
        %v2629 = vand.u32 %v2012, 4294901760
        %2630 = vmatpush1.msra.mxu0 %v2629
        %2631 = vmatprep.subr.mxu0 0.0
        %v2632 = vand.u32 %v2011, 4294901760
        %2633 = vmatpush1.msra.mxu0 %v2632
        %2634 = vmatprep.subr.mxu0 0.0
        %v2635 = vand.u32 %v2010, 4294901760
        %2636 = vmatpush1.msra.mxu0 %v2635
        %2637 = vmatprep.subr.mxu0 0.0
        %2638 = vmatpush2.msra.mxu0 0.0
        %2639 = vmatprep.subr.mxu0 0.0
        %2640 = vmatpush2.msra.mxu0 0.0
        %2641 = vmatprep.subr.mxu0 0.0
        %2642 = vmatpush2.msra.mxu0 0.0
        %2643 = vmatprep.subr.mxu0 0.0
        %2644 = vmatpush2.msra.mxu0 0.0
        %2645 = vmatprep.subr.mxu0 0.0
        %2646 = vmatpush2.msra.mxu0 0.0
        %2647 = vmatprep.subr.mxu0 0.0
        %2648 = vmatpush2.msra.mxu0 0.0
        %2649 = vmatprep.subr.mxu0 0.0
        %2650 = vmatpush2.msra.mxu0 0.0
        %2651 = vmatprep.subr.mxu0 0.0
        %2652 = vmatpush2.msra.mxu0 0.0
        %2653 = vmatprep.subr.mxu0 0.0
        %2654 = vmatpush2.msra.mxu0 0.0
        %2655 = vmatprep.subr.mxu0 0.0
        %2656 = vmatpush2.msra.mxu0 0.0
        %2657 = vmatprep.subr.mxu0 0.0
        %2658 = vmatpush2.msra.mxu0 0.0
        %2659 = vmatprep.subr.mxu0 0.0
        %2660 = vmatpush2.msra.mxu0 0.0
        %2661 = vmatprep.subr.mxu0 0.0
        %2662 = vmatpush2.msra.mxu0 0.0
        %2663 = vmatprep.subr.mxu0 0.0
        %2664 = vmatpush2.msra.mxu0 0.0
        %2665 = vmatprep.subr.mxu0 0.0
        %2666 = vmatpush2.msra.mxu0 0.0
        %2667 = vmatprep.subr.mxu0 0.0
        %2668 = vmatpush2.msra.mxu0 0.0
        %2669 = vmatprep.mubr.f32.mxu0 0.0
        %v2670 = vand.u32 %v2033, 4294901760
        %2671 = vmatmul.mubr.f32.gmra.mxu0 %v2670
        %v2672 = vpop.f32.mrf.mxu0
        %v2673 = vadd.f32 %v2586, %v2672
        %v2674 = vpop.f32.mrf.mxu0
        %2675 = vdwg.mxu0
        %v2677 = vrot.slane %v2673, 2
        %v2679 = vrot.slane %v2673, 7
        %v2680 = vrot.slane %v1986, 7
        %v2681 = vrot.slane %v1987, 7
        %2682 = vrot.lane.b32.xlu0 %v2679, 112
        %v2683 = vpop.permute.xlu0 %2682
        %2684 = vrot.lane.b32.xlu0 %v2680, 112
        %v2685 = vpop.permute.xlu0 %2684
        %2686 = vrot.lane.b32.xlu0 %v2681, 112
        %v2687 = vpop.permute.xlu0 %2686
        %vm2688 = vcmask 916480
        %v2689 = vsel %vm2688, %v2683, %v2685
        %v2690 = vsel %vm2688, %v2685, %v2687
        %v2693 = vrot.slane %v2673, 6
        %v2694 = vrot.slane %v1986, 6
        %v2695 = vrot.slane %v1987, 6
        %2696 = vrot.lane.b32.xlu0 %v2693, 96
        %v2697 = vpop.permute.xlu0 %2696
        %2698 = vrot.lane.b32.xlu0 %v2694, 96
        %v2699 = vpop.permute.xlu0 %2698
        %2700 = vrot.lane.b32.xlu0 %v2695, 96
        %v2701 = vpop.permute.xlu0 %2700
        %vm2702 = vcmask 785408
        %v2703 = vsel %vm2702, %v2697, %v2699
        %v2704 = vsel %vm2702, %v2699, %v2701
        %v2707 = vrot.slane %v2673, 5
        %v2708 = vrot.slane %v1986, 5
        %v2709 = vrot.slane %v1987, 5
        %2710 = vrot.lane.b32.xlu0 %v2707, 80
        %v2711 = vpop.permute.xlu0 %2710
        %2712 = vrot.lane.b32.xlu0 %v2708, 80
        %v2713 = vpop.permute.xlu0 %2712
        %2714 = vrot.lane.b32.xlu0 %v2709, 80
        %v2715 = vpop.permute.xlu0 %2714
        %vm2716 = vcmask 654336
        %v2717 = vsel %vm2716, %v2711, %v2713
        %v2718 = vsel %vm2716, %v2713, %v2715
        %v2721 = vrot.slane %v2673, 4
        %v2722 = vrot.slane %v1986, 4
        %v2723 = vrot.slane %v1987, 4
        %2724 = vrot.lane.b32.xlu0 %v2721, 64
        %v2725 = vpop.permute.xlu0 %2724
        %2726 = vrot.lane.b32.xlu0 %v2722, 64
        %v2727 = vpop.permute.xlu0 %2726
        %2728 = vrot.lane.b32.xlu0 %v2723, 64
        %v2729 = vpop.permute.xlu0 %2728
        %vm2730 = vcmask 523264
        %v2731 = vsel %vm2730, %v2725, %v2727
        %v2732 = vsel %vm2730, %v2727, %v2729
        %v2735 = vrot.slane %v2673, 3
        %v2736 = vrot.slane %v1986, 3
        %v2737 = vrot.slane %v1987, 3
        %2738 = vrot.lane.b32.xlu0 %v2735, 48
        %v2739 = vpop.permute.xlu0 %2738
        %2740 = vrot.lane.b32.xlu0 %v2736, 48
        %v2741 = vpop.permute.xlu0 %2740
        %2742 = vrot.lane.b32.xlu0 %v2737, 48
        %v2743 = vpop.permute.xlu0 %2742
        %vm2744 = vcmask 392192
        %v2745 = vsel %vm2744, %v2739, %v2741
        %v2746 = vsel %vm2744, %v2741, %v2743
        %v2749 = vrot.slane %v1986, 2
        %v2750 = vrot.slane %v1987, 2
        %2751 = vrot.lane.b32.xlu0 %v2677, 32
        %v2752 = vpop.permute.xlu0 %2751
        %2753 = vrot.lane.b32.xlu0 %v2749, 32
        %v2754 = vpop.permute.xlu0 %2753
        %2755 = vrot.lane.b32.xlu0 %v2750, 32
        %v2756 = vpop.permute.xlu0 %2755
        %vm2757 = vcmask 261120
        %v2758 = vsel %vm2757, %v2752, %v2754
        %v2759 = vsel %vm2757, %v2754, %v2756
        %v2762 = vrot.slane %v2673, 1
        %v2763 = vrot.slane %v1986, 1
        %v2764 = vrot.slane %v1987, 1
        %2765 = vrot.lane.b32.xlu0 %v2762, 16
        %v2766 = vpop.permute.xlu0 %2765
        %2767 = vrot.lane.b32.xlu0 %v2763, 16
        %v2768 = vpop.permute.xlu0 %2767
        %2769 = vrot.lane.b32.xlu0 %v2764, 16
        %v2770 = vpop.permute.xlu0 %2769
        %vm2771 = vcmask 130048
        %v2772 = vsel %vm2771, %v2766, %v2768
        %v2773 = vsel %vm2771, %v2768, %v2770
        %v2776 = vsel %vm1112, %v2673, %v2689
        %v2777 = vsel %vm1112, %v1986, %v2690
        %v2778 = vsel %vm2007, %v2776, %v2703
        %v2779 = vsel %vm2007, %v2777, %v2704
        %vm2780 = vcmask 1042432
        %v2781 = vsel %vm2780, %v2778, %v2717
        %v2782 = vsel %vm2780, %v2779, %v2718
        %vm2783 = vcmask 1043456
        %v2784 = vsel %vm2783, %v2781, %v2731
        %v2785 = vsel %vm2783, %v2782, %v2732
        %vm2786 = vcmask 1044480
        %v2787 = vsel %vm2786, %v2784, %v2745
        %v2788 = vsel %vm2786, %v2785, %v2746
        %vm2789 = vcmask 1045504
        %v2790 = vsel %vm2789, %v2787, %v2758
        %v2791 = vsel %vm2789, %v2788, %v2759
        %vm2792 = vcmask 1046528
        %v2793 = vsel %vm2792, %v2790, %v2772
        %v2794 = vsel %vm2792, %v2791, %v2773
        %2795 = vst [vmem:[#allocation3] sm:$0xff] %v2793
        %2796 = vst [vmem:[#allocation3 + $0x8] sm:$0xff] %v2794
        %2799 = vrot.lane.b32.xlu0 %v2673, 112
        %v2800 = vpop.permute.xlu0 %2799
        %2801 = vrot.lane.b32.xlu0 %v1986, 112
        %v2802 = vpop.permute.xlu0 %2801
        %2803 = vrot.lane.b32.xlu0 %v1987, 112
        %v2804 = vpop.permute.xlu0 %2803
        %v2805 = vsel %vm2688, %v2800, %v2802
        %v2806 = vsel %vm2688, %v2802, %v2804
        %2809 = vrot.lane.b32.xlu0 %v2679, 96
        %v2810 = vpop.permute.xlu0 %2809
        %2811 = vrot.lane.b32.xlu0 %v2680, 96
        %v2812 = vpop.permute.xlu0 %2811
        %2813 = vrot.lane.b32.xlu0 %v2681, 96
        %v2814 = vpop.permute.xlu0 %2813
        %v2815 = vsel %vm2702, %v2810, %v2812
        %v2816 = vsel %vm2702, %v2812, %v2814
        %2819 = vrot.lane.b32.xlu0 %v2693, 80
        %v2820 = vpop.permute.xlu0 %2819
        %2821 = vrot.lane.b32.xlu0 %v2694, 80
        %v2822 = vpop.permute.xlu0 %2821
        %2823 = vrot.lane.b32.xlu0 %v2695, 80
        %v2824 = vpop.permute.xlu0 %2823
        %v2825 = vsel %vm2716, %v2820, %v2822
        %v2826 = vsel %vm2716, %v2822, %v2824
        %2829 = vrot.lane.b32.xlu0 %v2707, 64
        %v2830 = vpop.permute.xlu0 %2829
        %2831 = vrot.lane.b32.xlu0 %v2708, 64
        %v2832 = vpop.permute.xlu0 %2831
        %2833 = vrot.lane.b32.xlu0 %v2709, 64
        %v2834 = vpop.permute.xlu0 %2833
        %v2835 = vsel %vm2730, %v2830, %v2832
        %v2836 = vsel %vm2730, %v2832, %v2834
        %2839 = vrot.lane.b32.xlu0 %v2721, 48
        %v2840 = vpop.permute.xlu0 %2839
        %2841 = vrot.lane.b32.xlu0 %v2722, 48
        %v2842 = vpop.permute.xlu0 %2841
        %2843 = vrot.lane.b32.xlu0 %v2723, 48
        %v2844 = vpop.permute.xlu0 %2843
        %v2845 = vsel %vm2744, %v2840, %v2842
        %v2846 = vsel %vm2744, %v2842, %v2844
        %2849 = vrot.lane.b32.xlu0 %v2735, 32
        %v2850 = vpop.permute.xlu0 %2849
        %2851 = vrot.lane.b32.xlu0 %v2736, 32
        %v2852 = vpop.permute.xlu0 %2851
        %2853 = vrot.lane.b32.xlu0 %v2737, 32
        %v2854 = vpop.permute.xlu0 %2853
        %v2855 = vsel %vm2757, %v2850, %v2852
        %v2856 = vsel %vm2757, %v2852, %v2854
        %2859 = vrot.lane.b32.xlu0 %v2677, 16
        %v2860 = vpop.permute.xlu0 %2859
        %2861 = vrot.lane.b32.xlu0 %v2749, 16
        %v2862 = vpop.permute.xlu0 %2861
        %2863 = vrot.lane.b32.xlu0 %v2750, 16
        %v2864 = vpop.permute.xlu0 %2863
        %v2865 = vsel %vm2771, %v2860, %v2862
        %v2866 = vsel %vm2771, %v2862, %v2864
        %v2869 = vsel %vm1112, %v2762, %v2805
        %v2870 = vsel %vm1112, %v2763, %v2806
        %v2871 = vsel %vm2007, %v2869, %v2815
        %v2872 = vsel %vm2007, %v2870, %v2816
        %v2873 = vsel %vm2780, %v2871, %v2825
        %v2874 = vsel %vm2780, %v2872, %v2826
        %v2875 = vsel %vm2783, %v2873, %v2835
        %v2876 = vsel %vm2783, %v2874, %v2836
        %v2877 = vsel %vm2786, %v2875, %v2845
        %v2878 = vsel %vm2786, %v2876, %v2846
        %v2879 = vsel %vm2789, %v2877, %v2855
        %v2880 = vsel %vm2789, %v2878, %v2856
        %v2881 = vsel %vm2792, %v2879, %v2865
        %v2882 = vsel %vm2792, %v2880, %v2866
        %2883 = vst [vmem:[#allocation3 + $0x30] sm:$0xff] %v2881
        %2884 = vst [vmem:[#allocation3 + $0x38] sm:$0xff] %v2882
        %v2885 = vrot.slane %v2677, 7
        %2886 = vrot.lane.b32.xlu0 %v2885, 112
        %v2887 = vpop.permute.xlu0 %2886
        %v2888 = vsel %vm2688, %v2687, %v2887
        %v2890 = vrot.slane %v2677, 6
        %2891 = vrot.lane.b32.xlu0 %v2890, 96
        %v2892 = vpop.permute.xlu0 %2891
        %v2893 = vsel %vm2702, %v2701, %v2892
        %v2895 = vrot.slane %v2677, 5
        %2896 = vrot.lane.b32.xlu0 %v2895, 80
        %v2897 = vpop.permute.xlu0 %2896
        %v2898 = vsel %vm2716, %v2715, %v2897
        %v2900 = vrot.slane %v2677, 4
        %2901 = vrot.lane.b32.xlu0 %v2900, 64
        %v2902 = vpop.permute.xlu0 %2901
        %v2903 = vsel %vm2730, %v2729, %v2902
        %v2905 = vrot.slane %v2677, 3
        %2906 = vrot.lane.b32.xlu0 %v2905, 48
        %v2907 = vpop.permute.xlu0 %2906
        %v2908 = vsel %vm2744, %v2743, %v2907
        %v2910 = vrot.slane %v2677, 2
        %2911 = vrot.lane.b32.xlu0 %v2910, 32
        %v2912 = vpop.permute.xlu0 %2911
        %v2913 = vsel %vm2757, %v2756, %v2912
        %v2915 = vrot.slane %v2677, 1
        %2916 = vrot.lane.b32.xlu0 %v2915, 16
        %v2917 = vpop.permute.xlu0 %2916
        %v2918 = vsel %vm2771, %v2770, %v2917
        %v2920 = vsel %vm1112, %v1987, %v2888
        %v2921 = vsel %vm2007, %v2920, %v2893
        %v2922 = vsel %vm2780, %v2921, %v2898
        %v2923 = vsel %vm2783, %v2922, %v2903
        %v2924 = vsel %vm2786, %v2923, %v2908
        %v2925 = vsel %vm2789, %v2924, %v2913
        %v2926 = vsel %vm2792, %v2925, %v2918
        %2927 = vst [vmem:[#allocation3 + $0x10] sm:$0xff] %v2794
        %2928 = vst [vmem:[#allocation3 + $0x18] sm:$0xff] %v2926
        %2930 = vrot.lane.b32.xlu0 %v2677, 112
        %v2931 = vpop.permute.xlu0 %2930
        %v2932 = vsel %vm2688, %v2804, %v2931
        %2934 = vrot.lane.b32.xlu0 %v2885, 96
        %v2935 = vpop.permute.xlu0 %2934
        %v2936 = vsel %vm2702, %v2814, %v2935
        %2938 = vrot.lane.b32.xlu0 %v2890, 80
        %v2939 = vpop.permute.xlu0 %2938
        %v2940 = vsel %vm2716, %v2824, %v2939
        %2942 = vrot.lane.b32.xlu0 %v2895, 64
        %v2943 = vpop.permute.xlu0 %2942
        %v2944 = vsel %vm2730, %v2834, %v2943
        %2946 = vrot.lane.b32.xlu0 %v2900, 48
        %v2947 = vpop.permute.xlu0 %2946
        %v2948 = vsel %vm2744, %v2844, %v2947
        %2950 = vrot.lane.b32.xlu0 %v2905, 32
        %v2951 = vpop.permute.xlu0 %2950
        %v2952 = vsel %vm2757, %v2854, %v2951
        %2954 = vrot.lane.b32.xlu0 %v2910, 16
        %v2955 = vpop.permute.xlu0 %2954
        %v2956 = vsel %vm2771, %v2864, %v2955
        %v2958 = vsel %vm1112, %v2764, %v2932
        %v2959 = vsel %vm2007, %v2958, %v2936
        %v2960 = vsel %vm2780, %v2959, %v2940
        %v2961 = vsel %vm2783, %v2960, %v2944
        %v2962 = vsel %vm2786, %v2961, %v2948
        %v2963 = vsel %vm2789, %v2962, %v2952
        %v2964 = vsel %vm2792, %v2963, %v2956
        %2965 = vst [vmem:[#allocation3 + $0x40] sm:$0xff] %v2882
        %2966 = vst [vmem:[#allocation3 + $0x48] sm:$0xff] %v2964
        %v2980 = vsel %vm1112, %v1987, %v2681
        %v2981 = vsel %vm1112, %v2677, %v2885
        %v2982 = vsel %vm2007, %v2980, %v2695
        %v2983 = vsel %vm2007, %v2981, %v2890
        %v2984 = vsel %vm2780, %v2982, %v2709
        %v2985 = vsel %vm2780, %v2983, %v2895
        %v2986 = vsel %vm2783, %v2984, %v2723
        %v2987 = vsel %vm2783, %v2985, %v2900
        %v2988 = vsel %vm2786, %v2986, %v2737
        %v2989 = vsel %vm2786, %v2987, %v2905
        %v2990 = vsel %vm2789, %v2988, %v2750
        %v2991 = vsel %vm2789, %v2989, %v2910
        %v2992 = vsel %vm2792, %v2990, %v2764
        %v2993 = vsel %vm2792, %v2991, %v2915
        %2994 = vst [vmem:[#allocation3 + $0x20] sm:$0xff] %v2992
        %2995 = vst [vmem:[#allocation3 + $0x28] sm:$0xff] %v2993
        %v2996 = vsel %vm1112, %v2764, %v1987
        %v2997 = vsel %vm1112, %v2915, %v2677
        %v2998 = vsel %vm2007, %v2996, %v2681
        %v2999 = vsel %vm2007, %v2997, %v2885
        %v3000 = vsel %vm2780, %v2998, %v2695
        %v3001 = vsel %vm2780, %v2999, %v2890
        %v3002 = vsel %vm2783, %v3000, %v2709
        %v3003 = vsel %vm2783, %v3001, %v2895
        %v3004 = vsel %vm2786, %v3002, %v2723
        %v3005 = vsel %vm2786, %v3003, %v2900
        %v3006 = vsel %vm2789, %v3004, %v2737
        %v3007 = vsel %vm2789, %v3005, %v2905
        %v3008 = vsel %vm2792, %v3006, %v2750
        %v3009 = vsel %vm2792, %v3007, %v2910
        %3010 = vst [vmem:[#allocation3 + $0x50] sm:$0xff] %v3008
        %3011 = vst [vmem:[#allocation3 + $0x58] sm:$0xff] %v3009
        %v3012 = vld [vmem:[#allocation3] sm:$0xff]
        %v3013 = vld [vmem:[#allocation3 + $0x8] sm:$0xff]
        %v3014 = vld [vmem:[#allocation3 + $0x10] sm:$0xff]
        %v3015 = vld [vmem:[#allocation3 + $0x18] sm:$0xff]
        %v3016 = vld [vmem:[#allocation3 + $0x20] sm:$0xff]
        %v3017 = vld [vmem:[#allocation3 + $0x28] sm:$0xff]
        %v3018 = vld [vmem:[#allocation3 + $0x30] sm:$0xff]
        %v3019 = vld [vmem:[#allocation3 + $0x38] sm:$0xff]
        %v3020 = vld [vmem:[#allocation3 + $0x40] sm:$0xff]
        %v3021 = vld [vmem:[#allocation3 + $0x48] sm:$0xff]
        %v3022 = vld [vmem:[#allocation3 + $0x50] sm:$0xff]
        %v3023 = vld [vmem:[#allocation3 + $0x58] sm:$0xff]
        %v3024 = vld [vmem:[%s3] sm:$0xff]
        %v3025 = vld [vmem:[%s3 + $0x8] sm:$0xff]
        %v3026 = vld [vmem:[%s3 + $0x10] sm:$0xff]
        %v3027 = vld [vmem:[%s3 + $0x18] sm:$0xff]
        %v3028 = vld [vmem:[%s3 + $0x20] sm:$0xff]
        %v3029 = vld [vmem:[%s3 + $0x28] sm:$0xff]
        %v3030 = vld [vmem:[%s3 + $0x30] sm:$0xff]
        %v3031 = vld [vmem:[%s3 + $0x38] sm:$0xff]
        %v3032 = vld [vmem:[%s3 + $0x40] sm:$0xff]
        %v3033 = vld [vmem:[%s3 + $0x48] sm:$0xff]
        %v3034 = vld [vmem:[%s3 + $0x50] sm:$0xff]
        %v3035 = vld [vmem:[%s3 + $0x58] sm:$0xff]
        %v3036 = vld [vmem:[%s3 + $0x60] sm:$0xff]
        %v3037 = vld [vmem:[%s3 + $0x68] sm:$0xff]
        %v3038 = vld [vmem:[%s3 + $0x70] sm:$0xff]
        %v3039 = vld [vmem:[%s3 + $0x78] sm:$0xff]
        %v3040 = vld [vmem:[%s3 + $0x80] sm:$0xff]
        %v3041 = vld [vmem:[%s3 + $0x88] sm:$0xff]
        %v3042 = vld [vmem:[%s3 + $0x90] sm:$0xff]
        %v3043 = vld [vmem:[%s3 + $0x98] sm:$0xff]
        %v3044 = vld [vmem:[%s3 + $0xa0] sm:$0xff]
        %v3045 = vld [vmem:[%s3 + $0xa8] sm:$0xff]
        %v3046 = vld [vmem:[%s3 + $0xb0] sm:$0xff]
        %v3047 = vld [vmem:[%s3 + $0xb8] sm:$0xff]
        %v3048 = vld [vmem:[%s3 + $0xc0] sm:$0xff]
        %v3049 = vld [vmem:[%s3 + $0xc8] sm:$0xff]
        %v3050 = vld [vmem:[%s3 + $0xd0] sm:$0xff]
        %v3051 = vld [vmem:[%s3 + $0xd8] sm:$0xff]
        %v3052 = vld [vmem:[%s3 + $0xe0] sm:$0xff]
        %v3053 = vld [vmem:[%s3 + $0xe8] sm:$0xff]
        %v3054 = vld [vmem:[%s3 + $0xf0] sm:$0xff]
        %v3055 = vld [vmem:[%s3 + $0xf8] sm:$0xff]
        %v3056 = vld [vmem:[%s3 + $0x100] sm:$0xff]
        %v3057 = vld [vmem:[%s3 + $0x108] sm:$0xff]
        %v3058 = vld [vmem:[%s3 + $0x110] sm:$0xff]
        %v3059 = vld [vmem:[%s3 + $0x118] sm:$0xff]
        %v3060 = vld [vmem:[%s3 + $0x120] sm:$0xff]
        %v3061 = vld [vmem:[%s3 + $0x128] sm:$0xff]
        %v3062 = vld [vmem:[%s3 + $0x130] sm:$0xff]
        %v3063 = vld [vmem:[%s3 + $0x138] sm:$0xff]
        %v3064 = vld [vmem:[%s3 + $0x140] sm:$0xff]
        %v3065 = vld [vmem:[%s3 + $0x148] sm:$0xff]
        %v3066 = vld [vmem:[%s3 + $0x150] sm:$0xff]
        %v3067 = vld [vmem:[%s3 + $0x158] sm:$0xff]
        %v3068 = vld [vmem:[%s3 + $0x160] sm:$0xff]
        %v3069 = vld [vmem:[%s3 + $0x168] sm:$0xff]
        %v3070 = vld [vmem:[%s3 + $0x170] sm:$0xff]
        %v3071 = vld [vmem:[%s3 + $0x178] sm:$0xff]
        %v3072 = vld [vmem:[%s3 + $0x180] sm:$0xff]
        %v3073 = vld [vmem:[%s3 + $0x188] sm:$0xff]
        %v3074 = vld [vmem:[%s3 + $0x190] sm:$0xff]
        %v3075 = vld [vmem:[%s3 + $0x198] sm:$0xff]
        %v3076 = vld [vmem:[%s3 + $0x1a0] sm:$0xff]
        %v3077 = vld [vmem:[%s3 + $0x1a8] sm:$0xff]
        %v3078 = vld [vmem:[%s3 + $0x1b0] sm:$0xff]
        %v3079 = vld [vmem:[%s3 + $0x1b8] sm:$0xff]
        %v3080 = vld [vmem:[%s3 + $0x1c0] sm:$0xff]
        %v3081 = vld [vmem:[%s3 + $0x1c8] sm:$0xff]
        %v3082 = vld [vmem:[%s3 + $0x1d0] sm:$0xff]
        %v3083 = vld [vmem:[%s3 + $0x1d8] sm:$0xff]
        %v3084 = vld [vmem:[%s3 + $0x1e0] sm:$0xff]
        %v3085 = vld [vmem:[%s3 + $0x1e8] sm:$0xff]
        %v3086 = vld [vmem:[%s3 + $0x1f0] sm:$0xff]
        %v3087 = vld [vmem:[%s3 + $0x1f8] sm:$0xff]
        %v3088 = vld [vmem:[%s3 + $0x200] sm:$0xff]
        %v3089 = vld [vmem:[%s3 + $0x208] sm:$0xff]
        %v3090 = vld [vmem:[%s3 + $0x210] sm:$0xff]
        %v3091 = vld [vmem:[%s3 + $0x218] sm:$0xff]
        %v3092 = vld [vmem:[%s3 + $0x220] sm:$0xff]
        %v3093 = vld [vmem:[%s3 + $0x228] sm:$0xff]
        %v3094 = vld [vmem:[%s3 + $0x230] sm:$0xff]
        %v3095 = vld [vmem:[%s3 + $0x238] sm:$0xff]
        %v3096 = vld [vmem:[%s3 + $0x240] sm:$0xff]
        %v3097 = vld [vmem:[%s3 + $0x248] sm:$0xff]
        %v3098 = vld [vmem:[%s3 + $0x250] sm:$0xff]
        %v3099 = vld [vmem:[%s3 + $0x258] sm:$0xff]
        %v3100 = vld [vmem:[%s3 + $0x260] sm:$0xff]
        %v3101 = vld [vmem:[%s3 + $0x268] sm:$0xff]
        %v3102 = vld [vmem:[%s3 + $0x270] sm:$0xff]
        %v3103 = vld [vmem:[%s3 + $0x278] sm:$0xff]
        %v3104 = vld [vmem:[%s3 + $0x280] sm:$0xff]
        %v3105 = vld [vmem:[%s3 + $0x288] sm:$0xff]
        %v3106 = vld [vmem:[%s3 + $0x290] sm:$0xff]
        %v3107 = vld [vmem:[%s3 + $0x298] sm:$0xff]
        %v3108 = vld [vmem:[%s3 + $0x2a0] sm:$0xff]
        %v3109 = vld [vmem:[%s3 + $0x2a8] sm:$0xff]
        %v3110 = vld [vmem:[%s3 + $0x2b0] sm:$0xff]
        %v3111 = vld [vmem:[%s3 + $0x2b8] sm:$0xff]
        %v3112 = vld [vmem:[%s3 + $0x2c0] sm:$0xff]
        %v3113 = vld [vmem:[%s3 + $0x2c8] sm:$0xff]
        %v3114 = vld [vmem:[%s3 + $0x2d0] sm:$0xff]
        %v3115 = vld [vmem:[%s3 + $0x2d8] sm:$0xff]
        %v3116 = vld [vmem:[%s3 + $0x2e0] sm:$0xff]
        %v3117 = vld [vmem:[%s3 + $0x2e8] sm:$0xff]
        %v3118 = vld [vmem:[%s3 + $0x2f0] sm:$0xff]
        %v3119 = vld [vmem:[%s3 + $0x2f8] sm:$0xff]
        %v3120 = vld [vmem:[%s3 + $0x300] sm:$0xff]
        %v3121 = vld [vmem:[%s3 + $0x308] sm:$0xff]
        %v3122 = vld [vmem:[%s3 + $0x310] sm:$0xff]
        %v3123 = vld [vmem:[%s3 + $0x318] sm:$0xff]
        %v3124 = vld [vmem:[%s3 + $0x320] sm:$0xff]
        %v3125 = vld [vmem:[%s3 + $0x328] sm:$0xff]
        %v3126 = vld [vmem:[%s3 + $0x330] sm:$0xff]
        %v3127 = vld [vmem:[%s3 + $0x338] sm:$0xff]
        %v3128 = vld [vmem:[%s3 + $0x340] sm:$0xff]
        %v3129 = vld [vmem:[%s3 + $0x348] sm:$0xff]
        %v3130 = vld [vmem:[%s3 + $0x350] sm:$0xff]
        %v3131 = vld [vmem:[%s3 + $0x358] sm:$0xff]
        %v3132 = vld [vmem:[%s3 + $0x360] sm:$0xff]
        %v3133 = vld [vmem:[%s3 + $0x368] sm:$0xff]
        %v3134 = vld [vmem:[%s3 + $0x370] sm:$0xff]
        %v3135 = vld [vmem:[%s3 + $0x378] sm:$0xff]
        %v3136 = vld [vmem:[%s3 + $0x380] sm:$0xff]
        %v3137 = vld [vmem:[%s3 + $0x388] sm:$0xff]
        %v3138 = vld [vmem:[%s3 + $0x390] sm:$0xff]
        %v3139 = vld [vmem:[%s3 + $0x398] sm:$0xff]
        %v3140 = vld [vmem:[%s3 + $0x3a0] sm:$0xff]
        %v3141 = vld [vmem:[%s3 + $0x3a8] sm:$0xff]
        %v3142 = vld [vmem:[%s3 + $0x3b0] sm:$0xff]
        %v3143 = vld [vmem:[%s3 + $0x3b8] sm:$0xff]
        %v3144 = vld [vmem:[%s3 + $0x3c0] sm:$0xff]
        %v3145 = vld [vmem:[%s3 + $0x3c8] sm:$0xff]
        %v3146 = vld [vmem:[%s3 + $0x3d0] sm:$0xff]
        %v3147 = vld [vmem:[%s3 + $0x3d8] sm:$0xff]
        %v3148 = vld [vmem:[%s3 + $0x3e0] sm:$0xff]
        %v3149 = vld [vmem:[%s3 + $0x3e8] sm:$0xff]
        %v3150 = vld [vmem:[%s3 + $0x3f0] sm:$0xff]
        %v3151 = vld [vmem:[%s3 + $0x3f8] sm:$0xff]
        %v3152 = vand.u32 %v3085, 4294901760
        %3153 = vmatprep.subr.mxu0 %v3152
        %v3154 = vand.u32 %v3084, 4294901760
        %3155 = vmatpush1.msra.mxu0 %v3154
        %v3156 = vand.u32 %v3081, 4294901760
        %3157 = vmatprep.subr.mxu0 %v3156
        %v3158 = vand.u32 %v3080, 4294901760
        %3159 = vmatpush1.msra.mxu0 %v3158
        %v3160 = vand.u32 %v3077, 4294901760
        %3161 = vmatprep.subr.mxu0 %v3160
        %v3162 = vand.u32 %v3076, 4294901760
        %3163 = vmatpush1.msra.mxu0 %v3162
        %v3164 = vand.u32 %v3073, 4294901760
        %3165 = vmatprep.subr.mxu0 %v3164
        %v3166 = vand.u32 %v3072, 4294901760
        %3167 = vmatpush1.msra.mxu0 %v3166
        %v3168 = vand.u32 %v3069, 4294901760
        %3169 = vmatprep.subr.mxu0 %v3168
        %v3170 = vand.u32 %v3068, 4294901760
        %3171 = vmatpush1.msra.mxu0 %v3170
        %v3172 = vand.u32 %v3065, 4294901760
        %3173 = vmatprep.subr.mxu0 %v3172
        %v3174 = vand.u32 %v3064, 4294901760
        %3175 = vmatpush1.msra.mxu0 %v3174
        %v3176 = vand.u32 %v3061, 4294901760
        %3177 = vmatprep.subr.mxu0 %v3176
        %v3178 = vand.u32 %v3060, 4294901760
        %3179 = vmatpush1.msra.mxu0 %v3178
        %v3180 = vand.u32 %v3057, 4294901760
        %3181 = vmatprep.subr.mxu0 %v3180
        %v3182 = vand.u32 %v3056, 4294901760
        %3183 = vmatpush1.msra.mxu0 %v3182
        %v3184 = vand.u32 %v3053, 4294901760
        %3185 = vmatprep.subr.mxu0 %v3184
        %v3186 = vand.u32 %v3052, 4294901760
        %3187 = vmatpush1.msra.mxu0 %v3186
        %v3188 = vand.u32 %v3049, 4294901760
        %3189 = vmatprep.subr.mxu0 %v3188
        %v3190 = vand.u32 %v3048, 4294901760
        %3191 = vmatpush1.msra.mxu0 %v3190
        %v3192 = vand.u32 %v3045, 4294901760
        %3193 = vmatprep.subr.mxu0 %v3192
        %v3194 = vand.u32 %v3044, 4294901760
        %3195 = vmatpush1.msra.mxu0 %v3194
        %v3196 = vand.u32 %v3041, 4294901760
        %3197 = vmatprep.subr.mxu0 %v3196
        %v3198 = vand.u32 %v3040, 4294901760
        %3199 = vmatpush1.msra.mxu0 %v3198
        %v3200 = vand.u32 %v3037, 4294901760
        %3201 = vmatprep.subr.mxu0 %v3200
        %v3202 = vand.u32 %v3036, 4294901760
        %3203 = vmatpush1.msra.mxu0 %v3202
        %v3204 = vand.u32 %v3033, 4294901760
        %3205 = vmatprep.subr.mxu0 %v3204
        %v3206 = vand.u32 %v3032, 4294901760
        %3207 = vmatpush1.msra.mxu0 %v3206
        %v3208 = vand.u32 %v3029, 4294901760
        %3209 = vmatprep.subr.mxu0 %v3208
        %v3210 = vand.u32 %v3028, 4294901760
        %3211 = vmatpush1.msra.mxu0 %v3210
        %v3212 = vand.u32 %v3025, 4294901760
        %3213 = vmatprep.subr.mxu0 %v3212
        %v3214 = vand.u32 %v3024, 4294901760
        %3215 = vmatpush1.msra.mxu0 %v3214
        %v3216 = vand.u32 %v3149, 4294901760
        %3217 = vmatprep.subr.mxu0 %v3216
        %v3218 = vand.u32 %v3148, 4294901760
        %3219 = vmatpush2.msra.mxu0 %v3218
        %v3220 = vand.u32 %v3145, 4294901760
        %3221 = vmatprep.subr.mxu0 %v3220
        %v3222 = vand.u32 %v3144, 4294901760
        %3223 = vmatpush2.msra.mxu0 %v3222
        %v3224 = vand.u32 %v3141, 4294901760
        %3225 = vmatprep.subr.mxu0 %v3224
        %v3226 = vand.u32 %v3140, 4294901760
        %3227 = vmatpush2.msra.mxu0 %v3226
        %v3228 = vand.u32 %v3137, 4294901760
        %3229 = vmatprep.subr.mxu0 %v3228
        %v3230 = vand.u32 %v3136, 4294901760
        %3231 = vmatpush2.msra.mxu0 %v3230
        %v3232 = vand.u32 %v3133, 4294901760
        %3233 = vmatprep.subr.mxu0 %v3232
        %v3234 = vand.u32 %v3132, 4294901760
        %3235 = vmatpush2.msra.mxu0 %v3234
        %v3236 = vand.u32 %v3129, 4294901760
        %3237 = vmatprep.subr.mxu0 %v3236
        %v3238 = vand.u32 %v3128, 4294901760
        %3239 = vmatpush2.msra.mxu0 %v3238
        %v3240 = vand.u32 %v3125, 4294901760
        %3241 = vmatprep.subr.mxu0 %v3240
        %v3242 = vand.u32 %v3124, 4294901760
        %3243 = vmatpush2.msra.mxu0 %v3242
        %v3244 = vand.u32 %v3121, 4294901760
        %3245 = vmatprep.subr.mxu0 %v3244
        %v3246 = vand.u32 %v3120, 4294901760
        %3247 = vmatpush2.msra.mxu0 %v3246
        %v3248 = vand.u32 %v3117, 4294901760
        %3249 = vmatprep.subr.mxu0 %v3248
        %v3250 = vand.u32 %v3116, 4294901760
        %3251 = vmatpush2.msra.mxu0 %v3250
        %v3252 = vand.u32 %v3113, 4294901760
        %3253 = vmatprep.subr.mxu0 %v3252
        %v3254 = vand.u32 %v3112, 4294901760
        %3255 = vmatpush2.msra.mxu0 %v3254
        %v3256 = vand.u32 %v3109, 4294901760
        %3257 = vmatprep.subr.mxu0 %v3256
        %v3258 = vand.u32 %v3108, 4294901760
        %3259 = vmatpush2.msra.mxu0 %v3258
        %v3260 = vand.u32 %v3105, 4294901760
        %3261 = vmatprep.subr.mxu0 %v3260
        %v3262 = vand.u32 %v3104, 4294901760
        %3263 = vmatpush2.msra.mxu0 %v3262
        %v3264 = vand.u32 %v3101, 4294901760
        %3265 = vmatprep.subr.mxu0 %v3264
        %v3266 = vand.u32 %v3100, 4294901760
        %3267 = vmatpush2.msra.mxu0 %v3266
        %v3268 = vand.u32 %v3097, 4294901760
        %3269 = vmatprep.subr.mxu0 %v3268
        %v3270 = vand.u32 %v3096, 4294901760
        %3271 = vmatpush2.msra.mxu0 %v3270
        %v3272 = vand.u32 %v3093, 4294901760
        %3273 = vmatprep.subr.mxu0 %v3272
        %v3274 = vand.u32 %v3092, 4294901760
        %3275 = vmatpush2.msra.mxu0 %v3274
        %v3276 = vand.u32 %v3089, 4294901760
        %3277 = vmatprep.subr.mxu0 %v3276
        %v3278 = vand.u32 %v3088, 4294901760
        %3279 = vmatpush2.msra.mxu0 %v3278
        %v3280 = vand.u32 %v3013, 4294901760
        %v3281 = vsub.f32 %v3013, %v3280
        %v3282 = vand.u32 %v3281, 4294901760
        %v3283 = vsub.f32 %v3281, %v3282
        %v3284 = vand.u32 %v3283, 4294901760
        %3285 = vmatprep.mubr.f32.mxu0 %v3284
        %v3286 = vand.u32 %v3012, 4294901760
        %v3287 = vsub.f32 %v3012, %v3286
        %v3288 = vand.u32 %v3287, 4294901760
        %v3289 = vsub.f32 %v3287, %v3288
        %v3290 = vand.u32 %v3289, 4294901760
        %3291 = vmatmul.mubr.f32.gmra.mxu0 %v3290
        %v3292 = vpop.f32.mrf.mxu0
        %v3293 = vadd.f32 0.0, %v3292
        %v3294 = vpop.f32.mrf.mxu0
        %v3295 = vadd.f32 0.0, %v3294
        %v3296 = vand.u32 %v3015, 4294901760
        %v3297 = vsub.f32 %v3015, %v3296
        %v3298 = vand.u32 %v3297, 4294901760
        %v3299 = vsub.f32 %v3297, %v3298
        %v3300 = vand.u32 %v3299, 4294901760
        %3301 = vmatprep.mubr.f32.mxu0 %v3300
        %v3302 = vand.u32 %v3014, 4294901760
        %v3303 = vsub.f32 %v3014, %v3302
        %v3304 = vand.u32 %v3303, 4294901760
        %v3305 = vsub.f32 %v3303, %v3304
        %v3306 = vand.u32 %v3305, 4294901760
        %3307 = vmatmul.mubr.f32.gmra.mxu0 %v3306
        %v3308 = vpop.f32.mrf.mxu0
        %v3309 = vadd.f32 0.0, %v3308
        %v3310 = vpop.f32.mrf.mxu0
        %v3311 = vadd.f32 0.0, %v3310
        %v3312 = vand.u32 %v3017, 4294901760
        %v3313 = vsub.f32 %v3017, %v3312
        %v3314 = vand.u32 %v3313, 4294901760
        %v3315 = vsub.f32 %v3313, %v3314
        %v3316 = vand.u32 %v3315, 4294901760
        %3317 = vmatprep.mubr.f32.mxu0 %v3316
        %v3318 = vand.u32 %v3016, 4294901760
        %v3319 = vsub.f32 %v3016, %v3318
        %v3320 = vand.u32 %v3319, 4294901760
        %v3321 = vsub.f32 %v3319, %v3320
        %v3322 = vand.u32 %v3321, 4294901760
        %3323 = vmatmul.mubr.f32.gmra.mxu0 %v3322
        %v3324 = vpop.f32.mrf.mxu0
        %v3325 = vadd.f32 0.0, %v3324
        %v3326 = vpop.f32.mrf.mxu0
        %v3327 = vadd.f32 0.0, %v3326
        %v3328 = vand.u32 %v3019, 4294901760
        %v3329 = vsub.f32 %v3019, %v3328
        %v3330 = vand.u32 %v3329, 4294901760
        %v3331 = vsub.f32 %v3329, %v3330
        %v3332 = vand.u32 %v3331, 4294901760
        %3333 = vmatprep.mubr.f32.mxu0 %v3332
        %v3334 = vand.u32 %v3018, 4294901760
        %v3335 = vsub.f32 %v3018, %v3334
        %v3336 = vand.u32 %v3335, 4294901760
        %v3337 = vsub.f32 %v3335, %v3336
        %v3338 = vand.u32 %v3337, 4294901760
        %3339 = vmatmul.mubr.f32.gmra.mxu0 %v3338
        %v3340 = vpop.f32.mrf.mxu0
        %v3341 = vadd.f32 0.0, %v3340
        %v3342 = vpop.f32.mrf.mxu0
        %v3343 = vadd.f32 0.0, %v3342
        %v3344 = vand.u32 %v3021, 4294901760
        %v3345 = vsub.f32 %v3021, %v3344
        %v3346 = vand.u32 %v3345, 4294901760
        %v3347 = vsub.f32 %v3345, %v3346
        %v3348 = vand.u32 %v3347, 4294901760
        %3349 = vmatprep.mubr.f32.mxu0 %v3348
        %v3350 = vand.u32 %v3020, 4294901760
        %v3351 = vsub.f32 %v3020, %v3350
        %v3352 = vand.u32 %v3351, 4294901760
        %v3353 = vsub.f32 %v3351, %v3352
        %v3354 = vand.u32 %v3353, 4294901760
        %3355 = vmatmul.mubr.f32.gmra.mxu0 %v3354
        %v3356 = vpop.f32.mrf.mxu0
        %v3357 = vadd.f32 0.0, %v3356
        %v3358 = vpop.f32.mrf.mxu0
        %v3359 = vadd.f32 0.0, %v3358
        %v3360 = vand.u32 %v3023, 4294901760
        %v3361 = vsub.f32 %v3023, %v3360
        %v3362 = vand.u32 %v3361, 4294901760
        %v3363 = vsub.f32 %v3361, %v3362
        %v3364 = vand.u32 %v3363, 4294901760
        %3365 = vmatprep.mubr.f32.mxu0 %v3364
        %v3366 = vand.u32 %v3022, 4294901760
        %v3367 = vsub.f32 %v3022, %v3366
        %v3368 = vand.u32 %v3367, 4294901760
        %v3369 = vsub.f32 %v3367, %v3368
        %v3370 = vand.u32 %v3369, 4294901760
        %3371 = vmatmul.mubr.f32.gmra.mxu0 %v3370
        %v3372 = vpop.f32.mrf.mxu0
        %v3373 = vadd.f32 0.0, %v3372
        %v3374 = vpop.f32.mrf.mxu0
        %v3375 = vadd.f32 0.0, %v3374
        %3376 = vdwg.mxu0
        %v3377 = vand.u32 %v3085, 4294901760
        %v3378 = vsub.f32 %v3085, %v3377
        %v3379 = vand.u32 %v3378, 4294901760
        %v3380 = vsub.f32 %v3378, %v3379
        %v3381 = vand.u32 %v3380, 4294901760
        %3382 = vmatprep.subr.mxu0 %v3381
        %v3383 = vand.u32 %v3084, 4294901760
        %v3384 = vsub.f32 %v3084, %v3383
        %v3385 = vand.u32 %v3384, 4294901760
        %v3386 = vsub.f32 %v3384, %v3385
        %v3387 = vand.u32 %v3386, 4294901760
        %3388 = vmatpush1.msra.mxu0 %v3387
        %v3389 = vand.u32 %v3081, 4294901760
        %v3390 = vsub.f32 %v3081, %v3389
        %v3391 = vand.u32 %v3390, 4294901760
        %v3392 = vsub.f32 %v3390, %v3391
        %v3393 = vand.u32 %v3392, 4294901760
        %3394 = vmatprep.subr.mxu0 %v3393
        %v3395 = vand.u32 %v3080, 4294901760
        %v3396 = vsub.f32 %v3080, %v3395
        %v3397 = vand.u32 %v3396, 4294901760
        %v3398 = vsub.f32 %v3396, %v3397
        %v3399 = vand.u32 %v3398, 4294901760
        %3400 = vmatpush1.msra.mxu0 %v3399
        %v3401 = vand.u32 %v3077, 4294901760
        %v3402 = vsub.f32 %v3077, %v3401
        %v3403 = vand.u32 %v3402, 4294901760
        %v3404 = vsub.f32 %v3402, %v3403
        %v3405 = vand.u32 %v3404, 4294901760
        %3406 = vmatprep.subr.mxu0 %v3405
        %v3407 = vand.u32 %v3076, 4294901760
        %v3408 = vsub.f32 %v3076, %v3407
        %v3409 = vand.u32 %v3408, 4294901760
        %v3410 = vsub.f32 %v3408, %v3409
        %v3411 = vand.u32 %v3410, 4294901760
        %3412 = vmatpush1.msra.mxu0 %v3411
        %v3413 = vand.u32 %v3073, 4294901760
        %v3414 = vsub.f32 %v3073, %v3413
        %v3415 = vand.u32 %v3414, 4294901760
        %v3416 = vsub.f32 %v3414, %v3415
        %v3417 = vand.u32 %v3416, 4294901760
        %3418 = vmatprep.subr.mxu0 %v3417
        %v3419 = vand.u32 %v3072, 4294901760
        %v3420 = vsub.f32 %v3072, %v3419
        %v3421 = vand.u32 %v3420, 4294901760
        %v3422 = vsub.f32 %v3420, %v3421
        %v3423 = vand.u32 %v3422, 4294901760
        %3424 = vmatpush1.msra.mxu0 %v3423
        %v3425 = vand.u32 %v3069, 4294901760
        %v3426 = vsub.f32 %v3069, %v3425
        %v3427 = vand.u32 %v3426, 4294901760
        %v3428 = vsub.f32 %v3426, %v3427
        %v3429 = vand.u32 %v3428, 4294901760
        %3430 = vmatprep.subr.mxu0 %v3429
        %v3431 = vand.u32 %v3068, 4294901760
        %v3432 = vsub.f32 %v3068, %v3431
        %v3433 = vand.u32 %v3432, 4294901760
        %v3434 = vsub.f32 %v3432, %v3433
        %v3435 = vand.u32 %v3434, 4294901760
        %3436 = vmatpush1.msra.mxu0 %v3435
        %v3437 = vand.u32 %v3065, 4294901760
        %v3438 = vsub.f32 %v3065, %v3437
        %v3439 = vand.u32 %v3438, 4294901760
        %v3440 = vsub.f32 %v3438, %v3439
        %v3441 = vand.u32 %v3440, 4294901760
        %3442 = vmatprep.subr.mxu0 %v3441
        %v3443 = vand.u32 %v3064, 4294901760
        %v3444 = vsub.f32 %v3064, %v3443
        %v3445 = vand.u32 %v3444, 4294901760
        %v3446 = vsub.f32 %v3444, %v3445
        %v3447 = vand.u32 %v3446, 4294901760
        %3448 = vmatpush1.msra.mxu0 %v3447
        %v3449 = vand.u32 %v3061, 4294901760
        %v3450 = vsub.f32 %v3061, %v3449
        %v3451 = vand.u32 %v3450, 4294901760
        %v3452 = vsub.f32 %v3450, %v3451
        %v3453 = vand.u32 %v3452, 4294901760
        %3454 = vmatprep.subr.mxu0 %v3453
        %v3455 = vand.u32 %v3060, 4294901760
        %v3456 = vsub.f32 %v3060, %v3455
        %v3457 = vand.u32 %v3456, 4294901760
        %v3458 = vsub.f32 %v3456, %v3457
        %v3459 = vand.u32 %v3458, 4294901760
        %3460 = vmatpush1.msra.mxu0 %v3459
        %v3461 = vand.u32 %v3057, 4294901760
        %v3462 = vsub.f32 %v3057, %v3461
        %v3463 = vand.u32 %v3462, 4294901760
        %v3464 = vsub.f32 %v3462, %v3463
        %v3465 = vand.u32 %v3464, 4294901760
        %3466 = vmatprep.subr.mxu0 %v3465
        %v3467 = vand.u32 %v3056, 4294901760
        %v3468 = vsub.f32 %v3056, %v3467
        %v3469 = vand.u32 %v3468, 4294901760
        %v3470 = vsub.f32 %v3468, %v3469
        %v3471 = vand.u32 %v3470, 4294901760
        %3472 = vmatpush1.msra.mxu0 %v3471
        %v3473 = vand.u32 %v3053, 4294901760
        %v3474 = vsub.f32 %v3053, %v3473
        %v3475 = vand.u32 %v3474, 4294901760
        %v3476 = vsub.f32 %v3474, %v3475
        %v3477 = vand.u32 %v3476, 4294901760
        %3478 = vmatprep.subr.mxu0 %v3477
        %v3479 = vand.u32 %v3052, 4294901760
        %v3480 = vsub.f32 %v3052, %v3479
        %v3481 = vand.u32 %v3480, 4294901760
        %v3482 = vsub.f32 %v3480, %v3481
        %v3483 = vand.u32 %v3482, 4294901760
        %3484 = vmatpush1.msra.mxu0 %v3483
        %v3485 = vand.u32 %v3049, 4294901760
        %v3486 = vsub.f32 %v3049, %v3485
        %v3487 = vand.u32 %v3486, 4294901760
        %v3488 = vsub.f32 %v3486, %v3487
        %v3489 = vand.u32 %v3488, 4294901760
        %3490 = vmatprep.subr.mxu0 %v3489
        %v3491 = vand.u32 %v3048, 4294901760
        %v3492 = vsub.f32 %v3048, %v3491
        %v3493 = vand.u32 %v3492, 4294901760
        %v3494 = vsub.f32 %v3492, %v3493
        %v3495 = vand.u32 %v3494, 4294901760
        %3496 = vmatpush1.msra.mxu0 %v3495
        %v3497 = vand.u32 %v3045, 4294901760
        %v3498 = vsub.f32 %v3045, %v3497
        %v3499 = vand.u32 %v3498, 4294901760
        %v3500 = vsub.f32 %v3498, %v3499
        %v3501 = vand.u32 %v3500, 4294901760
        %3502 = vmatprep.subr.mxu0 %v3501
        %v3503 = vand.u32 %v3044, 4294901760
        %v3504 = vsub.f32 %v3044, %v3503
        %v3505 = vand.u32 %v3504, 4294901760
        %v3506 = vsub.f32 %v3504, %v3505
        %v3507 = vand.u32 %v3506, 4294901760
        %3508 = vmatpush1.msra.mxu0 %v3507
        %v3509 = vand.u32 %v3041, 4294901760
        %v3510 = vsub.f32 %v3041, %v3509
        %v3511 = vand.u32 %v3510, 4294901760
        %v3512 = vsub.f32 %v3510, %v3511
        %v3513 = vand.u32 %v3512, 4294901760
        %3514 = vmatprep.subr.mxu0 %v3513
        %v3515 = vand.u32 %v3040, 4294901760
        %v3516 = vsub.f32 %v3040, %v3515
        %v3517 = vand.u32 %v3516, 4294901760
        %v3518 = vsub.f32 %v3516, %v3517
        %v3519 = vand.u32 %v3518, 4294901760
        %3520 = vmatpush1.msra.mxu0 %v3519
        %v3521 = vand.u32 %v3037, 4294901760
        %v3522 = vsub.f32 %v3037, %v3521
        %v3523 = vand.u32 %v3522, 4294901760
        %v3524 = vsub.f32 %v3522, %v3523
        %v3525 = vand.u32 %v3524, 4294901760
        %3526 = vmatprep.subr.mxu0 %v3525
        %v3527 = vand.u32 %v3036, 4294901760
        %v3528 = vsub.f32 %v3036, %v3527
        %v3529 = vand.u32 %v3528, 4294901760
        %v3530 = vsub.f32 %v3528, %v3529
        %v3531 = vand.u32 %v3530, 4294901760
        %3532 = vmatpush1.msra.mxu0 %v3531
        %v3533 = vand.u32 %v3033, 4294901760
        %v3534 = vsub.f32 %v3033, %v3533
        %v3535 = vand.u32 %v3534, 4294901760
        %v3536 = vsub.f32 %v3534, %v3535
        %v3537 = vand.u32 %v3536, 4294901760
        %3538 = vmatprep.subr.mxu0 %v3537
        %v3539 = vand.u32 %v3032, 4294901760
        %v3540 = vsub.f32 %v3032, %v3539
        %v3541 = vand.u32 %v3540, 4294901760
        %v3542 = vsub.f32 %v3540, %v3541
        %v3543 = vand.u32 %v3542, 4294901760
        %3544 = vmatpush1.msra.mxu0 %v3543
        %v3545 = vand.u32 %v3029, 4294901760
        %v3546 = vsub.f32 %v3029, %v3545
        %v3547 = vand.u32 %v3546, 4294901760
        %v3548 = vsub.f32 %v3546, %v3547
        %v3549 = vand.u32 %v3548, 4294901760
        %3550 = vmatprep.subr.mxu0 %v3549
        %v3551 = vand.u32 %v3028, 4294901760
        %v3552 = vsub.f32 %v3028, %v3551
        %v3553 = vand.u32 %v3552, 4294901760
        %v3554 = vsub.f32 %v3552, %v3553
        %v3555 = vand.u32 %v3554, 4294901760
        %3556 = vmatpush1.msra.mxu0 %v3555
        %v3557 = vand.u32 %v3025, 4294901760
        %v3558 = vsub.f32 %v3025, %v3557
        %v3559 = vand.u32 %v3558, 4294901760
        %v3560 = vsub.f32 %v3558, %v3559
        %v3561 = vand.u32 %v3560, 4294901760
        %3562 = vmatprep.subr.mxu0 %v3561
        %v3563 = vand.u32 %v3024, 4294901760
        %v3564 = vsub.f32 %v3024, %v3563
        %v3565 = vand.u32 %v3564, 4294901760
        %v3566 = vsub.f32 %v3564, %v3565
        %v3567 = vand.u32 %v3566, 4294901760
        %3568 = vmatpush1.msra.mxu0 %v3567
        %v3569 = vand.u32 %v3149, 4294901760
        %v3570 = vsub.f32 %v3149, %v3569
        %v3571 = vand.u32 %v3570, 4294901760
        %v3572 = vsub.f32 %v3570, %v3571
        %v3573 = vand.u32 %v3572, 4294901760
        %3574 = vmatprep.subr.mxu0 %v3573
        %v3575 = vand.u32 %v3148, 4294901760
        %v3576 = vsub.f32 %v3148, %v3575
        %v3577 = vand.u32 %v3576, 4294901760
        %v3578 = vsub.f32 %v3576, %v3577
        %v3579 = vand.u32 %v3578, 4294901760
        %3580 = vmatpush2.msra.mxu0 %v3579
        %v3581 = vand.u32 %v3145, 4294901760
        %v3582 = vsub.f32 %v3145, %v3581
        %v3583 = vand.u32 %v3582, 4294901760
        %v3584 = vsub.f32 %v3582, %v3583
        %v3585 = vand.u32 %v3584, 4294901760
        %3586 = vmatprep.subr.mxu0 %v3585
        %v3587 = vand.u32 %v3144, 4294901760
        %v3588 = vsub.f32 %v3144, %v3587
        %v3589 = vand.u32 %v3588, 4294901760
        %v3590 = vsub.f32 %v3588, %v3589
        %v3591 = vand.u32 %v3590, 4294901760
        %3592 = vmatpush2.msra.mxu0 %v3591
        %v3593 = vand.u32 %v3141, 4294901760
        %v3594 = vsub.f32 %v3141, %v3593
        %v3595 = vand.u32 %v3594, 4294901760
        %v3596 = vsub.f32 %v3594, %v3595
        %v3597 = vand.u32 %v3596, 4294901760
        %3598 = vmatprep.subr.mxu0 %v3597
        %v3599 = vand.u32 %v3140, 4294901760
        %v3600 = vsub.f32 %v3140, %v3599
        %v3601 = vand.u32 %v3600, 4294901760
        %v3602 = vsub.f32 %v3600, %v3601
        %v3603 = vand.u32 %v3602, 4294901760
        %3604 = vmatpush2.msra.mxu0 %v3603
        %v3605 = vand.u32 %v3137, 4294901760
        %v3606 = vsub.f32 %v3137, %v3605
        %v3607 = vand.u32 %v3606, 4294901760
        %v3608 = vsub.f32 %v3606, %v3607
        %v3609 = vand.u32 %v3608, 4294901760
        %3610 = vmatprep.subr.mxu0 %v3609
        %v3611 = vand.u32 %v3136, 4294901760
        %v3612 = vsub.f32 %v3136, %v3611
        %v3613 = vand.u32 %v3612, 4294901760
        %v3614 = vsub.f32 %v3612, %v3613
        %v3615 = vand.u32 %v3614, 4294901760
        %3616 = vmatpush2.msra.mxu0 %v3615
        %v3617 = vand.u32 %v3133, 4294901760
        %v3618 = vsub.f32 %v3133, %v3617
        %v3619 = vand.u32 %v3618, 4294901760
        %v3620 = vsub.f32 %v3618, %v3619
        %v3621 = vand.u32 %v3620, 4294901760
        %3622 = vmatprep.subr.mxu0 %v3621
        %v3623 = vand.u32 %v3132, 4294901760
        %v3624 = vsub.f32 %v3132, %v3623
        %v3625 = vand.u32 %v3624, 4294901760
        %v3626 = vsub.f32 %v3624, %v3625
        %v3627 = vand.u32 %v3626, 4294901760
        %3628 = vmatpush2.msra.mxu0 %v3627
        %v3629 = vand.u32 %v3129, 4294901760
        %v3630 = vsub.f32 %v3129, %v3629
        %v3631 = vand.u32 %v3630, 4294901760
        %v3632 = vsub.f32 %v3630, %v3631
        %v3633 = vand.u32 %v3632, 4294901760
        %3634 = vmatprep.subr.mxu0 %v3633
        %v3635 = vand.u32 %v3128, 4294901760
        %v3636 = vsub.f32 %v3128, %v3635
        %v3637 = vand.u32 %v3636, 4294901760
        %v3638 = vsub.f32 %v3636, %v3637
        %v3639 = vand.u32 %v3638, 4294901760
        %3640 = vmatpush2.msra.mxu0 %v3639
        %v3641 = vand.u32 %v3125, 4294901760
        %v3642 = vsub.f32 %v3125, %v3641
        %v3643 = vand.u32 %v3642, 4294901760
        %v3644 = vsub.f32 %v3642, %v3643
        %v3645 = vand.u32 %v3644, 4294901760
        %3646 = vmatprep.subr.mxu0 %v3645
        %v3647 = vand.u32 %v3124, 4294901760
        %v3648 = vsub.f32 %v3124, %v3647
        %v3649 = vand.u32 %v3648, 4294901760
        %v3650 = vsub.f32 %v3648, %v3649
        %v3651 = vand.u32 %v3650, 4294901760
        %3652 = vmatpush2.msra.mxu0 %v3651
        %v3653 = vand.u32 %v3121, 4294901760
        %v3654 = vsub.f32 %v3121, %v3653
        %v3655 = vand.u32 %v3654, 4294901760
        %v3656 = vsub.f32 %v3654, %v3655
        %v3657 = vand.u32 %v3656, 4294901760
        %3658 = vmatprep.subr.mxu0 %v3657
        %v3659 = vand.u32 %v3120, 4294901760
        %v3660 = vsub.f32 %v3120, %v3659
        %v3661 = vand.u32 %v3660, 4294901760
        %v3662 = vsub.f32 %v3660, %v3661
        %v3663 = vand.u32 %v3662, 4294901760
        %3664 = vmatpush2.msra.mxu0 %v3663
        %v3665 = vand.u32 %v3117, 4294901760
        %v3666 = vsub.f32 %v3117, %v3665
        %v3667 = vand.u32 %v3666, 4294901760
        %v3668 = vsub.f32 %v3666, %v3667
        %v3669 = vand.u32 %v3668, 4294901760
        %3670 = vmatprep.subr.mxu0 %v3669
        %v3671 = vand.u32 %v3116, 4294901760
        %v3672 = vsub.f32 %v3116, %v3671
        %v3673 = vand.u32 %v3672, 4294901760
        %v3674 = vsub.f32 %v3672, %v3673
        %v3675 = vand.u32 %v3674, 4294901760
        %3676 = vmatpush2.msra.mxu0 %v3675
        %v3677 = vand.u32 %v3113, 4294901760
        %v3678 = vsub.f32 %v3113, %v3677
        %v3679 = vand.u32 %v3678, 4294901760
        %v3680 = vsub.f32 %v3678, %v3679
        %v3681 = vand.u32 %v3680, 4294901760
        %3682 = vmatprep.subr.mxu0 %v3681
        %v3683 = vand.u32 %v3112, 4294901760
        %v3684 = vsub.f32 %v3112, %v3683
        %v3685 = vand.u32 %v3684, 4294901760
        %v3686 = vsub.f32 %v3684, %v3685
        %v3687 = vand.u32 %v3686, 4294901760
        %3688 = vmatpush2.msra.mxu0 %v3687
        %v3689 = vand.u32 %v3109, 4294901760
        %v3690 = vsub.f32 %v3109, %v3689
        %v3691 = vand.u32 %v3690, 4294901760
        %v3692 = vsub.f32 %v3690, %v3691
        %v3693 = vand.u32 %v3692, 4294901760
        %3694 = vmatprep.subr.mxu0 %v3693
        %v3695 = vand.u32 %v3108, 4294901760
        %v3696 = vsub.f32 %v3108, %v3695
        %v3697 = vand.u32 %v3696, 4294901760
        %v3698 = vsub.f32 %v3696, %v3697
        %v3699 = vand.u32 %v3698, 4294901760
        %3700 = vmatpush2.msra.mxu0 %v3699
        %v3701 = vand.u32 %v3105, 4294901760
        %v3702 = vsub.f32 %v3105, %v3701
        %v3703 = vand.u32 %v3702, 4294901760
        %v3704 = vsub.f32 %v3702, %v3703
        %v3705 = vand.u32 %v3704, 4294901760
        %3706 = vmatprep.subr.mxu0 %v3705
        %v3707 = vand.u32 %v3104, 4294901760
        %v3708 = vsub.f32 %v3104, %v3707
        %v3709 = vand.u32 %v3708, 4294901760
        %v3710 = vsub.f32 %v3708, %v3709
        %v3711 = vand.u32 %v3710, 4294901760
        %3712 = vmatpush2.msra.mxu0 %v3711
        %v3713 = vand.u32 %v3101, 4294901760
        %v3714 = vsub.f32 %v3101, %v3713
        %v3715 = vand.u32 %v3714, 4294901760
        %v3716 = vsub.f32 %v3714, %v3715
        %v3717 = vand.u32 %v3716, 4294901760
        %3718 = vmatprep.subr.mxu0 %v3717
        %v3719 = vand.u32 %v3100, 4294901760
        %v3720 = vsub.f32 %v3100, %v3719
        %v3721 = vand.u32 %v3720, 4294901760
        %v3722 = vsub.f32 %v3720, %v3721
        %v3723 = vand.u32 %v3722, 4294901760
        %3724 = vmatpush2.msra.mxu0 %v3723
        %v3725 = vand.u32 %v3097, 4294901760
        %v3726 = vsub.f32 %v3097, %v3725
        %v3727 = vand.u32 %v3726, 4294901760
        %v3728 = vsub.f32 %v3726, %v3727
        %v3729 = vand.u32 %v3728, 4294901760
        %3730 = vmatprep.subr.mxu0 %v3729
        %v3731 = vand.u32 %v3096, 4294901760
        %v3732 = vsub.f32 %v3096, %v3731
        %v3733 = vand.u32 %v3732, 4294901760
        %v3734 = vsub.f32 %v3732, %v3733
        %v3735 = vand.u32 %v3734, 4294901760
        %3736 = vmatpush2.msra.mxu0 %v3735
        %v3737 = vand.u32 %v3093, 4294901760
        %v3738 = vsub.f32 %v3093, %v3737
        %v3739 = vand.u32 %v3738, 4294901760
        %v3740 = vsub.f32 %v3738, %v3739
        %v3741 = vand.u32 %v3740, 4294901760
        %3742 = vmatprep.subr.mxu0 %v3741
        %v3743 = vand.u32 %v3092, 4294901760
        %v3744 = vsub.f32 %v3092, %v3743
        %v3745 = vand.u32 %v3744, 4294901760
        %v3746 = vsub.f32 %v3744, %v3745
        %v3747 = vand.u32 %v3746, 4294901760
        %3748 = vmatpush2.msra.mxu0 %v3747
        %v3749 = vand.u32 %v3089, 4294901760
        %v3750 = vsub.f32 %v3089, %v3749
        %v3751 = vand.u32 %v3750, 4294901760
        %v3752 = vsub.f32 %v3750, %v3751
        %v3753 = vand.u32 %v3752, 4294901760
        %3754 = vmatprep.subr.mxu0 %v3753
        %v3755 = vand.u32 %v3088, 4294901760
        %v3756 = vsub.f32 %v3088, %v3755
        %v3757 = vand.u32 %v3756, 4294901760
        %v3758 = vsub.f32 %v3756, %v3757
        %v3759 = vand.u32 %v3758, 4294901760
        %3760 = vmatpush2.msra.mxu0 %v3759
        %v3761 = vand.u32 %v3013, 4294901760
        %3762 = vmatprep.mubr.f32.mxu0 %v3761
        %v3763 = vand.u32 %v3012, 4294901760
        %3764 = vmatmul.mubr.f32.gmra.mxu0 %v3763
        %v3765 = vpop.f32.mrf.mxu0
        %v3766 = vadd.f32 %v3293, %v3765
        %v3767 = vpop.f32.mrf.mxu0
        %v3768 = vadd.f32 %v3295, %v3767
        %v3769 = vand.u32 %v3015, 4294901760
        %3770 = vmatprep.mubr.f32.mxu0 %v3769
        %v3771 = vand.u32 %v3014, 4294901760
        %3772 = vmatmul.mubr.f32.gmra.mxu0 %v3771
        %v3773 = vpop.f32.mrf.mxu0
        %v3774 = vadd.f32 %v3309, %v3773
        %v3775 = vpop.f32.mrf.mxu0
        %v3776 = vadd.f32 %v3311, %v3775
        %v3777 = vand.u32 %v3017, 4294901760
        %3778 = vmatprep.mubr.f32.mxu0 %v3777
        %v3779 = vand.u32 %v3016, 4294901760
        %3780 = vmatmul.mubr.f32.gmra.mxu0 %v3779
        %v3781 = vpop.f32.mrf.mxu0
        %v3782 = vadd.f32 %v3325, %v3781
        %v3783 = vpop.f32.mrf.mxu0
        %v3784 = vadd.f32 %v3327, %v3783
        %v3785 = vand.u32 %v3019, 4294901760
        %3786 = vmatprep.mubr.f32.mxu0 %v3785
        %v3787 = vand.u32 %v3018, 4294901760
        %3788 = vmatmul.mubr.f32.gmra.mxu0 %v3787
        %v3789 = vpop.f32.mrf.mxu0
        %v3790 = vadd.f32 %v3341, %v3789
        %v3791 = vpop.f32.mrf.mxu0
        %v3792 = vadd.f32 %v3343, %v3791
        %v3793 = vand.u32 %v3021, 4294901760
        %3794 = vmatprep.mubr.f32.mxu0 %v3793
        %v3795 = vand.u32 %v3020, 4294901760
        %3796 = vmatmul.mubr.f32.gmra.mxu0 %v3795
        %v3797 = vpop.f32.mrf.mxu0
        %v3798 = vadd.f32 %v3357, %v3797
        %v3799 = vpop.f32.mrf.mxu0
        %v3800 = vadd.f32 %v3359, %v3799
        %v3801 = vand.u32 %v3023, 4294901760
        %3802 = vmatprep.mubr.f32.mxu0 %v3801
        %v3803 = vand.u32 %v3022, 4294901760
        %3804 = vmatmul.mubr.f32.gmra.mxu0 %v3803
        %v3805 = vpop.f32.mrf.mxu0
        %v3806 = vadd.f32 %v3373, %v3805
        %v3807 = vpop.f32.mrf.mxu0
        %v3808 = vadd.f32 %v3375, %v3807
        %3809 = vdwg.mxu0
        %v3810 = vand.u32 %v3085, 4294901760
        %v3811 = vsub.f32 %v3085, %v3810
        %3812 = vmatprep.subr.mxu0 %v3811
        %v3813 = vand.u32 %v3084, 4294901760
        %v3814 = vsub.f32 %v3084, %v3813
        %3815 = vmatpush1.msra.mxu0 %v3814
        %v3816 = vand.u32 %v3081, 4294901760
        %v3817 = vsub.f32 %v3081, %v3816
        %3818 = vmatprep.subr.mxu0 %v3817
        %v3819 = vand.u32 %v3080, 4294901760
        %v3820 = vsub.f32 %v3080, %v3819
        %3821 = vmatpush1.msra.mxu0 %v3820
        %v3822 = vand.u32 %v3077, 4294901760
        %v3823 = vsub.f32 %v3077, %v3822
        %3824 = vmatprep.subr.mxu0 %v3823
        %v3825 = vand.u32 %v3076, 4294901760
        %v3826 = vsub.f32 %v3076, %v3825
        %3827 = vmatpush1.msra.mxu0 %v3826
        %v3828 = vand.u32 %v3073, 4294901760
        %v3829 = vsub.f32 %v3073, %v3828
        %3830 = vmatprep.subr.mxu0 %v3829
        %v3831 = vand.u32 %v3072, 4294901760
        %v3832 = vsub.f32 %v3072, %v3831
        %3833 = vmatpush1.msra.mxu0 %v3832
        %v3834 = vand.u32 %v3069, 4294901760
        %v3835 = vsub.f32 %v3069, %v3834
        %3836 = vmatprep.subr.mxu0 %v3835
        %v3837 = vand.u32 %v3068, 4294901760
        %v3838 = vsub.f32 %v3068, %v3837
        %3839 = vmatpush1.msra.mxu0 %v3838
        %v3840 = vand.u32 %v3065, 4294901760
        %v3841 = vsub.f32 %v3065, %v3840
        %3842 = vmatprep.subr.mxu0 %v3841
        %v3843 = vand.u32 %v3064, 4294901760
        %v3844 = vsub.f32 %v3064, %v3843
        %3845 = vmatpush1.msra.mxu0 %v3844
        %v3846 = vand.u32 %v3061, 4294901760
        %v3847 = vsub.f32 %v3061, %v3846
        %3848 = vmatprep.subr.mxu0 %v3847
        %v3849 = vand.u32 %v3060, 4294901760
        %v3850 = vsub.f32 %v3060, %v3849
        %3851 = vmatpush1.msra.mxu0 %v3850
        %v3852 = vand.u32 %v3057, 4294901760
        %v3853 = vsub.f32 %v3057, %v3852
        %3854 = vmatprep.subr.mxu0 %v3853
        %v3855 = vand.u32 %v3056, 4294901760
        %v3856 = vsub.f32 %v3056, %v3855
        %3857 = vmatpush1.msra.mxu0 %v3856
        %v3858 = vand.u32 %v3053, 4294901760
        %v3859 = vsub.f32 %v3053, %v3858
        %3860 = vmatprep.subr.mxu0 %v3859
        %v3861 = vand.u32 %v3052, 4294901760
        %v3862 = vsub.f32 %v3052, %v3861
        %3863 = vmatpush1.msra.mxu0 %v3862
        %v3864 = vand.u32 %v3049, 4294901760
        %v3865 = vsub.f32 %v3049, %v3864
        %3866 = vmatprep.subr.mxu0 %v3865
        %v3867 = vand.u32 %v3048, 4294901760
        %v3868 = vsub.f32 %v3048, %v3867
        %3869 = vmatpush1.msra.mxu0 %v3868
        %v3870 = vand.u32 %v3045, 4294901760
        %v3871 = vsub.f32 %v3045, %v3870
        %3872 = vmatprep.subr.mxu0 %v3871
        %v3873 = vand.u32 %v3044, 4294901760
        %v3874 = vsub.f32 %v3044, %v3873
        %3875 = vmatpush1.msra.mxu0 %v3874
        %v3876 = vand.u32 %v3041, 4294901760
        %v3877 = vsub.f32 %v3041, %v3876
        %3878 = vmatprep.subr.mxu0 %v3877
        %v3879 = vand.u32 %v3040, 4294901760
        %v3880 = vsub.f32 %v3040, %v3879
        %3881 = vmatpush1.msra.mxu0 %v3880
        %v3882 = vand.u32 %v3037, 4294901760
        %v3883 = vsub.f32 %v3037, %v3882
        %3884 = vmatprep.subr.mxu0 %v3883
        %v3885 = vand.u32 %v3036, 4294901760
        %v3886 = vsub.f32 %v3036, %v3885
        %3887 = vmatpush1.msra.mxu0 %v3886
        %v3888 = vand.u32 %v3033, 4294901760
        %v3889 = vsub.f32 %v3033, %v3888
        %3890 = vmatprep.subr.mxu0 %v3889
        %v3891 = vand.u32 %v3032, 4294901760
        %v3892 = vsub.f32 %v3032, %v3891
        %3893 = vmatpush1.msra.mxu0 %v3892
        %v3894 = vand.u32 %v3029, 4294901760
        %v3895 = vsub.f32 %v3029, %v3894
        %3896 = vmatprep.subr.mxu0 %v3895
        %v3897 = vand.u32 %v3028, 4294901760
        %v3898 = vsub.f32 %v3028, %v3897
        %3899 = vmatpush1.msra.mxu0 %v3898
        %v3900 = vand.u32 %v3025, 4294901760
        %v3901 = vsub.f32 %v3025, %v3900
        %3902 = vmatprep.subr.mxu0 %v3901
        %v3903 = vand.u32 %v3024, 4294901760
        %v3904 = vsub.f32 %v3024, %v3903
        %3905 = vmatpush1.msra.mxu0 %v3904
        %v3906 = vand.u32 %v3149, 4294901760
        %v3907 = vsub.f32 %v3149, %v3906
        %3908 = vmatprep.subr.mxu0 %v3907
        %v3909 = vand.u32 %v3148, 4294901760
        %v3910 = vsub.f32 %v3148, %v3909
        %3911 = vmatpush2.msra.mxu0 %v3910
        %v3912 = vand.u32 %v3145, 4294901760
        %v3913 = vsub.f32 %v3145, %v3912
        %3914 = vmatprep.subr.mxu0 %v3913
        %v3915 = vand.u32 %v3144, 4294901760
        %v3916 = vsub.f32 %v3144, %v3915
        %3917 = vmatpush2.msra.mxu0 %v3916
        %v3918 = vand.u32 %v3141, 4294901760
        %v3919 = vsub.f32 %v3141, %v3918
        %3920 = vmatprep.subr.mxu0 %v3919
        %v3921 = vand.u32 %v3140, 4294901760
        %v3922 = vsub.f32 %v3140, %v3921
        %3923 = vmatpush2.msra.mxu0 %v3922
        %v3924 = vand.u32 %v3137, 4294901760
        %v3925 = vsub.f32 %v3137, %v3924
        %3926 = vmatprep.subr.mxu0 %v3925
        %v3927 = vand.u32 %v3136, 4294901760
        %v3928 = vsub.f32 %v3136, %v3927
        %3929 = vmatpush2.msra.mxu0 %v3928
        %v3930 = vand.u32 %v3133, 4294901760
        %v3931 = vsub.f32 %v3133, %v3930
        %3932 = vmatprep.subr.mxu0 %v3931
        %v3933 = vand.u32 %v3132, 4294901760
        %v3934 = vsub.f32 %v3132, %v3933
        %3935 = vmatpush2.msra.mxu0 %v3934
        %v3936 = vand.u32 %v3129, 4294901760
        %v3937 = vsub.f32 %v3129, %v3936
        %3938 = vmatprep.subr.mxu0 %v3937
        %v3939 = vand.u32 %v3128, 4294901760
        %v3940 = vsub.f32 %v3128, %v3939
        %3941 = vmatpush2.msra.mxu0 %v3940
        %v3942 = vand.u32 %v3125, 4294901760
        %v3943 = vsub.f32 %v3125, %v3942
        %3944 = vmatprep.subr.mxu0 %v3943
        %v3945 = vand.u32 %v3124, 4294901760
        %v3946 = vsub.f32 %v3124, %v3945
        %3947 = vmatpush2.msra.mxu0 %v3946
        %v3948 = vand.u32 %v3121, 4294901760
        %v3949 = vsub.f32 %v3121, %v3948
        %3950 = vmatprep.subr.mxu0 %v3949
        %v3951 = vand.u32 %v3120, 4294901760
        %v3952 = vsub.f32 %v3120, %v3951
        %3953 = vmatpush2.msra.mxu0 %v3952
        %v3954 = vand.u32 %v3117, 4294901760
        %v3955 = vsub.f32 %v3117, %v3954
        %3956 = vmatprep.subr.mxu0 %v3955
        %v3957 = vand.u32 %v3116, 4294901760
        %v3958 = vsub.f32 %v3116, %v3957
        %3959 = vmatpush2.msra.mxu0 %v3958
        %v3960 = vand.u32 %v3113, 4294901760
        %v3961 = vsub.f32 %v3113, %v3960
        %3962 = vmatprep.subr.mxu0 %v3961
        %v3963 = vand.u32 %v3112, 4294901760
        %v3964 = vsub.f32 %v3112, %v3963
        %3965 = vmatpush2.msra.mxu0 %v3964
        %v3966 = vand.u32 %v3109, 4294901760
        %v3967 = vsub.f32 %v3109, %v3966
        %3968 = vmatprep.subr.mxu0 %v3967
        %v3969 = vand.u32 %v3108, 4294901760
        %v3970 = vsub.f32 %v3108, %v3969
        %3971 = vmatpush2.msra.mxu0 %v3970
        %v3972 = vand.u32 %v3105, 4294901760
        %v3973 = vsub.f32 %v3105, %v3972
        %3974 = vmatprep.subr.mxu0 %v3973
        %v3975 = vand.u32 %v3104, 4294901760
        %v3976 = vsub.f32 %v3104, %v3975
        %3977 = vmatpush2.msra.mxu0 %v3976
        %v3978 = vand.u32 %v3101, 4294901760
        %v3979 = vsub.f32 %v3101, %v3978
        %3980 = vmatprep.subr.mxu0 %v3979
        %v3981 = vand.u32 %v3100, 4294901760
        %v3982 = vsub.f32 %v3100, %v3981
        %3983 = vmatpush2.msra.mxu0 %v3982
        %v3984 = vand.u32 %v3097, 4294901760
        %v3985 = vsub.f32 %v3097, %v3984
        %3986 = vmatprep.subr.mxu0 %v3985
        %v3987 = vand.u32 %v3096, 4294901760
        %v3988 = vsub.f32 %v3096, %v3987
        %3989 = vmatpush2.msra.mxu0 %v3988
        %v3990 = vand.u32 %v3093, 4294901760
        %v3991 = vsub.f32 %v3093, %v3990
        %3992 = vmatprep.subr.mxu0 %v3991
        %v3993 = vand.u32 %v3092, 4294901760
        %v3994 = vsub.f32 %v3092, %v3993
        %3995 = vmatpush2.msra.mxu0 %v3994
        %v3996 = vand.u32 %v3089, 4294901760
        %v3997 = vsub.f32 %v3089, %v3996
        %3998 = vmatprep.subr.mxu0 %v3997
        %v3999 = vand.u32 %v3088, 4294901760
        %v4000 = vsub.f32 %v3088, %v3999
        %4001 = vmatpush2.msra.mxu0 %v4000
        %v4002 = vand.u32 %v3013, 4294901760
        %v4003 = vsub.f32 %v3013, %v4002
        %4004 = vmatprep.mubr.f32.mxu0 %v4003
        %v4005 = vand.u32 %v3012, 4294901760
        %v4006 = vsub.f32 %v3012, %v4005
        %4007 = vmatmul.mubr.f32.gmra.mxu0 %v4006
        %v4008 = vpop.f32.mrf.mxu0
        %v4009 = vadd.f32 %v3766, %v4008
        %v4010 = vpop.f32.mrf.mxu0
        %v4011 = vadd.f32 %v3768, %v4010
        %v4012 = vand.u32 %v3015, 4294901760
        %v4013 = vsub.f32 %v3015, %v4012
        %4014 = vmatprep.mubr.f32.mxu0 %v4013
        %v4015 = vand.u32 %v3014, 4294901760
        %v4016 = vsub.f32 %v3014, %v4015
        %4017 = vmatmul.mubr.f32.gmra.mxu0 %v4016
        %v4018 = vpop.f32.mrf.mxu0
        %v4019 = vadd.f32 %v3774, %v4018
        %v4020 = vpop.f32.mrf.mxu0
        %v4021 = vadd.f32 %v3776, %v4020
        %v4022 = vand.u32 %v3017, 4294901760
        %v4023 = vsub.f32 %v3017, %v4022
        %4024 = vmatprep.mubr.f32.mxu0 %v4023
        %v4025 = vand.u32 %v3016, 4294901760
        %v4026 = vsub.f32 %v3016, %v4025
        %4027 = vmatmul.mubr.f32.gmra.mxu0 %v4026
        %v4028 = vpop.f32.mrf.mxu0
        %v4029 = vadd.f32 %v3782, %v4028
        %v4030 = vpop.f32.mrf.mxu0
        %v4031 = vadd.f32 %v3784, %v4030
        %v4032 = vand.u32 %v3019, 4294901760
        %v4033 = vsub.f32 %v3019, %v4032
        %4034 = vmatprep.mubr.f32.mxu0 %v4033
        %v4035 = vand.u32 %v3018, 4294901760
        %v4036 = vsub.f32 %v3018, %v4035
        %4037 = vmatmul.mubr.f32.gmra.mxu0 %v4036
        %v4038 = vpop.f32.mrf.mxu0
        %v4039 = vadd.f32 %v3790, %v4038
        %v4040 = vpop.f32.mrf.mxu0
        %v4041 = vadd.f32 %v3792, %v4040
        %v4042 = vand.u32 %v3021, 4294901760
        %v4043 = vsub.f32 %v3021, %v4042
        %4044 = vmatprep.mubr.f32.mxu0 %v4043
        %v4045 = vand.u32 %v3020, 4294901760
        %v4046 = vsub.f32 %v3020, %v4045
        %4047 = vmatmul.mubr.f32.gmra.mxu0 %v4046
        %v4048 = vpop.f32.mrf.mxu0
        %v4049 = vadd.f32 %v3798, %v4048
        %v4050 = vpop.f32.mrf.mxu0
        %v4051 = vadd.f32 %v3800, %v4050
        %v4052 = vand.u32 %v3023, 4294901760
        %v4053 = vsub.f32 %v3023, %v4052
        %4054 = vmatprep.mubr.f32.mxu0 %v4053
        %v4055 = vand.u32 %v3022, 4294901760
        %v4056 = vsub.f32 %v3022, %v4055
        %4057 = vmatmul.mubr.f32.gmra.mxu0 %v4056
        %v4058 = vpop.f32.mrf.mxu0
        %v4059 = vadd.f32 %v3806, %v4058
        %v4060 = vpop.f32.mrf.mxu0
        %v4061 = vadd.f32 %v3808, %v4060
        %4062 = vdwg.mxu0
        %v4063 = vand.u32 %v3085, 4294901760
        %4064 = vmatprep.subr.mxu0 %v4063
        %v4065 = vand.u32 %v3084, 4294901760
        %4066 = vmatpush1.msra.mxu0 %v4065
        %v4067 = vand.u32 %v3081, 4294901760
        %4068 = vmatprep.subr.mxu0 %v4067
        %v4069 = vand.u32 %v3080, 4294901760
        %4070 = vmatpush1.msra.mxu0 %v4069
        %v4071 = vand.u32 %v3077, 4294901760
        %4072 = vmatprep.subr.mxu0 %v4071
        %v4073 = vand.u32 %v3076, 4294901760
        %4074 = vmatpush1.msra.mxu0 %v4073
        %v4075 = vand.u32 %v3073, 4294901760
        %4076 = vmatprep.subr.mxu0 %v4075
        %v4077 = vand.u32 %v3072, 4294901760
        %4078 = vmatpush1.msra.mxu0 %v4077
        %v4079 = vand.u32 %v3069, 4294901760
        %4080 = vmatprep.subr.mxu0 %v4079
        %v4081 = vand.u32 %v3068, 4294901760
        %4082 = vmatpush1.msra.mxu0 %v4081
        %v4083 = vand.u32 %v3065, 4294901760
        %4084 = vmatprep.subr.mxu0 %v4083
        %v4085 = vand.u32 %v3064, 4294901760
        %4086 = vmatpush1.msra.mxu0 %v4085
        %v4087 = vand.u32 %v3061, 4294901760
        %4088 = vmatprep.subr.mxu0 %v4087
        %v4089 = vand.u32 %v3060, 4294901760
        %4090 = vmatpush1.msra.mxu0 %v4089
        %v4091 = vand.u32 %v3057, 4294901760
        %4092 = vmatprep.subr.mxu0 %v4091
        %v4093 = vand.u32 %v3056, 4294901760
        %4094 = vmatpush1.msra.mxu0 %v4093
        %v4095 = vand.u32 %v3053, 4294901760
        %4096 = vmatprep.subr.mxu0 %v4095
        %v4097 = vand.u32 %v3052, 4294901760
        %4098 = vmatpush1.msra.mxu0 %v4097
        %v4099 = vand.u32 %v3049, 4294901760
        %4100 = vmatprep.subr.mxu0 %v4099
        %v4101 = vand.u32 %v3048, 4294901760
        %4102 = vmatpush1.msra.mxu0 %v4101
        %v4103 = vand.u32 %v3045, 4294901760
        %4104 = vmatprep.subr.mxu0 %v4103
        %v4105 = vand.u32 %v3044, 4294901760
        %4106 = vmatpush1.msra.mxu0 %v4105
        %v4107 = vand.u32 %v3041, 4294901760
        %4108 = vmatprep.subr.mxu0 %v4107
        %v4109 = vand.u32 %v3040, 4294901760
        %4110 = vmatpush1.msra.mxu0 %v4109
        %v4111 = vand.u32 %v3037, 4294901760
        %4112 = vmatprep.subr.mxu0 %v4111
        %v4113 = vand.u32 %v3036, 4294901760
        %4114 = vmatpush1.msra.mxu0 %v4113
        %v4115 = vand.u32 %v3033, 4294901760
        %4116 = vmatprep.subr.mxu0 %v4115
        %v4117 = vand.u32 %v3032, 4294901760
        %4118 = vmatpush1.msra.mxu0 %v4117
        %v4119 = vand.u32 %v3029, 4294901760
        %4120 = vmatprep.subr.mxu0 %v4119
        %v4121 = vand.u32 %v3028, 4294901760
        %4122 = vmatpush1.msra.mxu0 %v4121
        %v4123 = vand.u32 %v3025, 4294901760
        %4124 = vmatprep.subr.mxu0 %v4123
        %v4125 = vand.u32 %v3024, 4294901760
        %4126 = vmatpush1.msra.mxu0 %v4125
        %v4127 = vand.u32 %v3149, 4294901760
        %4128 = vmatprep.subr.mxu0 %v4127
        %v4129 = vand.u32 %v3148, 4294901760
        %4130 = vmatpush2.msra.mxu0 %v4129
        %v4131 = vand.u32 %v3145, 4294901760
        %4132 = vmatprep.subr.mxu0 %v4131
        %v4133 = vand.u32 %v3144, 4294901760
        %4134 = vmatpush2.msra.mxu0 %v4133
        %v4135 = vand.u32 %v3141, 4294901760
        %4136 = vmatprep.subr.mxu0 %v4135
        %v4137 = vand.u32 %v3140, 4294901760
        %4138 = vmatpush2.msra.mxu0 %v4137
        %v4139 = vand.u32 %v3137, 4294901760
        %4140 = vmatprep.subr.mxu0 %v4139
        %v4141 = vand.u32 %v3136, 4294901760
        %4142 = vmatpush2.msra.mxu0 %v4141
        %v4143 = vand.u32 %v3133, 4294901760
        %4144 = vmatprep.subr.mxu0 %v4143
        %v4145 = vand.u32 %v3132, 4294901760
        %4146 = vmatpush2.msra.mxu0 %v4145
        %v4147 = vand.u32 %v3129, 4294901760
        %4148 = vmatprep.subr.mxu0 %v4147
        %v4149 = vand.u32 %v3128, 4294901760
        %4150 = vmatpush2.msra.mxu0 %v4149
        %v4151 = vand.u32 %v3125, 4294901760
        %4152 = vmatprep.subr.mxu0 %v4151
        %v4153 = vand.u32 %v3124, 4294901760
        %4154 = vmatpush2.msra.mxu0 %v4153
        %v4155 = vand.u32 %v3121, 4294901760
        %4156 = vmatprep.subr.mxu0 %v4155
        %v4157 = vand.u32 %v3120, 4294901760
        %4158 = vmatpush2.msra.mxu0 %v4157
        %v4159 = vand.u32 %v3117, 4294901760
        %4160 = vmatprep.subr.mxu0 %v4159
        %v4161 = vand.u32 %v3116, 4294901760
        %4162 = vmatpush2.msra.mxu0 %v4161
        %v4163 = vand.u32 %v3113, 4294901760
        %4164 = vmatprep.subr.mxu0 %v4163
        %v4165 = vand.u32 %v3112, 4294901760
        %4166 = vmatpush2.msra.mxu0 %v4165
        %v4167 = vand.u32 %v3109, 4294901760
        %4168 = vmatprep.subr.mxu0 %v4167
        %v4169 = vand.u32 %v3108, 4294901760
        %4170 = vmatpush2.msra.mxu0 %v4169
        %v4171 = vand.u32 %v3105, 4294901760
        %4172 = vmatprep.subr.mxu0 %v4171
        %v4173 = vand.u32 %v3104, 4294901760
        %4174 = vmatpush2.msra.mxu0 %v4173
        %v4175 = vand.u32 %v3101, 4294901760
        %4176 = vmatprep.subr.mxu0 %v4175
        %v4177 = vand.u32 %v3100, 4294901760
        %4178 = vmatpush2.msra.mxu0 %v4177
        %v4179 = vand.u32 %v3097, 4294901760
        %4180 = vmatprep.subr.mxu0 %v4179
        %v4181 = vand.u32 %v3096, 4294901760
        %4182 = vmatpush2.msra.mxu0 %v4181
        %v4183 = vand.u32 %v3093, 4294901760
        %4184 = vmatprep.subr.mxu0 %v4183
        %v4185 = vand.u32 %v3092, 4294901760
        %4186 = vmatpush2.msra.mxu0 %v4185
        %v4187 = vand.u32 %v3089, 4294901760
        %4188 = vmatprep.subr.mxu0 %v4187
        %v4189 = vand.u32 %v3088, 4294901760
        %4190 = vmatpush2.msra.mxu0 %v4189
        %v4191 = vand.u32 %v3013, 4294901760
        %v4192 = vsub.f32 %v3013, %v4191
        %v4193 = vand.u32 %v4192, 4294901760
        %4194 = vmatprep.mubr.f32.mxu0 %v4193
        %v4195 = vand.u32 %v3012, 4294901760
        %v4196 = vsub.f32 %v3012, %v4195
        %v4197 = vand.u32 %v4196, 4294901760
        %4198 = vmatmul.mubr.f32.gmra.mxu0 %v4197
        %v4199 = vpop.f32.mrf.mxu0
        %v4200 = vadd.f32 %v4009, %v4199
        %v4201 = vpop.f32.mrf.mxu0
        %v4202 = vadd.f32 %v4011, %v4201
        %v4203 = vand.u32 %v3015, 4294901760
        %v4204 = vsub.f32 %v3015, %v4203
        %v4205 = vand.u32 %v4204, 4294901760
        %4206 = vmatprep.mubr.f32.mxu0 %v4205
        %v4207 = vand.u32 %v3014, 4294901760
        %v4208 = vsub.f32 %v3014, %v4207
        %v4209 = vand.u32 %v4208, 4294901760
        %4210 = vmatmul.mubr.f32.gmra.mxu0 %v4209
        %v4211 = vpop.f32.mrf.mxu0
        %v4212 = vadd.f32 %v4019, %v4211
        %v4213 = vpop.f32.mrf.mxu0
        %v4214 = vadd.f32 %v4021, %v4213
        %v4215 = vand.u32 %v3017, 4294901760
        %v4216 = vsub.f32 %v3017, %v4215
        %v4217 = vand.u32 %v4216, 4294901760
        %4218 = vmatprep.mubr.f32.mxu0 %v4217
        %v4219 = vand.u32 %v3016, 4294901760
        %v4220 = vsub.f32 %v3016, %v4219
        %v4221 = vand.u32 %v4220, 4294901760
        %4222 = vmatmul.mubr.f32.gmra.mxu0 %v4221
        %v4223 = vpop.f32.mrf.mxu0
        %v4224 = vadd.f32 %v4029, %v4223
        %v4225 = vpop.f32.mrf.mxu0
        %v4226 = vadd.f32 %v4031, %v4225
        %v4227 = vand.u32 %v3019, 4294901760
        %v4228 = vsub.f32 %v3019, %v4227
        %v4229 = vand.u32 %v4228, 4294901760
        %4230 = vmatprep.mubr.f32.mxu0 %v4229
        %v4231 = vand.u32 %v3018, 4294901760
        %v4232 = vsub.f32 %v3018, %v4231
        %v4233 = vand.u32 %v4232, 4294901760
        %4234 = vmatmul.mubr.f32.gmra.mxu0 %v4233
        %v4235 = vpop.f32.mrf.mxu0
        %v4236 = vadd.f32 %v4039, %v4235
        %v4237 = vpop.f32.mrf.mxu0
        %v4238 = vadd.f32 %v4041, %v4237
        %v4239 = vand.u32 %v3021, 4294901760
        %v4240 = vsub.f32 %v3021, %v4239
        %v4241 = vand.u32 %v4240, 4294901760
        %4242 = vmatprep.mubr.f32.mxu0 %v4241
        %v4243 = vand.u32 %v3020, 4294901760
        %v4244 = vsub.f32 %v3020, %v4243
        %v4245 = vand.u32 %v4244, 4294901760
        %4246 = vmatmul.mubr.f32.gmra.mxu0 %v4245
        %v4247 = vpop.f32.mrf.mxu0
        %v4248 = vadd.f32 %v4049, %v4247
        %v4249 = vpop.f32.mrf.mxu0
        %v4250 = vadd.f32 %v4051, %v4249
        %v4251 = vand.u32 %v3023, 4294901760
        %v4252 = vsub.f32 %v3023, %v4251
        %v4253 = vand.u32 %v4252, 4294901760
        %4254 = vmatprep.mubr.f32.mxu0 %v4253
        %v4255 = vand.u32 %v3022, 4294901760
        %v4256 = vsub.f32 %v3022, %v4255
        %v4257 = vand.u32 %v4256, 4294901760
        %4258 = vmatmul.mubr.f32.gmra.mxu0 %v4257
        %v4259 = vpop.f32.mrf.mxu0
        %v4260 = vadd.f32 %v4059, %v4259
        %v4261 = vpop.f32.mrf.mxu0
        %v4262 = vadd.f32 %v4061, %v4261
        %4263 = vdwg.mxu0
        %v4264 = vand.u32 %v3085, 4294901760
        %v4265 = vsub.f32 %v3085, %v4264
        %v4266 = vand.u32 %v4265, 4294901760
        %4267 = vmatprep.subr.mxu0 %v4266
        %v4268 = vand.u32 %v3084, 4294901760
        %v4269 = vsub.f32 %v3084, %v4268
        %v4270 = vand.u32 %v4269, 4294901760
        %4271 = vmatpush1.msra.mxu0 %v4270
        %v4272 = vand.u32 %v3081, 4294901760
        %v4273 = vsub.f32 %v3081, %v4272
        %v4274 = vand.u32 %v4273, 4294901760
        %4275 = vmatprep.subr.mxu0 %v4274
        %v4276 = vand.u32 %v3080, 4294901760
        %v4277 = vsub.f32 %v3080, %v4276
        %v4278 = vand.u32 %v4277, 4294901760
        %4279 = vmatpush1.msra.mxu0 %v4278
        %v4280 = vand.u32 %v3077, 4294901760
        %v4281 = vsub.f32 %v3077, %v4280
        %v4282 = vand.u32 %v4281, 4294901760
        %4283 = vmatprep.subr.mxu0 %v4282
        %v4284 = vand.u32 %v3076, 4294901760
        %v4285 = vsub.f32 %v3076, %v4284
        %v4286 = vand.u32 %v4285, 4294901760
        %4287 = vmatpush1.msra.mxu0 %v4286
        %v4288 = vand.u32 %v3073, 4294901760
        %v4289 = vsub.f32 %v3073, %v4288
        %v4290 = vand.u32 %v4289, 4294901760
        %4291 = vmatprep.subr.mxu0 %v4290
        %v4292 = vand.u32 %v3072, 4294901760
        %v4293 = vsub.f32 %v3072, %v4292
        %v4294 = vand.u32 %v4293, 4294901760
        %4295 = vmatpush1.msra.mxu0 %v4294
        %v4296 = vand.u32 %v3069, 4294901760
        %v4297 = vsub.f32 %v3069, %v4296
        %v4298 = vand.u32 %v4297, 4294901760
        %4299 = vmatprep.subr.mxu0 %v4298
        %v4300 = vand.u32 %v3068, 4294901760
        %v4301 = vsub.f32 %v3068, %v4300
        %v4302 = vand.u32 %v4301, 4294901760
        %4303 = vmatpush1.msra.mxu0 %v4302
        %v4304 = vand.u32 %v3065, 4294901760
        %v4305 = vsub.f32 %v3065, %v4304
        %v4306 = vand.u32 %v4305, 4294901760
        %4307 = vmatprep.subr.mxu0 %v4306
        %v4308 = vand.u32 %v3064, 4294901760
        %v4309 = vsub.f32 %v3064, %v4308
        %v4310 = vand.u32 %v4309, 4294901760
        %4311 = vmatpush1.msra.mxu0 %v4310
        %v4312 = vand.u32 %v3061, 4294901760
        %v4313 = vsub.f32 %v3061, %v4312
        %v4314 = vand.u32 %v4313, 4294901760
        %4315 = vmatprep.subr.mxu0 %v4314
        %v4316 = vand.u32 %v3060, 4294901760
        %v4317 = vsub.f32 %v3060, %v4316
        %v4318 = vand.u32 %v4317, 4294901760
        %4319 = vmatpush1.msra.mxu0 %v4318
        %v4320 = vand.u32 %v3057, 4294901760
        %v4321 = vsub.f32 %v3057, %v4320
        %v4322 = vand.u32 %v4321, 4294901760
        %4323 = vmatprep.subr.mxu0 %v4322
        %v4324 = vand.u32 %v3056, 4294901760
        %v4325 = vsub.f32 %v3056, %v4324
        %v4326 = vand.u32 %v4325, 4294901760
        %4327 = vmatpush1.msra.mxu0 %v4326
        %v4328 = vand.u32 %v3053, 4294901760
        %v4329 = vsub.f32 %v3053, %v4328
        %v4330 = vand.u32 %v4329, 4294901760
        %4331 = vmatprep.subr.mxu0 %v4330
        %v4332 = vand.u32 %v3052, 4294901760
        %v4333 = vsub.f32 %v3052, %v4332
        %v4334 = vand.u32 %v4333, 4294901760
        %4335 = vmatpush1.msra.mxu0 %v4334
        %v4336 = vand.u32 %v3049, 4294901760
        %v4337 = vsub.f32 %v3049, %v4336
        %v4338 = vand.u32 %v4337, 4294901760
        %4339 = vmatprep.subr.mxu0 %v4338
        %v4340 = vand.u32 %v3048, 4294901760
        %v4341 = vsub.f32 %v3048, %v4340
        %v4342 = vand.u32 %v4341, 4294901760
        %4343 = vmatpush1.msra.mxu0 %v4342
        %v4344 = vand.u32 %v3045, 4294901760
        %v4345 = vsub.f32 %v3045, %v4344
        %v4346 = vand.u32 %v4345, 4294901760
        %4347 = vmatprep.subr.mxu0 %v4346
        %v4348 = vand.u32 %v3044, 4294901760
        %v4349 = vsub.f32 %v3044, %v4348
        %v4350 = vand.u32 %v4349, 4294901760
        %4351 = vmatpush1.msra.mxu0 %v4350
        %v4352 = vand.u32 %v3041, 4294901760
        %v4353 = vsub.f32 %v3041, %v4352
        %v4354 = vand.u32 %v4353, 4294901760
        %4355 = vmatprep.subr.mxu0 %v4354
        %v4356 = vand.u32 %v3040, 4294901760
        %v4357 = vsub.f32 %v3040, %v4356
        %v4358 = vand.u32 %v4357, 4294901760
        %4359 = vmatpush1.msra.mxu0 %v4358
        %v4360 = vand.u32 %v3037, 4294901760
        %v4361 = vsub.f32 %v3037, %v4360
        %v4362 = vand.u32 %v4361, 4294901760
        %4363 = vmatprep.subr.mxu0 %v4362
        %v4364 = vand.u32 %v3036, 4294901760
        %v4365 = vsub.f32 %v3036, %v4364
        %v4366 = vand.u32 %v4365, 4294901760
        %4367 = vmatpush1.msra.mxu0 %v4366
        %v4368 = vand.u32 %v3033, 4294901760
        %v4369 = vsub.f32 %v3033, %v4368
        %v4370 = vand.u32 %v4369, 4294901760
        %4371 = vmatprep.subr.mxu0 %v4370
        %v4372 = vand.u32 %v3032, 4294901760
        %v4373 = vsub.f32 %v3032, %v4372
        %v4374 = vand.u32 %v4373, 4294901760
        %4375 = vmatpush1.msra.mxu0 %v4374
        %v4376 = vand.u32 %v3029, 4294901760
        %v4377 = vsub.f32 %v3029, %v4376
        %v4378 = vand.u32 %v4377, 4294901760
        %4379 = vmatprep.subr.mxu0 %v4378
        %v4380 = vand.u32 %v3028, 4294901760
        %v4381 = vsub.f32 %v3028, %v4380
        %v4382 = vand.u32 %v4381, 4294901760
        %4383 = vmatpush1.msra.mxu0 %v4382
        %v4384 = vand.u32 %v3025, 4294901760
        %v4385 = vsub.f32 %v3025, %v4384
        %v4386 = vand.u32 %v4385, 4294901760
        %4387 = vmatprep.subr.mxu0 %v4386
        %v4388 = vand.u32 %v3024, 4294901760
        %v4389 = vsub.f32 %v3024, %v4388
        %v4390 = vand.u32 %v4389, 4294901760
        %4391 = vmatpush1.msra.mxu0 %v4390
        %v4392 = vand.u32 %v3149, 4294901760
        %v4393 = vsub.f32 %v3149, %v4392
        %v4394 = vand.u32 %v4393, 4294901760
        %4395 = vmatprep.subr.mxu0 %v4394
        %v4396 = vand.u32 %v3148, 4294901760
        %v4397 = vsub.f32 %v3148, %v4396
        %v4398 = vand.u32 %v4397, 4294901760
        %4399 = vmatpush2.msra.mxu0 %v4398
        %v4400 = vand.u32 %v3145, 4294901760
        %v4401 = vsub.f32 %v3145, %v4400
        %v4402 = vand.u32 %v4401, 4294901760
        %4403 = vmatprep.subr.mxu0 %v4402
        %v4404 = vand.u32 %v3144, 4294901760
        %v4405 = vsub.f32 %v3144, %v4404
        %v4406 = vand.u32 %v4405, 4294901760
        %4407 = vmatpush2.msra.mxu0 %v4406
        %v4408 = vand.u32 %v3141, 4294901760
        %v4409 = vsub.f32 %v3141, %v4408
        %v4410 = vand.u32 %v4409, 4294901760
        %4411 = vmatprep.subr.mxu0 %v4410
        %v4412 = vand.u32 %v3140, 4294901760
        %v4413 = vsub.f32 %v3140, %v4412
        %v4414 = vand.u32 %v4413, 4294901760
        %4415 = vmatpush2.msra.mxu0 %v4414
        %v4416 = vand.u32 %v3137, 4294901760
        %v4417 = vsub.f32 %v3137, %v4416
        %v4418 = vand.u32 %v4417, 4294901760
        %4419 = vmatprep.subr.mxu0 %v4418
        %v4420 = vand.u32 %v3136, 4294901760
        %v4421 = vsub.f32 %v3136, %v4420
        %v4422 = vand.u32 %v4421, 4294901760
        %4423 = vmatpush2.msra.mxu0 %v4422
        %v4424 = vand.u32 %v3133, 4294901760
        %v4425 = vsub.f32 %v3133, %v4424
        %v4426 = vand.u32 %v4425, 4294901760
        %4427 = vmatprep.subr.mxu0 %v4426
        %v4428 = vand.u32 %v3132, 4294901760
        %v4429 = vsub.f32 %v3132, %v4428
        %v4430 = vand.u32 %v4429, 4294901760
        %4431 = vmatpush2.msra.mxu0 %v4430
        %v4432 = vand.u32 %v3129, 4294901760
        %v4433 = vsub.f32 %v3129, %v4432
        %v4434 = vand.u32 %v4433, 4294901760
        %4435 = vmatprep.subr.mxu0 %v4434
        %v4436 = vand.u32 %v3128, 4294901760
        %v4437 = vsub.f32 %v3128, %v4436
        %v4438 = vand.u32 %v4437, 4294901760
        %4439 = vmatpush2.msra.mxu0 %v4438
        %v4440 = vand.u32 %v3125, 4294901760
        %v4441 = vsub.f32 %v3125, %v4440
        %v4442 = vand.u32 %v4441, 4294901760
        %4443 = vmatprep.subr.mxu0 %v4442
        %v4444 = vand.u32 %v3124, 4294901760
        %v4445 = vsub.f32 %v3124, %v4444
        %v4446 = vand.u32 %v4445, 4294901760
        %4447 = vmatpush2.msra.mxu0 %v4446
        %v4448 = vand.u32 %v3121, 4294901760
        %v4449 = vsub.f32 %v3121, %v4448
        %v4450 = vand.u32 %v4449, 4294901760
        %4451 = vmatprep.subr.mxu0 %v4450
        %v4452 = vand.u32 %v3120, 4294901760
        %v4453 = vsub.f32 %v3120, %v4452
        %v4454 = vand.u32 %v4453, 4294901760
        %4455 = vmatpush2.msra.mxu0 %v4454
        %v4456 = vand.u32 %v3117, 4294901760
        %v4457 = vsub.f32 %v3117, %v4456
        %v4458 = vand.u32 %v4457, 4294901760
        %4459 = vmatprep.subr.mxu0 %v4458
        %v4460 = vand.u32 %v3116, 4294901760
        %v4461 = vsub.f32 %v3116, %v4460
        %v4462 = vand.u32 %v4461, 4294901760
        %4463 = vmatpush2.msra.mxu0 %v4462
        %v4464 = vand.u32 %v3113, 4294901760
        %v4465 = vsub.f32 %v3113, %v4464
        %v4466 = vand.u32 %v4465, 4294901760
        %4467 = vmatprep.subr.mxu0 %v4466
        %v4468 = vand.u32 %v3112, 4294901760
        %v4469 = vsub.f32 %v3112, %v4468
        %v4470 = vand.u32 %v4469, 4294901760
        %4471 = vmatpush2.msra.mxu0 %v4470
        %v4472 = vand.u32 %v3109, 4294901760
        %v4473 = vsub.f32 %v3109, %v4472
        %v4474 = vand.u32 %v4473, 4294901760
        %4475 = vmatprep.subr.mxu0 %v4474
        %v4476 = vand.u32 %v3108, 4294901760
        %v4477 = vsub.f32 %v3108, %v4476
        %v4478 = vand.u32 %v4477, 4294901760
        %4479 = vmatpush2.msra.mxu0 %v4478
        %v4480 = vand.u32 %v3105, 4294901760
        %v4481 = vsub.f32 %v3105, %v4480
        %v4482 = vand.u32 %v4481, 4294901760
        %4483 = vmatprep.subr.mxu0 %v4482
        %v4484 = vand.u32 %v3104, 4294901760
        %v4485 = vsub.f32 %v3104, %v4484
        %v4486 = vand.u32 %v4485, 4294901760
        %4487 = vmatpush2.msra.mxu0 %v4486
        %v4488 = vand.u32 %v3101, 4294901760
        %v4489 = vsub.f32 %v3101, %v4488
        %v4490 = vand.u32 %v4489, 4294901760
        %4491 = vmatprep.subr.mxu0 %v4490
        %v4492 = vand.u32 %v3100, 4294901760
        %v4493 = vsub.f32 %v3100, %v4492
        %v4494 = vand.u32 %v4493, 4294901760
        %4495 = vmatpush2.msra.mxu0 %v4494
        %v4496 = vand.u32 %v3097, 4294901760
        %v4497 = vsub.f32 %v3097, %v4496
        %v4498 = vand.u32 %v4497, 4294901760
        %4499 = vmatprep.subr.mxu0 %v4498
        %v4500 = vand.u32 %v3096, 4294901760
        %v4501 = vsub.f32 %v3096, %v4500
        %v4502 = vand.u32 %v4501, 4294901760
        %4503 = vmatpush2.msra.mxu0 %v4502
        %v4504 = vand.u32 %v3093, 4294901760
        %v4505 = vsub.f32 %v3093, %v4504
        %v4506 = vand.u32 %v4505, 4294901760
        %4507 = vmatprep.subr.mxu0 %v4506
        %v4508 = vand.u32 %v3092, 4294901760
        %v4509 = vsub.f32 %v3092, %v4508
        %v4510 = vand.u32 %v4509, 4294901760
        %4511 = vmatpush2.msra.mxu0 %v4510
        %v4512 = vand.u32 %v3089, 4294901760
        %v4513 = vsub.f32 %v3089, %v4512
        %v4514 = vand.u32 %v4513, 4294901760
        %4515 = vmatprep.subr.mxu0 %v4514
        %v4516 = vand.u32 %v3088, 4294901760
        %v4517 = vsub.f32 %v3088, %v4516
        %v4518 = vand.u32 %v4517, 4294901760
        %4519 = vmatpush2.msra.mxu0 %v4518
        %v4520 = vand.u32 %v3013, 4294901760
        %4521 = vmatprep.mubr.f32.mxu0 %v4520
        %v4522 = vand.u32 %v3012, 4294901760
        %4523 = vmatmul.mubr.f32.gmra.mxu0 %v4522
        %v4524 = vpop.f32.mrf.mxu0
        %v4525 = vadd.f32 %v4200, %v4524
        %v4526 = vpop.f32.mrf.mxu0
        %v4527 = vadd.f32 %v4202, %v4526
        %v4528 = vand.u32 %v3015, 4294901760
        %4529 = vmatprep.mubr.f32.mxu0 %v4528
        %v4530 = vand.u32 %v3014, 4294901760
        %4531 = vmatmul.mubr.f32.gmra.mxu0 %v4530
        %v4532 = vpop.f32.mrf.mxu0
        %v4533 = vadd.f32 %v4212, %v4532
        %v4534 = vpop.f32.mrf.mxu0
        %v4535 = vadd.f32 %v4214, %v4534
        %v4536 = vand.u32 %v3017, 4294901760
        %4537 = vmatprep.mubr.f32.mxu0 %v4536
        %v4538 = vand.u32 %v3016, 4294901760
        %4539 = vmatmul.mubr.f32.gmra.mxu0 %v4538
        %v4540 = vpop.f32.mrf.mxu0
        %v4541 = vadd.f32 %v4224, %v4540
        %v4542 = vpop.f32.mrf.mxu0
        %v4543 = vadd.f32 %v4226, %v4542
        %v4544 = vand.u32 %v3019, 4294901760
        %4545 = vmatprep.mubr.f32.mxu0 %v4544
        %v4546 = vand.u32 %v3018, 4294901760
        %4547 = vmatmul.mubr.f32.gmra.mxu0 %v4546
        %v4548 = vpop.f32.mrf.mxu0
        %v4549 = vadd.f32 %v4236, %v4548
        %v4550 = vpop.f32.mrf.mxu0
        %v4551 = vadd.f32 %v4238, %v4550
        %v4552 = vand.u32 %v3021, 4294901760
        %4553 = vmatprep.mubr.f32.mxu0 %v4552
        %v4554 = vand.u32 %v3020, 4294901760
        %4555 = vmatmul.mubr.f32.gmra.mxu0 %v4554
        %v4556 = vpop.f32.mrf.mxu0
        %v4557 = vadd.f32 %v4248, %v4556
        %v4558 = vpop.f32.mrf.mxu0
        %v4559 = vadd.f32 %v4250, %v4558
        %v4560 = vand.u32 %v3023, 4294901760
        %4561 = vmatprep.mubr.f32.mxu0 %v4560
        %v4562 = vand.u32 %v3022, 4294901760
        %4563 = vmatmul.mubr.f32.gmra.mxu0 %v4562
        %v4564 = vpop.f32.mrf.mxu0
        %v4565 = vadd.f32 %v4260, %v4564
        %v4566 = vpop.f32.mrf.mxu0
        %v4567 = vadd.f32 %v4262, %v4566
        %4568 = vdwg.mxu0
        %v4569 = vand.u32 %v3085, 4294901760
        %4570 = vmatprep.subr.mxu0 %v4569
        %v4571 = vand.u32 %v3084, 4294901760
        %4572 = vmatpush1.msra.mxu0 %v4571
        %v4573 = vand.u32 %v3081, 4294901760
        %4574 = vmatprep.subr.mxu0 %v4573
        %v4575 = vand.u32 %v3080, 4294901760
        %4576 = vmatpush1.msra.mxu0 %v4575
        %v4577 = vand.u32 %v3077, 4294901760
        %4578 = vmatprep.subr.mxu0 %v4577
        %v4579 = vand.u32 %v3076, 4294901760
        %4580 = vmatpush1.msra.mxu0 %v4579
        %v4581 = vand.u32 %v3073, 4294901760
        %4582 = vmatprep.subr.mxu0 %v4581
        %v4583 = vand.u32 %v3072, 4294901760
        %4584 = vmatpush1.msra.mxu0 %v4583
        %v4585 = vand.u32 %v3069, 4294901760
        %4586 = vmatprep.subr.mxu0 %v4585
        %v4587 = vand.u32 %v3068, 4294901760
        %4588 = vmatpush1.msra.mxu0 %v4587
        %v4589 = vand.u32 %v3065, 4294901760
        %4590 = vmatprep.subr.mxu0 %v4589
        %v4591 = vand.u32 %v3064, 4294901760
        %4592 = vmatpush1.msra.mxu0 %v4591
        %v4593 = vand.u32 %v3061, 4294901760
        %4594 = vmatprep.subr.mxu0 %v4593
        %v4595 = vand.u32 %v3060, 4294901760
        %4596 = vmatpush1.msra.mxu0 %v4595
        %v4597 = vand.u32 %v3057, 4294901760
        %4598 = vmatprep.subr.mxu0 %v4597
        %v4599 = vand.u32 %v3056, 4294901760
        %4600 = vmatpush1.msra.mxu0 %v4599
        %v4601 = vand.u32 %v3053, 4294901760
        %4602 = vmatprep.subr.mxu0 %v4601
        %v4603 = vand.u32 %v3052, 4294901760
        %4604 = vmatpush1.msra.mxu0 %v4603
        %v4605 = vand.u32 %v3049, 4294901760
        %4606 = vmatprep.subr.mxu0 %v4605
        %v4607 = vand.u32 %v3048, 4294901760
        %4608 = vmatpush1.msra.mxu0 %v4607
        %v4609 = vand.u32 %v3045, 4294901760
        %4610 = vmatprep.subr.mxu0 %v4609
        %v4611 = vand.u32 %v3044, 4294901760
        %4612 = vmatpush1.msra.mxu0 %v4611
        %v4613 = vand.u32 %v3041, 4294901760
        %4614 = vmatprep.subr.mxu0 %v4613
        %v4615 = vand.u32 %v3040, 4294901760
        %4616 = vmatpush1.msra.mxu0 %v4615
        %v4617 = vand.u32 %v3037, 4294901760
        %4618 = vmatprep.subr.mxu0 %v4617
        %v4619 = vand.u32 %v3036, 4294901760
        %4620 = vmatpush1.msra.mxu0 %v4619
        %v4621 = vand.u32 %v3033, 4294901760
        %4622 = vmatprep.subr.mxu0 %v4621
        %v4623 = vand.u32 %v3032, 4294901760
        %4624 = vmatpush1.msra.mxu0 %v4623
        %v4625 = vand.u32 %v3029, 4294901760
        %4626 = vmatprep.subr.mxu0 %v4625
        %v4627 = vand.u32 %v3028, 4294901760
        %4628 = vmatpush1.msra.mxu0 %v4627
        %v4629 = vand.u32 %v3025, 4294901760
        %4630 = vmatprep.subr.mxu0 %v4629
        %v4631 = vand.u32 %v3024, 4294901760
        %4632 = vmatpush1.msra.mxu0 %v4631
        %v4633 = vand.u32 %v3149, 4294901760
        %4634 = vmatprep.subr.mxu0 %v4633
        %v4635 = vand.u32 %v3148, 4294901760
        %4636 = vmatpush2.msra.mxu0 %v4635
        %v4637 = vand.u32 %v3145, 4294901760
        %4638 = vmatprep.subr.mxu0 %v4637
        %v4639 = vand.u32 %v3144, 4294901760
        %4640 = vmatpush2.msra.mxu0 %v4639
        %v4641 = vand.u32 %v3141, 4294901760
        %4642 = vmatprep.subr.mxu0 %v4641
        %v4643 = vand.u32 %v3140, 4294901760
        %4644 = vmatpush2.msra.mxu0 %v4643
        %v4645 = vand.u32 %v3137, 4294901760
        %4646 = vmatprep.subr.mxu0 %v4645
        %v4647 = vand.u32 %v3136, 4294901760
        %4648 = vmatpush2.msra.mxu0 %v4647
        %v4649 = vand.u32 %v3133, 4294901760
        %4650 = vmatprep.subr.mxu0 %v4649
        %v4651 = vand.u32 %v3132, 4294901760
        %4652 = vmatpush2.msra.mxu0 %v4651
        %v4653 = vand.u32 %v3129, 4294901760
        %4654 = vmatprep.subr.mxu0 %v4653
        %v4655 = vand.u32 %v3128, 4294901760
        %4656 = vmatpush2.msra.mxu0 %v4655
        %v4657 = vand.u32 %v3125, 4294901760
        %4658 = vmatprep.subr.mxu0 %v4657
        %v4659 = vand.u32 %v3124, 4294901760
        %4660 = vmatpush2.msra.mxu0 %v4659
        %v4661 = vand.u32 %v3121, 4294901760
        %4662 = vmatprep.subr.mxu0 %v4661
        %v4663 = vand.u32 %v3120, 4294901760
        %4664 = vmatpush2.msra.mxu0 %v4663
        %v4665 = vand.u32 %v3117, 4294901760
        %4666 = vmatprep.subr.mxu0 %v4665
        %v4667 = vand.u32 %v3116, 4294901760
        %4668 = vmatpush2.msra.mxu0 %v4667
        %v4669 = vand.u32 %v3113, 4294901760
        %4670 = vmatprep.subr.mxu0 %v4669
        %v4671 = vand.u32 %v3112, 4294901760
        %4672 = vmatpush2.msra.mxu0 %v4671
        %v4673 = vand.u32 %v3109, 4294901760
        %4674 = vmatprep.subr.mxu0 %v4673
        %v4675 = vand.u32 %v3108, 4294901760
        %4676 = vmatpush2.msra.mxu0 %v4675
        %v4677 = vand.u32 %v3105, 4294901760
        %4678 = vmatprep.subr.mxu0 %v4677
        %v4679 = vand.u32 %v3104, 4294901760
        %4680 = vmatpush2.msra.mxu0 %v4679
        %v4681 = vand.u32 %v3101, 4294901760
        %4682 = vmatprep.subr.mxu0 %v4681
        %v4683 = vand.u32 %v3100, 4294901760
        %4684 = vmatpush2.msra.mxu0 %v4683
        %v4685 = vand.u32 %v3097, 4294901760
        %4686 = vmatprep.subr.mxu0 %v4685
        %v4687 = vand.u32 %v3096, 4294901760
        %4688 = vmatpush2.msra.mxu0 %v4687
        %v4689 = vand.u32 %v3093, 4294901760
        %4690 = vmatprep.subr.mxu0 %v4689
        %v4691 = vand.u32 %v3092, 4294901760
        %4692 = vmatpush2.msra.mxu0 %v4691
        %v4693 = vand.u32 %v3089, 4294901760
        %4694 = vmatprep.subr.mxu0 %v4693
        %v4695 = vand.u32 %v3088, 4294901760
        %4696 = vmatpush2.msra.mxu0 %v4695
        %v4697 = vand.u32 %v3013, 4294901760
        %4698 = vmatprep.mubr.f32.mxu0 %v4697
        %v4699 = vand.u32 %v3012, 4294901760
        %4700 = vmatmul.mubr.f32.gmra.mxu0 %v4699
        %v4701 = vpop.f32.mrf.mxu0
        %v4702 = vadd.f32 %v4525, %v4701
        %v4703 = vpop.f32.mrf.mxu0
        %v4704 = vadd.f32 %v4527, %v4703
        %v4705 = vand.u32 %v3015, 4294901760
        %4706 = vmatprep.mubr.f32.mxu0 %v4705
        %v4707 = vand.u32 %v3014, 4294901760
        %4708 = vmatmul.mubr.f32.gmra.mxu0 %v4707
        %v4709 = vpop.f32.mrf.mxu0
        %v4710 = vadd.f32 %v4533, %v4709
        %v4711 = vpop.f32.mrf.mxu0
        %v4712 = vadd.f32 %v4535, %v4711
        %v4713 = vand.u32 %v3017, 4294901760
        %4714 = vmatprep.mubr.f32.mxu0 %v4713
        %v4715 = vand.u32 %v3016, 4294901760
        %4716 = vmatmul.mubr.f32.gmra.mxu0 %v4715
        %v4717 = vpop.f32.mrf.mxu0
        %v4718 = vadd.f32 %v4541, %v4717
        %v4719 = vpop.f32.mrf.mxu0
        %v4720 = vadd.f32 %v4543, %v4719
        %v4721 = vand.u32 %v3019, 4294901760
        %4722 = vmatprep.mubr.f32.mxu0 %v4721
        %v4723 = vand.u32 %v3018, 4294901760
        %4724 = vmatmul.mubr.f32.gmra.mxu0 %v4723
        %v4725 = vpop.f32.mrf.mxu0
        %v4726 = vadd.f32 %v4549, %v4725
        %v4727 = vpop.f32.mrf.mxu0
        %v4728 = vadd.f32 %v4551, %v4727
        %v4729 = vand.u32 %v3021, 4294901760
        %4730 = vmatprep.mubr.f32.mxu0 %v4729
        %v4731 = vand.u32 %v3020, 4294901760
        %4732 = vmatmul.mubr.f32.gmra.mxu0 %v4731
        %v4733 = vpop.f32.mrf.mxu0
        %v4734 = vadd.f32 %v4557, %v4733
        %v4735 = vpop.f32.mrf.mxu0
        %v4736 = vadd.f32 %v4559, %v4735
        %v4737 = vand.u32 %v3023, 4294901760
        %4738 = vmatprep.mubr.f32.mxu0 %v4737
        %v4739 = vand.u32 %v3022, 4294901760
        %4740 = vmatmul.mubr.f32.gmra.mxu0 %v4739
        %v4741 = vpop.f32.mrf.mxu0
        %v4742 = vadd.f32 %v4565, %v4741
        %v4743 = vpop.f32.mrf.mxu0
        %v4744 = vadd.f32 %v4567, %v4743
        %4745 = vdwg.mxu0
        %v4746 = vand.u32 %v3087, 4294901760
        %4747 = vmatprep.subr.mxu0 %v4746
        %v4748 = vand.u32 %v3086, 4294901760
        %4749 = vmatpush1.msra.mxu0 %v4748
        %v4750 = vand.u32 %v3083, 4294901760
        %4751 = vmatprep.subr.mxu0 %v4750
        %v4752 = vand.u32 %v3082, 4294901760
        %4753 = vmatpush1.msra.mxu0 %v4752
        %v4754 = vand.u32 %v3079, 4294901760
        %4755 = vmatprep.subr.mxu0 %v4754
        %v4756 = vand.u32 %v3078, 4294901760
        %4757 = vmatpush1.msra.mxu0 %v4756
        %v4758 = vand.u32 %v3075, 4294901760
        %4759 = vmatprep.subr.mxu0 %v4758
        %v4760 = vand.u32 %v3074, 4294901760
        %4761 = vmatpush1.msra.mxu0 %v4760
        %v4762 = vand.u32 %v3071, 4294901760
        %4763 = vmatprep.subr.mxu0 %v4762
        %v4764 = vand.u32 %v3070, 4294901760
        %4765 = vmatpush1.msra.mxu0 %v4764
        %v4766 = vand.u32 %v3067, 4294901760
        %4767 = vmatprep.subr.mxu0 %v4766
        %v4768 = vand.u32 %v3066, 4294901760
        %4769 = vmatpush1.msra.mxu0 %v4768
        %v4770 = vand.u32 %v3063, 4294901760
        %4771 = vmatprep.subr.mxu0 %v4770
        %v4772 = vand.u32 %v3062, 4294901760
        %4773 = vmatpush1.msra.mxu0 %v4772
        %v4774 = vand.u32 %v3059, 4294901760
        %4775 = vmatprep.subr.mxu0 %v4774
        %v4776 = vand.u32 %v3058, 4294901760
        %4777 = vmatpush1.msra.mxu0 %v4776
        %v4778 = vand.u32 %v3055, 4294901760
        %4779 = vmatprep.subr.mxu0 %v4778
        %v4780 = vand.u32 %v3054, 4294901760
        %4781 = vmatpush1.msra.mxu0 %v4780
        %v4782 = vand.u32 %v3051, 4294901760
        %4783 = vmatprep.subr.mxu0 %v4782
        %v4784 = vand.u32 %v3050, 4294901760
        %4785 = vmatpush1.msra.mxu0 %v4784
        %v4786 = vand.u32 %v3047, 4294901760
        %4787 = vmatprep.subr.mxu0 %v4786
        %v4788 = vand.u32 %v3046, 4294901760
        %4789 = vmatpush1.msra.mxu0 %v4788
        %v4790 = vand.u32 %v3043, 4294901760
        %4791 = vmatprep.subr.mxu0 %v4790
        %v4792 = vand.u32 %v3042, 4294901760
        %4793 = vmatpush1.msra.mxu0 %v4792
        %v4794 = vand.u32 %v3039, 4294901760
        %4795 = vmatprep.subr.mxu0 %v4794
        %v4796 = vand.u32 %v3038, 4294901760
        %4797 = vmatpush1.msra.mxu0 %v4796
        %v4798 = vand.u32 %v3035, 4294901760
        %4799 = vmatprep.subr.mxu0 %v4798
        %v4800 = vand.u32 %v3034, 4294901760
        %4801 = vmatpush1.msra.mxu0 %v4800
        %v4802 = vand.u32 %v3031, 4294901760
        %4803 = vmatprep.subr.mxu0 %v4802
        %v4804 = vand.u32 %v3030, 4294901760
        %4805 = vmatpush1.msra.mxu0 %v4804
        %v4806 = vand.u32 %v3027, 4294901760
        %4807 = vmatprep.subr.mxu0 %v4806
        %v4808 = vand.u32 %v3026, 4294901760
        %4809 = vmatpush1.msra.mxu0 %v4808
        %v4810 = vand.u32 %v3151, 4294901760
        %4811 = vmatprep.subr.mxu0 %v4810
        %v4812 = vand.u32 %v3150, 4294901760
        %4813 = vmatpush2.msra.mxu0 %v4812
        %v4814 = vand.u32 %v3147, 4294901760
        %4815 = vmatprep.subr.mxu0 %v4814
        %v4816 = vand.u32 %v3146, 4294901760
        %4817 = vmatpush2.msra.mxu0 %v4816
        %v4818 = vand.u32 %v3143, 4294901760
        %4819 = vmatprep.subr.mxu0 %v4818
        %v4820 = vand.u32 %v3142, 4294901760
        %4821 = vmatpush2.msra.mxu0 %v4820
        %v4822 = vand.u32 %v3139, 4294901760
        %4823 = vmatprep.subr.mxu0 %v4822
        %v4824 = vand.u32 %v3138, 4294901760
        %4825 = vmatpush2.msra.mxu0 %v4824
        %v4826 = vand.u32 %v3135, 4294901760
        %4827 = vmatprep.subr.mxu0 %v4826
        %v4828 = vand.u32 %v3134, 4294901760
        %4829 = vmatpush2.msra.mxu0 %v4828
        %v4830 = vand.u32 %v3131, 4294901760
        %4831 = vmatprep.subr.mxu0 %v4830
        %v4832 = vand.u32 %v3130, 4294901760
        %4833 = vmatpush2.msra.mxu0 %v4832
        %v4834 = vand.u32 %v3127, 4294901760
        %4835 = vmatprep.subr.mxu0 %v4834
        %v4836 = vand.u32 %v3126, 4294901760
        %4837 = vmatpush2.msra.mxu0 %v4836
        %v4838 = vand.u32 %v3123, 4294901760
        %4839 = vmatprep.subr.mxu0 %v4838
        %v4840 = vand.u32 %v3122, 4294901760
        %4841 = vmatpush2.msra.mxu0 %v4840
        %v4842 = vand.u32 %v3119, 4294901760
        %4843 = vmatprep.subr.mxu0 %v4842
        %v4844 = vand.u32 %v3118, 4294901760
        %4845 = vmatpush2.msra.mxu0 %v4844
        %v4846 = vand.u32 %v3115, 4294901760
        %4847 = vmatprep.subr.mxu0 %v4846
        %v4848 = vand.u32 %v3114, 4294901760
        %4849 = vmatpush2.msra.mxu0 %v4848
        %v4850 = vand.u32 %v3111, 4294901760
        %4851 = vmatprep.subr.mxu0 %v4850
        %v4852 = vand.u32 %v3110, 4294901760
        %4853 = vmatpush2.msra.mxu0 %v4852
        %v4854 = vand.u32 %v3107, 4294901760
        %4855 = vmatprep.subr.mxu0 %v4854
        %v4856 = vand.u32 %v3106, 4294901760
        %4857 = vmatpush2.msra.mxu0 %v4856
        %v4858 = vand.u32 %v3103, 4294901760
        %4859 = vmatprep.subr.mxu0 %v4858
        %v4860 = vand.u32 %v3102, 4294901760
        %4861 = vmatpush2.msra.mxu0 %v4860
        %v4862 = vand.u32 %v3099, 4294901760
        %4863 = vmatprep.subr.mxu0 %v4862
        %v4864 = vand.u32 %v3098, 4294901760
        %4865 = vmatpush2.msra.mxu0 %v4864
        %v4866 = vand.u32 %v3095, 4294901760
        %4867 = vmatprep.subr.mxu0 %v4866
        %v4868 = vand.u32 %v3094, 4294901760
        %4869 = vmatpush2.msra.mxu0 %v4868
        %v4870 = vand.u32 %v3091, 4294901760
        %4871 = vmatprep.subr.mxu0 %v4870
        %v4872 = vand.u32 %v3090, 4294901760
        %4873 = vmatpush2.msra.mxu0 %v4872
        %v4874 = vand.u32 %v3013, 4294901760
        %v4875 = vsub.f32 %v3013, %v4874
        %v4876 = vand.u32 %v4875, 4294901760
        %v4877 = vsub.f32 %v4875, %v4876
        %v4878 = vand.u32 %v4877, 4294901760
        %4879 = vmatprep.mubr.f32.mxu0 %v4878
        %v4880 = vand.u32 %v3012, 4294901760
        %v4881 = vsub.f32 %v3012, %v4880
        %v4882 = vand.u32 %v4881, 4294901760
        %v4883 = vsub.f32 %v4881, %v4882
        %v4884 = vand.u32 %v4883, 4294901760
        %4885 = vmatmul.mubr.f32.gmra.mxu0 %v4884
        %v4886 = vpop.f32.mrf.mxu0
        %v4887 = vadd.f32 0.0, %v4886
        %v4888 = vpop.f32.mrf.mxu0
        %v4889 = vadd.f32 0.0, %v4888
        %v4890 = vand.u32 %v3015, 4294901760
        %v4891 = vsub.f32 %v3015, %v4890
        %v4892 = vand.u32 %v4891, 4294901760
        %v4893 = vsub.f32 %v4891, %v4892
        %v4894 = vand.u32 %v4893, 4294901760
        %4895 = vmatprep.mubr.f32.mxu0 %v4894
        %v4896 = vand.u32 %v3014, 4294901760
        %v4897 = vsub.f32 %v3014, %v4896
        %v4898 = vand.u32 %v4897, 4294901760
        %v4899 = vsub.f32 %v4897, %v4898
        %v4900 = vand.u32 %v4899, 4294901760
        %4901 = vmatmul.mubr.f32.gmra.mxu0 %v4900
        %v4902 = vpop.f32.mrf.mxu0
        %v4903 = vadd.f32 0.0, %v4902
        %v4904 = vpop.f32.mrf.mxu0
        %v4905 = vadd.f32 0.0, %v4904
        %v4906 = vand.u32 %v3017, 4294901760
        %v4907 = vsub.f32 %v3017, %v4906
        %v4908 = vand.u32 %v4907, 4294901760
        %v4909 = vsub.f32 %v4907, %v4908
        %v4910 = vand.u32 %v4909, 4294901760
        %4911 = vmatprep.mubr.f32.mxu0 %v4910
        %v4912 = vand.u32 %v3016, 4294901760
        %v4913 = vsub.f32 %v3016, %v4912
        %v4914 = vand.u32 %v4913, 4294901760
        %v4915 = vsub.f32 %v4913, %v4914
        %v4916 = vand.u32 %v4915, 4294901760
        %4917 = vmatmul.mubr.f32.gmra.mxu0 %v4916
        %v4918 = vpop.f32.mrf.mxu0
        %v4919 = vadd.f32 0.0, %v4918
        %v4920 = vpop.f32.mrf.mxu0
        %v4921 = vadd.f32 0.0, %v4920
        %v4922 = vand.u32 %v3019, 4294901760
        %v4923 = vsub.f32 %v3019, %v4922
        %v4924 = vand.u32 %v4923, 4294901760
        %v4925 = vsub.f32 %v4923, %v4924
        %v4926 = vand.u32 %v4925, 4294901760
        %4927 = vmatprep.mubr.f32.mxu0 %v4926
        %v4928 = vand.u32 %v3018, 4294901760
        %v4929 = vsub.f32 %v3018, %v4928
        %v4930 = vand.u32 %v4929, 4294901760
        %v4931 = vsub.f32 %v4929, %v4930
        %v4932 = vand.u32 %v4931, 4294901760
        %4933 = vmatmul.mubr.f32.gmra.mxu0 %v4932
        %v4934 = vpop.f32.mrf.mxu0
        %v4935 = vadd.f32 0.0, %v4934
        %v4936 = vpop.f32.mrf.mxu0
        %v4937 = vadd.f32 0.0, %v4936
        %v4938 = vand.u32 %v3021, 4294901760
        %v4939 = vsub.f32 %v3021, %v4938
        %v4940 = vand.u32 %v4939, 4294901760
        %v4941 = vsub.f32 %v4939, %v4940
        %v4942 = vand.u32 %v4941, 4294901760
        %4943 = vmatprep.mubr.f32.mxu0 %v4942
        %v4944 = vand.u32 %v3020, 4294901760
        %v4945 = vsub.f32 %v3020, %v4944
        %v4946 = vand.u32 %v4945, 4294901760
        %v4947 = vsub.f32 %v4945, %v4946
        %v4948 = vand.u32 %v4947, 4294901760
        %4949 = vmatmul.mubr.f32.gmra.mxu0 %v4948
        %v4950 = vpop.f32.mrf.mxu0
        %v4951 = vadd.f32 0.0, %v4950
        %v4952 = vpop.f32.mrf.mxu0
        %v4953 = vadd.f32 0.0, %v4952
        %v4954 = vand.u32 %v3023, 4294901760
        %v4955 = vsub.f32 %v3023, %v4954
        %v4956 = vand.u32 %v4955, 4294901760
        %v4957 = vsub.f32 %v4955, %v4956
        %v4958 = vand.u32 %v4957, 4294901760
        %4959 = vmatprep.mubr.f32.mxu0 %v4958
        %v4960 = vand.u32 %v3022, 4294901760
        %v4961 = vsub.f32 %v3022, %v4960
        %v4962 = vand.u32 %v4961, 4294901760
        %v4963 = vsub.f32 %v4961, %v4962
        %v4964 = vand.u32 %v4963, 4294901760
        %4965 = vmatmul.mubr.f32.gmra.mxu0 %v4964
        %v4966 = vpop.f32.mrf.mxu0
        %v4967 = vadd.f32 0.0, %v4966
        %v4968 = vpop.f32.mrf.mxu0
        %v4969 = vadd.f32 0.0, %v4968
        %4970 = vdwg.mxu0
        %v4971 = vand.u32 %v3087, 4294901760
        %v4972 = vsub.f32 %v3087, %v4971
        %v4973 = vand.u32 %v4972, 4294901760
        %v4974 = vsub.f32 %v4972, %v4973
        %v4975 = vand.u32 %v4974, 4294901760
        %4976 = vmatprep.subr.mxu0 %v4975
        %v4977 = vand.u32 %v3086, 4294901760
        %v4978 = vsub.f32 %v3086, %v4977
        %v4979 = vand.u32 %v4978, 4294901760
        %v4980 = vsub.f32 %v4978, %v4979
        %v4981 = vand.u32 %v4980, 4294901760
        %4982 = vmatpush1.msra.mxu0 %v4981
        %v4983 = vand.u32 %v3083, 4294901760
        %v4984 = vsub.f32 %v3083, %v4983
        %v4985 = vand.u32 %v4984, 4294901760
        %v4986 = vsub.f32 %v4984, %v4985
        %v4987 = vand.u32 %v4986, 4294901760
        %4988 = vmatprep.subr.mxu0 %v4987
        %v4989 = vand.u32 %v3082, 4294901760
        %v4990 = vsub.f32 %v3082, %v4989
        %v4991 = vand.u32 %v4990, 4294901760
        %v4992 = vsub.f32 %v4990, %v4991
        %v4993 = vand.u32 %v4992, 4294901760
        %4994 = vmatpush1.msra.mxu0 %v4993
        %v4995 = vand.u32 %v3079, 4294901760
        %v4996 = vsub.f32 %v3079, %v4995
        %v4997 = vand.u32 %v4996, 4294901760
        %v4998 = vsub.f32 %v4996, %v4997
        %v4999 = vand.u32 %v4998, 4294901760
        %5000 = vmatprep.subr.mxu0 %v4999
        %v5001 = vand.u32 %v3078, 4294901760
        %v5002 = vsub.f32 %v3078, %v5001
        %v5003 = vand.u32 %v5002, 4294901760
        %v5004 = vsub.f32 %v5002, %v5003
        %v5005 = vand.u32 %v5004, 4294901760
        %5006 = vmatpush1.msra.mxu0 %v5005
        %v5007 = vand.u32 %v3075, 4294901760
        %v5008 = vsub.f32 %v3075, %v5007
        %v5009 = vand.u32 %v5008, 4294901760
        %v5010 = vsub.f32 %v5008, %v5009
        %v5011 = vand.u32 %v5010, 4294901760
        %5012 = vmatprep.subr.mxu0 %v5011
        %v5013 = vand.u32 %v3074, 4294901760
        %v5014 = vsub.f32 %v3074, %v5013
        %v5015 = vand.u32 %v5014, 4294901760
        %v5016 = vsub.f32 %v5014, %v5015
        %v5017 = vand.u32 %v5016, 4294901760
        %5018 = vmatpush1.msra.mxu0 %v5017
        %v5019 = vand.u32 %v3071, 4294901760
        %v5020 = vsub.f32 %v3071, %v5019
        %v5021 = vand.u32 %v5020, 4294901760
        %v5022 = vsub.f32 %v5020, %v5021
        %v5023 = vand.u32 %v5022, 4294901760
        %5024 = vmatprep.subr.mxu0 %v5023
        %v5025 = vand.u32 %v3070, 4294901760
        %v5026 = vsub.f32 %v3070, %v5025
        %v5027 = vand.u32 %v5026, 4294901760
        %v5028 = vsub.f32 %v5026, %v5027
        %v5029 = vand.u32 %v5028, 4294901760
        %5030 = vmatpush1.msra.mxu0 %v5029
        %v5031 = vand.u32 %v3067, 4294901760
        %v5032 = vsub.f32 %v3067, %v5031
        %v5033 = vand.u32 %v5032, 4294901760
        %v5034 = vsub.f32 %v5032, %v5033
        %v5035 = vand.u32 %v5034, 4294901760
        %5036 = vmatprep.subr.mxu0 %v5035
        %v5037 = vand.u32 %v3066, 4294901760
        %v5038 = vsub.f32 %v3066, %v5037
        %v5039 = vand.u32 %v5038, 4294901760
        %v5040 = vsub.f32 %v5038, %v5039
        %v5041 = vand.u32 %v5040, 4294901760
        %5042 = vmatpush1.msra.mxu0 %v5041
        %v5043 = vand.u32 %v3063, 4294901760
        %v5044 = vsub.f32 %v3063, %v5043
        %v5045 = vand.u32 %v5044, 4294901760
        %v5046 = vsub.f32 %v5044, %v5045
        %v5047 = vand.u32 %v5046, 4294901760
        %5048 = vmatprep.subr.mxu0 %v5047
        %v5049 = vand.u32 %v3062, 4294901760
        %v5050 = vsub.f32 %v3062, %v5049
        %v5051 = vand.u32 %v5050, 4294901760
        %v5052 = vsub.f32 %v5050, %v5051
        %v5053 = vand.u32 %v5052, 4294901760
        %5054 = vmatpush1.msra.mxu0 %v5053
        %v5055 = vand.u32 %v3059, 4294901760
        %v5056 = vsub.f32 %v3059, %v5055
        %v5057 = vand.u32 %v5056, 4294901760
        %v5058 = vsub.f32 %v5056, %v5057
        %v5059 = vand.u32 %v5058, 4294901760
        %5060 = vmatprep.subr.mxu0 %v5059
        %v5061 = vand.u32 %v3058, 4294901760
        %v5062 = vsub.f32 %v3058, %v5061
        %v5063 = vand.u32 %v5062, 4294901760
        %v5064 = vsub.f32 %v5062, %v5063
        %v5065 = vand.u32 %v5064, 4294901760
        %5066 = vmatpush1.msra.mxu0 %v5065
        %v5067 = vand.u32 %v3055, 4294901760
        %v5068 = vsub.f32 %v3055, %v5067
        %v5069 = vand.u32 %v5068, 4294901760
        %v5070 = vsub.f32 %v5068, %v5069
        %v5071 = vand.u32 %v5070, 4294901760
        %5072 = vmatprep.subr.mxu0 %v5071
        %v5073 = vand.u32 %v3054, 4294901760
        %v5074 = vsub.f32 %v3054, %v5073
        %v5075 = vand.u32 %v5074, 4294901760
        %v5076 = vsub.f32 %v5074, %v5075
        %v5077 = vand.u32 %v5076, 4294901760
        %5078 = vmatpush1.msra.mxu0 %v5077
        %v5079 = vand.u32 %v3051, 4294901760
        %v5080 = vsub.f32 %v3051, %v5079
        %v5081 = vand.u32 %v5080, 4294901760
        %v5082 = vsub.f32 %v5080, %v5081
        %v5083 = vand.u32 %v5082, 4294901760
        %5084 = vmatprep.subr.mxu0 %v5083
        %v5085 = vand.u32 %v3050, 4294901760
        %v5086 = vsub.f32 %v3050, %v5085
        %v5087 = vand.u32 %v5086, 4294901760
        %v5088 = vsub.f32 %v5086, %v5087
        %v5089 = vand.u32 %v5088, 4294901760
        %5090 = vmatpush1.msra.mxu0 %v5089
        %v5091 = vand.u32 %v3047, 4294901760
        %v5092 = vsub.f32 %v3047, %v5091
        %v5093 = vand.u32 %v5092, 4294901760
        %v5094 = vsub.f32 %v5092, %v5093
        %v5095 = vand.u32 %v5094, 4294901760
        %5096 = vmatprep.subr.mxu0 %v5095
        %v5097 = vand.u32 %v3046, 4294901760
        %v5098 = vsub.f32 %v3046, %v5097
        %v5099 = vand.u32 %v5098, 4294901760
        %v5100 = vsub.f32 %v5098, %v5099
        %v5101 = vand.u32 %v5100, 4294901760
        %5102 = vmatpush1.msra.mxu0 %v5101
        %v5103 = vand.u32 %v3043, 4294901760
        %v5104 = vsub.f32 %v3043, %v5103
        %v5105 = vand.u32 %v5104, 4294901760
        %v5106 = vsub.f32 %v5104, %v5105
        %v5107 = vand.u32 %v5106, 4294901760
        %5108 = vmatprep.subr.mxu0 %v5107
        %v5109 = vand.u32 %v3042, 4294901760
        %v5110 = vsub.f32 %v3042, %v5109
        %v5111 = vand.u32 %v5110, 4294901760
        %v5112 = vsub.f32 %v5110, %v5111
        %v5113 = vand.u32 %v5112, 4294901760
        %5114 = vmatpush1.msra.mxu0 %v5113
        %v5115 = vand.u32 %v3039, 4294901760
        %v5116 = vsub.f32 %v3039, %v5115
        %v5117 = vand.u32 %v5116, 4294901760
        %v5118 = vsub.f32 %v5116, %v5117
        %v5119 = vand.u32 %v5118, 4294901760
        %5120 = vmatprep.subr.mxu0 %v5119
        %v5121 = vand.u32 %v3038, 4294901760
        %v5122 = vsub.f32 %v3038, %v5121
        %v5123 = vand.u32 %v5122, 4294901760
        %v5124 = vsub.f32 %v5122, %v5123
        %v5125 = vand.u32 %v5124, 4294901760
        %5126 = vmatpush1.msra.mxu0 %v5125
        %v5127 = vand.u32 %v3035, 4294901760
        %v5128 = vsub.f32 %v3035, %v5127
        %v5129 = vand.u32 %v5128, 4294901760
        %v5130 = vsub.f32 %v5128, %v5129
        %v5131 = vand.u32 %v5130, 4294901760
        %5132 = vmatprep.subr.mxu0 %v5131
        %v5133 = vand.u32 %v3034, 4294901760
        %v5134 = vsub.f32 %v3034, %v5133
        %v5135 = vand.u32 %v5134, 4294901760
        %v5136 = vsub.f32 %v5134, %v5135
        %v5137 = vand.u32 %v5136, 4294901760
        %5138 = vmatpush1.msra.mxu0 %v5137
        %v5139 = vand.u32 %v3031, 4294901760
        %v5140 = vsub.f32 %v3031, %v5139
        %v5141 = vand.u32 %v5140, 4294901760
        %v5142 = vsub.f32 %v5140, %v5141
        %v5143 = vand.u32 %v5142, 4294901760
        %5144 = vmatprep.subr.mxu0 %v5143
        %v5145 = vand.u32 %v3030, 4294901760
        %v5146 = vsub.f32 %v3030, %v5145
        %v5147 = vand.u32 %v5146, 4294901760
        %v5148 = vsub.f32 %v5146, %v5147
        %v5149 = vand.u32 %v5148, 4294901760
        %5150 = vmatpush1.msra.mxu0 %v5149
        %v5151 = vand.u32 %v3027, 4294901760
        %v5152 = vsub.f32 %v3027, %v5151
        %v5153 = vand.u32 %v5152, 4294901760
        %v5154 = vsub.f32 %v5152, %v5153
        %v5155 = vand.u32 %v5154, 4294901760
        %5156 = vmatprep.subr.mxu0 %v5155
        %v5157 = vand.u32 %v3026, 4294901760
        %v5158 = vsub.f32 %v3026, %v5157
        %v5159 = vand.u32 %v5158, 4294901760
        %v5160 = vsub.f32 %v5158, %v5159
        %v5161 = vand.u32 %v5160, 4294901760
        %5162 = vmatpush1.msra.mxu0 %v5161
        %v5163 = vand.u32 %v3151, 4294901760
        %v5164 = vsub.f32 %v3151, %v5163
        %v5165 = vand.u32 %v5164, 4294901760
        %v5166 = vsub.f32 %v5164, %v5165
        %v5167 = vand.u32 %v5166, 4294901760
        %5168 = vmatprep.subr.mxu0 %v5167
        %v5169 = vand.u32 %v3150, 4294901760
        %v5170 = vsub.f32 %v3150, %v5169
        %v5171 = vand.u32 %v5170, 4294901760
        %v5172 = vsub.f32 %v5170, %v5171
        %v5173 = vand.u32 %v5172, 4294901760
        %5174 = vmatpush2.msra.mxu0 %v5173
        %v5175 = vand.u32 %v3147, 4294901760
        %v5176 = vsub.f32 %v3147, %v5175
        %v5177 = vand.u32 %v5176, 4294901760
        %v5178 = vsub.f32 %v5176, %v5177
        %v5179 = vand.u32 %v5178, 4294901760
        %5180 = vmatprep.subr.mxu0 %v5179
        %v5181 = vand.u32 %v3146, 4294901760
        %v5182 = vsub.f32 %v3146, %v5181
        %v5183 = vand.u32 %v5182, 4294901760
        %v5184 = vsub.f32 %v5182, %v5183
        %v5185 = vand.u32 %v5184, 4294901760
        %5186 = vmatpush2.msra.mxu0 %v5185
        %v5187 = vand.u32 %v3143, 4294901760
        %v5188 = vsub.f32 %v3143, %v5187
        %v5189 = vand.u32 %v5188, 4294901760
        %v5190 = vsub.f32 %v5188, %v5189
        %v5191 = vand.u32 %v5190, 4294901760
        %5192 = vmatprep.subr.mxu0 %v5191
        %v5193 = vand.u32 %v3142, 4294901760
        %v5194 = vsub.f32 %v3142, %v5193
        %v5195 = vand.u32 %v5194, 4294901760
        %v5196 = vsub.f32 %v5194, %v5195
        %v5197 = vand.u32 %v5196, 4294901760
        %5198 = vmatpush2.msra.mxu0 %v5197
        %v5199 = vand.u32 %v3139, 4294901760
        %v5200 = vsub.f32 %v3139, %v5199
        %v5201 = vand.u32 %v5200, 4294901760
        %v5202 = vsub.f32 %v5200, %v5201
        %v5203 = vand.u32 %v5202, 4294901760
        %5204 = vmatprep.subr.mxu0 %v5203
        %v5205 = vand.u32 %v3138, 4294901760
        %v5206 = vsub.f32 %v3138, %v5205
        %v5207 = vand.u32 %v5206, 4294901760
        %v5208 = vsub.f32 %v5206, %v5207
        %v5209 = vand.u32 %v5208, 4294901760
        %5210 = vmatpush2.msra.mxu0 %v5209
        %v5211 = vand.u32 %v3135, 4294901760
        %v5212 = vsub.f32 %v3135, %v5211
        %v5213 = vand.u32 %v5212, 4294901760
        %v5214 = vsub.f32 %v5212, %v5213
        %v5215 = vand.u32 %v5214, 4294901760
        %5216 = vmatprep.subr.mxu0 %v5215
        %v5217 = vand.u32 %v3134, 4294901760
        %v5218 = vsub.f32 %v3134, %v5217
        %v5219 = vand.u32 %v5218, 4294901760
        %v5220 = vsub.f32 %v5218, %v5219
        %v5221 = vand.u32 %v5220, 4294901760
        %5222 = vmatpush2.msra.mxu0 %v5221
        %v5223 = vand.u32 %v3131, 4294901760
        %v5224 = vsub.f32 %v3131, %v5223
        %v5225 = vand.u32 %v5224, 4294901760
        %v5226 = vsub.f32 %v5224, %v5225
        %v5227 = vand.u32 %v5226, 4294901760
        %5228 = vmatprep.subr.mxu0 %v5227
        %v5229 = vand.u32 %v3130, 4294901760
        %v5230 = vsub.f32 %v3130, %v5229
        %v5231 = vand.u32 %v5230, 4294901760
        %v5232 = vsub.f32 %v5230, %v5231
        %v5233 = vand.u32 %v5232, 4294901760
        %5234 = vmatpush2.msra.mxu0 %v5233
        %v5235 = vand.u32 %v3127, 4294901760
        %v5236 = vsub.f32 %v3127, %v5235
        %v5237 = vand.u32 %v5236, 4294901760
        %v5238 = vsub.f32 %v5236, %v5237
        %v5239 = vand.u32 %v5238, 4294901760
        %5240 = vmatprep.subr.mxu0 %v5239
        %v5241 = vand.u32 %v3126, 4294901760
        %v5242 = vsub.f32 %v3126, %v5241
        %v5243 = vand.u32 %v5242, 4294901760
        %v5244 = vsub.f32 %v5242, %v5243
        %v5245 = vand.u32 %v5244, 4294901760
        %5246 = vmatpush2.msra.mxu0 %v5245
        %v5247 = vand.u32 %v3123, 4294901760
        %v5248 = vsub.f32 %v3123, %v5247
        %v5249 = vand.u32 %v5248, 4294901760
        %v5250 = vsub.f32 %v5248, %v5249
        %v5251 = vand.u32 %v5250, 4294901760
        %5252 = vmatprep.subr.mxu0 %v5251
        %v5253 = vand.u32 %v3122, 4294901760
        %v5254 = vsub.f32 %v3122, %v5253
        %v5255 = vand.u32 %v5254, 4294901760
        %v5256 = vsub.f32 %v5254, %v5255
        %v5257 = vand.u32 %v5256, 4294901760
        %5258 = vmatpush2.msra.mxu0 %v5257
        %v5259 = vand.u32 %v3119, 4294901760
        %v5260 = vsub.f32 %v3119, %v5259
        %v5261 = vand.u32 %v5260, 4294901760
        %v5262 = vsub.f32 %v5260, %v5261
        %v5263 = vand.u32 %v5262, 4294901760
        %5264 = vmatprep.subr.mxu0 %v5263
        %v5265 = vand.u32 %v3118, 4294901760
        %v5266 = vsub.f32 %v3118, %v5265
        %v5267 = vand.u32 %v5266, 4294901760
        %v5268 = vsub.f32 %v5266, %v5267
        %v5269 = vand.u32 %v5268, 4294901760
        %5270 = vmatpush2.msra.mxu0 %v5269
        %v5271 = vand.u32 %v3115, 4294901760
        %v5272 = vsub.f32 %v3115, %v5271
        %v5273 = vand.u32 %v5272, 4294901760
        %v5274 = vsub.f32 %v5272, %v5273
        %v5275 = vand.u32 %v5274, 4294901760
        %5276 = vmatprep.subr.mxu0 %v5275
        %v5277 = vand.u32 %v3114, 4294901760
        %v5278 = vsub.f32 %v3114, %v5277
        %v5279 = vand.u32 %v5278, 4294901760
        %v5280 = vsub.f32 %v5278, %v5279
        %v5281 = vand.u32 %v5280, 4294901760
        %5282 = vmatpush2.msra.mxu0 %v5281
        %v5283 = vand.u32 %v3111, 4294901760
        %v5284 = vsub.f32 %v3111, %v5283
        %v5285 = vand.u32 %v5284, 4294901760
        %v5286 = vsub.f32 %v5284, %v5285
        %v5287 = vand.u32 %v5286, 4294901760
        %5288 = vmatprep.subr.mxu0 %v5287
        %v5289 = vand.u32 %v3110, 4294901760
        %v5290 = vsub.f32 %v3110, %v5289
        %v5291 = vand.u32 %v5290, 4294901760
        %v5292 = vsub.f32 %v5290, %v5291
        %v5293 = vand.u32 %v5292, 4294901760
        %5294 = vmatpush2.msra.mxu0 %v5293
        %v5295 = vand.u32 %v3107, 4294901760
        %v5296 = vsub.f32 %v3107, %v5295
        %v5297 = vand.u32 %v5296, 4294901760
        %v5298 = vsub.f32 %v5296, %v5297
        %v5299 = vand.u32 %v5298, 4294901760
        %5300 = vmatprep.subr.mxu0 %v5299
        %v5301 = vand.u32 %v3106, 4294901760
        %v5302 = vsub.f32 %v3106, %v5301
        %v5303 = vand.u32 %v5302, 4294901760
        %v5304 = vsub.f32 %v5302, %v5303
        %v5305 = vand.u32 %v5304, 4294901760
        %5306 = vmatpush2.msra.mxu0 %v5305
        %v5307 = vand.u32 %v3103, 4294901760
        %v5308 = vsub.f32 %v3103, %v5307
        %v5309 = vand.u32 %v5308, 4294901760
        %v5310 = vsub.f32 %v5308, %v5309
        %v5311 = vand.u32 %v5310, 4294901760
        %5312 = vmatprep.subr.mxu0 %v5311
        %v5313 = vand.u32 %v3102, 4294901760
        %v5314 = vsub.f32 %v3102, %v5313
        %v5315 = vand.u32 %v5314, 4294901760
        %v5316 = vsub.f32 %v5314, %v5315
        %v5317 = vand.u32 %v5316, 4294901760
        %5318 = vmatpush2.msra.mxu0 %v5317
        %v5319 = vand.u32 %v3099, 4294901760
        %v5320 = vsub.f32 %v3099, %v5319
        %v5321 = vand.u32 %v5320, 4294901760
        %v5322 = vsub.f32 %v5320, %v5321
        %v5323 = vand.u32 %v5322, 4294901760
        %5324 = vmatprep.subr.mxu0 %v5323
        %v5325 = vand.u32 %v3098, 4294901760
        %v5326 = vsub.f32 %v3098, %v5325
        %v5327 = vand.u32 %v5326, 4294901760
        %v5328 = vsub.f32 %v5326, %v5327
        %v5329 = vand.u32 %v5328, 4294901760
        %5330 = vmatpush2.msra.mxu0 %v5329
        %v5331 = vand.u32 %v3095, 4294901760
        %v5332 = vsub.f32 %v3095, %v5331
        %v5333 = vand.u32 %v5332, 4294901760
        %v5334 = vsub.f32 %v5332, %v5333
        %v5335 = vand.u32 %v5334, 4294901760
        %5336 = vmatprep.subr.mxu0 %v5335
        %v5337 = vand.u32 %v3094, 4294901760
        %v5338 = vsub.f32 %v3094, %v5337
        %v5339 = vand.u32 %v5338, 4294901760
        %v5340 = vsub.f32 %v5338, %v5339
        %v5341 = vand.u32 %v5340, 4294901760
        %5342 = vmatpush2.msra.mxu0 %v5341
        %v5343 = vand.u32 %v3091, 4294901760
        %v5344 = vsub.f32 %v3091, %v5343
        %v5345 = vand.u32 %v5344, 4294901760
        %v5346 = vsub.f32 %v5344, %v5345
        %v5347 = vand.u32 %v5346, 4294901760
        %5348 = vmatprep.subr.mxu0 %v5347
        %v5349 = vand.u32 %v3090, 4294901760
        %v5350 = vsub.f32 %v3090, %v5349
        %v5351 = vand.u32 %v5350, 4294901760
        %v5352 = vsub.f32 %v5350, %v5351
        %v5353 = vand.u32 %v5352, 4294901760
        %5354 = vmatpush2.msra.mxu0 %v5353
        %v5355 = vand.u32 %v3013, 4294901760
        %5356 = vmatprep.mubr.f32.mxu0 %v5355
        %v5357 = vand.u32 %v3012, 4294901760
        %5358 = vmatmul.mubr.f32.gmra.mxu0 %v5357
        %v5359 = vpop.f32.mrf.mxu0
        %v5360 = vadd.f32 %v4887, %v5359
        %v5361 = vpop.f32.mrf.mxu0
        %v5362 = vadd.f32 %v4889, %v5361
        %v5363 = vand.u32 %v3015, 4294901760
        %5364 = vmatprep.mubr.f32.mxu0 %v5363
        %v5365 = vand.u32 %v3014, 4294901760
        %5366 = vmatmul.mubr.f32.gmra.mxu0 %v5365
        %v5367 = vpop.f32.mrf.mxu0
        %v5368 = vadd.f32 %v4903, %v5367
        %v5369 = vpop.f32.mrf.mxu0
        %v5370 = vadd.f32 %v4905, %v5369
        %v5371 = vand.u32 %v3017, 4294901760
        %5372 = vmatprep.mubr.f32.mxu0 %v5371
        %v5373 = vand.u32 %v3016, 4294901760
        %5374 = vmatmul.mubr.f32.gmra.mxu0 %v5373
        %v5375 = vpop.f32.mrf.mxu0
        %v5376 = vadd.f32 %v4919, %v5375
        %v5377 = vpop.f32.mrf.mxu0
        %v5378 = vadd.f32 %v4921, %v5377
        %v5379 = vand.u32 %v3019, 4294901760
        %5380 = vmatprep.mubr.f32.mxu0 %v5379
        %v5381 = vand.u32 %v3018, 4294901760
        %5382 = vmatmul.mubr.f32.gmra.mxu0 %v5381
        %v5383 = vpop.f32.mrf.mxu0
        %v5384 = vadd.f32 %v4935, %v5383
        %v5385 = vpop.f32.mrf.mxu0
        %v5386 = vadd.f32 %v4937, %v5385
        %v5387 = vand.u32 %v3021, 4294901760
        %5388 = vmatprep.mubr.f32.mxu0 %v5387
        %v5389 = vand.u32 %v3020, 4294901760
        %5390 = vmatmul.mubr.f32.gmra.mxu0 %v5389
        %v5391 = vpop.f32.mrf.mxu0
        %v5392 = vadd.f32 %v4951, %v5391
        %v5393 = vpop.f32.mrf.mxu0
        %v5394 = vadd.f32 %v4953, %v5393
        %v5395 = vand.u32 %v3023, 4294901760
        %5396 = vmatprep.mubr.f32.mxu0 %v5395
        %v5397 = vand.u32 %v3022, 4294901760
        %5398 = vmatmul.mubr.f32.gmra.mxu0 %v5397
        %v5399 = vpop.f32.mrf.mxu0
        %v5400 = vadd.f32 %v4967, %v5399
        %v5401 = vpop.f32.mrf.mxu0
        %v5402 = vadd.f32 %v4969, %v5401
        %5403 = vdwg.mxu0
        %v5404 = vand.u32 %v3087, 4294901760
        %v5405 = vsub.f32 %v3087, %v5404
        %5406 = vmatprep.subr.mxu0 %v5405
        %v5407 = vand.u32 %v3086, 4294901760
        %v5408 = vsub.f32 %v3086, %v5407
        %5409 = vmatpush1.msra.mxu0 %v5408
        %v5410 = vand.u32 %v3083, 4294901760
        %v5411 = vsub.f32 %v3083, %v5410
        %5412 = vmatprep.subr.mxu0 %v5411
        %v5413 = vand.u32 %v3082, 4294901760
        %v5414 = vsub.f32 %v3082, %v5413
        %5415 = vmatpush1.msra.mxu0 %v5414
        %v5416 = vand.u32 %v3079, 4294901760
        %v5417 = vsub.f32 %v3079, %v5416
        %5418 = vmatprep.subr.mxu0 %v5417
        %v5419 = vand.u32 %v3078, 4294901760
        %v5420 = vsub.f32 %v3078, %v5419
        %5421 = vmatpush1.msra.mxu0 %v5420
        %v5422 = vand.u32 %v3075, 4294901760
        %v5423 = vsub.f32 %v3075, %v5422
        %5424 = vmatprep.subr.mxu0 %v5423
        %v5425 = vand.u32 %v3074, 4294901760
        %v5426 = vsub.f32 %v3074, %v5425
        %5427 = vmatpush1.msra.mxu0 %v5426
        %v5428 = vand.u32 %v3071, 4294901760
        %v5429 = vsub.f32 %v3071, %v5428
        %5430 = vmatprep.subr.mxu0 %v5429
        %v5431 = vand.u32 %v3070, 4294901760
        %v5432 = vsub.f32 %v3070, %v5431
        %5433 = vmatpush1.msra.mxu0 %v5432
        %v5434 = vand.u32 %v3067, 4294901760
        %v5435 = vsub.f32 %v3067, %v5434
        %5436 = vmatprep.subr.mxu0 %v5435
        %v5437 = vand.u32 %v3066, 4294901760
        %v5438 = vsub.f32 %v3066, %v5437
        %5439 = vmatpush1.msra.mxu0 %v5438
        %v5440 = vand.u32 %v3063, 4294901760
        %v5441 = vsub.f32 %v3063, %v5440
        %5442 = vmatprep.subr.mxu0 %v5441
        %v5443 = vand.u32 %v3062, 4294901760
        %v5444 = vsub.f32 %v3062, %v5443
        %5445 = vmatpush1.msra.mxu0 %v5444
        %v5446 = vand.u32 %v3059, 4294901760
        %v5447 = vsub.f32 %v3059, %v5446
        %5448 = vmatprep.subr.mxu0 %v5447
        %v5449 = vand.u32 %v3058, 4294901760
        %v5450 = vsub.f32 %v3058, %v5449
        %5451 = vmatpush1.msra.mxu0 %v5450
        %v5452 = vand.u32 %v3055, 4294901760
        %v5453 = vsub.f32 %v3055, %v5452
        %5454 = vmatprep.subr.mxu0 %v5453
        %v5455 = vand.u32 %v3054, 4294901760
        %v5456 = vsub.f32 %v3054, %v5455
        %5457 = vmatpush1.msra.mxu0 %v5456
        %v5458 = vand.u32 %v3051, 4294901760
        %v5459 = vsub.f32 %v3051, %v5458
        %5460 = vmatprep.subr.mxu0 %v5459
        %v5461 = vand.u32 %v3050, 4294901760
        %v5462 = vsub.f32 %v3050, %v5461
        %5463 = vmatpush1.msra.mxu0 %v5462
        %v5464 = vand.u32 %v3047, 4294901760
        %v5465 = vsub.f32 %v3047, %v5464
        %5466 = vmatprep.subr.mxu0 %v5465
        %v5467 = vand.u32 %v3046, 4294901760
        %v5468 = vsub.f32 %v3046, %v5467
        %5469 = vmatpush1.msra.mxu0 %v5468
        %v5470 = vand.u32 %v3043, 4294901760
        %v5471 = vsub.f32 %v3043, %v5470
        %5472 = vmatprep.subr.mxu0 %v5471
        %v5473 = vand.u32 %v3042, 4294901760
        %v5474 = vsub.f32 %v3042, %v5473
        %5475 = vmatpush1.msra.mxu0 %v5474
        %v5476 = vand.u32 %v3039, 4294901760
        %v5477 = vsub.f32 %v3039, %v5476
        %5478 = vmatprep.subr.mxu0 %v5477
        %v5479 = vand.u32 %v3038, 4294901760
        %v5480 = vsub.f32 %v3038, %v5479
        %5481 = vmatpush1.msra.mxu0 %v5480
        %v5482 = vand.u32 %v3035, 4294901760
        %v5483 = vsub.f32 %v3035, %v5482
        %5484 = vmatprep.subr.mxu0 %v5483
        %v5485 = vand.u32 %v3034, 4294901760
        %v5486 = vsub.f32 %v3034, %v5485
        %5487 = vmatpush1.msra.mxu0 %v5486
        %v5488 = vand.u32 %v3031, 4294901760
        %v5489 = vsub.f32 %v3031, %v5488
        %5490 = vmatprep.subr.mxu0 %v5489
        %v5491 = vand.u32 %v3030, 4294901760
        %v5492 = vsub.f32 %v3030, %v5491
        %5493 = vmatpush1.msra.mxu0 %v5492
        %v5494 = vand.u32 %v3027, 4294901760
        %v5495 = vsub.f32 %v3027, %v5494
        %5496 = vmatprep.subr.mxu0 %v5495
        %v5497 = vand.u32 %v3026, 4294901760
        %v5498 = vsub.f32 %v3026, %v5497
        %5499 = vmatpush1.msra.mxu0 %v5498
        %v5500 = vand.u32 %v3151, 4294901760
        %v5501 = vsub.f32 %v3151, %v5500
        %5502 = vmatprep.subr.mxu0 %v5501
        %v5503 = vand.u32 %v3150, 4294901760
        %v5504 = vsub.f32 %v3150, %v5503
        %5505 = vmatpush2.msra.mxu0 %v5504
        %v5506 = vand.u32 %v3147, 4294901760
        %v5507 = vsub.f32 %v3147, %v5506
        %5508 = vmatprep.subr.mxu0 %v5507
        %v5509 = vand.u32 %v3146, 4294901760
        %v5510 = vsub.f32 %v3146, %v5509
        %5511 = vmatpush2.msra.mxu0 %v5510
        %v5512 = vand.u32 %v3143, 4294901760
        %v5513 = vsub.f32 %v3143, %v5512
        %5514 = vmatprep.subr.mxu0 %v5513
        %v5515 = vand.u32 %v3142, 4294901760
        %v5516 = vsub.f32 %v3142, %v5515
        %5517 = vmatpush2.msra.mxu0 %v5516
        %v5518 = vand.u32 %v3139, 4294901760
        %v5519 = vsub.f32 %v3139, %v5518
        %5520 = vmatprep.subr.mxu0 %v5519
        %v5521 = vand.u32 %v3138, 4294901760
        %v5522 = vsub.f32 %v3138, %v5521
        %5523 = vmatpush2.msra.mxu0 %v5522
        %v5524 = vand.u32 %v3135, 4294901760
        %v5525 = vsub.f32 %v3135, %v5524
        %5526 = vmatprep.subr.mxu0 %v5525
        %v5527 = vand.u32 %v3134, 4294901760
        %v5528 = vsub.f32 %v3134, %v5527
        %5529 = vmatpush2.msra.mxu0 %v5528
        %v5530 = vand.u32 %v3131, 4294901760
        %v5531 = vsub.f32 %v3131, %v5530
        %5532 = vmatprep.subr.mxu0 %v5531
        %v5533 = vand.u32 %v3130, 4294901760
        %v5534 = vsub.f32 %v3130, %v5533
        %5535 = vmatpush2.msra.mxu0 %v5534
        %v5536 = vand.u32 %v3127, 4294901760
        %v5537 = vsub.f32 %v3127, %v5536
        %5538 = vmatprep.subr.mxu0 %v5537
        %v5539 = vand.u32 %v3126, 4294901760
        %v5540 = vsub.f32 %v3126, %v5539
        %5541 = vmatpush2.msra.mxu0 %v5540
        %v5542 = vand.u32 %v3123, 4294901760
        %v5543 = vsub.f32 %v3123, %v5542
        %5544 = vmatprep.subr.mxu0 %v5543
        %v5545 = vand.u32 %v3122, 4294901760
        %v5546 = vsub.f32 %v3122, %v5545
        %5547 = vmatpush2.msra.mxu0 %v5546
        %v5548 = vand.u32 %v3119, 4294901760
        %v5549 = vsub.f32 %v3119, %v5548
        %5550 = vmatprep.subr.mxu0 %v5549
        %v5551 = vand.u32 %v3118, 4294901760
        %v5552 = vsub.f32 %v3118, %v5551
        %5553 = vmatpush2.msra.mxu0 %v5552
        %v5554 = vand.u32 %v3115, 4294901760
        %v5555 = vsub.f32 %v3115, %v5554
        %5556 = vmatprep.subr.mxu0 %v5555
        %v5557 = vand.u32 %v3114, 4294901760
        %v5558 = vsub.f32 %v3114, %v5557
        %5559 = vmatpush2.msra.mxu0 %v5558
        %v5560 = vand.u32 %v3111, 4294901760
        %v5561 = vsub.f32 %v3111, %v5560
        %5562 = vmatprep.subr.mxu0 %v5561
        %v5563 = vand.u32 %v3110, 4294901760
        %v5564 = vsub.f32 %v3110, %v5563
        %5565 = vmatpush2.msra.mxu0 %v5564
        %v5566 = vand.u32 %v3107, 4294901760
        %v5567 = vsub.f32 %v3107, %v5566
        %5568 = vmatprep.subr.mxu0 %v5567
        %v5569 = vand.u32 %v3106, 4294901760
        %v5570 = vsub.f32 %v3106, %v5569
        %5571 = vmatpush2.msra.mxu0 %v5570
        %v5572 = vand.u32 %v3103, 4294901760
        %v5573 = vsub.f32 %v3103, %v5572
        %5574 = vmatprep.subr.mxu0 %v5573
        %v5575 = vand.u32 %v3102, 4294901760
        %v5576 = vsub.f32 %v3102, %v5575
        %5577 = vmatpush2.msra.mxu0 %v5576
        %v5578 = vand.u32 %v3099, 4294901760
        %v5579 = vsub.f32 %v3099, %v5578
        %5580 = vmatprep.subr.mxu0 %v5579
        %v5581 = vand.u32 %v3098, 4294901760
        %v5582 = vsub.f32 %v3098, %v5581
        %5583 = vmatpush2.msra.mxu0 %v5582
        %v5584 = vand.u32 %v3095, 4294901760
        %v5585 = vsub.f32 %v3095, %v5584
        %5586 = vmatprep.subr.mxu0 %v5585
        %v5587 = vand.u32 %v3094, 4294901760
        %v5588 = vsub.f32 %v3094, %v5587
        %5589 = vmatpush2.msra.mxu0 %v5588
        %v5590 = vand.u32 %v3091, 4294901760
        %v5591 = vsub.f32 %v3091, %v5590
        %5592 = vmatprep.subr.mxu0 %v5591
        %v5593 = vand.u32 %v3090, 4294901760
        %v5594 = vsub.f32 %v3090, %v5593
        %5595 = vmatpush2.msra.mxu0 %v5594
        %v5596 = vand.u32 %v3013, 4294901760
        %v5597 = vsub.f32 %v3013, %v5596
        %5598 = vmatprep.mubr.f32.mxu0 %v5597
        %v5599 = vand.u32 %v3012, 4294901760
        %v5600 = vsub.f32 %v3012, %v5599
        %5601 = vmatmul.mubr.f32.gmra.mxu0 %v5600
        %v5602 = vpop.f32.mrf.mxu0
        %v5603 = vadd.f32 %v5360, %v5602
        %v5604 = vpop.f32.mrf.mxu0
        %v5605 = vadd.f32 %v5362, %v5604
        %v5606 = vand.u32 %v3015, 4294901760
        %v5607 = vsub.f32 %v3015, %v5606
        %5608 = vmatprep.mubr.f32.mxu0 %v5607
        %v5609 = vand.u32 %v3014, 4294901760
        %v5610 = vsub.f32 %v3014, %v5609
        %5611 = vmatmul.mubr.f32.gmra.mxu0 %v5610
        %v5612 = vpop.f32.mrf.mxu0
        %v5613 = vadd.f32 %v5368, %v5612
        %v5614 = vpop.f32.mrf.mxu0
        %v5615 = vadd.f32 %v5370, %v5614
        %v5616 = vand.u32 %v3017, 4294901760
        %v5617 = vsub.f32 %v3017, %v5616
        %5618 = vmatprep.mubr.f32.mxu0 %v5617
        %v5619 = vand.u32 %v3016, 4294901760
        %v5620 = vsub.f32 %v3016, %v5619
        %5621 = vmatmul.mubr.f32.gmra.mxu0 %v5620
        %v5622 = vpop.f32.mrf.mxu0
        %v5623 = vadd.f32 %v5376, %v5622
        %v5624 = vpop.f32.mrf.mxu0
        %v5625 = vadd.f32 %v5378, %v5624
        %v5626 = vand.u32 %v3019, 4294901760
        %v5627 = vsub.f32 %v3019, %v5626
        %5628 = vmatprep.mubr.f32.mxu0 %v5627
        %v5629 = vand.u32 %v3018, 4294901760
        %v5630 = vsub.f32 %v3018, %v5629
        %5631 = vmatmul.mubr.f32.gmra.mxu0 %v5630
        %v5632 = vpop.f32.mrf.mxu0
        %v5633 = vadd.f32 %v5384, %v5632
        %v5634 = vpop.f32.mrf.mxu0
        %v5635 = vadd.f32 %v5386, %v5634
        %v5636 = vand.u32 %v3021, 4294901760
        %v5637 = vsub.f32 %v3021, %v5636
        %5638 = vmatprep.mubr.f32.mxu0 %v5637
        %v5639 = vand.u32 %v3020, 4294901760
        %v5640 = vsub.f32 %v3020, %v5639
        %5641 = vmatmul.mubr.f32.gmra.mxu0 %v5640
        %v5642 = vpop.f32.mrf.mxu0
        %v5643 = vadd.f32 %v5392, %v5642
        %v5644 = vpop.f32.mrf.mxu0
        %v5645 = vadd.f32 %v5394, %v5644
        %v5646 = vand.u32 %v3023, 4294901760
        %v5647 = vsub.f32 %v3023, %v5646
        %5648 = vmatprep.mubr.f32.mxu0 %v5647
        %v5649 = vand.u32 %v3022, 4294901760
        %v5650 = vsub.f32 %v3022, %v5649
        %5651 = vmatmul.mubr.f32.gmra.mxu0 %v5650
        %v5652 = vpop.f32.mrf.mxu0
        %v5653 = vadd.f32 %v5400, %v5652
        %v5654 = vpop.f32.mrf.mxu0
        %v5655 = vadd.f32 %v5402, %v5654
        %5656 = vdwg.mxu0
        %v5657 = vand.u32 %v3087, 4294901760
        %5658 = vmatprep.subr.mxu0 %v5657
        %v5659 = vand.u32 %v3086, 4294901760
        %5660 = vmatpush1.msra.mxu0 %v5659
        %v5661 = vand.u32 %v3083, 4294901760
        %5662 = vmatprep.subr.mxu0 %v5661
        %v5663 = vand.u32 %v3082, 4294901760
        %5664 = vmatpush1.msra.mxu0 %v5663
        %v5665 = vand.u32 %v3079, 4294901760
        %5666 = vmatprep.subr.mxu0 %v5665
        %v5667 = vand.u32 %v3078, 4294901760
        %5668 = vmatpush1.msra.mxu0 %v5667
        %v5669 = vand.u32 %v3075, 4294901760
        %5670 = vmatprep.subr.mxu0 %v5669
        %v5671 = vand.u32 %v3074, 4294901760
        %5672 = vmatpush1.msra.mxu0 %v5671
        %v5673 = vand.u32 %v3071, 4294901760
        %5674 = vmatprep.subr.mxu0 %v5673
        %v5675 = vand.u32 %v3070, 4294901760
        %5676 = vmatpush1.msra.mxu0 %v5675
        %v5677 = vand.u32 %v3067, 4294901760
        %5678 = vmatprep.subr.mxu0 %v5677
        %v5679 = vand.u32 %v3066, 4294901760
        %5680 = vmatpush1.msra.mxu0 %v5679
        %v5681 = vand.u32 %v3063, 4294901760
        %5682 = vmatprep.subr.mxu0 %v5681
        %v5683 = vand.u32 %v3062, 4294901760
        %5684 = vmatpush1.msra.mxu0 %v5683
        %v5685 = vand.u32 %v3059, 4294901760
        %5686 = vmatprep.subr.mxu0 %v5685
        %v5687 = vand.u32 %v3058, 4294901760
        %5688 = vmatpush1.msra.mxu0 %v5687
        %v5689 = vand.u32 %v3055, 4294901760
        %5690 = vmatprep.subr.mxu0 %v5689
        %v5691 = vand.u32 %v3054, 4294901760
        %5692 = vmatpush1.msra.mxu0 %v5691
        %v5693 = vand.u32 %v3051, 4294901760
        %5694 = vmatprep.subr.mxu0 %v5693
        %v5695 = vand.u32 %v3050, 4294901760
        %5696 = vmatpush1.msra.mxu0 %v5695
        %v5697 = vand.u32 %v3047, 4294901760
        %5698 = vmatprep.subr.mxu0 %v5697
        %v5699 = vand.u32 %v3046, 4294901760
        %5700 = vmatpush1.msra.mxu0 %v5699
        %v5701 = vand.u32 %v3043, 4294901760
        %5702 = vmatprep.subr.mxu0 %v5701
        %v5703 = vand.u32 %v3042, 4294901760
        %5704 = vmatpush1.msra.mxu0 %v5703
        %v5705 = vand.u32 %v3039, 4294901760
        %5706 = vmatprep.subr.mxu0 %v5705
        %v5707 = vand.u32 %v3038, 4294901760
        %5708 = vmatpush1.msra.mxu0 %v5707
        %v5709 = vand.u32 %v3035, 4294901760
        %5710 = vmatprep.subr.mxu0 %v5709
        %v5711 = vand.u32 %v3034, 4294901760
        %5712 = vmatpush1.msra.mxu0 %v5711
        %v5713 = vand.u32 %v3031, 4294901760
        %5714 = vmatprep.subr.mxu0 %v5713
        %v5715 = vand.u32 %v3030, 4294901760
        %5716 = vmatpush1.msra.mxu0 %v5715
        %v5717 = vand.u32 %v3027, 4294901760
        %5718 = vmatprep.subr.mxu0 %v5717
        %v5719 = vand.u32 %v3026, 4294901760
        %5720 = vmatpush1.msra.mxu0 %v5719
        %v5721 = vand.u32 %v3151, 4294901760
        %5722 = vmatprep.subr.mxu0 %v5721
        %v5723 = vand.u32 %v3150, 4294901760
        %5724 = vmatpush2.msra.mxu0 %v5723
        %v5725 = vand.u32 %v3147, 4294901760
        %5726 = vmatprep.subr.mxu0 %v5725
        %v5727 = vand.u32 %v3146, 4294901760
        %5728 = vmatpush2.msra.mxu0 %v5727
        %v5729 = vand.u32 %v3143, 4294901760
        %5730 = vmatprep.subr.mxu0 %v5729
        %v5731 = vand.u32 %v3142, 4294901760
        %5732 = vmatpush2.msra.mxu0 %v5731
        %v5733 = vand.u32 %v3139, 4294901760
        %5734 = vmatprep.subr.mxu0 %v5733
        %v5735 = vand.u32 %v3138, 4294901760
        %5736 = vmatpush2.msra.mxu0 %v5735
        %v5737 = vand.u32 %v3135, 4294901760
        %5738 = vmatprep.subr.mxu0 %v5737
        %v5739 = vand.u32 %v3134, 4294901760
        %5740 = vmatpush2.msra.mxu0 %v5739
        %v5741 = vand.u32 %v3131, 4294901760
        %5742 = vmatprep.subr.mxu0 %v5741
        %v5743 = vand.u32 %v3130, 4294901760
        %5744 = vmatpush2.msra.mxu0 %v5743
        %v5745 = vand.u32 %v3127, 4294901760
        %5746 = vmatprep.subr.mxu0 %v5745
        %v5747 = vand.u32 %v3126, 4294901760
        %5748 = vmatpush2.msra.mxu0 %v5747
        %v5749 = vand.u32 %v3123, 4294901760
        %5750 = vmatprep.subr.mxu0 %v5749
        %v5751 = vand.u32 %v3122, 4294901760
        %5752 = vmatpush2.msra.mxu0 %v5751
        %v5753 = vand.u32 %v3119, 4294901760
        %5754 = vmatprep.subr.mxu0 %v5753
        %v5755 = vand.u32 %v3118, 4294901760
        %5756 = vmatpush2.msra.mxu0 %v5755
        %v5757 = vand.u32 %v3115, 4294901760
        %5758 = vmatprep.subr.mxu0 %v5757
        %v5759 = vand.u32 %v3114, 4294901760
        %5760 = vmatpush2.msra.mxu0 %v5759
        %v5761 = vand.u32 %v3111, 4294901760
        %5762 = vmatprep.subr.mxu0 %v5761
        %v5763 = vand.u32 %v3110, 4294901760
        %5764 = vmatpush2.msra.mxu0 %v5763
        %v5765 = vand.u32 %v3107, 4294901760
        %5766 = vmatprep.subr.mxu0 %v5765
        %v5767 = vand.u32 %v3106, 4294901760
        %5768 = vmatpush2.msra.mxu0 %v5767
        %v5769 = vand.u32 %v3103, 4294901760
        %5770 = vmatprep.subr.mxu0 %v5769
        %v5771 = vand.u32 %v3102, 4294901760
        %5772 = vmatpush2.msra.mxu0 %v5771
        %v5773 = vand.u32 %v3099, 4294901760
        %5774 = vmatprep.subr.mxu0 %v5773
        %v5775 = vand.u32 %v3098, 4294901760
        %5776 = vmatpush2.msra.mxu0 %v5775
        %v5777 = vand.u32 %v3095, 4294901760
        %5778 = vmatprep.subr.mxu0 %v5777
        %v5779 = vand.u32 %v3094, 4294901760
        %5780 = vmatpush2.msra.mxu0 %v5779
        %v5781 = vand.u32 %v3091, 4294901760
        %5782 = vmatprep.subr.mxu0 %v5781
        %v5783 = vand.u32 %v3090, 4294901760
        %5784 = vmatpush2.msra.mxu0 %v5783
        %v5785 = vand.u32 %v3013, 4294901760
        %v5786 = vsub.f32 %v3013, %v5785
        %v5787 = vand.u32 %v5786, 4294901760
        %5788 = vmatprep.mubr.f32.mxu0 %v5787
        %v5789 = vand.u32 %v3012, 4294901760
        %v5790 = vsub.f32 %v3012, %v5789
        %v5791 = vand.u32 %v5790, 4294901760
        %5792 = vmatmul.mubr.f32.gmra.mxu0 %v5791
        %v5793 = vpop.f32.mrf.mxu0
        %v5794 = vadd.f32 %v5603, %v5793
        %v5795 = vpop.f32.mrf.mxu0
        %v5796 = vadd.f32 %v5605, %v5795
        %v5797 = vand.u32 %v3015, 4294901760
        %v5798 = vsub.f32 %v3015, %v5797
        %v5799 = vand.u32 %v5798, 4294901760
        %5800 = vmatprep.mubr.f32.mxu0 %v5799
        %v5801 = vand.u32 %v3014, 4294901760
        %v5802 = vsub.f32 %v3014, %v5801
        %v5803 = vand.u32 %v5802, 4294901760
        %5804 = vmatmul.mubr.f32.gmra.mxu0 %v5803
        %v5805 = vpop.f32.mrf.mxu0
        %v5806 = vadd.f32 %v5613, %v5805
        %v5807 = vpop.f32.mrf.mxu0
        %v5808 = vadd.f32 %v5615, %v5807
        %v5809 = vand.u32 %v3017, 4294901760
        %v5810 = vsub.f32 %v3017, %v5809
        %v5811 = vand.u32 %v5810, 4294901760
        %5812 = vmatprep.mubr.f32.mxu0 %v5811
        %v5813 = vand.u32 %v3016, 4294901760
        %v5814 = vsub.f32 %v3016, %v5813
        %v5815 = vand.u32 %v5814, 4294901760
        %5816 = vmatmul.mubr.f32.gmra.mxu0 %v5815
        %v5817 = vpop.f32.mrf.mxu0
        %v5818 = vadd.f32 %v5623, %v5817
        %v5819 = vpop.f32.mrf.mxu0
        %v5820 = vadd.f32 %v5625, %v5819
        %v5821 = vand.u32 %v3019, 4294901760
        %v5822 = vsub.f32 %v3019, %v5821
        %v5823 = vand.u32 %v5822, 4294901760
        %5824 = vmatprep.mubr.f32.mxu0 %v5823
        %v5825 = vand.u32 %v3018, 4294901760
        %v5826 = vsub.f32 %v3018, %v5825
        %v5827 = vand.u32 %v5826, 4294901760
        %5828 = vmatmul.mubr.f32.gmra.mxu0 %v5827
        %v5829 = vpop.f32.mrf.mxu0
        %v5830 = vadd.f32 %v5633, %v5829
        %v5831 = vpop.f32.mrf.mxu0
        %v5832 = vadd.f32 %v5635, %v5831
        %v5833 = vand.u32 %v3021, 4294901760
        %v5834 = vsub.f32 %v3021, %v5833
        %v5835 = vand.u32 %v5834, 4294901760
        %5836 = vmatprep.mubr.f32.mxu0 %v5835
        %v5837 = vand.u32 %v3020, 4294901760
        %v5838 = vsub.f32 %v3020, %v5837
        %v5839 = vand.u32 %v5838, 4294901760
        %5840 = vmatmul.mubr.f32.gmra.mxu0 %v5839
        %v5841 = vpop.f32.mrf.mxu0
        %v5842 = vadd.f32 %v5643, %v5841
        %v5843 = vpop.f32.mrf.mxu0
        %v5844 = vadd.f32 %v5645, %v5843
        %v5845 = vand.u32 %v3023, 4294901760
        %v5846 = vsub.f32 %v3023, %v5845
        %v5847 = vand.u32 %v5846, 4294901760
        %5848 = vmatprep.mubr.f32.mxu0 %v5847
        %v5849 = vand.u32 %v3022, 4294901760
        %v5850 = vsub.f32 %v3022, %v5849
        %v5851 = vand.u32 %v5850, 4294901760
        %5852 = vmatmul.mubr.f32.gmra.mxu0 %v5851
        %v5853 = vpop.f32.mrf.mxu0
        %v5854 = vadd.f32 %v5653, %v5853
        %v5855 = vpop.f32.mrf.mxu0
        %v5856 = vadd.f32 %v5655, %v5855
        %5857 = vdwg.mxu0
        %v5858 = vand.u32 %v3087, 4294901760
        %v5859 = vsub.f32 %v3087, %v5858
        %v5860 = vand.u32 %v5859, 4294901760
        %5861 = vmatprep.subr.mxu0 %v5860
        %v5862 = vand.u32 %v3086, 4294901760
        %v5863 = vsub.f32 %v3086, %v5862
        %v5864 = vand.u32 %v5863, 4294901760
        %5865 = vmatpush1.msra.mxu0 %v5864
        %v5866 = vand.u32 %v3083, 4294901760
        %v5867 = vsub.f32 %v3083, %v5866
        %v5868 = vand.u32 %v5867, 4294901760
        %5869 = vmatprep.subr.mxu0 %v5868
        %v5870 = vand.u32 %v3082, 4294901760
        %v5871 = vsub.f32 %v3082, %v5870
        %v5872 = vand.u32 %v5871, 4294901760
        %5873 = vmatpush1.msra.mxu0 %v5872
        %v5874 = vand.u32 %v3079, 4294901760
        %v5875 = vsub.f32 %v3079, %v5874
        %v5876 = vand.u32 %v5875, 4294901760
        %5877 = vmatprep.subr.mxu0 %v5876
        %v5878 = vand.u32 %v3078, 4294901760
        %v5879 = vsub.f32 %v3078, %v5878
        %v5880 = vand.u32 %v5879, 4294901760
        %5881 = vmatpush1.msra.mxu0 %v5880
        %v5882 = vand.u32 %v3075, 4294901760
        %v5883 = vsub.f32 %v3075, %v5882
        %v5884 = vand.u32 %v5883, 4294901760
        %5885 = vmatprep.subr.mxu0 %v5884
        %v5886 = vand.u32 %v3074, 4294901760
        %v5887 = vsub.f32 %v3074, %v5886
        %v5888 = vand.u32 %v5887, 4294901760
        %5889 = vmatpush1.msra.mxu0 %v5888
        %v5890 = vand.u32 %v3071, 4294901760
        %v5891 = vsub.f32 %v3071, %v5890
        %v5892 = vand.u32 %v5891, 4294901760
        %5893 = vmatprep.subr.mxu0 %v5892
        %v5894 = vand.u32 %v3070, 4294901760
        %v5895 = vsub.f32 %v3070, %v5894
        %v5896 = vand.u32 %v5895, 4294901760
        %5897 = vmatpush1.msra.mxu0 %v5896
        %v5898 = vand.u32 %v3067, 4294901760
        %v5899 = vsub.f32 %v3067, %v5898
        %v5900 = vand.u32 %v5899, 4294901760
        %5901 = vmatprep.subr.mxu0 %v5900
        %v5902 = vand.u32 %v3066, 4294901760
        %v5903 = vsub.f32 %v3066, %v5902
        %v5904 = vand.u32 %v5903, 4294901760
        %5905 = vmatpush1.msra.mxu0 %v5904
        %v5906 = vand.u32 %v3063, 4294901760
        %v5907 = vsub.f32 %v3063, %v5906
        %v5908 = vand.u32 %v5907, 4294901760
        %5909 = vmatprep.subr.mxu0 %v5908
        %v5910 = vand.u32 %v3062, 4294901760
        %v5911 = vsub.f32 %v3062, %v5910
        %v5912 = vand.u32 %v5911, 4294901760
        %5913 = vmatpush1.msra.mxu0 %v5912
        %v5914 = vand.u32 %v3059, 4294901760
        %v5915 = vsub.f32 %v3059, %v5914
        %v5916 = vand.u32 %v5915, 4294901760
        %5917 = vmatprep.subr.mxu0 %v5916
        %v5918 = vand.u32 %v3058, 4294901760
        %v5919 = vsub.f32 %v3058, %v5918
        %v5920 = vand.u32 %v5919, 4294901760
        %5921 = vmatpush1.msra.mxu0 %v5920
        %v5922 = vand.u32 %v3055, 4294901760
        %v5923 = vsub.f32 %v3055, %v5922
        %v5924 = vand.u32 %v5923, 4294901760
        %5925 = vmatprep.subr.mxu0 %v5924
        %v5926 = vand.u32 %v3054, 4294901760
        %v5927 = vsub.f32 %v3054, %v5926
        %v5928 = vand.u32 %v5927, 4294901760
        %5929 = vmatpush1.msra.mxu0 %v5928
        %v5930 = vand.u32 %v3051, 4294901760
        %v5931 = vsub.f32 %v3051, %v5930
        %v5932 = vand.u32 %v5931, 4294901760
        %5933 = vmatprep.subr.mxu0 %v5932
        %v5934 = vand.u32 %v3050, 4294901760
        %v5935 = vsub.f32 %v3050, %v5934
        %v5936 = vand.u32 %v5935, 4294901760
        %5937 = vmatpush1.msra.mxu0 %v5936
        %v5938 = vand.u32 %v3047, 4294901760
        %v5939 = vsub.f32 %v3047, %v5938
        %v5940 = vand.u32 %v5939, 4294901760
        %5941 = vmatprep.subr.mxu0 %v5940
        %v5942 = vand.u32 %v3046, 4294901760
        %v5943 = vsub.f32 %v3046, %v5942
        %v5944 = vand.u32 %v5943, 4294901760
        %5945 = vmatpush1.msra.mxu0 %v5944
        %v5946 = vand.u32 %v3043, 4294901760
        %v5947 = vsub.f32 %v3043, %v5946
        %v5948 = vand.u32 %v5947, 4294901760
        %5949 = vmatprep.subr.mxu0 %v5948
        %v5950 = vand.u32 %v3042, 4294901760
        %v5951 = vsub.f32 %v3042, %v5950
        %v5952 = vand.u32 %v5951, 4294901760
        %5953 = vmatpush1.msra.mxu0 %v5952
        %v5954 = vand.u32 %v3039, 4294901760
        %v5955 = vsub.f32 %v3039, %v5954
        %v5956 = vand.u32 %v5955, 4294901760
        %5957 = vmatprep.subr.mxu0 %v5956
        %v5958 = vand.u32 %v3038, 4294901760
        %v5959 = vsub.f32 %v3038, %v5958
        %v5960 = vand.u32 %v5959, 4294901760
        %5961 = vmatpush1.msra.mxu0 %v5960
        %v5962 = vand.u32 %v3035, 4294901760
        %v5963 = vsub.f32 %v3035, %v5962
        %v5964 = vand.u32 %v5963, 4294901760
        %5965 = vmatprep.subr.mxu0 %v5964
        %v5966 = vand.u32 %v3034, 4294901760
        %v5967 = vsub.f32 %v3034, %v5966
        %v5968 = vand.u32 %v5967, 4294901760
        %5969 = vmatpush1.msra.mxu0 %v5968
        %v5970 = vand.u32 %v3031, 4294901760
        %v5971 = vsub.f32 %v3031, %v5970
        %v5972 = vand.u32 %v5971, 4294901760
        %5973 = vmatprep.subr.mxu0 %v5972
        %v5974 = vand.u32 %v3030, 4294901760
        %v5975 = vsub.f32 %v3030, %v5974
        %v5976 = vand.u32 %v5975, 4294901760
        %5977 = vmatpush1.msra.mxu0 %v5976
        %v5978 = vand.u32 %v3027, 4294901760
        %v5979 = vsub.f32 %v3027, %v5978
        %v5980 = vand.u32 %v5979, 4294901760
        %5981 = vmatprep.subr.mxu0 %v5980
        %v5982 = vand.u32 %v3026, 4294901760
        %v5983 = vsub.f32 %v3026, %v5982
        %v5984 = vand.u32 %v5983, 4294901760
        %5985 = vmatpush1.msra.mxu0 %v5984
        %v5986 = vand.u32 %v3151, 4294901760
        %v5987 = vsub.f32 %v3151, %v5986
        %v5988 = vand.u32 %v5987, 4294901760
        %5989 = vmatprep.subr.mxu0 %v5988
        %v5990 = vand.u32 %v3150, 4294901760
        %v5991 = vsub.f32 %v3150, %v5990
        %v5992 = vand.u32 %v5991, 4294901760
        %5993 = vmatpush2.msra.mxu0 %v5992
        %v5994 = vand.u32 %v3147, 4294901760
        %v5995 = vsub.f32 %v3147, %v5994
        %v5996 = vand.u32 %v5995, 4294901760
        %5997 = vmatprep.subr.mxu0 %v5996
        %v5998 = vand.u32 %v3146, 4294901760
        %v5999 = vsub.f32 %v3146, %v5998
        %v6000 = vand.u32 %v5999, 4294901760
        %6001 = vmatpush2.msra.mxu0 %v6000
        %v6002 = vand.u32 %v3143, 4294901760
        %v6003 = vsub.f32 %v3143, %v6002
        %v6004 = vand.u32 %v6003, 4294901760
        %6005 = vmatprep.subr.mxu0 %v6004
        %v6006 = vand.u32 %v3142, 4294901760
        %v6007 = vsub.f32 %v3142, %v6006
        %v6008 = vand.u32 %v6007, 4294901760
        %6009 = vmatpush2.msra.mxu0 %v6008
        %v6010 = vand.u32 %v3139, 4294901760
        %v6011 = vsub.f32 %v3139, %v6010
        %v6012 = vand.u32 %v6011, 4294901760
        %6013 = vmatprep.subr.mxu0 %v6012
        %v6014 = vand.u32 %v3138, 4294901760
        %v6015 = vsub.f32 %v3138, %v6014
        %v6016 = vand.u32 %v6015, 4294901760
        %6017 = vmatpush2.msra.mxu0 %v6016
        %v6018 = vand.u32 %v3135, 4294901760
        %v6019 = vsub.f32 %v3135, %v6018
        %v6020 = vand.u32 %v6019, 4294901760
        %6021 = vmatprep.subr.mxu0 %v6020
        %v6022 = vand.u32 %v3134, 4294901760
        %v6023 = vsub.f32 %v3134, %v6022
        %v6024 = vand.u32 %v6023, 4294901760
        %6025 = vmatpush2.msra.mxu0 %v6024
        %v6026 = vand.u32 %v3131, 4294901760
        %v6027 = vsub.f32 %v3131, %v6026
        %v6028 = vand.u32 %v6027, 4294901760
        %6029 = vmatprep.subr.mxu0 %v6028
        %v6030 = vand.u32 %v3130, 4294901760
        %v6031 = vsub.f32 %v3130, %v6030
        %v6032 = vand.u32 %v6031, 4294901760
        %6033 = vmatpush2.msra.mxu0 %v6032
        %v6034 = vand.u32 %v3127, 4294901760
        %v6035 = vsub.f32 %v3127, %v6034
        %v6036 = vand.u32 %v6035, 4294901760
        %6037 = vmatprep.subr.mxu0 %v6036
        %v6038 = vand.u32 %v3126, 4294901760
        %v6039 = vsub.f32 %v3126, %v6038
        %v6040 = vand.u32 %v6039, 4294901760
        %6041 = vmatpush2.msra.mxu0 %v6040
        %v6042 = vand.u32 %v3123, 4294901760
        %v6043 = vsub.f32 %v3123, %v6042
        %v6044 = vand.u32 %v6043, 4294901760
        %6045 = vmatprep.subr.mxu0 %v6044
        %v6046 = vand.u32 %v3122, 4294901760
        %v6047 = vsub.f32 %v3122, %v6046
        %v6048 = vand.u32 %v6047, 4294901760
        %6049 = vmatpush2.msra.mxu0 %v6048
        %v6050 = vand.u32 %v3119, 4294901760
        %v6051 = vsub.f32 %v3119, %v6050
        %v6052 = vand.u32 %v6051, 4294901760
        %6053 = vmatprep.subr.mxu0 %v6052
        %v6054 = vand.u32 %v3118, 4294901760
        %v6055 = vsub.f32 %v3118, %v6054
        %v6056 = vand.u32 %v6055, 4294901760
        %6057 = vmatpush2.msra.mxu0 %v6056
        %v6058 = vand.u32 %v3115, 4294901760
        %v6059 = vsub.f32 %v3115, %v6058
        %v6060 = vand.u32 %v6059, 4294901760
        %6061 = vmatprep.subr.mxu0 %v6060
        %v6062 = vand.u32 %v3114, 4294901760
        %v6063 = vsub.f32 %v3114, %v6062
        %v6064 = vand.u32 %v6063, 4294901760
        %6065 = vmatpush2.msra.mxu0 %v6064
        %v6066 = vand.u32 %v3111, 4294901760
        %v6067 = vsub.f32 %v3111, %v6066
        %v6068 = vand.u32 %v6067, 4294901760
        %6069 = vmatprep.subr.mxu0 %v6068
        %v6070 = vand.u32 %v3110, 4294901760
        %v6071 = vsub.f32 %v3110, %v6070
        %v6072 = vand.u32 %v6071, 4294901760
        %6073 = vmatpush2.msra.mxu0 %v6072
        %v6074 = vand.u32 %v3107, 4294901760
        %v6075 = vsub.f32 %v3107, %v6074
        %v6076 = vand.u32 %v6075, 4294901760
        %6077 = vmatprep.subr.mxu0 %v6076
        %v6078 = vand.u32 %v3106, 4294901760
        %v6079 = vsub.f32 %v3106, %v6078
        %v6080 = vand.u32 %v6079, 4294901760
        %6081 = vmatpush2.msra.mxu0 %v6080
        %v6082 = vand.u32 %v3103, 4294901760
        %v6083 = vsub.f32 %v3103, %v6082
        %v6084 = vand.u32 %v6083, 4294901760
        %6085 = vmatprep.subr.mxu0 %v6084
        %v6086 = vand.u32 %v3102, 4294901760
        %v6087 = vsub.f32 %v3102, %v6086
        %v6088 = vand.u32 %v6087, 4294901760
        %6089 = vmatpush2.msra.mxu0 %v6088
        %v6090 = vand.u32 %v3099, 4294901760
        %v6091 = vsub.f32 %v3099, %v6090
        %v6092 = vand.u32 %v6091, 4294901760
        %6093 = vmatprep.subr.mxu0 %v6092
        %v6094 = vand.u32 %v3098, 4294901760
        %v6095 = vsub.f32 %v3098, %v6094
        %v6096 = vand.u32 %v6095, 4294901760
        %6097 = vmatpush2.msra.mxu0 %v6096
        %v6098 = vand.u32 %v3095, 4294901760
        %v6099 = vsub.f32 %v3095, %v6098
        %v6100 = vand.u32 %v6099, 4294901760
        %6101 = vmatprep.subr.mxu0 %v6100
        %v6102 = vand.u32 %v3094, 4294901760
        %v6103 = vsub.f32 %v3094, %v6102
        %v6104 = vand.u32 %v6103, 4294901760
        %6105 = vmatpush2.msra.mxu0 %v6104
        %v6106 = vand.u32 %v3091, 4294901760
        %v6107 = vsub.f32 %v3091, %v6106
        %v6108 = vand.u32 %v6107, 4294901760
        %6109 = vmatprep.subr.mxu0 %v6108
        %v6110 = vand.u32 %v3090, 4294901760
        %v6111 = vsub.f32 %v3090, %v6110
        %v6112 = vand.u32 %v6111, 4294901760
        %6113 = vmatpush2.msra.mxu0 %v6112
        %v6114 = vand.u32 %v3013, 4294901760
        %6115 = vmatprep.mubr.f32.mxu0 %v6114
        %v6116 = vand.u32 %v3012, 4294901760
        %6117 = vmatmul.mubr.f32.gmra.mxu0 %v6116
        %v6118 = vpop.f32.mrf.mxu0
        %v6119 = vadd.f32 %v5794, %v6118
        %v6120 = vpop.f32.mrf.mxu0
        %v6121 = vadd.f32 %v5796, %v6120
        %v6122 = vand.u32 %v3015, 4294901760
        %6123 = vmatprep.mubr.f32.mxu0 %v6122
        %v6124 = vand.u32 %v3014, 4294901760
        %6125 = vmatmul.mubr.f32.gmra.mxu0 %v6124
        %v6126 = vpop.f32.mrf.mxu0
        %v6127 = vadd.f32 %v5806, %v6126
        %v6128 = vpop.f32.mrf.mxu0
        %v6129 = vadd.f32 %v5808, %v6128
        %v6130 = vand.u32 %v3017, 4294901760
        %6131 = vmatprep.mubr.f32.mxu0 %v6130
        %v6132 = vand.u32 %v3016, 4294901760
        %6133 = vmatmul.mubr.f32.gmra.mxu0 %v6132
        %v6134 = vpop.f32.mrf.mxu0
        %v6135 = vadd.f32 %v5818, %v6134
        %v6136 = vpop.f32.mrf.mxu0
        %v6137 = vadd.f32 %v5820, %v6136
        %v6138 = vand.u32 %v3019, 4294901760
        %6139 = vmatprep.mubr.f32.mxu0 %v6138
        %v6140 = vand.u32 %v3018, 4294901760
        %6141 = vmatmul.mubr.f32.gmra.mxu0 %v6140
        %v6142 = vpop.f32.mrf.mxu0
        %v6143 = vadd.f32 %v5830, %v6142
        %v6144 = vpop.f32.mrf.mxu0
        %v6145 = vadd.f32 %v5832, %v6144
        %v6146 = vand.u32 %v3021, 4294901760
        %6147 = vmatprep.mubr.f32.mxu0 %v6146
        %v6148 = vand.u32 %v3020, 4294901760
        %6149 = vmatmul.mubr.f32.gmra.mxu0 %v6148
        %v6150 = vpop.f32.mrf.mxu0
        %v6151 = vadd.f32 %v5842, %v6150
        %v6152 = vpop.f32.mrf.mxu0
        %v6153 = vadd.f32 %v5844, %v6152
        %v6154 = vand.u32 %v3023, 4294901760
        %6155 = vmatprep.mubr.f32.mxu0 %v6154
        %v6156 = vand.u32 %v3022, 4294901760
        %6157 = vmatmul.mubr.f32.gmra.mxu0 %v6156
        %v6158 = vpop.f32.mrf.mxu0
        %v6159 = vadd.f32 %v5854, %v6158
        %v6160 = vpop.f32.mrf.mxu0
        %v6161 = vadd.f32 %v5856, %v6160
        %6162 = vdwg.mxu0
        %v6163 = vand.u32 %v3087, 4294901760
        %6164 = vmatprep.subr.mxu0 %v6163
        %v6165 = vand.u32 %v3086, 4294901760
        %6166 = vmatpush1.msra.mxu0 %v6165
        %v6167 = vand.u32 %v3083, 4294901760
        %6168 = vmatprep.subr.mxu0 %v6167
        %v6169 = vand.u32 %v3082, 4294901760
        %6170 = vmatpush1.msra.mxu0 %v6169
        %v6171 = vand.u32 %v3079, 4294901760
        %6172 = vmatprep.subr.mxu0 %v6171
        %v6173 = vand.u32 %v3078, 4294901760
        %6174 = vmatpush1.msra.mxu0 %v6173
        %v6175 = vand.u32 %v3075, 4294901760
        %6176 = vmatprep.subr.mxu0 %v6175
        %v6177 = vand.u32 %v3074, 4294901760
        %6178 = vmatpush1.msra.mxu0 %v6177
        %v6179 = vand.u32 %v3071, 4294901760
        %6180 = vmatprep.subr.mxu0 %v6179
        %v6181 = vand.u32 %v3070, 4294901760
        %6182 = vmatpush1.msra.mxu0 %v6181
        %v6183 = vand.u32 %v3067, 4294901760
        %6184 = vmatprep.subr.mxu0 %v6183
        %v6185 = vand.u32 %v3066, 4294901760
        %6186 = vmatpush1.msra.mxu0 %v6185
        %v6187 = vand.u32 %v3063, 4294901760
        %6188 = vmatprep.subr.mxu0 %v6187
        %v6189 = vand.u32 %v3062, 4294901760
        %6190 = vmatpush1.msra.mxu0 %v6189
        %v6191 = vand.u32 %v3059, 4294901760
        %6192 = vmatprep.subr.mxu0 %v6191
        %v6193 = vand.u32 %v3058, 4294901760
        %6194 = vmatpush1.msra.mxu0 %v6193
        %v6195 = vand.u32 %v3055, 4294901760
        %6196 = vmatprep.subr.mxu0 %v6195
        %v6197 = vand.u32 %v3054, 4294901760
        %6198 = vmatpush1.msra.mxu0 %v6197
        %v6199 = vand.u32 %v3051, 4294901760
        %6200 = vmatprep.subr.mxu0 %v6199
        %v6201 = vand.u32 %v3050, 4294901760
        %6202 = vmatpush1.msra.mxu0 %v6201
        %v6203 = vand.u32 %v3047, 4294901760
        %6204 = vmatprep.subr.mxu0 %v6203
        %v6205 = vand.u32 %v3046, 4294901760
        %6206 = vmatpush1.msra.mxu0 %v6205
        %v6207 = vand.u32 %v3043, 4294901760
        %6208 = vmatprep.subr.mxu0 %v6207
        %v6209 = vand.u32 %v3042, 4294901760
        %6210 = vmatpush1.msra.mxu0 %v6209
        %v6211 = vand.u32 %v3039, 4294901760
        %6212 = vmatprep.subr.mxu0 %v6211
        %v6213 = vand.u32 %v3038, 4294901760
        %6214 = vmatpush1.msra.mxu0 %v6213
        %v6215 = vand.u32 %v3035, 4294901760
        %6216 = vmatprep.subr.mxu0 %v6215
        %v6217 = vand.u32 %v3034, 4294901760
        %6218 = vmatpush1.msra.mxu0 %v6217
        %v6219 = vand.u32 %v3031, 4294901760
        %6220 = vmatprep.subr.mxu0 %v6219
        %v6221 = vand.u32 %v3030, 4294901760
        %6222 = vmatpush1.msra.mxu0 %v6221
        %v6223 = vand.u32 %v3027, 4294901760
        %6224 = vmatprep.subr.mxu0 %v6223
        %v6225 = vand.u32 %v3026, 4294901760
        %6226 = vmatpush1.msra.mxu0 %v6225
        %v6227 = vand.u32 %v3151, 4294901760
        %6228 = vmatprep.subr.mxu0 %v6227
        %v6229 = vand.u32 %v3150, 4294901760
        %6230 = vmatpush2.msra.mxu0 %v6229
        %v6231 = vand.u32 %v3147, 4294901760
        %6232 = vmatprep.subr.mxu0 %v6231
        %v6233 = vand.u32 %v3146, 4294901760
        %6234 = vmatpush2.msra.mxu0 %v6233
        %v6235 = vand.u32 %v3143, 4294901760
        %6236 = vmatprep.subr.mxu0 %v6235
        %v6237 = vand.u32 %v3142, 4294901760
        %6238 = vmatpush2.msra.mxu0 %v6237
        %v6239 = vand.u32 %v3139, 4294901760
        %6240 = vmatprep.subr.mxu0 %v6239
        %v6241 = vand.u32 %v3138, 4294901760
        %6242 = vmatpush2.msra.mxu0 %v6241
        %v6243 = vand.u32 %v3135, 4294901760
        %6244 = vmatprep.subr.mxu0 %v6243
        %v6245 = vand.u32 %v3134, 4294901760
        %6246 = vmatpush2.msra.mxu0 %v6245
        %v6247 = vand.u32 %v3131, 4294901760
        %6248 = vmatprep.subr.mxu0 %v6247
        %v6249 = vand.u32 %v3130, 4294901760
        %6250 = vmatpush2.msra.mxu0 %v6249
        %v6251 = vand.u32 %v3127, 4294901760
        %6252 = vmatprep.subr.mxu0 %v6251
        %v6253 = vand.u32 %v3126, 4294901760
        %6254 = vmatpush2.msra.mxu0 %v6253
        %v6255 = vand.u32 %v3123, 4294901760
        %6256 = vmatprep.subr.mxu0 %v6255
        %v6257 = vand.u32 %v3122, 4294901760
        %6258 = vmatpush2.msra.mxu0 %v6257
        %v6259 = vand.u32 %v3119, 4294901760
        %6260 = vmatprep.subr.mxu0 %v6259
        %v6261 = vand.u32 %v3118, 4294901760
        %6262 = vmatpush2.msra.mxu0 %v6261
        %v6263 = vand.u32 %v3115, 4294901760
        %6264 = vmatprep.subr.mxu0 %v6263
        %v6265 = vand.u32 %v3114, 4294901760
        %6266 = vmatpush2.msra.mxu0 %v6265
        %v6267 = vand.u32 %v3111, 4294901760
        %6268 = vmatprep.subr.mxu0 %v6267
        %v6269 = vand.u32 %v3110, 4294901760
        %6270 = vmatpush2.msra.mxu0 %v6269
        %v6271 = vand.u32 %v3107, 4294901760
        %6272 = vmatprep.subr.mxu0 %v6271
        %v6273 = vand.u32 %v3106, 4294901760
        %6274 = vmatpush2.msra.mxu0 %v6273
        %v6275 = vand.u32 %v3103, 4294901760
        %6276 = vmatprep.subr.mxu0 %v6275
        %v6277 = vand.u32 %v3102, 4294901760
        %6278 = vmatpush2.msra.mxu0 %v6277
        %v6279 = vand.u32 %v3099, 4294901760
        %6280 = vmatprep.subr.mxu0 %v6279
        %v6281 = vand.u32 %v3098, 4294901760
        %6282 = vmatpush2.msra.mxu0 %v6281
        %v6283 = vand.u32 %v3095, 4294901760
        %6284 = vmatprep.subr.mxu0 %v6283
        %v6285 = vand.u32 %v3094, 4294901760
        %6286 = vmatpush2.msra.mxu0 %v6285
        %v6287 = vand.u32 %v3091, 4294901760
        %6288 = vmatprep.subr.mxu0 %v6287
        %v6289 = vand.u32 %v3090, 4294901760
        %6290 = vmatpush2.msra.mxu0 %v6289
        %v6291 = vand.u32 %v3013, 4294901760
        %6292 = vmatprep.mubr.f32.mxu0 %v6291
        %v6293 = vand.u32 %v3012, 4294901760
        %6294 = vmatmul.mubr.f32.gmra.mxu0 %v6293
        %v6295 = vpop.f32.mrf.mxu0
        %v6296 = vadd.f32 %v6119, %v6295
        %v6297 = vpop.f32.mrf.mxu0
        %v6298 = vadd.f32 %v6121, %v6297
        %v6299 = vand.u32 %v3015, 4294901760
        %6300 = vmatprep.mubr.f32.mxu0 %v6299
        %v6301 = vand.u32 %v3014, 4294901760
        %6302 = vmatmul.mubr.f32.gmra.mxu0 %v6301
        %v6303 = vpop.f32.mrf.mxu0
        %v6304 = vadd.f32 %v6127, %v6303
        %v6305 = vpop.f32.mrf.mxu0
        %v6306 = vadd.f32 %v6129, %v6305
        %v6307 = vand.u32 %v3017, 4294901760
        %6308 = vmatprep.mubr.f32.mxu0 %v6307
        %v6309 = vand.u32 %v3016, 4294901760
        %6310 = vmatmul.mubr.f32.gmra.mxu0 %v6309
        %v6311 = vpop.f32.mrf.mxu0
        %v6312 = vadd.f32 %v6135, %v6311
        %v6313 = vpop.f32.mrf.mxu0
        %v6314 = vadd.f32 %v6137, %v6313
        %v6315 = vand.u32 %v3019, 4294901760
        %6316 = vmatprep.mubr.f32.mxu0 %v6315
        %v6317 = vand.u32 %v3018, 4294901760
        %6318 = vmatmul.mubr.f32.gmra.mxu0 %v6317
        %v6319 = vpop.f32.mrf.mxu0
        %v6320 = vadd.f32 %v6143, %v6319
        %v6321 = vpop.f32.mrf.mxu0
        %v6322 = vadd.f32 %v6145, %v6321
        %v6323 = vand.u32 %v3021, 4294901760
        %6324 = vmatprep.mubr.f32.mxu0 %v6323
        %v6325 = vand.u32 %v3020, 4294901760
        %6326 = vmatmul.mubr.f32.gmra.mxu0 %v6325
        %v6327 = vpop.f32.mrf.mxu0
        %v6328 = vadd.f32 %v6151, %v6327
        %v6329 = vpop.f32.mrf.mxu0
        %v6330 = vadd.f32 %v6153, %v6329
        %v6331 = vand.u32 %v3023, 4294901760
        %6332 = vmatprep.mubr.f32.mxu0 %v6331
        %v6333 = vand.u32 %v3022, 4294901760
        %6334 = vmatmul.mubr.f32.gmra.mxu0 %v6333
        %v6335 = vpop.f32.mrf.mxu0
        %v6336 = vadd.f32 %v6159, %v6335
        %v6337 = vpop.f32.mrf.mxu0
        %v6338 = vadd.f32 %v6161, %v6337
        %6339 = vdwg.mxu0
        %v6340 = vadd.f32 %v4702, %v6320
        %v6341 = vadd.f32 %v4704, %v6322
        %v6342 = vadd.f32 %v4710, %v6328
        %v6343 = vadd.f32 %v4712, %v6330
        %v6344 = vadd.f32 %v4718, %v6336
        %v6345 = vadd.f32 %v4720, %v6338
        %v6346 = vsub.f32 %v4726, %v6296
        %v6347 = vsub.f32 %v4728, %v6298
        %v6348 = vsub.f32 %v4734, %v6304
        %v6349 = vsub.f32 %v4736, %v6306
        %v6350 = vsub.f32 %v4742, %v6312
        %v6351 = vsub.f32 %v4744, %v6314
        %v6352 = vmul.f32 %v6340, %v6340
        %v6353 = vmul.f32 %v6341, %v6341
        %v6354 = vmul.f32 %v6342, %v6342
        %v6355 = vmul.f32 %v6343, %v6343
        %v6356 = vmul.f32 %v6344, %v6344
        %v6357 = vmul.f32 %v6345, %v6345
        %v6358 = vmul.f32 %v6346, %v6346
        %v6359 = vmul.f32 %v6347, %v6347
        %v6360 = vmul.f32 %v6348, %v6348
        %v6361 = vmul.f32 %v6349, %v6349
        %v6362 = vmul.f32 %v6350, %v6350
        %v6363 = vmul.f32 %v6351, %v6351
        %v6364 = vadd.f32 %v6352, %v6358
        %v6365 = vadd.f32 %v6353, %v6359
        %v6366 = vadd.f32 %v6354, %v6360
        %v6367 = vadd.f32 %v6355, %v6361
        %v6368 = vadd.f32 %v6356, %v6362
        %v6369 = vadd.f32 %v6357, %v6363
        %v6370 = vrsqrt.pop %v6364
        %v6371 = vmul.f32 %v6364, %v6370
        %vm6372 = vcmp.eq.f32.partialorder %v6364, inf
        %v6373 = vsel %vm6372, %v6364, %v6371
        %vm6374 = vcmp.eq.f32.partialorder %v6364, 0.0
        %v6375 = vand.u32 %v6364, 2147483648
        %v6376 = vsel %vm6374, %v6375, %v6373
        %v6377 = vrsqrt.pop %v6365
        %v6378 = vmul.f32 %v6365, %v6377
        %vm6379 = vcmp.eq.f32.partialorder %v6365, inf
        %v6380 = vsel %vm6379, %v6365, %v6378
        %vm6381 = vcmp.eq.f32.partialorder %v6365, 0.0
        %v6382 = vand.u32 %v6365, 2147483648
        %v6383 = vsel %vm6381, %v6382, %v6380
        %v6384 = vrsqrt.pop %v6366
        %v6385 = vmul.f32 %v6366, %v6384
        %vm6386 = vcmp.eq.f32.partialorder %v6366, inf
        %v6387 = vsel %vm6386, %v6366, %v6385
        %vm6388 = vcmp.eq.f32.partialorder %v6366, 0.0
        %v6389 = vand.u32 %v6366, 2147483648
        %v6390 = vsel %vm6388, %v6389, %v6387
        %v6391 = vrsqrt.pop %v6367
        %v6392 = vmul.f32 %v6367, %v6391
        %vm6393 = vcmp.eq.f32.partialorder %v6367, inf
        %v6394 = vsel %vm6393, %v6367, %v6392
        %vm6395 = vcmp.eq.f32.partialorder %v6367, 0.0
        %v6396 = vand.u32 %v6367, 2147483648
        %v6397 = vsel %vm6395, %v6396, %v6394
        %v6398 = vrsqrt.pop %v6368
        %v6399 = vmul.f32 %v6368, %v6398
        %vm6400 = vcmp.eq.f32.partialorder %v6368, inf
        %v6401 = vsel %vm6400, %v6368, %v6399
        %vm6402 = vcmp.eq.f32.partialorder %v6368, 0.0
        %v6403 = vand.u32 %v6368, 2147483648
        %v6404 = vsel %vm6402, %v6403, %v6401
        %v6405 = vrsqrt.pop %v6369
        %v6406 = vmul.f32 %v6369, %v6405
        %vm6407 = vcmp.eq.f32.partialorder %v6369, inf
        %v6408 = vsel %vm6407, %v6369, %v6406
        %vm6409 = vcmp.eq.f32.partialorder %v6369, 0.0
        %v6410 = vand.u32 %v6369, 2147483648
        %v6411 = vsel %vm6409, %v6410, %v6408
        %v6412 = vadd.f32 %v6376, 1e-06
        %v6413 = vadd.f32 %v6383, 1e-06
        %v6414 = vadd.f32 %v6390, 1e-06
        %v6415 = vadd.f32 %v6397, 1e-06
        %v6416 = vadd.f32 %v6404, 1e-06
        %v6417 = vadd.f32 %v6411, 1e-06
        %v6418 = vlog2.pop %v6412
        %v6419 = vmul.f32 %v6418, 0.6931472
        %v6420 = vlog2.pop %v6413
        %v6421 = vmul.f32 %v6420, 0.6931472
        %v6422 = vlog2.pop %v6414
        %v6423 = vmul.f32 %v6422, 0.6931472
        %v6424 = vlog2.pop %v6415
        %v6425 = vmul.f32 %v6424, 0.6931472
        %v6426 = vlog2.pop %v6416
        %v6427 = vmul.f32 %v6426, 0.6931472
        %v6428 = vlog2.pop %v6417
        %v6429 = vmul.f32 %v6428, 0.6931472
        %6430 = vst [vmem:[%s239] sm:$0xff] %v6419
        %6431 = vst [vmem:[%s239 + $0x8] sm:$0xff] %v6421
        %6432 = vst [vmem:[%s239 + $0x10] sm:$0xff] %v6423
        %6433 = vst [vmem:[%s239 + $0x18] sm:$0xff] %v6425
        %6434 = vst [vmem:[%s239 + $0x20] sm:$0xff] %v6427
        %6435 = vst [vmem:[%s239 + $0x28] sm:$0xff] %v6429
        %p6436 = scmp.lt.s32.totalorder %s18, 1
        %s6437 = scalar_select %p6436, %s18, 1
        %s6438 = smul.addr %s6437, 6
        %s6439 = smul.addr %s6438, 8
        %s6440 = scalar_lea.vmem %s5, %s6439
        // Predicated region
        $region45: #{virtual_radar_forward.1} parent=39 // pred_check
          %p6441 = pneg %p146
        $region46: #{virtual_radar_forward.1} parent=39 // pred_check_branch
          %6443 = sbr.rel (%p6441) target = $region48
        $region47: #{virtual_radar_forward.1} parent=39 // pred_region
          _
        $region48: #{virtual_radar_forward.1} parent=39 // pred_fallthru
          _
      $region40: #{virtual_radar_forward.1} parent=5 // pred_fallthru
        _
      %p6444 = scmp.le.s32.totalorder 2, %s13
      // Predicated region
      $region49: #{virtual_radar_forward.1} parent=5 // pred_check
        %p6445 = pneg %p6444
      $region50: #{virtual_radar_forward.1} parent=5 // pred_check_branch
        %6447 = sbr.rel (%p6445) target = $region52
      $region51: #{virtual_radar_forward.1} parent=5 // pred_region
        %s6448 = ssub.s32 %s13, 2
        // Predicated region
        $region53: #{virtual_radar_forward.1} parent=51 // pred_check
          %p6449 = pneg %p152
        $region54: #{virtual_radar_forward.1} parent=51 // pred_check_branch
          %6451 = sbr.rel (%p6449) target = $region56
        $region55: #{virtual_radar_forward.1} parent=51 // pred_region
          %p6452 = scmp.lt.s32.totalorder %s19, 1
          %s6453 = scalar_select %p6452, %s19, 1
          %s6454 = smul.addr %s6453, 6
          %s6455 = smul.addr %s6454, 8
          %s6456 = scalar_lea.vmem %s5, %s6455
        $region56: #{virtual_radar_forward.1} parent=51 // pred_fallthru
          _
      $region52: #{virtual_radar_forward.1} parent=5 // pred_fallthru
        _
    $region6: #{virtual_radar_forward.1} parent=1 // loop_footer
      %s17 = sadd.s32 1, %s13
    $region7: #{virtual_radar_forward.1} parent=1 // loop_footer_branch
      %12 = sbr.rel target = $region3
    $region8: #{virtual_radar_forward.1} parent=1 // loop_exit
      _
    %6457 = vsyncpa [#allocation6], 1
    %s6458 = scalar_lea.sflag [#allocation6], 1
    %6459 = vsyncpa %s6458, 1

</llo_original>
